<compile_context>
chip_gen: v7x
topology: tpu7x:2x2x1
jax: 0.10.0
libtpu: 0.0.40
codegen_flags: <defaults>
</compile_context>

<pallas_src>
import numpy as np

import jax
import jax.numpy as jnp
from jax import lax
from jax.experimental import pallas as pl
from jax.experimental.pallas import tpu as pltpu

EPS = 1e-5
NB_IMAGES = 8                      # images per conv grid step -> conv1 M=224, conv2 M=96
_VMEM_LIMIT = 32 * 1024 * 1024     # worst-case double-buffered footprint ~16 MiB; fits all gens


def _compiler_params():
    return pltpu.CompilerParams(
        dimension_semantics=("parallel",),
        vmem_limit_bytes=_VMEM_LIMIT,
    )


# --------------------------- Pallas kernels ---------------------------------

def conv_pool_kernel(xe_ref, xo_ref, w_ref, s_ref, o_ref):
    """Fused Conv3x3 (banded matmul) + folded-BN shift + ReLU + 2x2 MaxPool.

    xe_ref/xo_ref: (M, K)       bf16 window slabs for even / odd conv output rows
    w_ref:         (K, 2*half)  bf16 banded conv matrix, columns grouped [even w | odd w]
    s_ref:         (1, 2*half)  f32 folded conv-bias + BN shift (0 on padded columns)
    o_ref:         (M, half)    bf16 pooled rows, one per 2x2-pooled output row
    """
    m = xe_ref.shape[0]
    half = o_ref.shape[1]
    x = jnp.concatenate([xe_ref[...], xo_ref[...]], axis=0)              # (2M, K)
    z = jnp.dot(x, w_ref[...], preferred_element_type=jnp.float32)       # one fused MXU dot
    z = jnp.maximum(z + s_ref[...], 0.0)                                 # BN shift + ReLU
    mw = jnp.maximum(z[:, :half], z[:, half:])                           # pool over W (lane halves)
    o_ref[...] = jnp.maximum(mw[:m, :], mw[m:, :]).astype(o_ref.dtype)   # pool over H (row parity)


def fc_head_kernel(x_ref, w1_ref, b1_ref, w2_ref, b2_ref, o_ref):
    """Fused fc1 + ReLU + (Dropout=id) + fc2 + Softmax for a block of rows.

    x_ref:  (bm, 2304) bf16 NHWC-flattened conv features
    w1_ref: (2304, 512) bf16 fc1 weights permuted to the NHWC layout
    w2_ref: (512, 128)  bf16 fc2 weights padded 10 -> 128 output lanes (zeros)
    b2_ref: (1, 128)    f32  fc2 bias, padded lanes = -1e30 so softmax assigns them 0
    """
    h = jnp.dot(x_ref[...], w1_ref[...], preferred_element_type=jnp.float32)
    h = jnp.maximum(h + b1_ref[...], 0.0)
    # TODO(synk): Dropout(p=0.5) is identity in eval mode; training-mode dropout not implemented.
    z = jnp.dot(h.astype(jnp.bfloat16), w2_ref[...], preferred_element_type=jnp.float32)
    z = z + b2_ref[...]
    z = z - jnp.max(z, axis=-1, keepdims=True)
    e = jnp.exp(z)
    o_ref[...] = e * pl.reciprocal(jnp.sum(e, axis=-1, keepdims=True), approx=True)


# --------------------------- pallas_call wrappers ----------------------------

def conv_pool_stage(xe, xo, w, shift, *, img_rows, nb):
    """(n_pad*img_rows, K) even/odd slabs -> (n_pad*img_rows, half) pooled NHWC rows."""
    m_tot, k = xe.shape
    cols = w.shape[1]
    half = cols // 2
    bm = nb * img_rows
    grid = m_tot // bm
    flops = 2 * (2 * m_tot) * k * cols
    bytes_acc = 2 * (2 * m_tot * k + k * cols + m_tot * half) + 4 * cols
    return pl.pallas_call(
        conv_pool_kernel,
        out_shape=jax.ShapeDtypeStruct((m_tot, half), jnp.bfloat16),
        grid=(grid,),
        in_specs=[
            pl.BlockSpec((bm, k), lambda i: (i, 0)),
            pl.BlockSpec((bm, k), lambda i: (i, 0)),
            pl.BlockSpec((k, cols), lambda i: (0, 0)),
            pl.BlockSpec((1, cols), lambda i: (0, 0)),
        ],
        out_specs=pl.BlockSpec((bm, half), lambda i: (i, 0)),
        compiler_params=_compiler_params(),
        cost_estimate=pl.CostEstimate(flops=int(flops), transcendentals=0,
                                      bytes_accessed=int(bytes_acc)),
    )(xe, xo, w, shift)


def _fc_block_rows(n_pad):
    for cand in (1024, 512, 256, 128, 64, 32, 16):
        if n_pad % cand == 0:
            return cand
    return n_pad          # small batches (multiple of 8): single full block


def fc_stage(x, w1, b1, w2, b2):
    """x: (n_pad, 2304) bf16 -> softmax probabilities (n_pad, 128) (first 10 lanes are classes)."""
    n_pad, kin = x.shape
    bm = _fc_block_rows(n_pad)
    grid = n_pad // bm
    flops = n_pad * (2 * kin * 512 + 2 * 512 * 128)
    bytes_acc = 2 * (n_pad * kin + kin * 512 + 512 * 128) + 4 * (512 + 128 + n_pad * 128)
    return pl.pallas_call(
        fc_head_kernel,
        out_shape=jax.ShapeDtypeStruct((n_pad, 128), jnp.float32),
        grid=(grid,),
        in_specs=[
            pl.BlockSpec((bm, kin), lambda i: (i, 0)),
            pl.BlockSpec((kin, 512), lambda i: (0, 0)),
            pl.BlockSpec((1, 512), lambda i: (0, 0)),
            pl.BlockSpec((512, 128), lambda i: (0, 0)),
            pl.BlockSpec((1, 128), lambda i: (0, 0)),
        ],
        out_specs=pl.BlockSpec((bm, 128), lambda i: (i, 0)),
        compiler_params=_compiler_params(),
        cost_estimate=pl.CostEstimate(flops=int(flops), transcendentals=int(n_pad * 128),
                                      bytes_accessed=int(bytes_acc)),
    )(x, w1, b1, w2, b2)


# --------------------------- one-time parameter prep -------------------------

def _banded_conv_matrix(wk, in_w, cin, out_w, cout, group_w):
    """wk: (3, cin, cout) folded weights for ONE kernel row ki.

    Returns (in_w*cin, 2*group_w*cout): columns grouped [even w_out | odd w_out]; w-slots
    >= out_w//2 inside each group stay zero (lane padding for 128-aligned outputs).
    """
    kw = wk.shape[0]
    B = np.zeros((in_w * cin, 2 * group_w * cout), np.float32)
    for w_out in range(out_w):
        p, m = w_out % 2, w_out // 2
        c0 = (p * group_w + m) * cout
        for kj in range(kw):
            w_in = w_out + kj
            B[w_in * cin:(w_in + 1) * cin, c0:c0 + cout] = wk[kj]
    return B


def _grouped_shift(sh, out_w, group_w):
    cout = sh.shape[0]
    block = np.zeros(group_w * cout, np.float32)
    block[: (out_w // 2) * cout] = np.tile(sh, out_w // 2)
    return np.tile(block, 2)[None, :]


def prepare_params(p):
    """Fold BN into weights/shifts, build stacked banded conv matrices (bf16), permute fc1 to
    the NHWC layout the conv stages produce, pad fc2 to 128 lanes."""
    def fold(conv_b, g, b, m, v):
        s = np.asarray(g) / np.sqrt(np.asarray(v) + EPS)
        return s, (np.asarray(conv_b) - np.asarray(m)) * s + np.asarray(b)

    s1, sh1 = fold(p["conv1_b"], p["bn1_g"], p["bn1_b"], p["bn1_m"], p["bn1_v"])
    s2, sh2 = fold(p["conv2_b"], p["bn2_g"], p["bn2_b"], p["bn2_m"], p["bn2_v"])

    # conv weights -> (kh, kw, cin, cout) with BN scale folded into the output channels.
    w1 = np.transpose(np.asarray(p["conv1_w"]), (2, 3, 1, 0)) * s1        # (3, 3, 1, 32)
    w2 = np.transpose(np.asarray(p["conv2_w"]), (2, 3, 1, 0)) * s2        # (3, 3, 32, 64)

    # conv1: in_w=30 (padding=1), out_w=28, group_w padded to 16 -> 1024 output lanes; K 90->128.
    c1 = np.concatenate([_banded_conv_matrix(w1[ki], 30, 1, 28, 32, 16) for ki in range(3)], 0)
    c1 = np.pad(c1, ((0, 128 - c1.shape[0]), (0, 0)))                     # (128, 1024)
    # conv2: in_w=16 (conv1 output lane-padded), out_w=12, group_w=6 -> 768 lanes; K = 1536.
    c2 = np.concatenate([_banded_conv_matrix(w2[ki], 16, 32, 12, 64, 6) for ki in range(3)], 0)

    # fc1: permute input rows from PyTorch NCHW flatten (c*36 + h*6 + w) to the NHWC
    # (h*384 + w*64 + c) layout produced by the conv stage; one fused 2304-K matmul at runtime.
    w_fc1 = np.asarray(p["fc1_w"]).reshape(512, 64, 6, 6).transpose(2, 3, 1, 0).reshape(2304, 512)

    # fc2: pad 10 -> 128 output lanes; padded bias = -1e30 so softmax assigns them 0 probability.
    w_fc2 = np.zeros((512, 128), np.float32)
    w_fc2[:, :10] = np.asarray(p["fc2_w"]).T
    b_fc2 = np.full((1, 128), -1e30, np.float32)
    b_fc2[0, :10] = np.asarray(p["fc2_b"])

    bf = jnp.bfloat16
    return {
        "conv1_mat": jnp.asarray(c1, bf), "conv1_shift": jnp.asarray(_grouped_shift(sh1, 28, 16)),
        "conv2_mat": jnp.asarray(c2, bf), "conv2_shift": jnp.asarray(_grouped_shift(sh2, 12, 6)),
        "fc1_w": jnp.asarray(w_fc1, bf),
        "fc1_b": jnp.asarray(np.asarray(p["fc1_b"])[None, :], jnp.float32),
        "fc2_w": jnp.asarray(w_fc2, bf),
        "fc2_b": jnp.asarray(b_fc2),
    }


# --------------------------- forward pass ------------------------------------

def cnn_forward(x_nchw, prep):
    n = x_nchw.shape[0]
    n_pad = ((n + NB_IMAGES - 1) // NB_IMAGES) * NB_IMAGES
    x = x_nchw.astype(jnp.float32)[:, 0]                                  # (N, 28, 28), Cin = 1
    x = jnp.pad(x, ((0, n_pad - n), (1, 1), (1, 1)))                      # conv1 padding=1 -> 30x30

    # conv1 window slabs split by output-row parity (even/odd) -> in-kernel H-pool is one max.
    xe = jnp.concatenate([x[:, 0:27:2], x[:, 1:28:2], x[:, 2:29:2]], axis=-1)   # (n_pad, 14, 90)
    xo = jnp.concatenate([x[:, 1:28:2], x[:, 2:29:2], x[:, 3:30:2]], axis=-1)
    pad = ((0, 0), (0, 0), (0, 128 - 90))
    xe = jnp.pad(xe, pad).reshape(n_pad * 14, 128).astype(jnp.bfloat16)
    xo = jnp.pad(xo, pad).reshape(n_pad * 14, 128).astype(jnp.bfloat16)

    h1 = conv_pool_stage(xe, xo, prep["conv1_mat"], prep["conv1_shift"],
                         img_rows=14, nb=NB_IMAGES)                       # (n_pad*14, 512) bf16
    h1 = h1.reshape(n_pad, 14, 512)

    # conv2 window slabs (tiny XLA slice/concat on the bf16 intermediate), again split by parity.
    s2e = jnp.concatenate([h1[:, 0:11:2], h1[:, 1:12:2], h1[:, 2:13:2]], axis=-1)  # (n_pad, 6, 1536)
    s2o = jnp.concatenate([h1[:, 1:12:2], h1[:, 2:13:2], h1[:, 3:14:2]], axis=-1)
    s2e = s2e.reshape(n_pad * 6, 1536)
    s2o = s2o.reshape(n_pad * 6, 1536)

    h2 = conv_pool_stage(s2e, s2o, prep["conv2_mat"], prep["conv2_shift"],
                         img_rows=6, nb=NB_IMAGES)                        # (n_pad*6, 384) bf16
    x_fc = h2.reshape(n_pad, 2304)                                        # free NHWC flatten

    probs = fc_stage(x_fc, prep["fc1_w"], prep["fc1_b"], prep["fc2_w"], prep["fc2_b"])
    return probs[:n, :10]


# --------------------------- reference & init --------------------------------

def cnn_reference(x_nchw, p):
    """Pure-JAX/XLA reference with PyTorch semantics (eval mode)."""
    x = x_nchw.astype(jnp.float32)

    def bn(y, g, b, m, v):
        return ((y - m[None, :, None, None]) / jnp.sqrt(v[None, :, None, None] + EPS)
                * g[None, :, None, None] + b[None, :, None, None])

    dn = ("NCHW", "OIHW", "NCHW")
    y = lax.conv_general_dilated(x, p["conv1_w"], (1, 1), ((1, 1), (1, 1)), dimension_numbers=dn)
    y = jnp.maximum(bn(y + p["conv1_b"][None, :, None, None],
                       p["bn1_g"], p["bn1_b"], p["bn1_m"], p["bn1_v"]), 0.0)
    y = lax.reduce_window(y, -jnp.inf, lax.max, (1, 1, 2, 2), (1, 1, 2, 2), "VALID")
    y = lax.conv_general_dilated(y, p["conv2_w"], (1, 1), "VALID", dimension_numbers=dn)
    y = jnp.maximum(bn(y + p["conv2_b"][None, :, None, None],
                       p["bn2_g"], p["bn2_b"], p["bn2_m"], p["bn2_v"]), 0.0)
    y = lax.reduce_window(y, -jnp.inf, lax.max, (1, 1, 2, 2), (1, 1, 2, 2), "VALID")
    y = y.reshape(y.shape[0], -1)
    y = jnp.maximum(y @ p["fc1_w"].T + p["fc1_b"], 0.0)
    z = y @ p["fc2_w"].T + p["fc2_b"]
    return jax.nn.softmax(z, axis=-1)


def init_params(key):
    ks = jax.random.split(key, 16)
    n = lambda k, shape, s=0.05: (s * jax.random.normal(k, shape)).astype(jnp.float32)
    return {
        "conv1_w": n(ks[0], (32, 1, 3, 3)),
        "conv1_b": n(ks[1], (32,)),
        "bn1_g": 1.0 + n(ks[2], (32,)),
        "bn1_b": n(ks[3], (32,)),
        "bn1_m": n(ks[4], (32,)),
        "bn1_v": jnp.abs(1.0 + n(ks[5], (32,))),
        "conv2_w": n(ks[6], (64, 32, 3, 3)),
        "conv2_b": n(ks[7], (64,)),
        "bn2_g": 1.0 + n(ks[8], (64,)),
        "bn2_b": n(ks[9], (64,)),
        "bn2_m": n(ks[10], (64,)),
        "bn2_v": jnp.abs(1.0 + n(ks[11], (64,))),
        "fc1_w": n(ks[12], (512, 64 * 6 * 6)),
        "fc1_b": n(ks[13], (512,)),
        "fc2_w": n(ks[14], (10, 512)),
        "fc2_b": n(ks[15], (10,)),
    }


if __name__ == "__main__":
    key = jax.random.PRNGKey(0)
    kx, kp = jax.random.split(key)
    # Input shape is constrained by the FC layer (64*6*6) to 28x28 single-channel images.
    x = jax.random.normal(kx, (2, 1, 28, 28), dtype=jnp.float32)
    params = init_params(kp)
    prep = prepare_params(params)     # one-time weight folding / layout prep (outside hot path)

    fwd = jax.jit(cnn_forward)
    out = jax.block_until_ready(fwd(x, prep))

    assert out.shape == (2, 10)
    assert bool(jnp.all(jnp.abs(jnp.sum(out, axis=-1) - 1.0) < 5e-3))
    ref = cnn_reference(x, params)
    max_err = float(jnp.max(jnp.abs(out - ref)))
    assert max_err < 5e-3, f"mismatch vs reference: {max_err}"
    print("KERNEL_OK")
</pallas_src>

<mosaic_0001>
module attributes {stable_mosaic.version = 11 : i64} {
  func.func @conv_pool_kernel(%arg0: i32, %arg1: memref<112x128xbf16, #tpu.memory_space<vmem>>, %arg2: memref<112x128xbf16, #tpu.memory_space<vmem>>, %arg3: memref<128x1024xbf16, #tpu.memory_space<vmem>>, %arg4: memref<1x1024xf32, #tpu.memory_space<vmem>>, %arg5: memref<112x512xbf16, #tpu.memory_space<vmem>>) attributes {dimension_semantics = [#tpu.dimension_semantics<parallel>], iteration_bounds = array<i64: 1>, scalar_prefetch = 0 : i64, scratch_operands = 0 : i64, tpu.core_type = #tpu.core_type<tc>, window_params = [{transform_indices = @transform_0, window_bounds = array<i64: 112, 128>}, {transform_indices = @transform_1, window_bounds = array<i64: 112, 128>}, {pipeline_mode = #tpu.pipeline_mode<synchronous>, transform_indices = @transform_2, window_bounds = array<i64: 128, 1024>}, {pipeline_mode = #tpu.pipeline_mode<synchronous>, transform_indices = @transform_3, window_bounds = array<i64: 1, 1024>}, {transform_indices = @transform_4, window_bounds = array<i64: 112, 512>}]} {
    %c0 = arith.constant 0 : index
    %c0_0 = arith.constant 0 : index
    %0 = vector.load %arg1[%c0, %c0_0] : memref<112x128xbf16, #tpu.memory_space<vmem>>, vector<112x128xbf16>
    %c0_1 = arith.constant 0 : index
    %c0_2 = arith.constant 0 : index
    %1 = vector.load %arg2[%c0_1, %c0_2] : memref<112x128xbf16, #tpu.memory_space<vmem>>, vector<112x128xbf16>
    %2 = tpu.concatenate %0, %1 in 0 : vector<112x128xbf16>, vector<112x128xbf16> -> vector<224x128xbf16>
    %c0_3 = arith.constant 0 : index
    %c0_4 = arith.constant 0 : index
    %3 = vector.load %arg3[%c0_3, %c0_4] : memref<128x1024xbf16, #tpu.memory_space<vmem>>, vector<128x1024xbf16>
    %cst = arith.constant dense<0.000000e+00> : vector<224x1024xf32>
    %4 = tpu.matmul %2, %3, %cst {dimension_numbers = #tpu.dot_dimension_numbers<[1], [0], [0], [1], [0, 0, 1, 1], [], []>} : vector<224x128xbf16>, vector<128x1024xbf16>, vector<224x1024xf32> -> vector<224x1024xf32>
    %c0_5 = arith.constant 0 : index
    %c0_6 = arith.constant 0 : index
    %5 = vector.load %arg4[%c0_5, %c0_6] : memref<1x1024xf32, #tpu.memory_space<vmem>>, vector<1x1024xf32>
    %6 = vector.broadcast %5 : vector<1x1024xf32> to vector<224x1024xf32>
    %7 = arith.addf %4, %6 : vector<224x1024xf32>
    %cst_7 = arith.constant 0.000000e+00 : f32
    %8 = vector.broadcast %cst_7 : f32 to vector<224x1024xf32>
    %9 = arith.maximumf %7, %8 : vector<224x1024xf32>
    %10 = vector.extract_strided_slice %9 {offsets = [0, 0], sizes = [224, 512], strides = [1, 1]} : vector<224x1024xf32> to vector<224x512xf32>
    %11 = vector.extract_strided_slice %9 {offsets = [0, 512], sizes = [224, 512], strides = [1, 1]} : vector<224x1024xf32> to vector<224x512xf32>
    %12 = arith.maximumf %10, %11 : vector<224x512xf32>
    %13 = vector.extract_strided_slice %12 {offsets = [0, 0], sizes = [112, 512], strides = [1, 1]} : vector<224x512xf32> to vector<112x512xf32>
    %14 = vector.extract_strided_slice %12 {offsets = [112, 0], sizes = [112, 512], strides = [1, 1]} : vector<224x512xf32> to vector<112x512xf32>
    %15 = arith.maximumf %13, %14 : vector<112x512xf32>
    %16 = arith.truncf %15 : vector<112x512xf32> to vector<112x512xbf16>
    %c0_8 = arith.constant 0 : index
    %c0_9 = arith.constant 0 : index
    %17 = vector.load %arg5[%c0_8, %c0_9] : memref<112x512xbf16, #tpu.memory_space<vmem>>, vector<112x512xbf16>
    tpu.vector_store %arg5[%c0_8, %c0_9], %16 {strides = array<i32>} : memref<112x512xbf16, #tpu.memory_space<vmem>>, vector<112x512xbf16>,
    return
  }
  func.func @transform_0(%arg0: i32) -> (i32, i32) {
    %c0_i32 = arith.constant 0 : i32
    %c0_i32_0 = arith.constant 0 : i32
    return %arg0, %c0_i32 : i32, i32
  }
  func.func @transform_1(%arg0: i32) -> (i32, i32) {
    %c0_i32 = arith.constant 0 : i32
    %c0_i32_0 = arith.constant 0 : i32
    return %arg0, %c0_i32 : i32, i32
  }
  func.func @transform_2(%arg0: i32) -> (i32, i32) {
    %c0_i32 = arith.constant 0 : i32
    %c0_i32_0 = arith.constant 0 : i32
    %c0_i32_1 = arith.constant 0 : i32
    return %c0_i32, %c0_i32_0 : i32, i32
  }
  func.func @transform_3(%arg0: i32) -> (i32, i32) {
    %c0_i32 = arith.constant 0 : i32
    %c0_i32_0 = arith.constant 0 : i32
    %c0_i32_1 = arith.constant 0 : i32
    return %c0_i32, %c0_i32_0 : i32, i32
  }
  func.func @transform_4(%arg0: i32) -> (i32, i32) {
    %c0_i32 = arith.constant 0 : i32
    %c0_i32_0 = arith.constant 0 : i32
    return %arg0, %c0_i32 : i32, i32
  }
}

module attributes {stable_mosaic.version = 11 : i64} {
  func.func @conv_pool_kernel(%arg0: i32, %arg1: memref<48x1536xbf16, #tpu.memory_space<vmem>>, %arg2: memref<48x1536xbf16, #tpu.memory_space<vmem>>, %arg3: memref<1536x768xbf16, #tpu.memory_space<vmem>>, %arg4: memref<1x768xf32, #tpu.memory_space<vmem>>, %arg5: memref<48x384xbf16, #tpu.memory_space<vmem>>) attributes {dimension_semantics = [#tpu.dimension_semantics<parallel>], iteration_bounds = array<i64: 1>, scalar_prefetch = 0 : i64, scratch_operands = 0 : i64, tpu.core_type = #tpu.core_type<tc>, window_params = [{transform_indices = @transform_0, window_bounds = array<i64: 48, 1536>}, {transform_indices = @transform_1, window_bounds = array<i64: 48, 1536>}, {pipeline_mode = #tpu.pipeline_mode<synchronous>, transform_indices = @transform_2, window_bounds = array<i64: 1536, 768>}, {pipeline_mode = #tpu.pipeline_mode<synchronous>, transform_indices = @transform_3, window_bounds = array<i64: 1, 768>}, {transform_indices = @transform_4, window_bounds = array<i64: 48, 384>}]} {
    %c0 = arith.constant 0 : index
    %c0_0 = arith.constant 0 : index
    %0 = vector.load %arg1[%c0, %c0_0] : memref<48x1536xbf16, #tpu.memory_space<vmem>>, vector<48x1536xbf16>
    %c0_1 = arith.constant 0 : index
    %c0_2 = arith.constant 0 : index
    %1 = vector.load %arg2[%c0_1, %c0_2] : memref<48x1536xbf16, #tpu.memory_space<vmem>>, vector<48x1536xbf16>
    %2 = tpu.concatenate %0, %1 in 0 : vector<48x1536xbf16>, vector<48x1536xbf16> -> vector<96x1536xbf16>
    %c0_3 = arith.constant 0 : index
    %c0_4 = arith.constant 0 : index
    %3 = vector.load %arg3[%c0_3, %c0_4] : memref<1536x768xbf16, #tpu.memory_space<vmem>>, vector<1536x768xbf16>
    %cst = arith.constant dense<0.000000e+00> : vector<96x768xf32>
    %4 = tpu.matmul %2, %3, %cst {dimension_numbers = #tpu.dot_dimension_numbers<[1], [0], [0], [1], [0, 0, 1, 1], [], []>} : vector<96x1536xbf16>, vector<1536x768xbf16>, vector<96x768xf32> -> vector<96x768xf32>
    %c0_5 = arith.constant 0 : index
    %c0_6 = arith.constant 0 : index
    %5 = vector.load %arg4[%c0_5, %c0_6] : memref<1x768xf32, #tpu.memory_space<vmem>>, vector<1x768xf32>
    %6 = vector.broadcast %5 : vector<1x768xf32> to vector<96x768xf32>
    %7 = arith.addf %4, %6 : vector<96x768xf32>
    %cst_7 = arith.constant 0.000000e+00 : f32
    %8 = vector.broadcast %cst_7 : f32 to vector<96x768xf32>
    %9 = arith.maximumf %7, %8 : vector<96x768xf32>
    %10 = vector.extract_strided_slice %9 {offsets = [0, 0], sizes = [96, 384], strides = [1, 1]} : vector<96x768xf32> to vector<96x384xf32>
    %11 = vector.extract_strided_slice %9 {offsets = [0, 384], sizes = [96, 384], strides = [1, 1]} : vector<96x768xf32> to vector<96x384xf32>
    %12 = arith.maximumf %10, %11 : vector<96x384xf32>
    %13 = vector.extract_strided_slice %12 {offsets = [0, 0], sizes = [48, 384], strides = [1, 1]} : vector<96x384xf32> to vector<48x384xf32>
    %14 = vector.extract_strided_slice %12 {offsets = [48, 0], sizes = [48, 384], strides = [1, 1]} : vector<96x384xf32> to vector<48x384xf32>
    %15 = arith.maximumf %13, %14 : vector<48x384xf32>
    %16 = arith.truncf %15 : vector<48x384xf32> to vector<48x384xbf16>
    %c0_8 = arith.constant 0 : index
    %c0_9 = arith.constant 0 : index
    %17 = vector.load %arg5[%c0_8, %c0_9] : memref<48x384xbf16, #tpu.memory_space<vmem>>, vector<48x384xbf16>
    tpu.vector_store %arg5[%c0_8, %c0_9], %16 {strides = array<i32>} : memref<48x384xbf16, #tpu.memory_space<vmem>>, vector<48x384xbf16>,
    return
  }
  func.func @transform_0(%arg0: i32) -> (i32, i32) {
    %c0_i32 = arith.constant 0 : i32
    %c0_i32_0 = arith.constant 0 : i32
    return %arg0, %c0_i32 : i32, i32
  }
  func.func @transform_1(%arg0: i32) -> (i32, i32) {
    %c0_i32 = arith.constant 0 : i32
    %c0_i32_0 = arith.constant 0 : i32
    return %arg0, %c0_i32 : i32, i32
  }
  func.func @transform_2(%arg0: i32) -> (i32, i32) {
    %c0_i32 = arith.constant 0 : i32
    %c0_i32_0 = arith.constant 0 : i32
    %c0_i32_1 = arith.constant 0 : i32
    return %c0_i32, %c0_i32_0 : i32, i32
  }
  func.func @transform_3(%arg0: i32) -> (i32, i32) {
    %c0_i32 = arith.constant 0 : i32
    %c0_i32_0 = arith.constant 0 : i32
    %c0_i32_1 = arith.constant 0 : i32
    return %c0_i32, %c0_i32_0 : i32, i32
  }
  func.func @transform_4(%arg0: i32) -> (i32, i32) {
    %c0_i32 = arith.constant 0 : i32
    %c0_i32_0 = arith.constant 0 : i32
    return %arg0, %c0_i32 : i32, i32
  }
}

module attributes {stable_mosaic.version = 11 : i64} {
  func.func @fc_head_kernel(%arg0: i32, %arg1: memref<8x2304xbf16, #tpu.memory_space<vmem>>, %arg2: memref<2304x512xbf16, #tpu.memory_space<vmem>>, %arg3: memref<1x512xf32, #tpu.memory_space<vmem>>, %arg4: memref<512x128xbf16, #tpu.memory_space<vmem>>, %arg5: memref<1x128xf32, #tpu.memory_space<vmem>>, %arg6: memref<8x128xf32, #tpu.memory_space<vmem>>) attributes {dimension_semantics = [#tpu.dimension_semantics<parallel>], iteration_bounds = array<i64: 1>, scalar_prefetch = 0 : i64, scratch_operands = 0 : i64, tpu.core_type = #tpu.core_type<tc>, window_params = [{transform_indices = @transform_0, window_bounds = array<i64: 8, 2304>}, {pipeline_mode = #tpu.pipeline_mode<synchronous>, transform_indices = @transform_1, window_bounds = array<i64: 2304, 512>}, {pipeline_mode = #tpu.pipeline_mode<synchronous>, transform_indices = @transform_2, window_bounds = array<i64: 1, 512>}, {pipeline_mode = #tpu.pipeline_mode<synchronous>, transform_indices = @transform_3, window_bounds = array<i64: 512, 128>}, {pipeline_mode = #tpu.pipeline_mode<synchronous>, transform_indices = @transform_4, window_bounds = array<i64: 1, 128>}, {transform_indices = @transform_5, window_bounds = array<i64: 8, 128>}]} {
    %c0 = arith.constant 0 : index
    %c0_0 = arith.constant 0 : index
    %0 = vector.load %arg1[%c0, %c0_0] : memref<8x2304xbf16, #tpu.memory_space<vmem>>, vector<8x2304xbf16>
    %c0_1 = arith.constant 0 : index
    %c0_2 = arith.constant 0 : index
    %1 = vector.load %arg2[%c0_1, %c0_2] : memref<2304x512xbf16, #tpu.memory_space<vmem>>, vector<2304x512xbf16>
    %cst = arith.constant dense<0.000000e+00> : vector<8x512xf32>
    %2 = tpu.matmul %0, %1, %cst {dimension_numbers = #tpu.dot_dimension_numbers<[1], [0], [0], [1], [0, 0, 1, 1], [], []>} : vector<8x2304xbf16>, vector<2304x512xbf16>, vector<8x512xf32> -> vector<8x512xf32>
    %c0_3 = arith.constant 0 : index
    %c0_4 = arith.constant 0 : index
    %3 = vector.load %arg3[%c0_3, %c0_4] : memref<1x512xf32, #tpu.memory_space<vmem>>, vector<1x512xf32>
    %4 = vector.broadcast %3 : vector<1x512xf32> to vector<8x512xf32>
    %5 = arith.addf %2, %4 : vector<8x512xf32>
    %cst_5 = arith.constant 0.000000e+00 : f32
    %6 = vector.broadcast %cst_5 : f32 to vector<8x512xf32>
    %7 = arith.maximumf %5, %6 : vector<8x512xf32>
    %8 = arith.truncf %7 : vector<8x512xf32> to vector<8x512xbf16>
    %c0_6 = arith.constant 0 : index
    %c0_7 = arith.constant 0 : index
    %9 = vector.load %arg4[%c0_6, %c0_7] : memref<512x128xbf16, #tpu.memory_space<vmem>>, vector<512x128xbf16>
    %cst_8 = arith.constant dense<0.000000e+00> : vector<8x128xf32>
    %10 = tpu.matmul %8, %9, %cst_8 {dimension_numbers = #tpu.dot_dimension_numbers<[1], [0], [0], [1], [0, 0, 1, 1], [], []>} : vector<8x512xbf16>, vector<512x128xbf16>, vector<8x128xf32> -> vector<8x128xf32>
    %c0_9 = arith.constant 0 : index
    %c0_10 = arith.constant 0 : index
    %11 = vector.load %arg5[%c0_9, %c0_10] : memref<1x128xf32, #tpu.memory_space<vmem>>, vector<1x128xf32>
    %12 = vector.broadcast %11 : vector<1x128xf32> to vector<8x128xf32>
    %13 = arith.addf %10, %12 : vector<8x128xf32>
    %cst_11 = arith.constant dense<0xFF800000> : vector<8xf32>
    %14 = vector.multi_reduction <maximumf>, %13, %cst_11 [1] : vector<8x128xf32> to vector<8xf32>
    %15 = vector.shape_cast %14 : vector<8xf32> to vector<8x1xf32>
    %16 = vector.broadcast %15 : vector<8x1xf32> to vector<8x128xf32>
    %17 = arith.subf %13, %16 : vector<8x128xf32>
    %18 = math.exp %17 : vector<8x128xf32>
    %cst_12 = arith.constant dense<0.000000e+00> : vector<8xf32>
    %19 = vector.multi_reduction <add>, %18, %cst_12 [1] : vector<8x128xf32> to vector<8xf32>
    %20 = vector.shape_cast %19 : vector<8xf32> to vector<8x1xf32>
    %21 = tpu.reciprocal %20 {approx = true} : vector<8x1xf32> -> vector<8x1xf32>
    %22 = vector.broadcast %21 : vector<8x1xf32> to vector<8x128xf32>
    %23 = arith.mulf %18, %22 : vector<8x128xf32>
    %c0_13 = arith.constant 0 : index
    %c0_14 = arith.constant 0 : index
    %24 = vector.load %arg6[%c0_13, %c0_14] : memref<8x128xf32, #tpu.memory_space<vmem>>, vector<8x128xf32>
    tpu.vector_store %arg6[%c0_13, %c0_14], %23 {strides = array<i32>} : memref<8x128xf32, #tpu.memory_space<vmem>>, vector<8x128xf32>,
    return
  }
  func.func @transform_0(%arg0: i32) -> (i32, i32) {
    %c0_i32 = arith.constant 0 : i32
    %c0_i32_0 = arith.constant 0 : i32
    return %arg0, %c0_i32 : i32, i32
  }
  func.func @transform_1(%arg0: i32) -> (i32, i32) {
    %c0_i32 = arith.constant 0 : i32
    %c0_i32_0 = arith.constant 0 : i32
    %c0_i32_1 = arith.constant 0 : i32
    return %c0_i32, %c0_i32_0 : i32, i32
  }
  func.func @transform_2(%arg0: i32) -> (i32, i32) {
    %c0_i32 = arith.constant 0 : i32
    %c0_i32_0 = arith.constant 0 : i32
    %c0_i32_1 = arith.constant 0 : i32
    return %c0_i32, %c0_i32_0 : i32, i32
  }
  func.func @transform_3(%arg0: i32) -> (i32, i32) {
    %c0_i32 = arith.constant 0 : i32
    %c0_i32_0 = arith.constant 0 : i32
    %c0_i32_1 = arith.constant 0 : i32
    return %c0_i32, %c0_i32_0 : i32, i32
  }
  func.func @transform_4(%arg0: i32) -> (i32, i32) {
    %c0_i32 = arith.constant 0 : i32
    %c0_i32_0 = arith.constant 0 : i32
    %c0_i32_1 = arith.constant 0 : i32
    return %c0_i32, %c0_i32_0 : i32, i32
  }
  func.func @transform_5(%arg0: i32) -> (i32, i32) {
    %c0_i32 = arith.constant 0 : i32
    %c0_i32_0 = arith.constant 0 : i32
    return %arg0, %c0_i32 : i32, i32
  }
}

</mosaic_0001>

<llo_original>
// kernel: cnn_forward.3
$region0: #{cnn_forward.3}
  #allocation0 [shape = 'u32[]', space=smem, size = 0x4, offset = 0x4, fixed_abs, tag = 'smem constant byte address 0x4 - core index']
  #allocation1 [shape = 'u32[144,128]{1,0:T(1,128)}', space=vmem, size = 0x12000, scoped, tag = 'internal scratch']
  %s0 = inlined_call_operand.vmem [shape: bf16[112,128], index: 0, kind: input, shape index: {}]
  %s1 = inlined_call_operand.vmem [shape: bf16[112,128], index: 1, kind: input, shape index: {}]
  %s2 = inlined_call_operand.hbm [shape: bf16[128,1024], index: 2, kind: input, shape index: {}]
  %s3 = inlined_call_operand.hbm [shape: f32[1,1024], index: 3, kind: input, shape index: {}]
  %s4 = inlined_call_operand.vmem [shape: bf16[112,512], index: 4, kind: output, shape index: {}]
  %s5 = sld [smem:[#allocation0]]
  $region34: #{cnn_forward.3} parent=0
    _
  %s7 = ssub.s32 1, %s5
  %s8 = scalar_select 0, %s7, %s5
  $region1: #{cnn_forward.3} parent=0
    #allocation2 [shape = 'u8[262144]{0}', space=vmem, size = 0x40000, scoped, tag = 'input window, operand 2, single buffered']
    #allocation3 [shape = 's32[1]{0}', space=sflag, size = 0x4, scoped, tag = 'scoped memory for cnn_forward.3']
    #allocation4 [shape = 'u8[4096]{0}', space=vmem, size = 0x1000, scoped, tag = 'input window, operand 3, single buffered']
    #allocation5 [shape = 's32[1]{0}', space=sflag, size = 0x4, scoped, tag = 'scoped memory for cnn_forward.3']
    %9 = vsyncpa [#allocation3], 0
    %10 = vsyncpa [#allocation5], 0
    // Predicated region
    $region2: #{cnn_forward.3} parent=1 // pred_check
      _
    $region3: #{cnn_forward.3} parent=1 // pred_check_branch
      %12 = sbr.rel (0) target = $region5
    $region4: #{cnn_forward.3} parent=1 // pred_region
      _
    $region5: #{cnn_forward.3} parent=1 // pred_fallthru
      _
    // Predicated region
    $region6: #{cnn_forward.3} parent=1 // pred_check
      _
    $region7: #{cnn_forward.3} parent=1 // pred_check_branch
      %14 = sbr.rel (0) target = $region9
    $region8: #{cnn_forward.3} parent=1 // pred_region
      _
    $region9: #{cnn_forward.3} parent=1 // pred_fallthru
      _
    // Predicated region
    $region10: #{cnn_forward.3} parent=1 // pred_check
      _
    $region11: #{cnn_forward.3} parent=1 // pred_check_branch
      %16 = sbr.rel (0) target = $region13
    $region12: #{cnn_forward.3} parent=1 // pred_region
      %s18 = ssub.s32 8192, 8192
      %19 = vsyncadd [#allocation3], %s18
      %s20 = sshll.u32 [#allocation2], 4
      %s21 = int_to_ptr.vmem [resolvable:$true] %s20
      %26 = dma.hbm_to_vmem [thread:$0]  %s2, 8192, %s21, [#allocation3], 512, 512, 32
    $region13: #{cnn_forward.3} parent=1 // pred_fallthru
      _
    // Predicated region
    $region14: #{cnn_forward.3} parent=1 // pred_check
      _
    $region15: #{cnn_forward.3} parent=1 // pred_check_branch
      %28 = sbr.rel (0) target = $region17
    $region16: #{cnn_forward.3} parent=1 // pred_region
      %s30 = ssub.s32 128, 128
      %31 = vsyncadd [#allocation5], %s30
      %s33 = sshll.u32 [#allocation4], 4
      %s34 = int_to_ptr.vmem [resolvable:$true] %s33
      %36 = dma.hbm_to_vmem [thread:$0]  %s3, 128, %s34, [#allocation5]
    $region17: #{cnn_forward.3} parent=1 // pred_fallthru
      _
    // Predicated region
    $region18: #{cnn_forward.3} parent=1 // pred_check
      _
    $region19: #{cnn_forward.3} parent=1 // pred_check_branch
      %38 = sbr.rel (0) target = $region21
    $region20: #{cnn_forward.3} parent=1 // pred_region
      %39 = dma.done [#allocation3], 8192
    $region21: #{cnn_forward.3} parent=1 // pred_fallthru
      _
    // Predicated region
    $region22: #{cnn_forward.3} parent=1 // pred_check
      _
    $region23: #{cnn_forward.3} parent=1 // pred_check_branch
      %41 = sbr.rel (0) target = $region25
    $region24: #{cnn_forward.3} parent=1 // pred_region
      %42 = dma.done [#allocation5], 128
    $region25: #{cnn_forward.3} parent=1 // pred_fallthru
      _
    %v44 = vld [vmem:[%s0] sm:$0xf]
    %v45 = vld [vmem:[%s0 + $0x4] sm:$0xf]
    %v46 = vld [vmem:[%s0 + $0x8] sm:$0xf]
    %v47 = vld [vmem:[%s0 + $0xc] sm:$0xf]
    %v48 = vld [vmem:[%s0 + $0x10] sm:$0xf]
    %v49 = vld [vmem:[%s0 + $0x14] sm:$0xf]
    %v50 = vld [vmem:[%s0 + $0x18] sm:$0xf]
    %v51 = vld [vmem:[%s0 + $0x1c] sm:$0xf]
    %v52 = vld [vmem:[%s0 + $0x20] sm:$0xf]
    %v53 = vld [vmem:[%s0 + $0x24] sm:$0xf]
    %v54 = vld [vmem:[%s0 + $0x28] sm:$0xf]
    %v55 = vld [vmem:[%s0 + $0x2c] sm:$0xf]
    %v56 = vld [vmem:[%s0 + $0x30] sm:$0xf]
    %v57 = vld [vmem:[%s0 + $0x34] sm:$0xf]
    %v58 = vld [vmem:[%s1] sm:$0xf]
    %v59 = vld [vmem:[%s1 + $0x4] sm:$0xf]
    %v60 = vld [vmem:[%s1 + $0x8] sm:$0xf]
    %v61 = vld [vmem:[%s1 + $0xc] sm:$0xf]
    %v62 = vld [vmem:[%s1 + $0x10] sm:$0xf]
    %v63 = vld [vmem:[%s1 + $0x14] sm:$0xf]
    %v64 = vld [vmem:[%s1 + $0x18] sm:$0xf]
    %v65 = vld [vmem:[%s1 + $0x1c] sm:$0xf]
    %v66 = vld [vmem:[%s1 + $0x20] sm:$0xf]
    %v67 = vld [vmem:[%s1 + $0x24] sm:$0xf]
    %v68 = vld [vmem:[%s1 + $0x28] sm:$0xf]
    %v69 = vld [vmem:[%s1 + $0x2c] sm:$0xf]
    %v70 = vld [vmem:[%s1 + $0x30] sm:$0xf]
    %v71 = vld [vmem:[%s1 + $0x34] sm:$0xf]
    %v86 = vunpack.c.l.b16 %v44
    %v87 = vunpack.c.l.b16 %v45
    %v88 = vunpack.c.l.b16 %v46
    %v89 = vunpack.c.l.b16 %v47
    %v90 = vunpack.c.l.b16 %v48
    %v91 = vunpack.c.l.b16 %v49
    %v92 = vunpack.c.l.b16 %v50
    %v93 = vunpack.c.l.b16 %v51
    %v94 = vunpack.c.l.b16 %v52
    %v95 = vunpack.c.l.b16 %v53
    %v96 = vunpack.c.l.b16 %v54
    %v97 = vunpack.c.l.b16 %v55
    %v98 = vunpack.c.l.b16 %v56
    %v99 = vunpack.c.l.b16 %v57
    %v100 = vpack.c.b16 %v87, %v86
    %v101 = vpack.c.b16 %v89, %v88
    %v102 = vpack.c.b16 %v91, %v90
    %v103 = vpack.c.b16 %v93, %v92
    %v104 = vpack.c.b16 %v95, %v94
    %v105 = vpack.c.b16 %v97, %v96
    %v106 = vpack.c.b16 %v99, %v98
    %v128 = vunpack.c.l.b16 %v58
    %v129 = vunpack.c.l.b16 %v59
    %v130 = vunpack.c.l.b16 %v60
    %v131 = vunpack.c.l.b16 %v61
    %v132 = vunpack.c.l.b16 %v62
    %v133 = vunpack.c.l.b16 %v63
    %v134 = vunpack.c.l.b16 %v64
    %v135 = vunpack.c.l.b16 %v65
    %v136 = vunpack.c.l.b16 %v66
    %v137 = vunpack.c.l.b16 %v67
    %v138 = vunpack.c.l.b16 %v68
    %v139 = vunpack.c.l.b16 %v69
    %v140 = vunpack.c.l.b16 %v70
    %v141 = vunpack.c.l.b16 %v71
    %v142 = vpack.c.b16 %v129, %v128
    %v143 = vpack.c.b16 %v131, %v130
    %v144 = vpack.c.b16 %v133, %v132
    %v145 = vpack.c.b16 %v135, %v134
    %v146 = vpack.c.b16 %v137, %v136
    %v147 = vpack.c.b16 %v139, %v138
    %v148 = vpack.c.b16 %v141, %v140
    %v156 = vld [vmem:[#allocation2] sm:$0xff]
    %v157 = vld [vmem:[#allocation2 + $0x8] sm:$0xff]
    %v158 = vld [vmem:[#allocation2 + $0x10] sm:$0xff]
    %v159 = vld [vmem:[#allocation2 + $0x18] sm:$0xff]
    %v160 = vld [vmem:[#allocation2 + $0x20] sm:$0xff]
    %v161 = vld [vmem:[#allocation2 + $0x28] sm:$0xff]
    %v162 = vld [vmem:[#allocation2 + $0x30] sm:$0xff]
    %v163 = vld [vmem:[#allocation2 + $0x38] sm:$0xff]
    %v164 = vld [vmem:[#allocation2 + $0x40] sm:$0xff]
    %v165 = vld [vmem:[#allocation2 + $0x48] sm:$0xff]
    %v166 = vld [vmem:[#allocation2 + $0x50] sm:$0xff]
    %v167 = vld [vmem:[#allocation2 + $0x58] sm:$0xff]
    %v168 = vld [vmem:[#allocation2 + $0x60] sm:$0xff]
    %v169 = vld [vmem:[#allocation2 + $0x68] sm:$0xff]
    %v170 = vld [vmem:[#allocation2 + $0x70] sm:$0xff]
    %v171 = vld [vmem:[#allocation2 + $0x78] sm:$0xff]
    %v172 = vld [vmem:[#allocation2 + $0x80] sm:$0xff]
    %v173 = vld [vmem:[#allocation2 + $0x88] sm:$0xff]
    %v174 = vld [vmem:[#allocation2 + $0x90] sm:$0xff]
    %v175 = vld [vmem:[#allocation2 + $0x98] sm:$0xff]
    %v176 = vld [vmem:[#allocation2 + $0xa0] sm:$0xff]
    %v177 = vld [vmem:[#allocation2 + $0xa8] sm:$0xff]
    %v178 = vld [vmem:[#allocation2 + $0xb0] sm:$0xff]
    %v179 = vld [vmem:[#allocation2 + $0xb8] sm:$0xff]
    %v180 = vld [vmem:[#allocation2 + $0xc0] sm:$0xff]
    %v181 = vld [vmem:[#allocation2 + $0xc8] sm:$0xff]
    %v182 = vld [vmem:[#allocation2 + $0xd0] sm:$0xff]
    %v183 = vld [vmem:[#allocation2 + $0xd8] sm:$0xff]
    %v184 = vld [vmem:[#allocation2 + $0xe0] sm:$0xff]
    %v185 = vld [vmem:[#allocation2 + $0xe8] sm:$0xff]
    %v186 = vld [vmem:[#allocation2 + $0xf0] sm:$0xff]
    %v187 = vld [vmem:[#allocation2 + $0xf8] sm:$0xff]
    %v188 = vld [vmem:[#allocation2 + $0x100] sm:$0xff]
    %v189 = vld [vmem:[#allocation2 + $0x108] sm:$0xff]
    %v190 = vld [vmem:[#allocation2 + $0x110] sm:$0xff]
    %v191 = vld [vmem:[#allocation2 + $0x118] sm:$0xff]
    %v192 = vld [vmem:[#allocation2 + $0x120] sm:$0xff]
    %v193 = vld [vmem:[#allocation2 + $0x128] sm:$0xff]
    %v194 = vld [vmem:[#allocation2 + $0x130] sm:$0xff]
    %v195 = vld [vmem:[#allocation2 + $0x138] sm:$0xff]
    %v196 = vld [vmem:[#allocation2 + $0x140] sm:$0xff]
    %v197 = vld [vmem:[#allocation2 + $0x148] sm:$0xff]
    %v198 = vld [vmem:[#allocation2 + $0x150] sm:$0xff]
    %v199 = vld [vmem:[#allocation2 + $0x158] sm:$0xff]
    %v200 = vld [vmem:[#allocation2 + $0x160] sm:$0xff]
    %v201 = vld [vmem:[#allocation2 + $0x168] sm:$0xff]
    %v202 = vld [vmem:[#allocation2 + $0x170] sm:$0xff]
    %v203 = vld [vmem:[#allocation2 + $0x178] sm:$0xff]
    %v204 = vld [vmem:[#allocation2 + $0x180] sm:$0xff]
    %v205 = vld [vmem:[#allocation2 + $0x188] sm:$0xff]
    %v206 = vld [vmem:[#allocation2 + $0x190] sm:$0xff]
    %v207 = vld [vmem:[#allocation2 + $0x198] sm:$0xff]
    %v208 = vld [vmem:[#allocation2 + $0x1a0] sm:$0xff]
    %v209 = vld [vmem:[#allocation2 + $0x1a8] sm:$0xff]
    %v210 = vld [vmem:[#allocation2 + $0x1b0] sm:$0xff]
    %v211 = vld [vmem:[#allocation2 + $0x1b8] sm:$0xff]
    %v212 = vld [vmem:[#allocation2 + $0x1c0] sm:$0xff]
    %v213 = vld [vmem:[#allocation2 + $0x1c8] sm:$0xff]
    %v214 = vld [vmem:[#allocation2 + $0x1d0] sm:$0xff]
    %v215 = vld [vmem:[#allocation2 + $0x1d8] sm:$0xff]
    %v216 = vld [vmem:[#allocation2 + $0x1e0] sm:$0xff]
    %v217 = vld [vmem:[#allocation2 + $0x1e8] sm:$0xff]
    %v218 = vld [vmem:[#allocation2 + $0x1f0] sm:$0xff]
    %v219 = vld [vmem:[#allocation2 + $0x1f8] sm:$0xff]
    %v220 = vld [vmem:[#allocation4] sm:$0xff]
    %v222 = vlaneseq
    %v223 = vshrl.u32 %v222, 7
    %v224 = vsub.s32 0, %v223
    %v225 = vrot.slane %v220, %v224
    %v226 = vlaneseq
    %v227 = vshrl.u32 %v226, 7
    %v228 = vsub.s32 1, %v227
    %v229 = vrot.slane %v220, %v228
    %v230 = vlaneseq
    %v231 = vshrl.u32 %v230, 7
    %v232 = vsub.s32 2, %v231
    %v233 = vrot.slane %v220, %v232
    %v234 = vlaneseq
    %v235 = vshrl.u32 %v234, 7
    %v236 = vsub.s32 3, %v235
    %v237 = vrot.slane %v220, %v236
    %v238 = vlaneseq
    %v239 = vshrl.u32 %v238, 7
    %v240 = vsub.s32 4, %v239
    %v241 = vrot.slane %v220, %v240
    %v242 = vlaneseq
    %v243 = vshrl.u32 %v242, 7
    %v244 = vsub.s32 5, %v243
    %v245 = vrot.slane %v220, %v244
    %v246 = vlaneseq
    %v247 = vshrl.u32 %v246, 7
    %v248 = vsub.s32 6, %v247
    %v249 = vrot.slane %v220, %v248
    %v250 = vlaneseq
    %v251 = vshrl.u32 %v250, 7
    %v252 = vsub.s32 7, %v251
    %v253 = vrot.slane %v220, %v252
    %v326 = vunpack.c.l.b16 %v156
    %v327 = vunpack.c.h.b16 %v156
    %v328 = vunpack.c.l.b16 %v157
    %v329 = vunpack.c.h.b16 %v157
    %v330 = vunpack.c.l.b16 %v158
    %v331 = vunpack.c.h.b16 %v158
    %v332 = vunpack.c.l.b16 %v159
    %v333 = vunpack.c.h.b16 %v159
    %v334 = vunpack.c.l.b16 %v160
    %v335 = vunpack.c.h.b16 %v160
    %v336 = vunpack.c.l.b16 %v161
    %v337 = vunpack.c.h.b16 %v161
    %v338 = vunpack.c.l.b16 %v162
    %v339 = vunpack.c.h.b16 %v162
    %v340 = vunpack.c.l.b16 %v163
    %v341 = vunpack.c.h.b16 %v163
    %v342 = vunpack.c.l.b16 %v164
    %v343 = vunpack.c.h.b16 %v164
    %v344 = vunpack.c.l.b16 %v165
    %v345 = vunpack.c.h.b16 %v165
    %v346 = vunpack.c.l.b16 %v166
    %v347 = vunpack.c.h.b16 %v166
    %v348 = vunpack.c.l.b16 %v167
    %v349 = vunpack.c.h.b16 %v167
    %v350 = vunpack.c.l.b16 %v168
    %v351 = vunpack.c.h.b16 %v168
    %v352 = vunpack.c.l.b16 %v169
    %v353 = vunpack.c.h.b16 %v169
    %v354 = vunpack.c.l.b16 %v170
    %v355 = vunpack.c.h.b16 %v170
    %v356 = vunpack.c.l.b16 %v171
    %v357 = vunpack.c.h.b16 %v171
    %v358 = vunpack.c.l.b16 %v172
    %v359 = vunpack.c.h.b16 %v172
    %v360 = vunpack.c.l.b16 %v173
    %v361 = vunpack.c.h.b16 %v173
    %v362 = vunpack.c.l.b16 %v174
    %v363 = vunpack.c.h.b16 %v174
    %v364 = vunpack.c.l.b16 %v175
    %v365 = vunpack.c.h.b16 %v175
    %v366 = vunpack.c.l.b16 %v176
    %v367 = vunpack.c.h.b16 %v176
    %v368 = vunpack.c.l.b16 %v177
    %v369 = vunpack.c.h.b16 %v177
    %v370 = vunpack.c.l.b16 %v178
    %v371 = vunpack.c.h.b16 %v178
    %v372 = vunpack.c.l.b16 %v179
    %v373 = vunpack.c.h.b16 %v179
    %v374 = vunpack.c.l.b16 %v180
    %v375 = vunpack.c.h.b16 %v180
    %v376 = vunpack.c.l.b16 %v181
    %v377 = vunpack.c.h.b16 %v181
    %v378 = vunpack.c.l.b16 %v182
    %v379 = vunpack.c.h.b16 %v182
    %v380 = vunpack.c.l.b16 %v183
    %v381 = vunpack.c.h.b16 %v183
    %v382 = vunpack.c.l.b16 %v184
    %v383 = vunpack.c.h.b16 %v184
    %v384 = vunpack.c.l.b16 %v185
    %v385 = vunpack.c.h.b16 %v185
    %v386 = vunpack.c.l.b16 %v186
    %v387 = vunpack.c.h.b16 %v186
    %v388 = vunpack.c.l.b16 %v187
    %v389 = vunpack.c.h.b16 %v187
    %v390 = vunpack.c.l.b16 %v188
    %v391 = vunpack.c.h.b16 %v188
    %v392 = vunpack.c.l.b16 %v189
    %v393 = vunpack.c.h.b16 %v189
    %v394 = vunpack.c.l.b16 %v190
    %v395 = vunpack.c.h.b16 %v190
    %v396 = vunpack.c.l.b16 %v191
    %v397 = vunpack.c.h.b16 %v191
    %v398 = vunpack.c.l.b16 %v192
    %v399 = vunpack.c.h.b16 %v192
    %v400 = vunpack.c.l.b16 %v193
    %v401 = vunpack.c.h.b16 %v193
    %v402 = vunpack.c.l.b16 %v194
    %v403 = vunpack.c.h.b16 %v194
    %v404 = vunpack.c.l.b16 %v195
    %v405 = vunpack.c.h.b16 %v195
    %v406 = vunpack.c.l.b16 %v196
    %v407 = vunpack.c.h.b16 %v196
    %v408 = vunpack.c.l.b16 %v197
    %v409 = vunpack.c.h.b16 %v197
    %v410 = vunpack.c.l.b16 %v198
    %v411 = vunpack.c.h.b16 %v198
    %v412 = vunpack.c.l.b16 %v199
    %v413 = vunpack.c.h.b16 %v199
    %v414 = vunpack.c.l.b16 %v200
    %v415 = vunpack.c.h.b16 %v200
    %v416 = vunpack.c.l.b16 %v201
    %v417 = vunpack.c.h.b16 %v201
    %v418 = vunpack.c.l.b16 %v202
    %v419 = vunpack.c.h.b16 %v202
    %v420 = vunpack.c.l.b16 %v203
    %v421 = vunpack.c.h.b16 %v203
    %v422 = vunpack.c.l.b16 %v204
    %v423 = vunpack.c.h.b16 %v204
    %v424 = vunpack.c.l.b16 %v205
    %v425 = vunpack.c.h.b16 %v205
    %v426 = vunpack.c.l.b16 %v206
    %v427 = vunpack.c.h.b16 %v206
    %v428 = vunpack.c.l.b16 %v207
    %v429 = vunpack.c.h.b16 %v207
    %v430 = vunpack.c.l.b16 %v208
    %v431 = vunpack.c.h.b16 %v208
    %v432 = vunpack.c.l.b16 %v209
    %v433 = vunpack.c.h.b16 %v209
    %v434 = vunpack.c.l.b16 %v210
    %v435 = vunpack.c.h.b16 %v210
    %v436 = vunpack.c.l.b16 %v211
    %v437 = vunpack.c.h.b16 %v211
    %v438 = vunpack.c.l.b16 %v212
    %v439 = vunpack.c.h.b16 %v212
    %v440 = vunpack.c.l.b16 %v213
    %v441 = vunpack.c.h.b16 %v213
    %v442 = vunpack.c.l.b16 %v214
    %v443 = vunpack.c.h.b16 %v214
    %v444 = vunpack.c.l.b16 %v215
    %v445 = vunpack.c.h.b16 %v215
    %v446 = vunpack.c.l.b16 %v216
    %v447 = vunpack.c.h.b16 %v216
    %v448 = vunpack.c.l.b16 %v217
    %v449 = vunpack.c.h.b16 %v217
    %v450 = vunpack.c.l.b16 %v218
    %v451 = vunpack.c.h.b16 %v218
    %v452 = vunpack.c.l.b16 %v219
    %v453 = vunpack.c.h.b16 %v219
    %v454 = vpack.c.b16 %v334, %v326
    %v455 = vpack.c.b16 %v335, %v327
    %v456 = vpack.c.b16 %v336, %v328
    %v457 = vpack.c.b16 %v337, %v329
    %v458 = vpack.c.b16 %v338, %v330
    %v459 = vpack.c.b16 %v339, %v331
    %v460 = vpack.c.b16 %v340, %v332
    %v461 = vpack.c.b16 %v341, %v333
    %v462 = vpack.c.b16 %v350, %v342
    %v463 = vpack.c.b16 %v351, %v343
    %v464 = vpack.c.b16 %v352, %v344
    %v465 = vpack.c.b16 %v353, %v345
    %v466 = vpack.c.b16 %v354, %v346
    %v467 = vpack.c.b16 %v355, %v347
    %v468 = vpack.c.b16 %v356, %v348
    %v469 = vpack.c.b16 %v357, %v349
    %v470 = vpack.c.b16 %v366, %v358
    %v471 = vpack.c.b16 %v367, %v359
    %v472 = vpack.c.b16 %v368, %v360
    %v473 = vpack.c.b16 %v369, %v361
    %v474 = vpack.c.b16 %v370, %v362
    %v475 = vpack.c.b16 %v371, %v363
    %v476 = vpack.c.b16 %v372, %v364
    %v477 = vpack.c.b16 %v373, %v365
    %v478 = vpack.c.b16 %v382, %v374
    %v479 = vpack.c.b16 %v383, %v375
    %v480 = vpack.c.b16 %v384, %v376
    %v481 = vpack.c.b16 %v385, %v377
    %v482 = vpack.c.b16 %v386, %v378
    %v483 = vpack.c.b16 %v387, %v379
    %v484 = vpack.c.b16 %v388, %v380
    %v485 = vpack.c.b16 %v389, %v381
    %v486 = vpack.c.b16 %v398, %v390
    %v487 = vpack.c.b16 %v399, %v391
    %v488 = vpack.c.b16 %v400, %v392
    %v489 = vpack.c.b16 %v401, %v393
    %v490 = vpack.c.b16 %v402, %v394
    %v491 = vpack.c.b16 %v403, %v395
    %v492 = vpack.c.b16 %v404, %v396
    %v493 = vpack.c.b16 %v405, %v397
    %v494 = vpack.c.b16 %v414, %v406
    %v495 = vpack.c.b16 %v415, %v407
    %v496 = vpack.c.b16 %v416, %v408
    %v497 = vpack.c.b16 %v417, %v409
    %v498 = vpack.c.b16 %v418, %v410
    %v499 = vpack.c.b16 %v419, %v411
    %v500 = vpack.c.b16 %v420, %v412
    %v501 = vpack.c.b16 %v421, %v413
    %v502 = vpack.c.b16 %v430, %v422
    %v503 = vpack.c.b16 %v431, %v423
    %v504 = vpack.c.b16 %v432, %v424
    %v505 = vpack.c.b16 %v433, %v425
    %v506 = vpack.c.b16 %v434, %v426
    %v507 = vpack.c.b16 %v435, %v427
    %v508 = vpack.c.b16 %v436, %v428
    %v509 = vpack.c.b16 %v437, %v429
    %v510 = vpack.c.b16 %v446, %v438
    %v511 = vpack.c.b16 %v447, %v439
    %v512 = vpack.c.b16 %v448, %v440
    %v513 = vpack.c.b16 %v449, %v441
    %v514 = vpack.c.b16 %v450, %v442
    %v515 = vpack.c.b16 %v451, %v443
    %v516 = vpack.c.b16 %v452, %v444
    %v517 = vpack.c.b16 %v453, %v445
    %582 = vmatprep.subr.bf16.mxu0 %v455
    %583 = vmatpush1.bf16.msra.mxu0 %v454
    %584 = vmatprep.subr.bf16.mxu0 %v463
    %585 = vmatpush1.bf16.msra.mxu0 %v462
    %586 = vmatprep.subr.bf16.mxu0 %v471
    %587 = vmatpush1.bf16.msra.mxu0 %v470
    %588 = vmatprep.subr.bf16.mxu0 %v479
    %589 = vmatpush1.bf16.msra.mxu0 %v478
    %590 = vmatprep.subr.bf16.mxu0 %v487
    %591 = vmatpush1.bf16.msra.mxu0 %v486
    %592 = vmatprep.subr.bf16.mxu0 %v495
    %593 = vmatpush1.bf16.msra.mxu0 %v494
    %594 = vmatprep.subr.bf16.mxu0 %v503
    %595 = vmatpush1.bf16.msra.mxu0 %v502
    %596 = vmatprep.subr.bf16.mxu0 %v511
    %597 = vmatpush1.bf16.msra.mxu0 %v510
    %598 = vmatprep.subr.bf16.mxu0 0
    %599 = vmatpush1.bf16.msra.mxu0 0
    %600 = vmatprep.subr.bf16.mxu0 0
    %601 = vmatpush1.bf16.msra.mxu0 0
    %602 = vmatprep.subr.bf16.mxu0 0
    %603 = vmatpush1.bf16.msra.mxu0 0
    %604 = vmatprep.subr.bf16.mxu0 0
    %605 = vmatpush1.bf16.msra.mxu0 0
    %606 = vmatprep.subr.bf16.mxu0 0
    %607 = vmatpush1.bf16.msra.mxu0 0
    %608 = vmatprep.subr.bf16.mxu0 0
    %609 = vmatpush1.bf16.msra.mxu0 0
    %610 = vmatprep.subr.bf16.mxu0 0
    %611 = vmatpush1.bf16.msra.mxu0 0
    %612 = vmatprep.subr.bf16.mxu0 0
    %613 = vmatpush1.bf16.msra.mxu0 0
    %614 = vmatprep.mubr.bf16.mxu0 0
    %615 = vmatmul.mubr.bf16.gmra.mrb[0].mxu0 %v100
    %v616 = vpop.f32.mrb[0].mxu0
    %v617 = vadd.f32 %v225, %v616
    %v618 = vpop.f32.mrb[0].mxu0
    %v619 = vadd.f32 %v229, %v618
    %v620 = vpop.f32.mrb[0].mxu0
    %v621 = vadd.f32 %v225, %v620
    %v622 = vpop.f32.mrb[0].mxu0
    %v623 = vadd.f32 %v229, %v622
    %624 = vmatprep.mubr.bf16.mxu0 0
    %625 = vmatmul.mubr.bf16.gmra.mrb[0].mxu0 %v101
    %v626 = vpop.f32.mrb[0].mxu0
    %v627 = vadd.f32 %v225, %v626
    %v628 = vpop.f32.mrb[0].mxu0
    %v629 = vadd.f32 %v229, %v628
    %v630 = vpop.f32.mrb[0].mxu0
    %v631 = vadd.f32 %v225, %v630
    %v632 = vpop.f32.mrb[0].mxu0
    %v633 = vadd.f32 %v229, %v632
    %634 = vmatprep.mubr.bf16.mxu0 0
    %635 = vmatmul.mubr.bf16.gmra.mrb[0].mxu0 %v102
    %v636 = vpop.f32.mrb[0].mxu0
    %v637 = vadd.f32 %v225, %v636
    %v638 = vpop.f32.mrb[0].mxu0
    %v639 = vadd.f32 %v229, %v638
    %v640 = vpop.f32.mrb[0].mxu0
    %v641 = vadd.f32 %v225, %v640
    %v642 = vpop.f32.mrb[0].mxu0
    %v643 = vadd.f32 %v229, %v642
    %644 = vmatprep.mubr.bf16.mxu0 0
    %645 = vmatmul.mubr.bf16.gmra.mrb[0].mxu0 %v103
    %v646 = vpop.f32.mrb[0].mxu0
    %v647 = vadd.f32 %v225, %v646
    %v648 = vpop.f32.mrb[0].mxu0
    %v649 = vadd.f32 %v229, %v648
    %v650 = vpop.f32.mrb[0].mxu0
    %v651 = vadd.f32 %v225, %v650
    %v652 = vpop.f32.mrb[0].mxu0
    %v653 = vadd.f32 %v229, %v652
    %654 = vmatprep.mubr.bf16.mxu0 0
    %655 = vmatmul.mubr.bf16.gmra.mrb[0].mxu0 %v104
    %v656 = vpop.f32.mrb[0].mxu0
    %v657 = vadd.f32 %v225, %v656
    %v658 = vpop.f32.mrb[0].mxu0
    %v659 = vadd.f32 %v229, %v658
    %v660 = vpop.f32.mrb[0].mxu0
    %v661 = vadd.f32 %v225, %v660
    %v662 = vpop.f32.mrb[0].mxu0
    %v663 = vadd.f32 %v229, %v662
    %664 = vmatprep.mubr.bf16.mxu0 0
    %665 = vmatmul.mubr.bf16.gmra.mrb[0].mxu0 %v105
    %v666 = vpop.f32.mrb[0].mxu0
    %v667 = vadd.f32 %v225, %v666
    %v668 = vpop.f32.mrb[0].mxu0
    %v669 = vadd.f32 %v229, %v668
    %v670 = vpop.f32.mrb[0].mxu0
    %v671 = vadd.f32 %v225, %v670
    %v672 = vpop.f32.mrb[0].mxu0
    %v673 = vadd.f32 %v229, %v672
    %674 = vmatprep.mubr.bf16.mxu0 0
    %675 = vmatmul.mubr.bf16.gmra.mrb[0].mxu0 %v106
    %v676 = vpop.f32.mrb[0].mxu0
    %v677 = vadd.f32 %v225, %v676
    %v678 = vpop.f32.mrb[0].mxu0
    %v679 = vadd.f32 %v229, %v678
    %v680 = vpop.f32.mrb[0].mxu0
    %v681 = vadd.f32 %v225, %v680
    %v682 = vpop.f32.mrb[0].mxu0
    %v683 = vadd.f32 %v229, %v682
    %684 = vmatprep.mubr.bf16.mxu0 0
    %685 = vmatmul.mubr.bf16.gmra.mrb[0].mxu0 %v142
    %v686 = vpop.f32.mrb[0].mxu0
    %v687 = vadd.f32 %v225, %v686
    %v688 = vpop.f32.mrb[0].mxu0
    %v689 = vadd.f32 %v229, %v688
    %v690 = vpop.f32.mrb[0].mxu0
    %v691 = vadd.f32 %v225, %v690
    %v692 = vpop.f32.mrb[0].mxu0
    %v693 = vadd.f32 %v229, %v692
    %694 = vmatprep.mubr.bf16.mxu0 0
    %695 = vmatmul.mubr.bf16.gmra.mrb[0].mxu0 %v143
    %v696 = vpop.f32.mrb[0].mxu0
    %v697 = vadd.f32 %v225, %v696
    %v698 = vpop.f32.mrb[0].mxu0
    %v699 = vadd.f32 %v229, %v698
    %v700 = vpop.f32.mrb[0].mxu0
    %v701 = vadd.f32 %v225, %v700
    %v702 = vpop.f32.mrb[0].mxu0
    %v703 = vadd.f32 %v229, %v702
    %704 = vmatprep.mubr.bf16.mxu0 0
    %705 = vmatmul.mubr.bf16.gmra.mrb[0].mxu0 %v144
    %v706 = vpop.f32.mrb[0].mxu0
    %v707 = vadd.f32 %v225, %v706
    %v708 = vpop.f32.mrb[0].mxu0
    %v709 = vadd.f32 %v229, %v708
    %v710 = vpop.f32.mrb[0].mxu0
    %v711 = vadd.f32 %v225, %v710
    %v712 = vpop.f32.mrb[0].mxu0
    %v713 = vadd.f32 %v229, %v712
    %714 = vmatprep.mubr.bf16.mxu0 0
    %715 = vmatmul.mubr.bf16.gmra.mrb[0].mxu0 %v145
    %v716 = vpop.f32.mrb[0].mxu0
    %v717 = vadd.f32 %v225, %v716
    %v718 = vpop.f32.mrb[0].mxu0
    %v719 = vadd.f32 %v229, %v718
    %v720 = vpop.f32.mrb[0].mxu0
    %v721 = vadd.f32 %v225, %v720
    %v722 = vpop.f32.mrb[0].mxu0
    %v723 = vadd.f32 %v229, %v722
    %724 = vmatprep.mubr.bf16.mxu0 0
    %725 = vmatmul.mubr.bf16.gmra.mrb[0].mxu0 %v146
    %v726 = vpop.f32.mrb[0].mxu0
    %v727 = vadd.f32 %v225, %v726
    %v728 = vpop.f32.mrb[0].mxu0
    %v729 = vadd.f32 %v229, %v728
    %v730 = vpop.f32.mrb[0].mxu0
    %v731 = vadd.f32 %v225, %v730
    %v732 = vpop.f32.mrb[0].mxu0
    %v733 = vadd.f32 %v229, %v732
    %734 = vmatprep.mubr.bf16.mxu0 0
    %735 = vmatmul.mubr.bf16.gmra.mrb[0].mxu0 %v147
    %v736 = vpop.f32.mrb[0].mxu0
    %v737 = vadd.f32 %v225, %v736
    %v738 = vpop.f32.mrb[0].mxu0
    %v739 = vadd.f32 %v229, %v738
    %v740 = vpop.f32.mrb[0].mxu0
    %v741 = vadd.f32 %v225, %v740
    %v742 = vpop.f32.mrb[0].mxu0
    %v743 = vadd.f32 %v229, %v742
    %744 = vmatprep.mubr.bf16.mxu0 0
    %745 = vmatmul.mubr.bf16.gmra.mrb[0].mxu0 %v148
    %v746 = vpop.f32.mrb[0].mxu0
    %v747 = vadd.f32 %v225, %v746
    %v748 = vpop.f32.mrb[0].mxu0
    %v749 = vadd.f32 %v229, %v748
    %v750 = vpop.f32.mrb[0].mxu0
    %v751 = vadd.f32 %v225, %v750
    %v752 = vpop.f32.mrb[0].mxu0
    %v753 = vadd.f32 %v229, %v752
    %754 = vdwg.mxu0
    %755 = vmatprep.subr.bf16.mxu0 %v457
    %756 = vmatpush1.bf16.msra.mxu0 %v456
    %757 = vmatprep.subr.bf16.mxu0 %v465
    %758 = vmatpush1.bf16.msra.mxu0 %v464
    %759 = vmatprep.subr.bf16.mxu0 %v473
    %760 = vmatpush1.bf16.msra.mxu0 %v472
    %761 = vmatprep.subr.bf16.mxu0 %v481
    %762 = vmatpush1.bf16.msra.mxu0 %v480
    %763 = vmatprep.subr.bf16.mxu0 %v489
    %764 = vmatpush1.bf16.msra.mxu0 %v488
    %765 = vmatprep.subr.bf16.mxu0 %v497
    %766 = vmatpush1.bf16.msra.mxu0 %v496
    %767 = vmatprep.subr.bf16.mxu0 %v505
    %768 = vmatpush1.bf16.msra.mxu0 %v504
    %769 = vmatprep.subr.bf16.mxu0 %v513
    %770 = vmatpush1.bf16.msra.mxu0 %v512
    %771 = vmatprep.subr.bf16.mxu0 0
    %772 = vmatpush1.bf16.msra.mxu0 0
    %773 = vmatprep.subr.bf16.mxu0 0
    %774 = vmatpush1.bf16.msra.mxu0 0
    %775 = vmatprep.subr.bf16.mxu0 0
    %776 = vmatpush1.bf16.msra.mxu0 0
    %777 = vmatprep.subr.bf16.mxu0 0
    %778 = vmatpush1.bf16.msra.mxu0 0
    %779 = vmatprep.subr.bf16.mxu0 0
    %780 = vmatpush1.bf16.msra.mxu0 0
    %781 = vmatprep.subr.bf16.mxu0 0
    %782 = vmatpush1.bf16.msra.mxu0 0
    %783 = vmatprep.subr.bf16.mxu0 0
    %784 = vmatpush1.bf16.msra.mxu0 0
    %785 = vmatprep.subr.bf16.mxu0 0
    %786 = vmatpush1.bf16.msra.mxu0 0
    %787 = vmatprep.mubr.bf16.mxu0 0
    %788 = vmatmul.mubr.bf16.gmra.mrb[0].mxu0 %v100
    %v789 = vpop.f32.mrb[0].mxu0
    %v790 = vadd.f32 %v233, %v789
    %v791 = vpop.f32.mrb[0].mxu0
    %v792 = vadd.f32 %v237, %v791
    %v793 = vpop.f32.mrb[0].mxu0
    %v794 = vadd.f32 %v233, %v793
    %v795 = vpop.f32.mrb[0].mxu0
    %v796 = vadd.f32 %v237, %v795
    %797 = vmatprep.mubr.bf16.mxu0 0
    %798 = vmatmul.mubr.bf16.gmra.mrb[0].mxu0 %v101
    %v799 = vpop.f32.mrb[0].mxu0
    %v800 = vadd.f32 %v233, %v799
    %v801 = vpop.f32.mrb[0].mxu0
    %v802 = vadd.f32 %v237, %v801
    %v803 = vpop.f32.mrb[0].mxu0
    %v804 = vadd.f32 %v233, %v803
    %v805 = vpop.f32.mrb[0].mxu0
    %v806 = vadd.f32 %v237, %v805
    %807 = vmatprep.mubr.bf16.mxu0 0
    %808 = vmatmul.mubr.bf16.gmra.mrb[0].mxu0 %v102
    %v809 = vpop.f32.mrb[0].mxu0
    %v810 = vadd.f32 %v233, %v809
    %v811 = vpop.f32.mrb[0].mxu0
    %v812 = vadd.f32 %v237, %v811
    %v813 = vpop.f32.mrb[0].mxu0
    %v814 = vadd.f32 %v233, %v813
    %v815 = vpop.f32.mrb[0].mxu0
    %v816 = vadd.f32 %v237, %v815
    %817 = vmatprep.mubr.bf16.mxu0 0
    %818 = vmatmul.mubr.bf16.gmra.mrb[0].mxu0 %v103
    %v819 = vpop.f32.mrb[0].mxu0
    %v820 = vadd.f32 %v233, %v819
    %v821 = vpop.f32.mrb[0].mxu0
    %v822 = vadd.f32 %v237, %v821
    %v823 = vpop.f32.mrb[0].mxu0
    %v824 = vadd.f32 %v233, %v823
    %v825 = vpop.f32.mrb[0].mxu0
    %v826 = vadd.f32 %v237, %v825
    %827 = vmatprep.mubr.bf16.mxu0 0
    %828 = vmatmul.mubr.bf16.gmra.mrb[0].mxu0 %v104
    %v829 = vpop.f32.mrb[0].mxu0
    %v830 = vadd.f32 %v233, %v829
    %v831 = vpop.f32.mrb[0].mxu0
    %v832 = vadd.f32 %v237, %v831
    %v833 = vpop.f32.mrb[0].mxu0
    %v834 = vadd.f32 %v233, %v833
    %v835 = vpop.f32.mrb[0].mxu0
    %v836 = vadd.f32 %v237, %v835
    %837 = vmatprep.mubr.bf16.mxu0 0
    %838 = vmatmul.mubr.bf16.gmra.mrb[0].mxu0 %v105
    %v839 = vpop.f32.mrb[0].mxu0
    %v840 = vadd.f32 %v233, %v839
    %v841 = vpop.f32.mrb[0].mxu0
    %v842 = vadd.f32 %v237, %v841
    %v843 = vpop.f32.mrb[0].mxu0
    %v844 = vadd.f32 %v233, %v843
    %v845 = vpop.f32.mrb[0].mxu0
    %v846 = vadd.f32 %v237, %v845
    %847 = vmatprep.mubr.bf16.mxu0 0
    %848 = vmatmul.mubr.bf16.gmra.mrb[0].mxu0 %v106
    %v849 = vpop.f32.mrb[0].mxu0
    %v850 = vadd.f32 %v233, %v849
    %v851 = vpop.f32.mrb[0].mxu0
    %v852 = vadd.f32 %v237, %v851
    %v853 = vpop.f32.mrb[0].mxu0
    %v854 = vadd.f32 %v233, %v853
    %v855 = vpop.f32.mrb[0].mxu0
    %v856 = vadd.f32 %v237, %v855
    %857 = vmatprep.mubr.bf16.mxu0 0
    %858 = vmatmul.mubr.bf16.gmra.mrb[0].mxu0 %v142
    %v859 = vpop.f32.mrb[0].mxu0
    %v860 = vadd.f32 %v233, %v859
    %v861 = vpop.f32.mrb[0].mxu0
    %v862 = vadd.f32 %v237, %v861
    %v863 = vpop.f32.mrb[0].mxu0
    %v864 = vadd.f32 %v233, %v863
    %v865 = vpop.f32.mrb[0].mxu0
    %v866 = vadd.f32 %v237, %v865
    %867 = vmatprep.mubr.bf16.mxu0 0
    %868 = vmatmul.mubr.bf16.gmra.mrb[0].mxu0 %v143
    %v869 = vpop.f32.mrb[0].mxu0
    %v870 = vadd.f32 %v233, %v869
    %v871 = vpop.f32.mrb[0].mxu0
    %v872 = vadd.f32 %v237, %v871
    %v873 = vpop.f32.mrb[0].mxu0
    %v874 = vadd.f32 %v233, %v873
    %v875 = vpop.f32.mrb[0].mxu0
    %v876 = vadd.f32 %v237, %v875
    %877 = vmatprep.mubr.bf16.mxu0 0
    %878 = vmatmul.mubr.bf16.gmra.mrb[0].mxu0 %v144
    %v879 = vpop.f32.mrb[0].mxu0
    %v880 = vadd.f32 %v233, %v879
    %v881 = vpop.f32.mrb[0].mxu0
    %v882 = vadd.f32 %v237, %v881
    %v883 = vpop.f32.mrb[0].mxu0
    %v884 = vadd.f32 %v233, %v883
    %v885 = vpop.f32.mrb[0].mxu0
    %v886 = vadd.f32 %v237, %v885
    %887 = vmatprep.mubr.bf16.mxu0 0
    %888 = vmatmul.mubr.bf16.gmra.mrb[0].mxu0 %v145
    %v889 = vpop.f32.mrb[0].mxu0
    %v890 = vadd.f32 %v233, %v889
    %v891 = vpop.f32.mrb[0].mxu0
    %v892 = vadd.f32 %v237, %v891
    %v893 = vpop.f32.mrb[0].mxu0
    %v894 = vadd.f32 %v233, %v893
    %v895 = vpop.f32.mrb[0].mxu0
    %v896 = vadd.f32 %v237, %v895
    %897 = vmatprep.mubr.bf16.mxu0 0
    %898 = vmatmul.mubr.bf16.gmra.mrb[0].mxu0 %v146
    %v899 = vpop.f32.mrb[0].mxu0
    %v900 = vadd.f32 %v233, %v899
    %v901 = vpop.f32.mrb[0].mxu0
    %v902 = vadd.f32 %v237, %v901
    %v903 = vpop.f32.mrb[0].mxu0
    %v904 = vadd.f32 %v233, %v903
    %v905 = vpop.f32.mrb[0].mxu0
    %v906 = vadd.f32 %v237, %v905
    %907 = vmatprep.mubr.bf16.mxu0 0
    %908 = vmatmul.mubr.bf16.gmra.mrb[0].mxu0 %v147
    %v909 = vpop.f32.mrb[0].mxu0
    %v910 = vadd.f32 %v233, %v909
    %v911 = vpop.f32.mrb[0].mxu0
    %v912 = vadd.f32 %v237, %v911
    %v913 = vpop.f32.mrb[0].mxu0
    %v914 = vadd.f32 %v233, %v913
    %v915 = vpop.f32.mrb[0].mxu0
    %v916 = vadd.f32 %v237, %v915
    %917 = vmatprep.mubr.bf16.mxu0 0
    %918 = vmatmul.mubr.bf16.gmra.mrb[0].mxu0 %v148
    %v919 = vpop.f32.mrb[0].mxu0
    %v920 = vadd.f32 %v233, %v919
    %v921 = vpop.f32.mrb[0].mxu0
    %v922 = vadd.f32 %v237, %v921
    %v923 = vpop.f32.mrb[0].mxu0
    %v924 = vadd.f32 %v233, %v923
    %v925 = vpop.f32.mrb[0].mxu0
    %v926 = vadd.f32 %v237, %v925
    %927 = vdwg.mxu0
    %928 = vmatprep.subr.bf16.mxu0 %v459
    %929 = vmatpush1.bf16.msra.mxu0 %v458
    %930 = vmatprep.subr.bf16.mxu0 %v467
    %931 = vmatpush1.bf16.msra.mxu0 %v466
    %932 = vmatprep.subr.bf16.mxu0 %v475
    %933 = vmatpush1.bf16.msra.mxu0 %v474
    %934 = vmatprep.subr.bf16.mxu0 %v483
    %935 = vmatpush1.bf16.msra.mxu0 %v482
    %936 = vmatprep.subr.bf16.mxu0 %v491
    %937 = vmatpush1.bf16.msra.mxu0 %v490
    %938 = vmatprep.subr.bf16.mxu0 %v499
    %939 = vmatpush1.bf16.msra.mxu0 %v498
    %940 = vmatprep.subr.bf16.mxu0 %v507
    %941 = vmatpush1.bf16.msra.mxu0 %v506
    %942 = vmatprep.subr.bf16.mxu0 %v515
    %943 = vmatpush1.bf16.msra.mxu0 %v514
    %944 = vmatprep.subr.bf16.mxu0 0
    %945 = vmatpush1.bf16.msra.mxu0 0
    %946 = vmatprep.subr.bf16.mxu0 0
    %947 = vmatpush1.bf16.msra.mxu0 0
    %948 = vmatprep.subr.bf16.mxu0 0
    %949 = vmatpush1.bf16.msra.mxu0 0
    %950 = vmatprep.subr.bf16.mxu0 0
    %951 = vmatpush1.bf16.msra.mxu0 0
    %952 = vmatprep.subr.bf16.mxu0 0
    %953 = vmatpush1.bf16.msra.mxu0 0
    %954 = vmatprep.subr.bf16.mxu0 0
    %955 = vmatpush1.bf16.msra.mxu0 0
    %956 = vmatprep.subr.bf16.mxu0 0
    %957 = vmatpush1.bf16.msra.mxu0 0
    %958 = vmatprep.subr.bf16.mxu0 0
    %959 = vmatpush1.bf16.msra.mxu0 0
    %960 = vmatprep.mubr.bf16.mxu0 0
    %961 = vmatmul.mubr.bf16.gmra.mrb[0].mxu0 %v100
    %v962 = vpop.f32.mrb[0].mxu0
    %v963 = vadd.f32 %v241, %v962
    %v964 = vpop.f32.mrb[0].mxu0
    %v965 = vadd.f32 %v245, %v964
    %v966 = vpop.f32.mrb[0].mxu0
    %v967 = vadd.f32 %v241, %v966
    %v968 = vpop.f32.mrb[0].mxu0
    %v969 = vadd.f32 %v245, %v968
    %970 = vmatprep.mubr.bf16.mxu0 0
    %971 = vmatmul.mubr.bf16.gmra.mrb[0].mxu0 %v101
    %v972 = vpop.f32.mrb[0].mxu0
    %v973 = vadd.f32 %v241, %v972
    %v974 = vpop.f32.mrb[0].mxu0
    %v975 = vadd.f32 %v245, %v974
    %v976 = vpop.f32.mrb[0].mxu0
    %v977 = vadd.f32 %v241, %v976
    %v978 = vpop.f32.mrb[0].mxu0
    %v979 = vadd.f32 %v245, %v978
    %980 = vmatprep.mubr.bf16.mxu0 0
    %981 = vmatmul.mubr.bf16.gmra.mrb[0].mxu0 %v102
    %v982 = vpop.f32.mrb[0].mxu0
    %v983 = vadd.f32 %v241, %v982
    %v984 = vpop.f32.mrb[0].mxu0
    %v985 = vadd.f32 %v245, %v984
    %v986 = vpop.f32.mrb[0].mxu0
    %v987 = vadd.f32 %v241, %v986
    %v988 = vpop.f32.mrb[0].mxu0
    %v989 = vadd.f32 %v245, %v988
    %990 = vmatprep.mubr.bf16.mxu0 0
    %991 = vmatmul.mubr.bf16.gmra.mrb[0].mxu0 %v103
    %v992 = vpop.f32.mrb[0].mxu0
    %v993 = vadd.f32 %v241, %v992
    %v994 = vpop.f32.mrb[0].mxu0
    %v995 = vadd.f32 %v245, %v994
    %v996 = vpop.f32.mrb[0].mxu0
    %v997 = vadd.f32 %v241, %v996
    %v998 = vpop.f32.mrb[0].mxu0
    %v999 = vadd.f32 %v245, %v998
    %1000 = vmatprep.mubr.bf16.mxu0 0
    %1001 = vmatmul.mubr.bf16.gmra.mrb[0].mxu0 %v104
    %v1002 = vpop.f32.mrb[0].mxu0
    %v1003 = vadd.f32 %v241, %v1002
    %v1004 = vpop.f32.mrb[0].mxu0
    %v1005 = vadd.f32 %v245, %v1004
    %v1006 = vpop.f32.mrb[0].mxu0
    %v1007 = vadd.f32 %v241, %v1006
    %v1008 = vpop.f32.mrb[0].mxu0
    %v1009 = vadd.f32 %v245, %v1008
    %1010 = vmatprep.mubr.bf16.mxu0 0
    %1011 = vmatmul.mubr.bf16.gmra.mrb[0].mxu0 %v105
    %v1012 = vpop.f32.mrb[0].mxu0
    %v1013 = vadd.f32 %v241, %v1012
    %v1014 = vpop.f32.mrb[0].mxu0
    %v1015 = vadd.f32 %v245, %v1014
    %v1016 = vpop.f32.mrb[0].mxu0
    %v1017 = vadd.f32 %v241, %v1016
    %v1018 = vpop.f32.mrb[0].mxu0
    %v1019 = vadd.f32 %v245, %v1018
    %1020 = vmatprep.mubr.bf16.mxu0 0
    %1021 = vmatmul.mubr.bf16.gmra.mrb[0].mxu0 %v106
    %v1022 = vpop.f32.mrb[0].mxu0
    %v1023 = vadd.f32 %v241, %v1022
    %v1024 = vpop.f32.mrb[0].mxu0
    %v1025 = vadd.f32 %v245, %v1024
    %v1026 = vpop.f32.mrb[0].mxu0
    %v1027 = vadd.f32 %v241, %v1026
    %v1028 = vpop.f32.mrb[0].mxu0
    %v1029 = vadd.f32 %v245, %v1028
    %1030 = vmatprep.mubr.bf16.mxu0 0
    %1031 = vmatmul.mubr.bf16.gmra.mrb[0].mxu0 %v142
    %v1032 = vpop.f32.mrb[0].mxu0
    %v1033 = vadd.f32 %v241, %v1032
    %v1034 = vpop.f32.mrb[0].mxu0
    %v1035 = vadd.f32 %v245, %v1034
    %v1036 = vpop.f32.mrb[0].mxu0
    %v1037 = vadd.f32 %v241, %v1036
    %v1038 = vpop.f32.mrb[0].mxu0
    %v1039 = vadd.f32 %v245, %v1038
    %1040 = vmatprep.mubr.bf16.mxu0 0
    %1041 = vmatmul.mubr.bf16.gmra.mrb[0].mxu0 %v143
    %v1042 = vpop.f32.mrb[0].mxu0
    %v1043 = vadd.f32 %v241, %v1042
    %v1044 = vpop.f32.mrb[0].mxu0
    %v1045 = vadd.f32 %v245, %v1044
    %v1046 = vpop.f32.mrb[0].mxu0
    %v1047 = vadd.f32 %v241, %v1046
    %v1048 = vpop.f32.mrb[0].mxu0
    %v1049 = vadd.f32 %v245, %v1048
    %1050 = vmatprep.mubr.bf16.mxu0 0
    %1051 = vmatmul.mubr.bf16.gmra.mrb[0].mxu0 %v144
    %v1052 = vpop.f32.mrb[0].mxu0
    %v1053 = vadd.f32 %v241, %v1052
    %v1054 = vpop.f32.mrb[0].mxu0
    %v1055 = vadd.f32 %v245, %v1054
    %v1056 = vpop.f32.mrb[0].mxu0
    %v1057 = vadd.f32 %v241, %v1056
    %v1058 = vpop.f32.mrb[0].mxu0
    %v1059 = vadd.f32 %v245, %v1058
    %1060 = vmatprep.mubr.bf16.mxu0 0
    %1061 = vmatmul.mubr.bf16.gmra.mrb[0].mxu0 %v145
    %v1062 = vpop.f32.mrb[0].mxu0
    %v1063 = vadd.f32 %v241, %v1062
    %v1064 = vpop.f32.mrb[0].mxu0
    %v1065 = vadd.f32 %v245, %v1064
    %v1066 = vpop.f32.mrb[0].mxu0
    %v1067 = vadd.f32 %v241, %v1066
    %v1068 = vpop.f32.mrb[0].mxu0
    %v1069 = vadd.f32 %v245, %v1068
    %1070 = vmatprep.mubr.bf16.mxu0 0
    %1071 = vmatmul.mubr.bf16.gmra.mrb[0].mxu0 %v146
    %v1072 = vpop.f32.mrb[0].mxu0
    %v1073 = vadd.f32 %v241, %v1072
    %v1074 = vpop.f32.mrb[0].mxu0
    %v1075 = vadd.f32 %v245, %v1074
    %v1076 = vpop.f32.mrb[0].mxu0
    %v1077 = vadd.f32 %v241, %v1076
    %v1078 = vpop.f32.mrb[0].mxu0
    %v1079 = vadd.f32 %v245, %v1078
    %1080 = vmatprep.mubr.bf16.mxu0 0
    %1081 = vmatmul.mubr.bf16.gmra.mrb[0].mxu0 %v147
    %v1082 = vpop.f32.mrb[0].mxu0
    %v1083 = vadd.f32 %v241, %v1082
    %v1084 = vpop.f32.mrb[0].mxu0
    %v1085 = vadd.f32 %v245, %v1084
    %v1086 = vpop.f32.mrb[0].mxu0
    %v1087 = vadd.f32 %v241, %v1086
    %v1088 = vpop.f32.mrb[0].mxu0
    %v1089 = vadd.f32 %v245, %v1088
    %1090 = vmatprep.mubr.bf16.mxu0 0
    %1091 = vmatmul.mubr.bf16.gmra.mrb[0].mxu0 %v148
    %v1092 = vpop.f32.mrb[0].mxu0
    %v1093 = vadd.f32 %v241, %v1092
    %v1094 = vpop.f32.mrb[0].mxu0
    %v1095 = vadd.f32 %v245, %v1094
    %v1096 = vpop.f32.mrb[0].mxu0
    %v1097 = vadd.f32 %v241, %v1096
    %v1098 = vpop.f32.mrb[0].mxu0
    %v1099 = vadd.f32 %v245, %v1098
    %1100 = vdwg.mxu0
    %1101 = vmatprep.subr.bf16.mxu0 %v461
    %1102 = vmatpush1.bf16.msra.mxu0 %v460
    %1103 = vmatprep.subr.bf16.mxu0 %v469
    %1104 = vmatpush1.bf16.msra.mxu0 %v468
    %1105 = vmatprep.subr.bf16.mxu0 %v477
    %1106 = vmatpush1.bf16.msra.mxu0 %v476
    %1107 = vmatprep.subr.bf16.mxu0 %v485
    %1108 = vmatpush1.bf16.msra.mxu0 %v484
    %1109 = vmatprep.subr.bf16.mxu0 %v493
    %1110 = vmatpush1.bf16.msra.mxu0 %v492
    %1111 = vmatprep.subr.bf16.mxu0 %v501
    %1112 = vmatpush1.bf16.msra.mxu0 %v500
    %1113 = vmatprep.subr.bf16.mxu0 %v509
    %1114 = vmatpush1.bf16.msra.mxu0 %v508
    %1115 = vmatprep.subr.bf16.mxu0 %v517
    %1116 = vmatpush1.bf16.msra.mxu0 %v516
    %1117 = vmatprep.subr.bf16.mxu0 0
    %1118 = vmatpush1.bf16.msra.mxu0 0
    %1119 = vmatprep.subr.bf16.mxu0 0
    %1120 = vmatpush1.bf16.msra.mxu0 0
    %1121 = vmatprep.subr.bf16.mxu0 0
    %1122 = vmatpush1.bf16.msra.mxu0 0
    %1123 = vmatprep.subr.bf16.mxu0 0
    %1124 = vmatpush1.bf16.msra.mxu0 0
    %1125 = vmatprep.subr.bf16.mxu0 0
    %1126 = vmatpush1.bf16.msra.mxu0 0
    %1127 = vmatprep.subr.bf16.mxu0 0
    %1128 = vmatpush1.bf16.msra.mxu0 0
    %1129 = vmatprep.subr.bf16.mxu0 0
    %1130 = vmatpush1.bf16.msra.mxu0 0
    %1131 = vmatprep.subr.bf16.mxu0 0
    %1132 = vmatpush1.bf16.msra.mxu0 0
    %1133 = vmatprep.mubr.bf16.mxu0 0
    %1134 = vmatmul.mubr.bf16.gmra.mrb[0].mxu0 %v100
    %v1135 = vpop.f32.mrb[0].mxu0
    %v1136 = vadd.f32 %v249, %v1135
    %v1137 = vpop.f32.mrb[0].mxu0
    %v1138 = vadd.f32 %v253, %v1137
    %v1139 = vpop.f32.mrb[0].mxu0
    %v1140 = vadd.f32 %v249, %v1139
    %v1141 = vpop.f32.mrb[0].mxu0
    %v1142 = vadd.f32 %v253, %v1141
    %1143 = vmatprep.mubr.bf16.mxu0 0
    %1144 = vmatmul.mubr.bf16.gmra.mrb[0].mxu0 %v101
    %v1145 = vpop.f32.mrb[0].mxu0
    %v1146 = vadd.f32 %v249, %v1145
    %v1147 = vpop.f32.mrb[0].mxu0
    %v1148 = vadd.f32 %v253, %v1147
    %v1149 = vpop.f32.mrb[0].mxu0
    %v1150 = vadd.f32 %v249, %v1149
    %v1151 = vpop.f32.mrb[0].mxu0
    %v1152 = vadd.f32 %v253, %v1151
    %1153 = vmatprep.mubr.bf16.mxu0 0
    %1154 = vmatmul.mubr.bf16.gmra.mrb[0].mxu0 %v102
    %v1155 = vpop.f32.mrb[0].mxu0
    %v1156 = vadd.f32 %v249, %v1155
    %v1157 = vpop.f32.mrb[0].mxu0
    %v1158 = vadd.f32 %v253, %v1157
    %v1159 = vpop.f32.mrb[0].mxu0
    %v1160 = vadd.f32 %v249, %v1159
    %v1161 = vpop.f32.mrb[0].mxu0
    %v1162 = vadd.f32 %v253, %v1161
    %1163 = vmatprep.mubr.bf16.mxu0 0
    %1164 = vmatmul.mubr.bf16.gmra.mrb[0].mxu0 %v103
    %v1165 = vpop.f32.mrb[0].mxu0
    %v1166 = vadd.f32 %v249, %v1165
    %v1167 = vpop.f32.mrb[0].mxu0
    %v1168 = vadd.f32 %v253, %v1167
    %v1169 = vpop.f32.mrb[0].mxu0
    %v1170 = vadd.f32 %v249, %v1169
    %v1171 = vpop.f32.mrb[0].mxu0
    %v1172 = vadd.f32 %v253, %v1171
    %1173 = vmatprep.mubr.bf16.mxu0 0
    %1174 = vmatmul.mubr.bf16.gmra.mrb[0].mxu0 %v104
    %v1175 = vpop.f32.mrb[0].mxu0
    %v1176 = vadd.f32 %v249, %v1175
    %v1177 = vpop.f32.mrb[0].mxu0
    %v1178 = vadd.f32 %v253, %v1177
    %v1179 = vpop.f32.mrb[0].mxu0
    %v1180 = vadd.f32 %v249, %v1179
    %v1181 = vpop.f32.mrb[0].mxu0
    %v1182 = vadd.f32 %v253, %v1181
    %1183 = vmatprep.mubr.bf16.mxu0 0
    %1184 = vmatmul.mubr.bf16.gmra.mrb[0].mxu0 %v105
    %v1185 = vpop.f32.mrb[0].mxu0
    %v1186 = vadd.f32 %v249, %v1185
    %v1187 = vpop.f32.mrb[0].mxu0
    %v1188 = vadd.f32 %v253, %v1187
    %v1189 = vpop.f32.mrb[0].mxu0
    %v1190 = vadd.f32 %v249, %v1189
    %v1191 = vpop.f32.mrb[0].mxu0
    %v1192 = vadd.f32 %v253, %v1191
    %1193 = vmatprep.mubr.bf16.mxu0 0
    %1194 = vmatmul.mubr.bf16.gmra.mrb[0].mxu0 %v106
    %v1195 = vpop.f32.mrb[0].mxu0
    %v1196 = vadd.f32 %v249, %v1195
    %v1197 = vpop.f32.mrb[0].mxu0
    %v1198 = vadd.f32 %v253, %v1197
    %v1199 = vpop.f32.mrb[0].mxu0
    %v1200 = vadd.f32 %v249, %v1199
    %v1201 = vpop.f32.mrb[0].mxu0
    %v1202 = vadd.f32 %v253, %v1201
    %1203 = vmatprep.mubr.bf16.mxu0 0
    %1204 = vmatmul.mubr.bf16.gmra.mrb[0].mxu0 %v142
    %v1205 = vpop.f32.mrb[0].mxu0
    %v1206 = vadd.f32 %v249, %v1205
    %v1207 = vpop.f32.mrb[0].mxu0
    %v1208 = vadd.f32 %v253, %v1207
    %v1209 = vpop.f32.mrb[0].mxu0
    %v1210 = vadd.f32 %v249, %v1209
    %v1211 = vpop.f32.mrb[0].mxu0
    %v1212 = vadd.f32 %v253, %v1211
    %1213 = vmatprep.mubr.bf16.mxu0 0
    %1214 = vmatmul.mubr.bf16.gmra.mrb[0].mxu0 %v143
    %v1215 = vpop.f32.mrb[0].mxu0
    %v1216 = vadd.f32 %v249, %v1215
    %v1217 = vpop.f32.mrb[0].mxu0
    %v1218 = vadd.f32 %v253, %v1217
    %v1219 = vpop.f32.mrb[0].mxu0
    %v1220 = vadd.f32 %v249, %v1219
    %v1221 = vpop.f32.mrb[0].mxu0
    %v1222 = vadd.f32 %v253, %v1221
    %1223 = vmatprep.mubr.bf16.mxu0 0
    %1224 = vmatmul.mubr.bf16.gmra.mrb[0].mxu0 %v144
    %v1225 = vpop.f32.mrb[0].mxu0
    %v1226 = vadd.f32 %v249, %v1225
    %v1227 = vpop.f32.mrb[0].mxu0
    %v1228 = vadd.f32 %v253, %v1227
    %v1229 = vpop.f32.mrb[0].mxu0
    %v1230 = vadd.f32 %v249, %v1229
    %v1231 = vpop.f32.mrb[0].mxu0
    %v1232 = vadd.f32 %v253, %v1231
    %1233 = vmatprep.mubr.bf16.mxu0 0
    %1234 = vmatmul.mubr.bf16.gmra.mrb[0].mxu0 %v145
    %v1235 = vpop.f32.mrb[0].mxu0
    %v1236 = vadd.f32 %v249, %v1235
    %v1237 = vpop.f32.mrb[0].mxu0
    %v1238 = vadd.f32 %v253, %v1237
    %v1239 = vpop.f32.mrb[0].mxu0
    %v1240 = vadd.f32 %v249, %v1239
    %v1241 = vpop.f32.mrb[0].mxu0
    %v1242 = vadd.f32 %v253, %v1241
    %1243 = vmatprep.mubr.bf16.mxu0 0
    %1244 = vmatmul.mubr.bf16.gmra.mrb[0].mxu0 %v146
    %v1245 = vpop.f32.mrb[0].mxu0
    %v1246 = vadd.f32 %v249, %v1245
    %v1247 = vpop.f32.mrb[0].mxu0
    %v1248 = vadd.f32 %v253, %v1247
    %v1249 = vpop.f32.mrb[0].mxu0
    %v1250 = vadd.f32 %v249, %v1249
    %v1251 = vpop.f32.mrb[0].mxu0
    %v1252 = vadd.f32 %v253, %v1251
    %1253 = vmatprep.mubr.bf16.mxu0 0
    %1254 = vmatmul.mubr.bf16.gmra.mrb[0].mxu0 %v147
    %v1255 = vpop.f32.mrb[0].mxu0
    %v1256 = vadd.f32 %v249, %v1255
    %v1257 = vpop.f32.mrb[0].mxu0
    %v1258 = vadd.f32 %v253, %v1257
    %v1259 = vpop.f32.mrb[0].mxu0
    %v1260 = vadd.f32 %v249, %v1259
    %v1261 = vpop.f32.mrb[0].mxu0
    %v1262 = vadd.f32 %v253, %v1261
    %1263 = vmatprep.mubr.bf16.mxu0 0
    %1264 = vmatmul.mubr.bf16.gmra.mrb[0].mxu0 %v148
    %v1265 = vpop.f32.mrb[0].mxu0
    %v1266 = vadd.f32 %v249, %v1265
    %v1267 = vpop.f32.mrb[0].mxu0
    %v1268 = vadd.f32 %v253, %v1267
    %v1269 = vpop.f32.mrb[0].mxu0
    %v1270 = vadd.f32 %v249, %v1269
    %v1271 = vpop.f32.mrb[0].mxu0
    %v1272 = vadd.f32 %v253, %v1271
    %1273 = vdwg.mxu0
    %v1274 = vmax.f32 %v617, 0.0
    %v1275 = vmax.f32 %v619, 0.0
    %v1276 = vmax.f32 %v790, 0.0
    %v1277 = vmax.f32 %v792, 0.0
    %v1278 = vmax.f32 %v963, 0.0
    %v1279 = vmax.f32 %v965, 0.0
    %v1280 = vmax.f32 %v1136, 0.0
    %v1281 = vmax.f32 %v1138, 0.0
    %v1282 = vmax.f32 %v621, 0.0
    %v1283 = vmax.f32 %v623, 0.0
    %v1284 = vmax.f32 %v794, 0.0
    %v1285 = vmax.f32 %v796, 0.0
    %v1286 = vmax.f32 %v967, 0.0
    %v1287 = vmax.f32 %v969, 0.0
    %v1288 = vmax.f32 %v1140, 0.0
    %v1289 = vmax.f32 %v1142, 0.0
    %v1290 = vmax.f32 %v627, 0.0
    %v1291 = vmax.f32 %v629, 0.0
    %v1292 = vmax.f32 %v800, 0.0
    %v1293 = vmax.f32 %v802, 0.0
    %v1294 = vmax.f32 %v973, 0.0
    %v1295 = vmax.f32 %v975, 0.0
    %v1296 = vmax.f32 %v1146, 0.0
    %v1297 = vmax.f32 %v1148, 0.0
    %v1298 = vmax.f32 %v631, 0.0
    %v1299 = vmax.f32 %v633, 0.0
    %v1300 = vmax.f32 %v804, 0.0
    %v1301 = vmax.f32 %v806, 0.0
    %v1302 = vmax.f32 %v977, 0.0
    %v1303 = vmax.f32 %v979, 0.0
    %v1304 = vmax.f32 %v1150, 0.0
    %v1305 = vmax.f32 %v1152, 0.0
    %v1306 = vmax.f32 %v637, 0.0
    %v1307 = vmax.f32 %v639, 0.0
    %v1308 = vmax.f32 %v810, 0.0
    %v1309 = vmax.f32 %v812, 0.0
    %v1310 = vmax.f32 %v983, 0.0
    %v1311 = vmax.f32 %v985, 0.0
    %v1312 = vmax.f32 %v1156, 0.0
    %v1313 = vmax.f32 %v1158, 0.0
    %v1314 = vmax.f32 %v641, 0.0
    %v1315 = vmax.f32 %v643, 0.0
    %v1316 = vmax.f32 %v814, 0.0
    %v1317 = vmax.f32 %v816, 0.0
    %v1318 = vmax.f32 %v987, 0.0
    %v1319 = vmax.f32 %v989, 0.0
    %v1320 = vmax.f32 %v1160, 0.0
    %v1321 = vmax.f32 %v1162, 0.0
    %v1322 = vmax.f32 %v647, 0.0
    %v1323 = vmax.f32 %v649, 0.0
    %v1324 = vmax.f32 %v820, 0.0
    %v1325 = vmax.f32 %v822, 0.0
    %v1326 = vmax.f32 %v993, 0.0
    %v1327 = vmax.f32 %v995, 0.0
    %v1328 = vmax.f32 %v1166, 0.0
    %v1329 = vmax.f32 %v1168, 0.0
    %v1330 = vmax.f32 %v651, 0.0
    %v1331 = vmax.f32 %v653, 0.0
    %v1332 = vmax.f32 %v824, 0.0
    %v1333 = vmax.f32 %v826, 0.0
    %v1334 = vmax.f32 %v997, 0.0
    %v1335 = vmax.f32 %v999, 0.0
    %v1336 = vmax.f32 %v1170, 0.0
    %v1337 = vmax.f32 %v1172, 0.0
    %v1338 = vmax.f32 %v657, 0.0
    %v1339 = vmax.f32 %v659, 0.0
    %v1340 = vmax.f32 %v830, 0.0
    %v1341 = vmax.f32 %v832, 0.0
    %v1342 = vmax.f32 %v1003, 0.0
    %v1343 = vmax.f32 %v1005, 0.0
    %v1344 = vmax.f32 %v1176, 0.0
    %v1345 = vmax.f32 %v1178, 0.0
    %v1346 = vmax.f32 %v661, 0.0
    %v1347 = vmax.f32 %v663, 0.0
    %v1348 = vmax.f32 %v834, 0.0
    %v1349 = vmax.f32 %v836, 0.0
    %v1350 = vmax.f32 %v1007, 0.0
    %v1351 = vmax.f32 %v1009, 0.0
    %v1352 = vmax.f32 %v1180, 0.0
    %v1353 = vmax.f32 %v1182, 0.0
    %v1354 = vmax.f32 %v667, 0.0
    %v1355 = vmax.f32 %v669, 0.0
    %v1356 = vmax.f32 %v840, 0.0
    %v1357 = vmax.f32 %v842, 0.0
    %v1358 = vmax.f32 %v1013, 0.0
    %v1359 = vmax.f32 %v1015, 0.0
    %v1360 = vmax.f32 %v1186, 0.0
    %v1361 = vmax.f32 %v1188, 0.0
    %v1362 = vmax.f32 %v671, 0.0
    %v1363 = vmax.f32 %v673, 0.0
    %v1364 = vmax.f32 %v844, 0.0
    %v1365 = vmax.f32 %v846, 0.0
    %v1366 = vmax.f32 %v1017, 0.0
    %v1367 = vmax.f32 %v1019, 0.0
    %v1368 = vmax.f32 %v1190, 0.0
    %v1369 = vmax.f32 %v1192, 0.0
    %v1370 = vmax.f32 %v677, 0.0
    %v1371 = vmax.f32 %v679, 0.0
    %v1372 = vmax.f32 %v850, 0.0
    %v1373 = vmax.f32 %v852, 0.0
    %v1374 = vmax.f32 %v1023, 0.0
    %v1375 = vmax.f32 %v1025, 0.0
    %v1376 = vmax.f32 %v1196, 0.0
    %v1377 = vmax.f32 %v1198, 0.0
    %v1378 = vmax.f32 %v681, 0.0
    %v1379 = vmax.f32 %v683, 0.0
    %v1380 = vmax.f32 %v854, 0.0
    %v1381 = vmax.f32 %v856, 0.0
    %v1382 = vmax.f32 %v1027, 0.0
    %v1383 = vmax.f32 %v1029, 0.0
    %v1384 = vmax.f32 %v1200, 0.0
    %v1385 = vmax.f32 %v1202, 0.0
    %v1386 = vmax.f32 %v687, 0.0
    %v1387 = vmax.f32 %v689, 0.0
    %v1388 = vmax.f32 %v860, 0.0
    %v1389 = vmax.f32 %v862, 0.0
    %v1390 = vmax.f32 %v1033, 0.0
    %v1391 = vmax.f32 %v1035, 0.0
    %v1392 = vmax.f32 %v1206, 0.0
    %v1393 = vmax.f32 %v1208, 0.0
    %v1394 = vmax.f32 %v691, 0.0
    %v1395 = vmax.f32 %v693, 0.0
    %v1396 = vmax.f32 %v864, 0.0
    %v1397 = vmax.f32 %v866, 0.0
    %v1398 = vmax.f32 %v1037, 0.0
    %v1399 = vmax.f32 %v1039, 0.0
    %v1400 = vmax.f32 %v1210, 0.0
    %v1401 = vmax.f32 %v1212, 0.0
    %v1402 = vmax.f32 %v697, 0.0
    %v1403 = vmax.f32 %v699, 0.0
    %v1404 = vmax.f32 %v870, 0.0
    %v1405 = vmax.f32 %v872, 0.0
    %v1406 = vmax.f32 %v1043, 0.0
    %v1407 = vmax.f32 %v1045, 0.0
    %v1408 = vmax.f32 %v1216, 0.0
    %v1409 = vmax.f32 %v1218, 0.0
    %v1410 = vmax.f32 %v701, 0.0
    %v1411 = vmax.f32 %v703, 0.0
    %v1412 = vmax.f32 %v874, 0.0
    %v1413 = vmax.f32 %v876, 0.0
    %v1414 = vmax.f32 %v1047, 0.0
    %v1415 = vmax.f32 %v1049, 0.0
    %v1416 = vmax.f32 %v1220, 0.0
    %v1417 = vmax.f32 %v1222, 0.0
    %v1418 = vmax.f32 %v707, 0.0
    %v1419 = vmax.f32 %v709, 0.0
    %v1420 = vmax.f32 %v880, 0.0
    %v1421 = vmax.f32 %v882, 0.0
    %v1422 = vmax.f32 %v1053, 0.0
    %v1423 = vmax.f32 %v1055, 0.0
    %v1424 = vmax.f32 %v1226, 0.0
    %v1425 = vmax.f32 %v1228, 0.0
    %v1426 = vmax.f32 %v711, 0.0
    %v1427 = vmax.f32 %v713, 0.0
    %v1428 = vmax.f32 %v884, 0.0
    %v1429 = vmax.f32 %v886, 0.0
    %v1430 = vmax.f32 %v1057, 0.0
    %v1431 = vmax.f32 %v1059, 0.0
    %v1432 = vmax.f32 %v1230, 0.0
    %v1433 = vmax.f32 %v1232, 0.0
    %v1434 = vmax.f32 %v717, 0.0
    %v1435 = vmax.f32 %v719, 0.0
    %v1436 = vmax.f32 %v890, 0.0
    %v1437 = vmax.f32 %v892, 0.0
    %v1438 = vmax.f32 %v1063, 0.0
    %v1439 = vmax.f32 %v1065, 0.0
    %v1440 = vmax.f32 %v1236, 0.0
    %v1441 = vmax.f32 %v1238, 0.0
    %v1442 = vmax.f32 %v721, 0.0
    %v1443 = vmax.f32 %v723, 0.0
    %v1444 = vmax.f32 %v894, 0.0
    %v1445 = vmax.f32 %v896, 0.0
    %v1446 = vmax.f32 %v1067, 0.0
    %v1447 = vmax.f32 %v1069, 0.0
    %v1448 = vmax.f32 %v1240, 0.0
    %v1449 = vmax.f32 %v1242, 0.0
    %v1450 = vmax.f32 %v727, 0.0
    %v1451 = vmax.f32 %v729, 0.0
    %v1452 = vmax.f32 %v900, 0.0
    %v1453 = vmax.f32 %v902, 0.0
    %v1454 = vmax.f32 %v1073, 0.0
    %v1455 = vmax.f32 %v1075, 0.0
    %v1456 = vmax.f32 %v1246, 0.0
    %v1457 = vmax.f32 %v1248, 0.0
    %v1458 = vmax.f32 %v731, 0.0
    %v1459 = vmax.f32 %v733, 0.0
    %v1460 = vmax.f32 %v904, 0.0
    %v1461 = vmax.f32 %v906, 0.0
    %v1462 = vmax.f32 %v1077, 0.0
    %v1463 = vmax.f32 %v1079, 0.0
    %v1464 = vmax.f32 %v1250, 0.0
    %v1465 = vmax.f32 %v1252, 0.0
    %v1466 = vmax.f32 %v737, 0.0
    %v1467 = vmax.f32 %v739, 0.0
    %v1468 = vmax.f32 %v910, 0.0
    %v1469 = vmax.f32 %v912, 0.0
    %v1470 = vmax.f32 %v1083, 0.0
    %v1471 = vmax.f32 %v1085, 0.0
    %v1472 = vmax.f32 %v1256, 0.0
    %v1473 = vmax.f32 %v1258, 0.0
    %v1474 = vmax.f32 %v741, 0.0
    %v1475 = vmax.f32 %v743, 0.0
    %v1476 = vmax.f32 %v914, 0.0
    %v1477 = vmax.f32 %v916, 0.0
    %v1478 = vmax.f32 %v1087, 0.0
    %v1479 = vmax.f32 %v1089, 0.0
    %v1480 = vmax.f32 %v1260, 0.0
    %v1481 = vmax.f32 %v1262, 0.0
    %v1482 = vmax.f32 %v747, 0.0
    %v1483 = vmax.f32 %v749, 0.0
    %v1484 = vmax.f32 %v920, 0.0
    %v1485 = vmax.f32 %v922, 0.0
    %v1486 = vmax.f32 %v1093, 0.0
    %v1487 = vmax.f32 %v1095, 0.0
    %v1488 = vmax.f32 %v1266, 0.0
    %v1489 = vmax.f32 %v1268, 0.0
    %v1490 = vmax.f32 %v751, 0.0
    %v1491 = vmax.f32 %v753, 0.0
    %v1492 = vmax.f32 %v924, 0.0
    %v1493 = vmax.f32 %v926, 0.0
    %v1494 = vmax.f32 %v1097, 0.0
    %v1495 = vmax.f32 %v1099, 0.0
    %v1496 = vmax.f32 %v1270, 0.0
    %v1497 = vmax.f32 %v1272, 0.0
    %v1498 = vmax.f32 %v1274, %v1278
    %v1499 = vmax.f32 %v1275, %v1279
    %v1500 = vmax.f32 %v1276, %v1280
    %v1501 = vmax.f32 %v1277, %v1281
    %v1502 = vmax.f32 %v1282, %v1286
    %v1503 = vmax.f32 %v1283, %v1287
    %v1504 = vmax.f32 %v1284, %v1288
    %v1505 = vmax.f32 %v1285, %v1289
    %v1506 = vmax.f32 %v1290, %v1294
    %v1507 = vmax.f32 %v1291, %v1295
    %v1508 = vmax.f32 %v1292, %v1296
    %v1509 = vmax.f32 %v1293, %v1297
    %v1510 = vmax.f32 %v1298, %v1302
    %v1511 = vmax.f32 %v1299, %v1303
    %v1512 = vmax.f32 %v1300, %v1304
    %v1513 = vmax.f32 %v1301, %v1305
    %v1514 = vmax.f32 %v1306, %v1310
    %v1515 = vmax.f32 %v1307, %v1311
    %v1516 = vmax.f32 %v1308, %v1312
    %v1517 = vmax.f32 %v1309, %v1313
    %v1518 = vmax.f32 %v1314, %v1318
    %v1519 = vmax.f32 %v1315, %v1319
    %v1520 = vmax.f32 %v1316, %v1320
    %v1521 = vmax.f32 %v1317, %v1321
    %v1522 = vmax.f32 %v1322, %v1326
    %v1523 = vmax.f32 %v1323, %v1327
    %v1524 = vmax.f32 %v1324, %v1328
    %v1525 = vmax.f32 %v1325, %v1329
    %v1526 = vmax.f32 %v1330, %v1334
    %v1527 = vmax.f32 %v1331, %v1335
    %v1528 = vmax.f32 %v1332, %v1336
    %v1529 = vmax.f32 %v1333, %v1337
    %v1530 = vmax.f32 %v1338, %v1342
    %v1531 = vmax.f32 %v1339, %v1343
    %v1532 = vmax.f32 %v1340, %v1344
    %v1533 = vmax.f32 %v1341, %v1345
    %v1534 = vmax.f32 %v1346, %v1350
    %v1535 = vmax.f32 %v1347, %v1351
    %v1536 = vmax.f32 %v1348, %v1352
    %v1537 = vmax.f32 %v1349, %v1353
    %v1538 = vmax.f32 %v1354, %v1358
    %v1539 = vmax.f32 %v1355, %v1359
    %v1540 = vmax.f32 %v1356, %v1360
    %v1541 = vmax.f32 %v1357, %v1361
    %v1542 = vmax.f32 %v1362, %v1366
    %v1543 = vmax.f32 %v1363, %v1367
    %v1544 = vmax.f32 %v1364, %v1368
    %v1545 = vmax.f32 %v1365, %v1369
    %v1546 = vmax.f32 %v1370, %v1374
    %v1547 = vmax.f32 %v1371, %v1375
    %v1548 = vmax.f32 %v1372, %v1376
    %v1549 = vmax.f32 %v1373, %v1377
    %v1550 = vmax.f32 %v1378, %v1382
    %v1551 = vmax.f32 %v1379, %v1383
    %v1552 = vmax.f32 %v1380, %v1384
    %v1553 = vmax.f32 %v1381, %v1385
    %v1554 = vmax.f32 %v1386, %v1390
    %v1555 = vmax.f32 %v1387, %v1391
    %v1556 = vmax.f32 %v1388, %v1392
    %v1557 = vmax.f32 %v1389, %v1393
    %v1558 = vmax.f32 %v1394, %v1398
    %v1559 = vmax.f32 %v1395, %v1399
    %v1560 = vmax.f32 %v1396, %v1400
    %v1561 = vmax.f32 %v1397, %v1401
    %v1562 = vmax.f32 %v1402, %v1406
    %v1563 = vmax.f32 %v1403, %v1407
    %v1564 = vmax.f32 %v1404, %v1408
    %v1565 = vmax.f32 %v1405, %v1409
    %v1566 = vmax.f32 %v1410, %v1414
    %v1567 = vmax.f32 %v1411, %v1415
    %v1568 = vmax.f32 %v1412, %v1416
    %v1569 = vmax.f32 %v1413, %v1417
    %v1570 = vmax.f32 %v1418, %v1422
    %v1571 = vmax.f32 %v1419, %v1423
    %v1572 = vmax.f32 %v1420, %v1424
    %v1573 = vmax.f32 %v1421, %v1425
    %v1574 = vmax.f32 %v1426, %v1430
    %v1575 = vmax.f32 %v1427, %v1431
    %v1576 = vmax.f32 %v1428, %v1432
    %v1577 = vmax.f32 %v1429, %v1433
    %v1578 = vmax.f32 %v1434, %v1438
    %v1579 = vmax.f32 %v1435, %v1439
    %v1580 = vmax.f32 %v1436, %v1440
    %v1581 = vmax.f32 %v1437, %v1441
    %v1582 = vmax.f32 %v1442, %v1446
    %v1583 = vmax.f32 %v1443, %v1447
    %v1584 = vmax.f32 %v1444, %v1448
    %v1585 = vmax.f32 %v1445, %v1449
    %v1586 = vmax.f32 %v1450, %v1454
    %v1587 = vmax.f32 %v1451, %v1455
    %v1588 = vmax.f32 %v1452, %v1456
    %v1589 = vmax.f32 %v1453, %v1457
    %v1590 = vmax.f32 %v1458, %v1462
    %v1591 = vmax.f32 %v1459, %v1463
    %v1592 = vmax.f32 %v1460, %v1464
    %v1593 = vmax.f32 %v1461, %v1465
    %v1594 = vmax.f32 %v1466, %v1470
    %v1595 = vmax.f32 %v1467, %v1471
    %v1596 = vmax.f32 %v1468, %v1472
    %v1597 = vmax.f32 %v1469, %v1473
    %v1598 = vmax.f32 %v1474, %v1478
    %v1599 = vmax.f32 %v1475, %v1479
    %v1600 = vmax.f32 %v1476, %v1480
    %v1601 = vmax.f32 %v1477, %v1481
    %v1602 = vmax.f32 %v1482, %v1486
    %v1603 = vmax.f32 %v1483, %v1487
    %v1604 = vmax.f32 %v1484, %v1488
    %v1605 = vmax.f32 %v1485, %v1489
    %v1606 = vmax.f32 %v1490, %v1494
    %v1607 = vmax.f32 %v1491, %v1495
    %v1608 = vmax.f32 %v1492, %v1496
    %v1609 = vmax.f32 %v1493, %v1497
    %v1610 = vmax.f32 %v1498, %v1554
    %v1611 = vmax.f32 %v1499, %v1555
    %v1612 = vmax.f32 %v1500, %v1556
    %v1613 = vmax.f32 %v1501, %v1557
    %v1614 = vmax.f32 %v1502, %v1558
    %v1615 = vmax.f32 %v1503, %v1559
    %v1616 = vmax.f32 %v1504, %v1560
    %v1617 = vmax.f32 %v1505, %v1561
    %v1618 = vmax.f32 %v1506, %v1562
    %v1619 = vmax.f32 %v1507, %v1563
    %v1620 = vmax.f32 %v1508, %v1564
    %v1621 = vmax.f32 %v1509, %v1565
    %v1622 = vmax.f32 %v1510, %v1566
    %v1623 = vmax.f32 %v1511, %v1567
    %v1624 = vmax.f32 %v1512, %v1568
    %v1625 = vmax.f32 %v1513, %v1569
    %v1626 = vmax.f32 %v1514, %v1570
    %v1627 = vmax.f32 %v1515, %v1571
    %v1628 = vmax.f32 %v1516, %v1572
    %v1629 = vmax.f32 %v1517, %v1573
    %v1630 = vmax.f32 %v1518, %v1574
    %v1631 = vmax.f32 %v1519, %v1575
    %v1632 = vmax.f32 %v1520, %v1576
    %v1633 = vmax.f32 %v1521, %v1577
    %v1634 = vmax.f32 %v1522, %v1578
    %v1635 = vmax.f32 %v1523, %v1579
    %v1636 = vmax.f32 %v1524, %v1580
    %v1637 = vmax.f32 %v1525, %v1581
    %v1638 = vmax.f32 %v1526, %v1582
    %v1639 = vmax.f32 %v1527, %v1583
    %v1640 = vmax.f32 %v1528, %v1584
    %v1641 = vmax.f32 %v1529, %v1585
    %v1642 = vmax.f32 %v1530, %v1586
    %v1643 = vmax.f32 %v1531, %v1587
    %v1644 = vmax.f32 %v1532, %v1588
    %v1645 = vmax.f32 %v1533, %v1589
    %v1646 = vmax.f32 %v1534, %v1590
    %v1647 = vmax.f32 %v1535, %v1591
    %v1648 = vmax.f32 %v1536, %v1592
    %v1649 = vmax.f32 %v1537, %v1593
    %v1650 = vmax.f32 %v1538, %v1594
    %v1651 = vmax.f32 %v1539, %v1595
    %v1652 = vmax.f32 %v1540, %v1596
    %v1653 = vmax.f32 %v1541, %v1597
    %v1654 = vmax.f32 %v1542, %v1598
    %v1655 = vmax.f32 %v1543, %v1599
    %v1656 = vmax.f32 %v1544, %v1600
    %v1657 = vmax.f32 %v1545, %v1601
    %v1658 = vmax.f32 %v1546, %v1602
    %v1659 = vmax.f32 %v1547, %v1603
    %v1660 = vmax.f32 %v1548, %v1604
    %v1661 = vmax.f32 %v1549, %v1605
    %v1662 = vmax.f32 %v1550, %v1606
    %v1663 = vmax.f32 %v1551, %v1607
    %v1664 = vmax.f32 %v1552, %v1608
    %v1665 = vmax.f32 %v1553, %v1609
    %v1666 = vpack.c.bf16 %v1614, %v1610
    %v1667 = vpack.c.bf16 %v1615, %v1611
    %v1668 = vpack.c.bf16 %v1616, %v1612
    %v1669 = vpack.c.bf16 %v1617, %v1613
    %v1670 = vpack.c.bf16 %v1622, %v1618
    %v1671 = vpack.c.bf16 %v1623, %v1619
    %v1672 = vpack.c.bf16 %v1624, %v1620
    %v1673 = vpack.c.bf16 %v1625, %v1621
    %v1674 = vpack.c.bf16 %v1630, %v1626
    %v1675 = vpack.c.bf16 %v1631, %v1627
    %v1676 = vpack.c.bf16 %v1632, %v1628
    %v1677 = vpack.c.bf16 %v1633, %v1629
    %v1678 = vpack.c.bf16 %v1638, %v1634
    %v1679 = vpack.c.bf16 %v1639, %v1635
    %v1680 = vpack.c.bf16 %v1640, %v1636
    %v1681 = vpack.c.bf16 %v1641, %v1637
    %v1682 = vpack.c.bf16 %v1646, %v1642
    %v1683 = vpack.c.bf16 %v1647, %v1643
    %v1684 = vpack.c.bf16 %v1648, %v1644
    %v1685 = vpack.c.bf16 %v1649, %v1645
    %v1686 = vpack.c.bf16 %v1654, %v1650
    %v1687 = vpack.c.bf16 %v1655, %v1651
    %v1688 = vpack.c.bf16 %v1656, %v1652
    %v1689 = vpack.c.bf16 %v1657, %v1653
    %v1690 = vpack.c.bf16 %v1662, %v1658
    %v1691 = vpack.c.bf16 %v1663, %v1659
    %v1692 = vpack.c.bf16 %v1664, %v1660
    %v1693 = vpack.c.bf16 %v1665, %v1661
    %v1722 = vunpack.c.l.b16 %v1666
    %v1723 = vunpack.c.l.b16 %v1667
    %v1724 = vunpack.c.l.b16 %v1668
    %v1725 = vunpack.c.l.b16 %v1669
    %v1726 = vunpack.c.h.b16 %v1666
    %v1727 = vunpack.c.h.b16 %v1667
    %v1728 = vunpack.c.h.b16 %v1668
    %v1729 = vunpack.c.h.b16 %v1669
    %v1730 = vunpack.c.l.b16 %v1670
    %v1731 = vunpack.c.l.b16 %v1671
    %v1732 = vunpack.c.l.b16 %v1672
    %v1733 = vunpack.c.l.b16 %v1673
    %v1734 = vunpack.c.h.b16 %v1670
    %v1735 = vunpack.c.h.b16 %v1671
    %v1736 = vunpack.c.h.b16 %v1672
    %v1737 = vunpack.c.h.b16 %v1673
    %v1738 = vunpack.c.l.b16 %v1674
    %v1739 = vunpack.c.l.b16 %v1675
    %v1740 = vunpack.c.l.b16 %v1676
    %v1741 = vunpack.c.l.b16 %v1677
    %v1742 = vunpack.c.h.b16 %v1674
    %v1743 = vunpack.c.h.b16 %v1675
    %v1744 = vunpack.c.h.b16 %v1676
    %v1745 = vunpack.c.h.b16 %v1677
    %v1746 = vunpack.c.l.b16 %v1678
    %v1747 = vunpack.c.l.b16 %v1679
    %v1748 = vunpack.c.l.b16 %v1680
    %v1749 = vunpack.c.l.b16 %v1681
    %v1750 = vunpack.c.h.b16 %v1678
    %v1751 = vunpack.c.h.b16 %v1679
    %v1752 = vunpack.c.h.b16 %v1680
    %v1753 = vunpack.c.h.b16 %v1681
    %v1754 = vunpack.c.l.b16 %v1682
    %v1755 = vunpack.c.l.b16 %v1683
    %v1756 = vunpack.c.l.b16 %v1684
    %v1757 = vunpack.c.l.b16 %v1685
    %v1758 = vunpack.c.h.b16 %v1682
    %v1759 = vunpack.c.h.b16 %v1683
    %v1760 = vunpack.c.h.b16 %v1684
    %v1761 = vunpack.c.h.b16 %v1685
    %v1762 = vunpack.c.l.b16 %v1686
    %v1763 = vunpack.c.l.b16 %v1687
    %v1764 = vunpack.c.l.b16 %v1688
    %v1765 = vunpack.c.l.b16 %v1689
    %v1766 = vunpack.c.h.b16 %v1686
    %v1767 = vunpack.c.h.b16 %v1687
    %v1768 = vunpack.c.h.b16 %v1688
    %v1769 = vunpack.c.h.b16 %v1689
    %v1770 = vunpack.c.l.b16 %v1690
    %v1771 = vunpack.c.l.b16 %v1691
    %v1772 = vunpack.c.l.b16 %v1692
    %v1773 = vunpack.c.l.b16 %v1693
    %v1774 = vunpack.c.h.b16 %v1690
    %v1775 = vunpack.c.h.b16 %v1691
    %v1776 = vunpack.c.h.b16 %v1692
    %v1777 = vunpack.c.h.b16 %v1693
    %v1778 = vpack.c.b16 %v1723, %v1722
    %v1779 = vpack.c.b16 %v1725, %v1724
    %v1780 = vpack.c.b16 %v1727, %v1726
    %v1781 = vpack.c.b16 %v1729, %v1728
    %v1782 = vpack.c.b16 %v1731, %v1730
    %v1783 = vpack.c.b16 %v1733, %v1732
    %v1784 = vpack.c.b16 %v1735, %v1734
    %v1785 = vpack.c.b16 %v1737, %v1736
    %v1786 = vpack.c.b16 %v1739, %v1738
    %v1787 = vpack.c.b16 %v1741, %v1740
    %v1788 = vpack.c.b16 %v1743, %v1742
    %v1789 = vpack.c.b16 %v1745, %v1744
    %v1790 = vpack.c.b16 %v1747, %v1746
    %v1791 = vpack.c.b16 %v1749, %v1748
    %v1792 = vpack.c.b16 %v1751, %v1750
    %v1793 = vpack.c.b16 %v1753, %v1752
    %v1794 = vpack.c.b16 %v1755, %v1754
    %v1795 = vpack.c.b16 %v1757, %v1756
    %v1796 = vpack.c.b16 %v1759, %v1758
    %v1797 = vpack.c.b16 %v1761, %v1760
    %v1798 = vpack.c.b16 %v1763, %v1762
    %v1799 = vpack.c.b16 %v1765, %v1764
    %v1800 = vpack.c.b16 %v1767, %v1766
    %v1801 = vpack.c.b16 %v1769, %v1768
    %v1802 = vpack.c.b16 %v1771, %v1770
    %v1803 = vpack.c.b16 %v1773, %v1772
    %v1804 = vpack.c.b16 %v1775, %v1774
    %v1805 = vpack.c.b16 %v1777, %v1776
    %1834 = vst [vmem:[%s4] sm:$0xff] %v1778
    %1835 = vst [vmem:[%s4 + $0x8] sm:$0xff] %v1779
    %1836 = vst [vmem:[%s4 + $0x10] sm:$0xff] %v1780
    %1837 = vst [vmem:[%s4 + $0x18] sm:$0xff] %v1781
    %1838 = vst [vmem:[%s4 + $0x20] sm:$0xff] %v1782
    %1839 = vst [vmem:[%s4 + $0x28] sm:$0xff] %v1783
    %1840 = vst [vmem:[%s4 + $0x30] sm:$0xff] %v1784
    %1841 = vst [vmem:[%s4 + $0x38] sm:$0xff] %v1785
    %1842 = vst [vmem:[%s4 + $0x40] sm:$0xff] %v1786
    %1843 = vst [vmem:[%s4 + $0x48] sm:$0xff] %v1787
    %1844 = vst [vmem:[%s4 + $0x50] sm:$0xff] %v1788
    %1845 = vst [vmem:[%s4 + $0x58] sm:$0xff] %v1789
    %1846 = vst [vmem:[%s4 + $0x60] sm:$0xff] %v1790
    %1847 = vst [vmem:[%s4 + $0x68] sm:$0xff] %v1791
    %1848 = vst [vmem:[%s4 + $0x70] sm:$0xff] %v1792
    %1849 = vst [vmem:[%s4 + $0x78] sm:$0xff] %v1793
    %1850 = vst [vmem:[%s4 + $0x80] sm:$0xff] %v1794
    %1851 = vst [vmem:[%s4 + $0x88] sm:$0xff] %v1795
    %1852 = vst [vmem:[%s4 + $0x90] sm:$0xff] %v1796
    %1853 = vst [vmem:[%s4 + $0x98] sm:$0xff] %v1797
    %1854 = vst [vmem:[%s4 + $0xa0] sm:$0xff] %v1798
    %1855 = vst [vmem:[%s4 + $0xa8] sm:$0xff] %v1799
    %1856 = vst [vmem:[%s4 + $0xb0] sm:$0xff] %v1800
    %1857 = vst [vmem:[%s4 + $0xb8] sm:$0xff] %v1801
    %1858 = vst [vmem:[%s4 + $0xc0] sm:$0xff] %v1802
    %1859 = vst [vmem:[%s4 + $0xc8] sm:$0xff] %v1803
    %1860 = vst [vmem:[%s4 + $0xd0] sm:$0xff] %v1804
    %1861 = vst [vmem:[%s4 + $0xd8] sm:$0xff] %v1805
    // Predicated region
    $region26: #{cnn_forward.3} parent=1 // pred_check
      _
    $region27: #{cnn_forward.3} parent=1 // pred_check_branch
      %1863 = sbr.rel (0) target = $region29
    $region28: #{cnn_forward.3} parent=1 // pred_region
      _
    $region29: #{cnn_forward.3} parent=1 // pred_fallthru
      _
    // Predicated region
    $region30: #{cnn_forward.3} parent=1 // pred_check
      _
    $region31: #{cnn_forward.3} parent=1 // pred_check_branch
      %1865 = sbr.rel (0) target = $region33
    $region32: #{cnn_forward.3} parent=1 // pred_region
      _
    $region33: #{cnn_forward.3} parent=1 // pred_fallthru
      _
    %1866 = vsyncpa [#allocation3], 1
    %1867 = vsyncpa [#allocation5], 1

// kernel: cnn_forward.5
$region0: #{cnn_forward.5}
  #allocation0 [shape = 'u32[]', space=smem, size = 0x4, offset = 0x4, fixed_abs, tag = 'smem constant byte address 0x4 - core index']
  #allocation1 [shape = 'u32[144,128]{1,0:T(1,128)}', space=vmem, size = 0x12000, scoped, tag = 'internal scratch']
  %s0 = inlined_call_operand.vmem [shape: bf16[8,2304], index: 0, kind: input, shape index: {}]
  %s1 = inlined_call_operand.vmem [shape: bf16[2304,512], index: 1, kind: input, shape index: {}]
  %s2 = inlined_call_operand.vmem [shape: f32[1,512], index: 2, kind: input, shape index: {}]
  %s3 = inlined_call_operand.vmem [shape: bf16[512,128], index: 3, kind: input, shape index: {}]
  %s4 = inlined_call_operand.vmem [shape: f32[1,128], index: 4, kind: input, shape index: {}]
  %s5 = inlined_call_operand.vmem [shape: f32[8,128], index: 5, kind: output, shape index: {}]
  %s6 = sld [smem:[#allocation0]]
  $region30: #{cnn_forward.5} parent=0
    _
  %s8 = ssub.s32 1, %s6
  %s9 = scalar_select 0, %s8, %s6
  // Predicated region
  $region2: #{cnn_forward.5} parent=0 // pred_check
    _
  $region3: #{cnn_forward.5} parent=0 // pred_check_branch
    %11 = sbr.rel (0) target = $region5
  $region4: #{cnn_forward.5} parent=0 // pred_region
    _
  $region5: #{cnn_forward.5} parent=0 // pred_fallthru
    _
  // Predicated region
  $region6: #{cnn_forward.5} parent=0 // pred_check
    _
  $region7: #{cnn_forward.5} parent=0 // pred_check_branch
    %13 = sbr.rel (0) target = $region9
  $region8: #{cnn_forward.5} parent=0 // pred_region
    _
  $region9: #{cnn_forward.5} parent=0 // pred_fallthru
    _
  // Predicated region
  $region10: #{cnn_forward.5} parent=0 // pred_check
    _
  $region11: #{cnn_forward.5} parent=0 // pred_check_branch
    %15 = sbr.rel (0) target = $region13
  $region12: #{cnn_forward.5} parent=0 // pred_region
    _
  $region13: #{cnn_forward.5} parent=0 // pred_fallthru
    _
  // Predicated region
  $region14: #{cnn_forward.5} parent=0 // pred_check
    _
  $region15: #{cnn_forward.5} parent=0 // pred_check_branch
    %17 = sbr.rel (0) target = $region17
  $region16: #{cnn_forward.5} parent=0 // pred_region
    _
  $region17: #{cnn_forward.5} parent=0 // pred_fallthru
    _
  // Predicated region
  $region18: #{cnn_forward.5} parent=0 // pred_check
    _
  $region19: #{cnn_forward.5} parent=0 // pred_check_branch
    %19 = sbr.rel (0) target = $region21
  $region20: #{cnn_forward.5} parent=0 // pred_region
    _
  $region21: #{cnn_forward.5} parent=0 // pred_fallthru
    _
  %v21 = vld [vmem:[%s0] sm:$0xff]
  %v22 = vld [vmem:[%s0 + $0x8] sm:$0xff]
  %v23 = vld [vmem:[%s0 + $0x10] sm:$0xff]
  %v24 = vld [vmem:[%s0 + $0x18] sm:$0xff]
  %v25 = vld [vmem:[%s0 + $0x20] sm:$0xff]
  %v26 = vld [vmem:[%s0 + $0x28] sm:$0xff]
  %v27 = vld [vmem:[%s0 + $0x30] sm:$0xff]
  %v28 = vld [vmem:[%s0 + $0x38] sm:$0xff]
  %v29 = vld [vmem:[%s0 + $0x40] sm:$0xff]
  %v30 = vld [vmem:[%s1] sm:$0xff]
  %v31 = vld [vmem:[%s1 + $0x8] sm:$0xff]
  %v32 = vld [vmem:[%s1 + $0x10] sm:$0xff]
  %v33 = vld [vmem:[%s1 + $0x18] sm:$0xff]
  %v34 = vld [vmem:[%s1 + $0x20] sm:$0xff]
  %v35 = vld [vmem:[%s1 + $0x28] sm:$0xff]
  %v36 = vld [vmem:[%s1 + $0x30] sm:$0xff]
  %v37 = vld [vmem:[%s1 + $0x38] sm:$0xff]
  %v38 = vld [vmem:[%s1 + $0x40] sm:$0xff]
  %v39 = vld [vmem:[%s1 + $0x48] sm:$0xff]
  %v40 = vld [vmem:[%s1 + $0x50] sm:$0xff]
  %v41 = vld [vmem:[%s1 + $0x58] sm:$0xff]
  %v42 = vld [vmem:[%s1 + $0x60] sm:$0xff]
  %v43 = vld [vmem:[%s1 + $0x68] sm:$0xff]
  %v44 = vld [vmem:[%s1 + $0x70] sm:$0xff]
  %v45 = vld [vmem:[%s1 + $0x78] sm:$0xff]
  %v46 = vld [vmem:[%s1 + $0x80] sm:$0xff]
  %v47 = vld [vmem:[%s1 + $0x88] sm:$0xff]
  %v48 = vld [vmem:[%s1 + $0x90] sm:$0xff]
  %v49 = vld [vmem:[%s1 + $0x98] sm:$0xff]
  %v50 = vld [vmem:[%s1 + $0xa0] sm:$0xff]
  %v51 = vld [vmem:[%s1 + $0xa8] sm:$0xff]
  %v52 = vld [vmem:[%s1 + $0xb0] sm:$0xff]
  %v53 = vld [vmem:[%s1 + $0xb8] sm:$0xff]
  %v54 = vld [vmem:[%s1 + $0xc0] sm:$0xff]
  %v55 = vld [vmem:[%s1 + $0xc8] sm:$0xff]
  %v56 = vld [vmem:[%s1 + $0xd0] sm:$0xff]
  %v57 = vld [vmem:[%s1 + $0xd8] sm:$0xff]
  %v58 = vld [vmem:[%s1 + $0xe0] sm:$0xff]
  %v59 = vld [vmem:[%s1 + $0xe8] sm:$0xff]
  %v60 = vld [vmem:[%s1 + $0xf0] sm:$0xff]
  %v61 = vld [vmem:[%s1 + $0xf8] sm:$0xff]
  %v62 = vld [vmem:[%s1 + $0x100] sm:$0xff]
  %v63 = vld [vmem:[%s1 + $0x108] sm:$0xff]
  %v64 = vld [vmem:[%s1 + $0x110] sm:$0xff]
  %v65 = vld [vmem:[%s1 + $0x118] sm:$0xff]
  %v66 = vld [vmem:[%s1 + $0x120] sm:$0xff]
  %v67 = vld [vmem:[%s1 + $0x128] sm:$0xff]
  %v68 = vld [vmem:[%s1 + $0x130] sm:$0xff]
  %v69 = vld [vmem:[%s1 + $0x138] sm:$0xff]
  %v70 = vld [vmem:[%s1 + $0x140] sm:$0xff]
  %v71 = vld [vmem:[%s1 + $0x148] sm:$0xff]
  %v72 = vld [vmem:[%s1 + $0x150] sm:$0xff]
  %v73 = vld [vmem:[%s1 + $0x158] sm:$0xff]
  %v74 = vld [vmem:[%s1 + $0x160] sm:$0xff]
  %v75 = vld [vmem:[%s1 + $0x168] sm:$0xff]
  %v76 = vld [vmem:[%s1 + $0x170] sm:$0xff]
  %v77 = vld [vmem:[%s1 + $0x178] sm:$0xff]
  %v78 = vld [vmem:[%s1 + $0x180] sm:$0xff]
  %v79 = vld [vmem:[%s1 + $0x188] sm:$0xff]
  %v80 = vld [vmem:[%s1 + $0x190] sm:$0xff]
  %v81 = vld [vmem:[%s1 + $0x198] sm:$0xff]
  %v82 = vld [vmem:[%s1 + $0x1a0] sm:$0xff]
  %v83 = vld [vmem:[%s1 + $0x1a8] sm:$0xff]
  %v84 = vld [vmem:[%s1 + $0x1b0] sm:$0xff]
  %v85 = vld [vmem:[%s1 + $0x1b8] sm:$0xff]
  %v86 = vld [vmem:[%s1 + $0x1c0] sm:$0xff]
  %v87 = vld [vmem:[%s1 + $0x1c8] sm:$0xff]
  %v88 = vld [vmem:[%s1 + $0x1d0] sm:$0xff]
  %v89 = vld [vmem:[%s1 + $0x1d8] sm:$0xff]
  %v90 = vld [vmem:[%s1 + $0x1e0] sm:$0xff]
  %v91 = vld [vmem:[%s1 + $0x1e8] sm:$0xff]
  %v92 = vld [vmem:[%s1 + $0x1f0] sm:$0xff]
  %v93 = vld [vmem:[%s1 + $0x1f8] sm:$0xff]
  %v94 = vld [vmem:[%s1 + $0x200] sm:$0xff]
  %v95 = vld [vmem:[%s1 + $0x208] sm:$0xff]
  %v96 = vld [vmem:[%s1 + $0x210] sm:$0xff]
  %v97 = vld [vmem:[%s1 + $0x218] sm:$0xff]
  %v98 = vld [vmem:[%s1 + $0x220] sm:$0xff]
  %v99 = vld [vmem:[%s1 + $0x228] sm:$0xff]
  %v100 = vld [vmem:[%s1 + $0x230] sm:$0xff]
  %v101 = vld [vmem:[%s1 + $0x238] sm:$0xff]
  %v102 = vld [vmem:[%s1 + $0x240] sm:$0xff]
  %v103 = vld [vmem:[%s1 + $0x248] sm:$0xff]
  %v104 = vld [vmem:[%s1 + $0x250] sm:$0xff]
  %v105 = vld [vmem:[%s1 + $0x258] sm:$0xff]
  %v106 = vld [vmem:[%s1 + $0x260] sm:$0xff]
  %v107 = vld [vmem:[%s1 + $0x268] sm:$0xff]
  %v108 = vld [vmem:[%s1 + $0x270] sm:$0xff]
  %v109 = vld [vmem:[%s1 + $0x278] sm:$0xff]
  %v110 = vld [vmem:[%s1 + $0x280] sm:$0xff]
  %v111 = vld [vmem:[%s1 + $0x288] sm:$0xff]
  %v112 = vld [vmem:[%s1 + $0x290] sm:$0xff]
  %v113 = vld [vmem:[%s1 + $0x298] sm:$0xff]
  %v114 = vld [vmem:[%s1 + $0x2a0] sm:$0xff]
  %v115 = vld [vmem:[%s1 + $0x2a8] sm:$0xff]
  %v116 = vld [vmem:[%s1 + $0x2b0] sm:$0xff]
  %v117 = vld [vmem:[%s1 + $0x2b8] sm:$0xff]
  %v118 = vld [vmem:[%s1 + $0x2c0] sm:$0xff]
  %v119 = vld [vmem:[%s1 + $0x2c8] sm:$0xff]
  %v120 = vld [vmem:[%s1 + $0x2d0] sm:$0xff]
  %v121 = vld [vmem:[%s1 + $0x2d8] sm:$0xff]
  %v122 = vld [vmem:[%s1 + $0x2e0] sm:$0xff]
  %v123 = vld [vmem:[%s1 + $0x2e8] sm:$0xff]
  %v124 = vld [vmem:[%s1 + $0x2f0] sm:$0xff]
  %v125 = vld [vmem:[%s1 + $0x2f8] sm:$0xff]
  %v126 = vld [vmem:[%s1 + $0x300] sm:$0xff]
  %v127 = vld [vmem:[%s1 + $0x308] sm:$0xff]
  %v128 = vld [vmem:[%s1 + $0x310] sm:$0xff]
  %v129 = vld [vmem:[%s1 + $0x318] sm:$0xff]
  %v130 = vld [vmem:[%s1 + $0x320] sm:$0xff]
  %v131 = vld [vmem:[%s1 + $0x328] sm:$0xff]
  %v132 = vld [vmem:[%s1 + $0x330] sm:$0xff]
  %v133 = vld [vmem:[%s1 + $0x338] sm:$0xff]
  %v134 = vld [vmem:[%s1 + $0x340] sm:$0xff]
  %v135 = vld [vmem:[%s1 + $0x348] sm:$0xff]
  %v136 = vld [vmem:[%s1 + $0x350] sm:$0xff]
  %v137 = vld [vmem:[%s1 + $0x358] sm:$0xff]
  %v138 = vld [vmem:[%s1 + $0x360] sm:$0xff]
  %v139 = vld [vmem:[%s1 + $0x368] sm:$0xff]
  %v140 = vld [vmem:[%s1 + $0x370] sm:$0xff]
  %v141 = vld [vmem:[%s1 + $0x378] sm:$0xff]
  %v142 = vld [vmem:[%s1 + $0x380] sm:$0xff]
  %v143 = vld [vmem:[%s1 + $0x388] sm:$0xff]
  %v144 = vld [vmem:[%s1 + $0x390] sm:$0xff]
  %v145 = vld [vmem:[%s1 + $0x398] sm:$0xff]
  %v146 = vld [vmem:[%s1 + $0x3a0] sm:$0xff]
  %v147 = vld [vmem:[%s1 + $0x3a8] sm:$0xff]
  %v148 = vld [vmem:[%s1 + $0x3b0] sm:$0xff]
  %v149 = vld [vmem:[%s1 + $0x3b8] sm:$0xff]
  %v150 = vld [vmem:[%s1 + $0x3c0] sm:$0xff]
  %v151 = vld [vmem:[%s1 + $0x3c8] sm:$0xff]
  %v152 = vld [vmem:[%s1 + $0x3d0] sm:$0xff]
  %v153 = vld [vmem:[%s1 + $0x3d8] sm:$0xff]
  %v154 = vld [vmem:[%s1 + $0x3e0] sm:$0xff]
  %v155 = vld [vmem:[%s1 + $0x3e8] sm:$0xff]
  %v156 = vld [vmem:[%s1 + $0x3f0] sm:$0xff]
  %v157 = vld [vmem:[%s1 + $0x3f8] sm:$0xff]
  %v158 = vld [vmem:[%s1 + $0x400] sm:$0xff]
  %v159 = vld [vmem:[%s1 + $0x408] sm:$0xff]
  %v160 = vld [vmem:[%s1 + $0x410] sm:$0xff]
  %v161 = vld [vmem:[%s1 + $0x418] sm:$0xff]
  %v162 = vld [vmem:[%s1 + $0x420] sm:$0xff]
  %v163 = vld [vmem:[%s1 + $0x428] sm:$0xff]
  %v164 = vld [vmem:[%s1 + $0x430] sm:$0xff]
  %v165 = vld [vmem:[%s1 + $0x438] sm:$0xff]
  %v166 = vld [vmem:[%s1 + $0x440] sm:$0xff]
  %v167 = vld [vmem:[%s1 + $0x448] sm:$0xff]
  %v168 = vld [vmem:[%s1 + $0x450] sm:$0xff]
  %v169 = vld [vmem:[%s1 + $0x458] sm:$0xff]
  %v170 = vld [vmem:[%s1 + $0x460] sm:$0xff]
  %v171 = vld [vmem:[%s1 + $0x468] sm:$0xff]
  %v172 = vld [vmem:[%s1 + $0x470] sm:$0xff]
  %v173 = vld [vmem:[%s1 + $0x478] sm:$0xff]
  %v174 = vld [vmem:[%s1 + $0x480] sm:$0xff]
  %v175 = vld [vmem:[%s1 + $0x488] sm:$0xff]
  %v176 = vld [vmem:[%s1 + $0x490] sm:$0xff]
  %v177 = vld [vmem:[%s1 + $0x498] sm:$0xff]
  %v178 = vld [vmem:[%s1 + $0x4a0] sm:$0xff]
  %v179 = vld [vmem:[%s1 + $0x4a8] sm:$0xff]
  %v180 = vld [vmem:[%s1 + $0x4b0] sm:$0xff]
  %v181 = vld [vmem:[%s1 + $0x4b8] sm:$0xff]
  %v182 = vld [vmem:[%s1 + $0x4c0] sm:$0xff]
  %v183 = vld [vmem:[%s1 + $0x4c8] sm:$0xff]
  %v184 = vld [vmem:[%s1 + $0x4d0] sm:$0xff]
  %v185 = vld [vmem:[%s1 + $0x4d8] sm:$0xff]
  %v186 = vld [vmem:[%s1 + $0x4e0] sm:$0xff]
  %v187 = vld [vmem:[%s1 + $0x4e8] sm:$0xff]
  %v188 = vld [vmem:[%s1 + $0x4f0] sm:$0xff]
  %v189 = vld [vmem:[%s1 + $0x4f8] sm:$0xff]
  %v190 = vld [vmem:[%s1 + $0x500] sm:$0xff]
  %v191 = vld [vmem:[%s1 + $0x508] sm:$0xff]
  %v192 = vld [vmem:[%s1 + $0x510] sm:$0xff]
  %v193 = vld [vmem:[%s1 + $0x518] sm:$0xff]
  %v194 = vld [vmem:[%s1 + $0x520] sm:$0xff]
  %v195 = vld [vmem:[%s1 + $0x528] sm:$0xff]
  %v196 = vld [vmem:[%s1 + $0x530] sm:$0xff]
  %v197 = vld [vmem:[%s1 + $0x538] sm:$0xff]
  %v198 = vld [vmem:[%s1 + $0x540] sm:$0xff]
  %v199 = vld [vmem:[%s1 + $0x548] sm:$0xff]
  %v200 = vld [vmem:[%s1 + $0x550] sm:$0xff]
  %v201 = vld [vmem:[%s1 + $0x558] sm:$0xff]
  %v202 = vld [vmem:[%s1 + $0x560] sm:$0xff]
  %v203 = vld [vmem:[%s1 + $0x568] sm:$0xff]
  %v204 = vld [vmem:[%s1 + $0x570] sm:$0xff]
  %v205 = vld [vmem:[%s1 + $0x578] sm:$0xff]
  %v206 = vld [vmem:[%s1 + $0x580] sm:$0xff]
  %v207 = vld [vmem:[%s1 + $0x588] sm:$0xff]
  %v208 = vld [vmem:[%s1 + $0x590] sm:$0xff]
  %v209 = vld [vmem:[%s1 + $0x598] sm:$0xff]
  %v210 = vld [vmem:[%s1 + $0x5a0] sm:$0xff]
  %v211 = vld [vmem:[%s1 + $0x5a8] sm:$0xff]
  %v212 = vld [vmem:[%s1 + $0x5b0] sm:$0xff]
  %v213 = vld [vmem:[%s1 + $0x5b8] sm:$0xff]
  %v214 = vld [vmem:[%s1 + $0x5c0] sm:$0xff]
  %v215 = vld [vmem:[%s1 + $0x5c8] sm:$0xff]
  %v216 = vld [vmem:[%s1 + $0x5d0] sm:$0xff]
  %v217 = vld [vmem:[%s1 + $0x5d8] sm:$0xff]
  %v218 = vld [vmem:[%s1 + $0x5e0] sm:$0xff]
  %v219 = vld [vmem:[%s1 + $0x5e8] sm:$0xff]
  %v220 = vld [vmem:[%s1 + $0x5f0] sm:$0xff]
  %v221 = vld [vmem:[%s1 + $0x5f8] sm:$0xff]
  %v222 = vld [vmem:[%s1 + $0x600] sm:$0xff]
  %v223 = vld [vmem:[%s1 + $0x608] sm:$0xff]
  %v224 = vld [vmem:[%s1 + $0x610] sm:$0xff]
  %v225 = vld [vmem:[%s1 + $0x618] sm:$0xff]
  %v226 = vld [vmem:[%s1 + $0x620] sm:$0xff]
  %v227 = vld [vmem:[%s1 + $0x628] sm:$0xff]
  %v228 = vld [vmem:[%s1 + $0x630] sm:$0xff]
  %v229 = vld [vmem:[%s1 + $0x638] sm:$0xff]
  %v230 = vld [vmem:[%s1 + $0x640] sm:$0xff]
  %v231 = vld [vmem:[%s1 + $0x648] sm:$0xff]
  %v232 = vld [vmem:[%s1 + $0x650] sm:$0xff]
  %v233 = vld [vmem:[%s1 + $0x658] sm:$0xff]
  %v234 = vld [vmem:[%s1 + $0x660] sm:$0xff]
  %v235 = vld [vmem:[%s1 + $0x668] sm:$0xff]
  %v236 = vld [vmem:[%s1 + $0x670] sm:$0xff]
  %v237 = vld [vmem:[%s1 + $0x678] sm:$0xff]
  %v238 = vld [vmem:[%s1 + $0x680] sm:$0xff]
  %v239 = vld [vmem:[%s1 + $0x688] sm:$0xff]
  %v240 = vld [vmem:[%s1 + $0x690] sm:$0xff]
  %v241 = vld [vmem:[%s1 + $0x698] sm:$0xff]
  %v242 = vld [vmem:[%s1 + $0x6a0] sm:$0xff]
  %v243 = vld [vmem:[%s1 + $0x6a8] sm:$0xff]
  %v244 = vld [vmem:[%s1 + $0x6b0] sm:$0xff]
  %v245 = vld [vmem:[%s1 + $0x6b8] sm:$0xff]
  %v246 = vld [vmem:[%s1 + $0x6c0] sm:$0xff]
  %v247 = vld [vmem:[%s1 + $0x6c8] sm:$0xff]
  %v248 = vld [vmem:[%s1 + $0x6d0] sm:$0xff]
  %v249 = vld [vmem:[%s1 + $0x6d8] sm:$0xff]
  %v250 = vld [vmem:[%s1 + $0x6e0] sm:$0xff]
  %v251 = vld [vmem:[%s1 + $0x6e8] sm:$0xff]
  %v252 = vld [vmem:[%s1 + $0x6f0] sm:$0xff]
  %v253 = vld [vmem:[%s1 + $0x6f8] sm:$0xff]
  %v254 = vld [vmem:[%s1 + $0x700] sm:$0xff]
  %v255 = vld [vmem:[%s1 + $0x708] sm:$0xff]
  %v256 = vld [vmem:[%s1 + $0x710] sm:$0xff]
  %v257 = vld [vmem:[%s1 + $0x718] sm:$0xff]
  %v258 = vld [vmem:[%s1 + $0x720] sm:$0xff]
  %v259 = vld [vmem:[%s1 + $0x728] sm:$0xff]
  %v260 = vld [vmem:[%s1 + $0x730] sm:$0xff]
  %v261 = vld [vmem:[%s1 + $0x738] sm:$0xff]
  %v262 = vld [vmem:[%s1 + $0x740] sm:$0xff]
  %v263 = vld [vmem:[%s1 + $0x748] sm:$0xff]
  %v264 = vld [vmem:[%s1 + $0x750] sm:$0xff]
  %v265 = vld [vmem:[%s1 + $0x758] sm:$0xff]
  %v266 = vld [vmem:[%s1 + $0x760] sm:$0xff]
  %v267 = vld [vmem:[%s1 + $0x768] sm:$0xff]
  %v268 = vld [vmem:[%s1 + $0x770] sm:$0xff]
  %v269 = vld [vmem:[%s1 + $0x778] sm:$0xff]
  %v270 = vld [vmem:[%s1 + $0x780] sm:$0xff]
  %v271 = vld [vmem:[%s1 + $0x788] sm:$0xff]
  %v272 = vld [vmem:[%s1 + $0x790] sm:$0xff]
  %v273 = vld [vmem:[%s1 + $0x798] sm:$0xff]
  %v274 = vld [vmem:[%s1 + $0x7a0] sm:$0xff]
  %v275 = vld [vmem:[%s1 + $0x7a8] sm:$0xff]
  %v276 = vld [vmem:[%s1 + $0x7b0] sm:$0xff]
  %v277 = vld [vmem:[%s1 + $0x7b8] sm:$0xff]
  %v278 = vld [vmem:[%s1 + $0x7c0] sm:$0xff]
  %v279 = vld [vmem:[%s1 + $0x7c8] sm:$0xff]
  %v280 = vld [vmem:[%s1 + $0x7d0] sm:$0xff]
  %v281 = vld [vmem:[%s1 + $0x7d8] sm:$0xff]
  %v282 = vld [vmem:[%s1 + $0x7e0] sm:$0xff]
  %v283 = vld [vmem:[%s1 + $0x7e8] sm:$0xff]
  %v284 = vld [vmem:[%s1 + $0x7f0] sm:$0xff]
  %v285 = vld [vmem:[%s1 + $0x7f8] sm:$0xff]
  %v286 = vld [vmem:[%s1 + $0x800] sm:$0xff]
  %v287 = vld [vmem:[%s1 + $0x808] sm:$0xff]
  %v288 = vld [vmem:[%s1 + $0x810] sm:$0xff]
  %v289 = vld [vmem:[%s1 + $0x818] sm:$0xff]
  %v290 = vld [vmem:[%s1 + $0x820] sm:$0xff]
  %v291 = vld [vmem:[%s1 + $0x828] sm:$0xff]
  %v292 = vld [vmem:[%s1 + $0x830] sm:$0xff]
  %v293 = vld [vmem:[%s1 + $0x838] sm:$0xff]
  %v294 = vld [vmem:[%s1 + $0x840] sm:$0xff]
  %v295 = vld [vmem:[%s1 + $0x848] sm:$0xff]
  %v296 = vld [vmem:[%s1 + $0x850] sm:$0xff]
  %v297 = vld [vmem:[%s1 + $0x858] sm:$0xff]
  %v298 = vld [vmem:[%s1 + $0x860] sm:$0xff]
  %v299 = vld [vmem:[%s1 + $0x868] sm:$0xff]
  %v300 = vld [vmem:[%s1 + $0x870] sm:$0xff]
  %v301 = vld [vmem:[%s1 + $0x878] sm:$0xff]
  %v302 = vld [vmem:[%s1 + $0x880] sm:$0xff]
  %v303 = vld [vmem:[%s1 + $0x888] sm:$0xff]
  %v304 = vld [vmem:[%s1 + $0x890] sm:$0xff]
  %v305 = vld [vmem:[%s1 + $0x898] sm:$0xff]
  %v306 = vld [vmem:[%s1 + $0x8a0] sm:$0xff]
  %v307 = vld [vmem:[%s1 + $0x8a8] sm:$0xff]
  %v308 = vld [vmem:[%s1 + $0x8b0] sm:$0xff]
  %v309 = vld [vmem:[%s1 + $0x8b8] sm:$0xff]
  %v310 = vld [vmem:[%s1 + $0x8c0] sm:$0xff]
  %v311 = vld [vmem:[%s1 + $0x8c8] sm:$0xff]
  %v312 = vld [vmem:[%s1 + $0x8d0] sm:$0xff]
  %v313 = vld [vmem:[%s1 + $0x8d8] sm:$0xff]
  %v314 = vld [vmem:[%s1 + $0x8e0] sm:$0xff]
  %v315 = vld [vmem:[%s1 + $0x8e8] sm:$0xff]
  %v316 = vld [vmem:[%s1 + $0x8f0] sm:$0xff]
  %v317 = vld [vmem:[%s1 + $0x8f8] sm:$0xff]
  %v318 = vld [vmem:[%s1 + $0x900] sm:$0xff]
  %v319 = vld [vmem:[%s1 + $0x908] sm:$0xff]
  %v320 = vld [vmem:[%s1 + $0x910] sm:$0xff]
  %v321 = vld [vmem:[%s1 + $0x918] sm:$0xff]
  %v322 = vld [vmem:[%s1 + $0x920] sm:$0xff]
  %v323 = vld [vmem:[%s1 + $0x928] sm:$0xff]
  %v324 = vld [vmem:[%s1 + $0x930] sm:$0xff]
  %v325 = vld [vmem:[%s1 + $0x938] sm:$0xff]
  %v326 = vld [vmem:[%s1 + $0x940] sm:$0xff]
  %v327 = vld [vmem:[%s1 + $0x948] sm:$0xff]
  %v328 = vld [vmem:[%s1 + $0x950] sm:$0xff]
  %v329 = vld [vmem:[%s1 + $0x958] sm:$0xff]
  %v330 = vld [vmem:[%s1 + $0x960] sm:$0xff]
  %v331 = vld [vmem:[%s1 + $0x968] sm:$0xff]
  %v332 = vld [vmem:[%s1 + $0x970] sm:$0xff]
  %v333 = vld [vmem:[%s1 + $0x978] sm:$0xff]
  %v334 = vld [vmem:[%s1 + $0x980] sm:$0xff]
  %v335 = vld [vmem:[%s1 + $0x988] sm:$0xff]
  %v336 = vld [vmem:[%s1 + $0x990] sm:$0xff]
  %v337 = vld [vmem:[%s1 + $0x998] sm:$0xff]
  %v338 = vld [vmem:[%s1 + $0x9a0] sm:$0xff]
  %v339 = vld [vmem:[%s1 + $0x9a8] sm:$0xff]
  %v340 = vld [vmem:[%s1 + $0x9b0] sm:$0xff]
  %v341 = vld [vmem:[%s1 + $0x9b8] sm:$0xff]
  %v342 = vld [vmem:[%s1 + $0x9c0] sm:$0xff]
  %v343 = vld [vmem:[%s1 + $0x9c8] sm:$0xff]
  %v344 = vld [vmem:[%s1 + $0x9d0] sm:$0xff]
  %v345 = vld [vmem:[%s1 + $0x9d8] sm:$0xff]
  %v346 = vld [vmem:[%s1 + $0x9e0] sm:$0xff]
  %v347 = vld [vmem:[%s1 + $0x9e8] sm:$0xff]
  %v348 = vld [vmem:[%s1 + $0x9f0] sm:$0xff]
  %v349 = vld [vmem:[%s1 + $0x9f8] sm:$0xff]
  %v350 = vld [vmem:[%s1 + $0xa00] sm:$0xff]
  %v351 = vld [vmem:[%s1 + $0xa08] sm:$0xff]
  %v352 = vld [vmem:[%s1 + $0xa10] sm:$0xff]
  %v353 = vld [vmem:[%s1 + $0xa18] sm:$0xff]
  %v354 = vld [vmem:[%s1 + $0xa20] sm:$0xff]
  %v355 = vld [vmem:[%s1 + $0xa28] sm:$0xff]
  %v356 = vld [vmem:[%s1 + $0xa30] sm:$0xff]
  %v357 = vld [vmem:[%s1 + $0xa38] sm:$0xff]
  %v358 = vld [vmem:[%s1 + $0xa40] sm:$0xff]
  %v359 = vld [vmem:[%s1 + $0xa48] sm:$0xff]
  %v360 = vld [vmem:[%s1 + $0xa50] sm:$0xff]
  %v361 = vld [vmem:[%s1 + $0xa58] sm:$0xff]
  %v362 = vld [vmem:[%s1 + $0xa60] sm:$0xff]
  %v363 = vld [vmem:[%s1 + $0xa68] sm:$0xff]
  %v364 = vld [vmem:[%s1 + $0xa70] sm:$0xff]
  %v365 = vld [vmem:[%s1 + $0xa78] sm:$0xff]
  %v366 = vld [vmem:[%s1 + $0xa80] sm:$0xff]
  %v367 = vld [vmem:[%s1 + $0xa88] sm:$0xff]
  %v368 = vld [vmem:[%s1 + $0xa90] sm:$0xff]
  %v369 = vld [vmem:[%s1 + $0xa98] sm:$0xff]
  %v370 = vld [vmem:[%s1 + $0xaa0] sm:$0xff]
  %v371 = vld [vmem:[%s1 + $0xaa8] sm:$0xff]
  %v372 = vld [vmem:[%s1 + $0xab0] sm:$0xff]
  %v373 = vld [vmem:[%s1 + $0xab8] sm:$0xff]
  %v374 = vld [vmem:[%s1 + $0xac0] sm:$0xff]
  %v375 = vld [vmem:[%s1 + $0xac8] sm:$0xff]
  %v376 = vld [vmem:[%s1 + $0xad0] sm:$0xff]
  %v377 = vld [vmem:[%s1 + $0xad8] sm:$0xff]
  %v378 = vld [vmem:[%s1 + $0xae0] sm:$0xff]
  %v379 = vld [vmem:[%s1 + $0xae8] sm:$0xff]
  %v380 = vld [vmem:[%s1 + $0xaf0] sm:$0xff]
  %v381 = vld [vmem:[%s1 + $0xaf8] sm:$0xff]
  %v382 = vld [vmem:[%s1 + $0xb00] sm:$0xff]
  %v383 = vld [vmem:[%s1 + $0xb08] sm:$0xff]
  %v384 = vld [vmem:[%s1 + $0xb10] sm:$0xff]
  %v385 = vld [vmem:[%s1 + $0xb18] sm:$0xff]
  %v386 = vld [vmem:[%s1 + $0xb20] sm:$0xff]
  %v387 = vld [vmem:[%s1 + $0xb28] sm:$0xff]
  %v388 = vld [vmem:[%s1 + $0xb30] sm:$0xff]
  %v389 = vld [vmem:[%s1 + $0xb38] sm:$0xff]
  %v390 = vld [vmem:[%s1 + $0xb40] sm:$0xff]
  %v391 = vld [vmem:[%s1 + $0xb48] sm:$0xff]
  %v392 = vld [vmem:[%s1 + $0xb50] sm:$0xff]
  %v393 = vld [vmem:[%s1 + $0xb58] sm:$0xff]
  %v394 = vld [vmem:[%s1 + $0xb60] sm:$0xff]
  %v395 = vld [vmem:[%s1 + $0xb68] sm:$0xff]
  %v396 = vld [vmem:[%s1 + $0xb70] sm:$0xff]
  %v397 = vld [vmem:[%s1 + $0xb78] sm:$0xff]
  %v398 = vld [vmem:[%s1 + $0xb80] sm:$0xff]
  %v399 = vld [vmem:[%s1 + $0xb88] sm:$0xff]
  %v400 = vld [vmem:[%s1 + $0xb90] sm:$0xff]
  %v401 = vld [vmem:[%s1 + $0xb98] sm:$0xff]
  %v402 = vld [vmem:[%s1 + $0xba0] sm:$0xff]
  %v403 = vld [vmem:[%s1 + $0xba8] sm:$0xff]
  %v404 = vld [vmem:[%s1 + $0xbb0] sm:$0xff]
  %v405 = vld [vmem:[%s1 + $0xbb8] sm:$0xff]
  %v406 = vld [vmem:[%s1 + $0xbc0] sm:$0xff]
  %v407 = vld [vmem:[%s1 + $0xbc8] sm:$0xff]
  %v408 = vld [vmem:[%s1 + $0xbd0] sm:$0xff]
  %v409 = vld [vmem:[%s1 + $0xbd8] sm:$0xff]
  %v410 = vld [vmem:[%s1 + $0xbe0] sm:$0xff]
  %v411 = vld [vmem:[%s1 + $0xbe8] sm:$0xff]
  %v412 = vld [vmem:[%s1 + $0xbf0] sm:$0xff]
  %v413 = vld [vmem:[%s1 + $0xbf8] sm:$0xff]
  %v414 = vld [vmem:[%s1 + $0xc00] sm:$0xff]
  %v415 = vld [vmem:[%s1 + $0xc08] sm:$0xff]
  %v416 = vld [vmem:[%s1 + $0xc10] sm:$0xff]
  %v417 = vld [vmem:[%s1 + $0xc18] sm:$0xff]
  %v418 = vld [vmem:[%s1 + $0xc20] sm:$0xff]
  %v419 = vld [vmem:[%s1 + $0xc28] sm:$0xff]
  %v420 = vld [vmem:[%s1 + $0xc30] sm:$0xff]
  %v421 = vld [vmem:[%s1 + $0xc38] sm:$0xff]
  %v422 = vld [vmem:[%s1 + $0xc40] sm:$0xff]
  %v423 = vld [vmem:[%s1 + $0xc48] sm:$0xff]
  %v424 = vld [vmem:[%s1 + $0xc50] sm:$0xff]
  %v425 = vld [vmem:[%s1 + $0xc58] sm:$0xff]
  %v426 = vld [vmem:[%s1 + $0xc60] sm:$0xff]
  %v427 = vld [vmem:[%s1 + $0xc68] sm:$0xff]
  %v428 = vld [vmem:[%s1 + $0xc70] sm:$0xff]
  %v429 = vld [vmem:[%s1 + $0xc78] sm:$0xff]
  %v430 = vld [vmem:[%s1 + $0xc80] sm:$0xff]
  %v431 = vld [vmem:[%s1 + $0xc88] sm:$0xff]
  %v432 = vld [vmem:[%s1 + $0xc90] sm:$0xff]
  %v433 = vld [vmem:[%s1 + $0xc98] sm:$0xff]
  %v434 = vld [vmem:[%s1 + $0xca0] sm:$0xff]
  %v435 = vld [vmem:[%s1 + $0xca8] sm:$0xff]
  %v436 = vld [vmem:[%s1 + $0xcb0] sm:$0xff]
  %v437 = vld [vmem:[%s1 + $0xcb8] sm:$0xff]
  %v438 = vld [vmem:[%s1 + $0xcc0] sm:$0xff]
  %v439 = vld [vmem:[%s1 + $0xcc8] sm:$0xff]
  %v440 = vld [vmem:[%s1 + $0xcd0] sm:$0xff]
  %v441 = vld [vmem:[%s1 + $0xcd8] sm:$0xff]
  %v442 = vld [vmem:[%s1 + $0xce0] sm:$0xff]
  %v443 = vld [vmem:[%s1 + $0xce8] sm:$0xff]
  %v444 = vld [vmem:[%s1 + $0xcf0] sm:$0xff]
  %v445 = vld [vmem:[%s1 + $0xcf8] sm:$0xff]
  %v446 = vld [vmem:[%s1 + $0xd00] sm:$0xff]
  %v447 = vld [vmem:[%s1 + $0xd08] sm:$0xff]
  %v448 = vld [vmem:[%s1 + $0xd10] sm:$0xff]
  %v449 = vld [vmem:[%s1 + $0xd18] sm:$0xff]
  %v450 = vld [vmem:[%s1 + $0xd20] sm:$0xff]
  %v451 = vld [vmem:[%s1 + $0xd28] sm:$0xff]
  %v452 = vld [vmem:[%s1 + $0xd30] sm:$0xff]
  %v453 = vld [vmem:[%s1 + $0xd38] sm:$0xff]
  %v454 = vld [vmem:[%s1 + $0xd40] sm:$0xff]
  %v455 = vld [vmem:[%s1 + $0xd48] sm:$0xff]
  %v456 = vld [vmem:[%s1 + $0xd50] sm:$0xff]
  %v457 = vld [vmem:[%s1 + $0xd58] sm:$0xff]
  %v458 = vld [vmem:[%s1 + $0xd60] sm:$0xff]
  %v459 = vld [vmem:[%s1 + $0xd68] sm:$0xff]
  %v460 = vld [vmem:[%s1 + $0xd70] sm:$0xff]
  %v461 = vld [vmem:[%s1 + $0xd78] sm:$0xff]
  %v462 = vld [vmem:[%s1 + $0xd80] sm:$0xff]
  %v463 = vld [vmem:[%s1 + $0xd88] sm:$0xff]
  %v464 = vld [vmem:[%s1 + $0xd90] sm:$0xff]
  %v465 = vld [vmem:[%s1 + $0xd98] sm:$0xff]
  %v466 = vld [vmem:[%s1 + $0xda0] sm:$0xff]
  %v467 = vld [vmem:[%s1 + $0xda8] sm:$0xff]
  %v468 = vld [vmem:[%s1 + $0xdb0] sm:$0xff]
  %v469 = vld [vmem:[%s1 + $0xdb8] sm:$0xff]
  %v470 = vld [vmem:[%s1 + $0xdc0] sm:$0xff]
  %v471 = vld [vmem:[%s1 + $0xdc8] sm:$0xff]
  %v472 = vld [vmem:[%s1 + $0xdd0] sm:$0xff]
  %v473 = vld [vmem:[%s1 + $0xdd8] sm:$0xff]
  %v474 = vld [vmem:[%s1 + $0xde0] sm:$0xff]
  %v475 = vld [vmem:[%s1 + $0xde8] sm:$0xff]
  %v476 = vld [vmem:[%s1 + $0xdf0] sm:$0xff]
  %v477 = vld [vmem:[%s1 + $0xdf8] sm:$0xff]
  %v478 = vld [vmem:[%s1 + $0xe00] sm:$0xff]
  %v479 = vld [vmem:[%s1 + $0xe08] sm:$0xff]
  %v480 = vld [vmem:[%s1 + $0xe10] sm:$0xff]
  %v481 = vld [vmem:[%s1 + $0xe18] sm:$0xff]
  %v482 = vld [vmem:[%s1 + $0xe20] sm:$0xff]
  %v483 = vld [vmem:[%s1 + $0xe28] sm:$0xff]
  %v484 = vld [vmem:[%s1 + $0xe30] sm:$0xff]
  %v485 = vld [vmem:[%s1 + $0xe38] sm:$0xff]
  %v486 = vld [vmem:[%s1 + $0xe40] sm:$0xff]
  %v487 = vld [vmem:[%s1 + $0xe48] sm:$0xff]
  %v488 = vld [vmem:[%s1 + $0xe50] sm:$0xff]
  %v489 = vld [vmem:[%s1 + $0xe58] sm:$0xff]
  %v490 = vld [vmem:[%s1 + $0xe60] sm:$0xff]
  %v491 = vld [vmem:[%s1 + $0xe68] sm:$0xff]
  %v492 = vld [vmem:[%s1 + $0xe70] sm:$0xff]
  %v493 = vld [vmem:[%s1 + $0xe78] sm:$0xff]
  %v494 = vld [vmem:[%s1 + $0xe80] sm:$0xff]
  %v495 = vld [vmem:[%s1 + $0xe88] sm:$0xff]
  %v496 = vld [vmem:[%s1 + $0xe90] sm:$0xff]
  %v497 = vld [vmem:[%s1 + $0xe98] sm:$0xff]
  %v498 = vld [vmem:[%s1 + $0xea0] sm:$0xff]
  %v499 = vld [vmem:[%s1 + $0xea8] sm:$0xff]
  %v500 = vld [vmem:[%s1 + $0xeb0] sm:$0xff]
  %v501 = vld [vmem:[%s1 + $0xeb8] sm:$0xff]
  %v502 = vld [vmem:[%s1 + $0xec0] sm:$0xff]
  %v503 = vld [vmem:[%s1 + $0xec8] sm:$0xff]
  %v504 = vld [vmem:[%s1 + $0xed0] sm:$0xff]
  %v505 = vld [vmem:[%s1 + $0xed8] sm:$0xff]
  %v506 = vld [vmem:[%s1 + $0xee0] sm:$0xff]
  %v507 = vld [vmem:[%s1 + $0xee8] sm:$0xff]
  %v508 = vld [vmem:[%s1 + $0xef0] sm:$0xff]
  %v509 = vld [vmem:[%s1 + $0xef8] sm:$0xff]
  %v510 = vld [vmem:[%s1 + $0xf00] sm:$0xff]
  %v511 = vld [vmem:[%s1 + $0xf08] sm:$0xff]
  %v512 = vld [vmem:[%s1 + $0xf10] sm:$0xff]
  %v513 = vld [vmem:[%s1 + $0xf18] sm:$0xff]
  %v514 = vld [vmem:[%s1 + $0xf20] sm:$0xff]
  %v515 = vld [vmem:[%s1 + $0xf28] sm:$0xff]
  %v516 = vld [vmem:[%s1 + $0xf30] sm:$0xff]
  %v517 = vld [vmem:[%s1 + $0xf38] sm:$0xff]
  %v518 = vld [vmem:[%s1 + $0xf40] sm:$0xff]
  %v519 = vld [vmem:[%s1 + $0xf48] sm:$0xff]
  %v520 = vld [vmem:[%s1 + $0xf50] sm:$0xff]
  %v521 = vld [vmem:[%s1 + $0xf58] sm:$0xff]
  %v522 = vld [vmem:[%s1 + $0xf60] sm:$0xff]
  %v523 = vld [vmem:[%s1 + $0xf68] sm:$0xff]
  %v524 = vld [vmem:[%s1 + $0xf70] sm:$0xff]
  %v525 = vld [vmem:[%s1 + $0xf78] sm:$0xff]
  %v526 = vld [vmem:[%s1 + $0xf80] sm:$0xff]
  %v527 = vld [vmem:[%s1 + $0xf88] sm:$0xff]
  %v528 = vld [vmem:[%s1 + $0xf90] sm:$0xff]
  %v529 = vld [vmem:[%s1 + $0xf98] sm:$0xff]
  %v530 = vld [vmem:[%s1 + $0xfa0] sm:$0xff]
  %v531 = vld [vmem:[%s1 + $0xfa8] sm:$0xff]
  %v532 = vld [vmem:[%s1 + $0xfb0] sm:$0xff]
  %v533 = vld [vmem:[%s1 + $0xfb8] sm:$0xff]
  %v534 = vld [vmem:[%s1 + $0xfc0] sm:$0xff]
  %v535 = vld [vmem:[%s1 + $0xfc8] sm:$0xff]
  %v536 = vld [vmem:[%s1 + $0xfd0] sm:$0xff]
  %v537 = vld [vmem:[%s1 + $0xfd8] sm:$0xff]
  %v538 = vld [vmem:[%s1 + $0xfe0] sm:$0xff]
  %v539 = vld [vmem:[%s1 + $0xfe8] sm:$0xff]
  %v540 = vld [vmem:[%s1 + $0xff0] sm:$0xff]
  %v541 = vld [vmem:[%s1 + $0xff8] sm:$0xff]
  %v542 = vld [vmem:[%s1 + $0x1000] sm:$0xff]
  %v543 = vld [vmem:[%s1 + $0x1008] sm:$0xff]
  %v544 = vld [vmem:[%s1 + $0x1010] sm:$0xff]
  %v545 = vld [vmem:[%s1 + $0x1018] sm:$0xff]
  %v546 = vld [vmem:[%s1 + $0x1020] sm:$0xff]
  %v547 = vld [vmem:[%s1 + $0x1028] sm:$0xff]
  %v548 = vld [vmem:[%s1 + $0x1030] sm:$0xff]
  %v549 = vld [vmem:[%s1 + $0x1038] sm:$0xff]
  %v550 = vld [vmem:[%s1 + $0x1040] sm:$0xff]
  %v551 = vld [vmem:[%s1 + $0x1048] sm:$0xff]
  %v552 = vld [vmem:[%s1 + $0x1050] sm:$0xff]
  %v553 = vld [vmem:[%s1 + $0x1058] sm:$0xff]
  %v554 = vld [vmem:[%s1 + $0x1060] sm:$0xff]
  %v555 = vld [vmem:[%s1 + $0x1068] sm:$0xff]
  %v556 = vld [vmem:[%s1 + $0x1070] sm:$0xff]
  %v557 = vld [vmem:[%s1 + $0x1078] sm:$0xff]
  %v558 = vld [vmem:[%s1 + $0x1080] sm:$0xff]
  %v559 = vld [vmem:[%s1 + $0x1088] sm:$0xff]
  %v560 = vld [vmem:[%s1 + $0x1090] sm:$0xff]
  %v561 = vld [vmem:[%s1 + $0x1098] sm:$0xff]
  %v562 = vld [vmem:[%s1 + $0x10a0] sm:$0xff]
  %v563 = vld [vmem:[%s1 + $0x10a8] sm:$0xff]
  %v564 = vld [vmem:[%s1 + $0x10b0] sm:$0xff]
  %v565 = vld [vmem:[%s1 + $0x10b8] sm:$0xff]
  %v566 = vld [vmem:[%s1 + $0x10c0] sm:$0xff]
  %v567 = vld [vmem:[%s1 + $0x10c8] sm:$0xff]
  %v568 = vld [vmem:[%s1 + $0x10d0] sm:$0xff]
  %v569 = vld [vmem:[%s1 + $0x10d8] sm:$0xff]
  %v570 = vld [vmem:[%s1 + $0x10e0] sm:$0xff]
  %v571 = vld [vmem:[%s1 + $0x10e8] sm:$0xff]
  %v572 = vld [vmem:[%s1 + $0x10f0] sm:$0xff]
  %v573 = vld [vmem:[%s1 + $0x10f8] sm:$0xff]
  %v574 = vld [vmem:[%s1 + $0x1100] sm:$0xff]
  %v575 = vld [vmem:[%s1 + $0x1108] sm:$0xff]
  %v576 = vld [vmem:[%s1 + $0x1110] sm:$0xff]
  %v577 = vld [vmem:[%s1 + $0x1118] sm:$0xff]
  %v578 = vld [vmem:[%s1 + $0x1120] sm:$0xff]
  %v579 = vld [vmem:[%s1 + $0x1128] sm:$0xff]
  %v580 = vld [vmem:[%s1 + $0x1130] sm:$0xff]
  %v581 = vld [vmem:[%s1 + $0x1138] sm:$0xff]
  %v582 = vld [vmem:[%s1 + $0x1140] sm:$0xff]
  %v583 = vld [vmem:[%s1 + $0x1148] sm:$0xff]
  %v584 = vld [vmem:[%s1 + $0x1150] sm:$0xff]
  %v585 = vld [vmem:[%s1 + $0x1158] sm:$0xff]
  %v586 = vld [vmem:[%s1 + $0x1160] sm:$0xff]
  %v587 = vld [vmem:[%s1 + $0x1168] sm:$0xff]
  %v588 = vld [vmem:[%s1 + $0x1170] sm:$0xff]
  %v589 = vld [vmem:[%s1 + $0x1178] sm:$0xff]
  %v590 = vld [vmem:[%s1 + $0x1180] sm:$0xff]
  %v591 = vld [vmem:[%s1 + $0x1188] sm:$0xff]
  %v592 = vld [vmem:[%s1 + $0x1190] sm:$0xff]
  %v593 = vld [vmem:[%s1 + $0x1198] sm:$0xff]
  %v594 = vld [vmem:[%s1 + $0x11a0] sm:$0xff]
  %v595 = vld [vmem:[%s1 + $0x11a8] sm:$0xff]
  %v596 = vld [vmem:[%s1 + $0x11b0] sm:$0xff]
  %v597 = vld [vmem:[%s1 + $0x11b8] sm:$0xff]
  %v598 = vld [vmem:[%s1 + $0x11c0] sm:$0xff]
  %v599 = vld [vmem:[%s1 + $0x11c8] sm:$0xff]
  %v600 = vld [vmem:[%s1 + $0x11d0] sm:$0xff]
  %v601 = vld [vmem:[%s1 + $0x11d8] sm:$0xff]
  %v602 = vld [vmem:[%s1 + $0x11e0] sm:$0xff]
  %v603 = vld [vmem:[%s1 + $0x11e8] sm:$0xff]
  %v604 = vld [vmem:[%s1 + $0x11f0] sm:$0xff]
  %v605 = vld [vmem:[%s1 + $0x11f8] sm:$0xff]
  %v606 = vld [vmem:[%s2] sm:$0xf]
  %v608 = vlaneseq
  %v609 = vshrl.u32 %v608, 7
  %v610 = vsub.s32 0, %v609
  %v611 = vrot.slane %v606, %v610
  %v612 = vlaneseq
  %v613 = vshrl.u32 %v612, 7
  %v614 = vsub.s32 1, %v613
  %v615 = vrot.slane %v606, %v614
  %v616 = vlaneseq
  %v617 = vshrl.u32 %v616, 7
  %v618 = vsub.s32 2, %v617
  %v619 = vrot.slane %v606, %v618
  %v620 = vlaneseq
  %v621 = vshrl.u32 %v620, 7
  %v622 = vsub.s32 3, %v621
  %v623 = vrot.slane %v606, %v622
  %v637 = vunpack.c.l.b16 %v21
  %v638 = vunpack.c.h.b16 %v21
  %v639 = vunpack.c.l.b16 %v22
  %v640 = vunpack.c.h.b16 %v22
  %v641 = vunpack.c.l.b16 %v23
  %v642 = vunpack.c.h.b16 %v23
  %v643 = vunpack.c.l.b16 %v24
  %v644 = vunpack.c.h.b16 %v24
  %v645 = vunpack.c.l.b16 %v25
  %v646 = vunpack.c.h.b16 %v25
  %v647 = vunpack.c.l.b16 %v26
  %v648 = vunpack.c.h.b16 %v26
  %v649 = vunpack.c.l.b16 %v27
  %v650 = vunpack.c.h.b16 %v27
  %v651 = vunpack.c.l.b16 %v28
  %v652 = vunpack.c.h.b16 %v28
  %v653 = vunpack.c.l.b16 %v29
  %v654 = vunpack.c.h.b16 %v29
  %v655 = vpack.c.b16 %v637, %v637
  %v656 = vpack.c.b16 %v638, %v638
  %v657 = vpack.c.b16 %v639, %v639
  %v658 = vpack.c.b16 %v640, %v640
  %v659 = vpack.c.b16 %v641, %v641
  %v660 = vpack.c.b16 %v642, %v642
  %v661 = vpack.c.b16 %v643, %v643
  %v662 = vpack.c.b16 %v644, %v644
  %v663 = vpack.c.b16 %v645, %v645
  %v664 = vpack.c.b16 %v646, %v646
  %v665 = vpack.c.b16 %v647, %v647
  %v666 = vpack.c.b16 %v648, %v648
  %v667 = vpack.c.b16 %v649, %v649
  %v668 = vpack.c.b16 %v650, %v650
  %v669 = vpack.c.b16 %v651, %v651
  %v670 = vpack.c.b16 %v652, %v652
  %v671 = vpack.c.b16 %v653, %v653
  %v672 = vpack.c.b16 %v654, %v654
  %v1267 = vunpack.c.l.b16 %v30
  %v1268 = vunpack.c.h.b16 %v30
  %v1269 = vunpack.c.l.b16 %v31
  %v1270 = vunpack.c.h.b16 %v31
  %v1271 = vunpack.c.l.b16 %v32
  %v1272 = vunpack.c.h.b16 %v32
  %v1273 = vunpack.c.l.b16 %v33
  %v1274 = vunpack.c.h.b16 %v33
  %v1275 = vunpack.c.l.b16 %v34
  %v1276 = vunpack.c.h.b16 %v34
  %v1277 = vunpack.c.l.b16 %v35
  %v1278 = vunpack.c.h.b16 %v35
  %v1279 = vunpack.c.l.b16 %v36
  %v1280 = vunpack.c.h.b16 %v36
  %v1281 = vunpack.c.l.b16 %v37
  %v1282 = vunpack.c.h.b16 %v37
  %v1283 = vunpack.c.l.b16 %v38
  %v1284 = vunpack.c.h.b16 %v38
  %v1285 = vunpack.c.l.b16 %v39
  %v1286 = vunpack.c.h.b16 %v39
  %v1287 = vunpack.c.l.b16 %v40
  %v1288 = vunpack.c.h.b16 %v40
  %v1289 = vunpack.c.l.b16 %v41
  %v1290 = vunpack.c.h.b16 %v41
  %v1291 = vunpack.c.l.b16 %v42
  %v1292 = vunpack.c.h.b16 %v42
  %v1293 = vunpack.c.l.b16 %v43
  %v1294 = vunpack.c.h.b16 %v43
  %v1295 = vunpack.c.l.b16 %v44
  %v1296 = vunpack.c.h.b16 %v44
  %v1297 = vunpack.c.l.b16 %v45
  %v1298 = vunpack.c.h.b16 %v45
  %v1299 = vunpack.c.l.b16 %v46
  %v1300 = vunpack.c.h.b16 %v46
  %v1301 = vunpack.c.l.b16 %v47
  %v1302 = vunpack.c.h.b16 %v47
  %v1303 = vunpack.c.l.b16 %v48
  %v1304 = vunpack.c.h.b16 %v48
  %v1305 = vunpack.c.l.b16 %v49
  %v1306 = vunpack.c.h.b16 %v49
  %v1307 = vunpack.c.l.b16 %v50
  %v1308 = vunpack.c.h.b16 %v50
  %v1309 = vunpack.c.l.b16 %v51
  %v1310 = vunpack.c.h.b16 %v51
  %v1311 = vunpack.c.l.b16 %v52
  %v1312 = vunpack.c.h.b16 %v52
  %v1313 = vunpack.c.l.b16 %v53
  %v1314 = vunpack.c.h.b16 %v53
  %v1315 = vunpack.c.l.b16 %v54
  %v1316 = vunpack.c.h.b16 %v54
  %v1317 = vunpack.c.l.b16 %v55
  %v1318 = vunpack.c.h.b16 %v55
  %v1319 = vunpack.c.l.b16 %v56
  %v1320 = vunpack.c.h.b16 %v56
  %v1321 = vunpack.c.l.b16 %v57
  %v1322 = vunpack.c.h.b16 %v57
  %v1323 = vunpack.c.l.b16 %v58
  %v1324 = vunpack.c.h.b16 %v58
  %v1325 = vunpack.c.l.b16 %v59
  %v1326 = vunpack.c.h.b16 %v59
  %v1327 = vunpack.c.l.b16 %v60
  %v1328 = vunpack.c.h.b16 %v60
  %v1329 = vunpack.c.l.b16 %v61
  %v1330 = vunpack.c.h.b16 %v61
  %v1331 = vunpack.c.l.b16 %v62
  %v1332 = vunpack.c.h.b16 %v62
  %v1333 = vunpack.c.l.b16 %v63
  %v1334 = vunpack.c.h.b16 %v63
  %v1335 = vunpack.c.l.b16 %v64
  %v1336 = vunpack.c.h.b16 %v64
  %v1337 = vunpack.c.l.b16 %v65
  %v1338 = vunpack.c.h.b16 %v65
  %v1339 = vunpack.c.l.b16 %v66
  %v1340 = vunpack.c.h.b16 %v66
  %v1341 = vunpack.c.l.b16 %v67
  %v1342 = vunpack.c.h.b16 %v67
  %v1343 = vunpack.c.l.b16 %v68
  %v1344 = vunpack.c.h.b16 %v68
  %v1345 = vunpack.c.l.b16 %v69
  %v1346 = vunpack.c.h.b16 %v69
  %v1347 = vunpack.c.l.b16 %v70
  %v1348 = vunpack.c.h.b16 %v70
  %v1349 = vunpack.c.l.b16 %v71
  %v1350 = vunpack.c.h.b16 %v71
  %v1351 = vunpack.c.l.b16 %v72
  %v1352 = vunpack.c.h.b16 %v72
  %v1353 = vunpack.c.l.b16 %v73
  %v1354 = vunpack.c.h.b16 %v73
  %v1355 = vunpack.c.l.b16 %v74
  %v1356 = vunpack.c.h.b16 %v74
  %v1357 = vunpack.c.l.b16 %v75
  %v1358 = vunpack.c.h.b16 %v75
  %v1359 = vunpack.c.l.b16 %v76
  %v1360 = vunpack.c.h.b16 %v76
  %v1361 = vunpack.c.l.b16 %v77
  %v1362 = vunpack.c.h.b16 %v77
  %v1363 = vunpack.c.l.b16 %v78
  %v1364 = vunpack.c.h.b16 %v78
  %v1365 = vunpack.c.l.b16 %v79
  %v1366 = vunpack.c.h.b16 %v79
  %v1367 = vunpack.c.l.b16 %v80
  %v1368 = vunpack.c.h.b16 %v80
  %v1369 = vunpack.c.l.b16 %v81
  %v1370 = vunpack.c.h.b16 %v81
  %v1371 = vunpack.c.l.b16 %v82
  %v1372 = vunpack.c.h.b16 %v82
  %v1373 = vunpack.c.l.b16 %v83
  %v1374 = vunpack.c.h.b16 %v83
  %v1375 = vunpack.c.l.b16 %v84
  %v1376 = vunpack.c.h.b16 %v84
  %v1377 = vunpack.c.l.b16 %v85
  %v1378 = vunpack.c.h.b16 %v85
  %v1379 = vunpack.c.l.b16 %v86
  %v1380 = vunpack.c.h.b16 %v86
  %v1381 = vunpack.c.l.b16 %v87
  %v1382 = vunpack.c.h.b16 %v87
  %v1383 = vunpack.c.l.b16 %v88
  %v1384 = vunpack.c.h.b16 %v88
  %v1385 = vunpack.c.l.b16 %v89
  %v1386 = vunpack.c.h.b16 %v89
  %v1387 = vunpack.c.l.b16 %v90
  %v1388 = vunpack.c.h.b16 %v90
  %v1389 = vunpack.c.l.b16 %v91
  %v1390 = vunpack.c.h.b16 %v91
  %v1391 = vunpack.c.l.b16 %v92
  %v1392 = vunpack.c.h.b16 %v92
  %v1393 = vunpack.c.l.b16 %v93
  %v1394 = vunpack.c.h.b16 %v93
  %v1395 = vunpack.c.l.b16 %v94
  %v1396 = vunpack.c.h.b16 %v94
  %v1397 = vunpack.c.l.b16 %v95
  %v1398 = vunpack.c.h.b16 %v95
  %v1399 = vunpack.c.l.b16 %v96
  %v1400 = vunpack.c.h.b16 %v96
  %v1401 = vunpack.c.l.b16 %v97
  %v1402 = vunpack.c.h.b16 %v97
  %v1403 = vunpack.c.l.b16 %v98
  %v1404 = vunpack.c.h.b16 %v98
  %v1405 = vunpack.c.l.b16 %v99
  %v1406 = vunpack.c.h.b16 %v99
  %v1407 = vunpack.c.l.b16 %v100
  %v1408 = vunpack.c.h.b16 %v100
  %v1409 = vunpack.c.l.b16 %v101
  %v1410 = vunpack.c.h.b16 %v101
  %v1411 = vunpack.c.l.b16 %v102
  %v1412 = vunpack.c.h.b16 %v102
  %v1413 = vunpack.c.l.b16 %v103
  %v1414 = vunpack.c.h.b16 %v103
  %v1415 = vunpack.c.l.b16 %v104
  %v1416 = vunpack.c.h.b16 %v104
  %v1417 = vunpack.c.l.b16 %v105
  %v1418 = vunpack.c.h.b16 %v105
  %v1419 = vunpack.c.l.b16 %v106
  %v1420 = vunpack.c.h.b16 %v106
  %v1421 = vunpack.c.l.b16 %v107
  %v1422 = vunpack.c.h.b16 %v107
  %v1423 = vunpack.c.l.b16 %v108
  %v1424 = vunpack.c.h.b16 %v108
  %v1425 = vunpack.c.l.b16 %v109
  %v1426 = vunpack.c.h.b16 %v109
  %v1427 = vunpack.c.l.b16 %v110
  %v1428 = vunpack.c.h.b16 %v110
  %v1429 = vunpack.c.l.b16 %v111
  %v1430 = vunpack.c.h.b16 %v111
  %v1431 = vunpack.c.l.b16 %v112
  %v1432 = vunpack.c.h.b16 %v112
  %v1433 = vunpack.c.l.b16 %v113
  %v1434 = vunpack.c.h.b16 %v113
  %v1435 = vunpack.c.l.b16 %v114
  %v1436 = vunpack.c.h.b16 %v114
  %v1437 = vunpack.c.l.b16 %v115
  %v1438 = vunpack.c.h.b16 %v115
  %v1439 = vunpack.c.l.b16 %v116
  %v1440 = vunpack.c.h.b16 %v116
  %v1441 = vunpack.c.l.b16 %v117
  %v1442 = vunpack.c.h.b16 %v117
  %v1443 = vunpack.c.l.b16 %v118
  %v1444 = vunpack.c.h.b16 %v118
  %v1445 = vunpack.c.l.b16 %v119
  %v1446 = vunpack.c.h.b16 %v119
  %v1447 = vunpack.c.l.b16 %v120
  %v1448 = vunpack.c.h.b16 %v120
  %v1449 = vunpack.c.l.b16 %v121
  %v1450 = vunpack.c.h.b16 %v121
  %v1451 = vunpack.c.l.b16 %v122
  %v1452 = vunpack.c.h.b16 %v122
  %v1453 = vunpack.c.l.b16 %v123
  %v1454 = vunpack.c.h.b16 %v123
  %v1455 = vunpack.c.l.b16 %v124
  %v1456 = vunpack.c.h.b16 %v124
  %v1457 = vunpack.c.l.b16 %v125
  %v1458 = vunpack.c.h.b16 %v125
  %v1459 = vunpack.c.l.b16 %v126
  %v1460 = vunpack.c.h.b16 %v126
  %v1461 = vunpack.c.l.b16 %v127
  %v1462 = vunpack.c.h.b16 %v127
  %v1463 = vunpack.c.l.b16 %v128
  %v1464 = vunpack.c.h.b16 %v128
  %v1465 = vunpack.c.l.b16 %v129
  %v1466 = vunpack.c.h.b16 %v129
  %v1467 = vunpack.c.l.b16 %v130
  %v1468 = vunpack.c.h.b16 %v130
  %v1469 = vunpack.c.l.b16 %v131
  %v1470 = vunpack.c.h.b16 %v131
  %v1471 = vunpack.c.l.b16 %v132
  %v1472 = vunpack.c.h.b16 %v132
  %v1473 = vunpack.c.l.b16 %v133
  %v1474 = vunpack.c.h.b16 %v133
  %v1475 = vunpack.c.l.b16 %v134
  %v1476 = vunpack.c.h.b16 %v134
  %v1477 = vunpack.c.l.b16 %v135
  %v1478 = vunpack.c.h.b16 %v135
  %v1479 = vunpack.c.l.b16 %v136
  %v1480 = vunpack.c.h.b16 %v136
  %v1481 = vunpack.c.l.b16 %v137
  %v1482 = vunpack.c.h.b16 %v137
  %v1483 = vunpack.c.l.b16 %v138
  %v1484 = vunpack.c.h.b16 %v138
  %v1485 = vunpack.c.l.b16 %v139
  %v1486 = vunpack.c.h.b16 %v139
  %v1487 = vunpack.c.l.b16 %v140
  %v1488 = vunpack.c.h.b16 %v140
  %v1489 = vunpack.c.l.b16 %v141
  %v1490 = vunpack.c.h.b16 %v141
  %v1491 = vunpack.c.l.b16 %v142
  %v1492 = vunpack.c.h.b16 %v142
  %v1493 = vunpack.c.l.b16 %v143
  %v1494 = vunpack.c.h.b16 %v143
  %v1495 = vunpack.c.l.b16 %v144
  %v1496 = vunpack.c.h.b16 %v144
  %v1497 = vunpack.c.l.b16 %v145
  %v1498 = vunpack.c.h.b16 %v145
  %v1499 = vunpack.c.l.b16 %v146
  %v1500 = vunpack.c.h.b16 %v146
  %v1501 = vunpack.c.l.b16 %v147
  %v1502 = vunpack.c.h.b16 %v147
  %v1503 = vunpack.c.l.b16 %v148
  %v1504 = vunpack.c.h.b16 %v148
  %v1505 = vunpack.c.l.b16 %v149
  %v1506 = vunpack.c.h.b16 %v149
  %v1507 = vunpack.c.l.b16 %v150
  %v1508 = vunpack.c.h.b16 %v150
  %v1509 = vunpack.c.l.b16 %v151
  %v1510 = vunpack.c.h.b16 %v151
  %v1511 = vunpack.c.l.b16 %v152
  %v1512 = vunpack.c.h.b16 %v152
  %v1513 = vunpack.c.l.b16 %v153
  %v1514 = vunpack.c.h.b16 %v153
  %v1515 = vunpack.c.l.b16 %v154
  %v1516 = vunpack.c.h.b16 %v154
  %v1517 = vunpack.c.l.b16 %v155
  %v1518 = vunpack.c.h.b16 %v155
  %v1519 = vunpack.c.l.b16 %v156
  %v1520 = vunpack.c.h.b16 %v156
  %v1521 = vunpack.c.l.b16 %v157
  %v1522 = vunpack.c.h.b16 %v157
  %v1523 = vunpack.c.l.b16 %v158
  %v1524 = vunpack.c.h.b16 %v158
  %v1525 = vunpack.c.l.b16 %v159
  %v1526 = vunpack.c.h.b16 %v159
  %v1527 = vunpack.c.l.b16 %v160
  %v1528 = vunpack.c.h.b16 %v160
  %v1529 = vunpack.c.l.b16 %v161
  %v1530 = vunpack.c.h.b16 %v161
  %v1531 = vunpack.c.l.b16 %v162
  %v1532 = vunpack.c.h.b16 %v162
  %v1533 = vunpack.c.l.b16 %v163
  %v1534 = vunpack.c.h.b16 %v163
  %v1535 = vunpack.c.l.b16 %v164
  %v1536 = vunpack.c.h.b16 %v164
  %v1537 = vunpack.c.l.b16 %v165
  %v1538 = vunpack.c.h.b16 %v165
  %v1539 = vunpack.c.l.b16 %v166
  %v1540 = vunpack.c.h.b16 %v166
  %v1541 = vunpack.c.l.b16 %v167
  %v1542 = vunpack.c.h.b16 %v167
  %v1543 = vunpack.c.l.b16 %v168
  %v1544 = vunpack.c.h.b16 %v168
  %v1545 = vunpack.c.l.b16 %v169
  %v1546 = vunpack.c.h.b16 %v169
  %v1547 = vunpack.c.l.b16 %v170
  %v1548 = vunpack.c.h.b16 %v170
  %v1549 = vunpack.c.l.b16 %v171
  %v1550 = vunpack.c.h.b16 %v171
  %v1551 = vunpack.c.l.b16 %v172
  %v1552 = vunpack.c.h.b16 %v172
  %v1553 = vunpack.c.l.b16 %v173
  %v1554 = vunpack.c.h.b16 %v173
  %v1555 = vunpack.c.l.b16 %v174
  %v1556 = vunpack.c.h.b16 %v174
  %v1557 = vunpack.c.l.b16 %v175
  %v1558 = vunpack.c.h.b16 %v175
  %v1559 = vunpack.c.l.b16 %v176
  %v1560 = vunpack.c.h.b16 %v176
  %v1561 = vunpack.c.l.b16 %v177
  %v1562 = vunpack.c.h.b16 %v177
  %v1563 = vunpack.c.l.b16 %v178
  %v1564 = vunpack.c.h.b16 %v178
  %v1565 = vunpack.c.l.b16 %v179
  %v1566 = vunpack.c.h.b16 %v179
  %v1567 = vunpack.c.l.b16 %v180
  %v1568 = vunpack.c.h.b16 %v180
  %v1569 = vunpack.c.l.b16 %v181
  %v1570 = vunpack.c.h.b16 %v181
  %v1571 = vunpack.c.l.b16 %v182
  %v1572 = vunpack.c.h.b16 %v182
  %v1573 = vunpack.c.l.b16 %v183
  %v1574 = vunpack.c.h.b16 %v183
  %v1575 = vunpack.c.l.b16 %v184
  %v1576 = vunpack.c.h.b16 %v184
  %v1577 = vunpack.c.l.b16 %v185
  %v1578 = vunpack.c.h.b16 %v185
  %v1579 = vunpack.c.l.b16 %v186
  %v1580 = vunpack.c.h.b16 %v186
  %v1581 = vunpack.c.l.b16 %v187
  %v1582 = vunpack.c.h.b16 %v187
  %v1583 = vunpack.c.l.b16 %v188
  %v1584 = vunpack.c.h.b16 %v188
  %v1585 = vunpack.c.l.b16 %v189
  %v1586 = vunpack.c.h.b16 %v189
  %v1587 = vunpack.c.l.b16 %v190
  %v1588 = vunpack.c.h.b16 %v190
  %v1589 = vunpack.c.l.b16 %v191
  %v1590 = vunpack.c.h.b16 %v191
  %v1591 = vunpack.c.l.b16 %v192
  %v1592 = vunpack.c.h.b16 %v192
  %v1593 = vunpack.c.l.b16 %v193
  %v1594 = vunpack.c.h.b16 %v193
  %v1595 = vunpack.c.l.b16 %v194
  %v1596 = vunpack.c.h.b16 %v194
  %v1597 = vunpack.c.l.b16 %v195
  %v1598 = vunpack.c.h.b16 %v195
  %v1599 = vunpack.c.l.b16 %v196
  %v1600 = vunpack.c.h.b16 %v196
  %v1601 = vunpack.c.l.b16 %v197
  %v1602 = vunpack.c.h.b16 %v197
  %v1603 = vunpack.c.l.b16 %v198
  %v1604 = vunpack.c.h.b16 %v198
  %v1605 = vunpack.c.l.b16 %v199
  %v1606 = vunpack.c.h.b16 %v199
  %v1607 = vunpack.c.l.b16 %v200
  %v1608 = vunpack.c.h.b16 %v200
  %v1609 = vunpack.c.l.b16 %v201
  %v1610 = vunpack.c.h.b16 %v201
  %v1611 = vunpack.c.l.b16 %v202
  %v1612 = vunpack.c.h.b16 %v202
  %v1613 = vunpack.c.l.b16 %v203
  %v1614 = vunpack.c.h.b16 %v203
  %v1615 = vunpack.c.l.b16 %v204
  %v1616 = vunpack.c.h.b16 %v204
  %v1617 = vunpack.c.l.b16 %v205
  %v1618 = vunpack.c.h.b16 %v205
  %v1619 = vunpack.c.l.b16 %v206
  %v1620 = vunpack.c.h.b16 %v206
  %v1621 = vunpack.c.l.b16 %v207
  %v1622 = vunpack.c.h.b16 %v207
  %v1623 = vunpack.c.l.b16 %v208
  %v1624 = vunpack.c.h.b16 %v208
  %v1625 = vunpack.c.l.b16 %v209
  %v1626 = vunpack.c.h.b16 %v209
  %v1627 = vunpack.c.l.b16 %v210
  %v1628 = vunpack.c.h.b16 %v210
  %v1629 = vunpack.c.l.b16 %v211
  %v1630 = vunpack.c.h.b16 %v211
  %v1631 = vunpack.c.l.b16 %v212
  %v1632 = vunpack.c.h.b16 %v212
  %v1633 = vunpack.c.l.b16 %v213
  %v1634 = vunpack.c.h.b16 %v213
  %v1635 = vunpack.c.l.b16 %v214
  %v1636 = vunpack.c.h.b16 %v214
  %v1637 = vunpack.c.l.b16 %v215
  %v1638 = vunpack.c.h.b16 %v215
  %v1639 = vunpack.c.l.b16 %v216
  %v1640 = vunpack.c.h.b16 %v216
  %v1641 = vunpack.c.l.b16 %v217
  %v1642 = vunpack.c.h.b16 %v217
  %v1643 = vunpack.c.l.b16 %v218
  %v1644 = vunpack.c.h.b16 %v218
  %v1645 = vunpack.c.l.b16 %v219
  %v1646 = vunpack.c.h.b16 %v219
  %v1647 = vunpack.c.l.b16 %v220
  %v1648 = vunpack.c.h.b16 %v220
  %v1649 = vunpack.c.l.b16 %v221
  %v1650 = vunpack.c.h.b16 %v221
  %v1651 = vunpack.c.l.b16 %v222
  %v1652 = vunpack.c.h.b16 %v222
  %v1653 = vunpack.c.l.b16 %v223
  %v1654 = vunpack.c.h.b16 %v223
  %v1655 = vunpack.c.l.b16 %v224
  %v1656 = vunpack.c.h.b16 %v224
  %v1657 = vunpack.c.l.b16 %v225
  %v1658 = vunpack.c.h.b16 %v225
  %v1659 = vunpack.c.l.b16 %v226
  %v1660 = vunpack.c.h.b16 %v226
  %v1661 = vunpack.c.l.b16 %v227
  %v1662 = vunpack.c.h.b16 %v227
  %v1663 = vunpack.c.l.b16 %v228
  %v1664 = vunpack.c.h.b16 %v228
  %v1665 = vunpack.c.l.b16 %v229
  %v1666 = vunpack.c.h.b16 %v229
  %v1667 = vunpack.c.l.b16 %v230
  %v1668 = vunpack.c.h.b16 %v230
  %v1669 = vunpack.c.l.b16 %v231
  %v1670 = vunpack.c.h.b16 %v231
  %v1671 = vunpack.c.l.b16 %v232
  %v1672 = vunpack.c.h.b16 %v232
  %v1673 = vunpack.c.l.b16 %v233
  %v1674 = vunpack.c.h.b16 %v233
  %v1675 = vunpack.c.l.b16 %v234
  %v1676 = vunpack.c.h.b16 %v234
  %v1677 = vunpack.c.l.b16 %v235
  %v1678 = vunpack.c.h.b16 %v235
  %v1679 = vunpack.c.l.b16 %v236
  %v1680 = vunpack.c.h.b16 %v236
  %v1681 = vunpack.c.l.b16 %v237
  %v1682 = vunpack.c.h.b16 %v237
  %v1683 = vunpack.c.l.b16 %v238
  %v1684 = vunpack.c.h.b16 %v238
  %v1685 = vunpack.c.l.b16 %v239
  %v1686 = vunpack.c.h.b16 %v239
  %v1687 = vunpack.c.l.b16 %v240
  %v1688 = vunpack.c.h.b16 %v240
  %v1689 = vunpack.c.l.b16 %v241
  %v1690 = vunpack.c.h.b16 %v241
  %v1691 = vunpack.c.l.b16 %v242
  %v1692 = vunpack.c.h.b16 %v242
  %v1693 = vunpack.c.l.b16 %v243
  %v1694 = vunpack.c.h.b16 %v243
  %v1695 = vunpack.c.l.b16 %v244
  %v1696 = vunpack.c.h.b16 %v244
  %v1697 = vunpack.c.l.b16 %v245
  %v1698 = vunpack.c.h.b16 %v245
  %v1699 = vunpack.c.l.b16 %v246
  %v1700 = vunpack.c.h.b16 %v246
  %v1701 = vunpack.c.l.b16 %v247
  %v1702 = vunpack.c.h.b16 %v247
  %v1703 = vunpack.c.l.b16 %v248
  %v1704 = vunpack.c.h.b16 %v248
  %v1705 = vunpack.c.l.b16 %v249
  %v1706 = vunpack.c.h.b16 %v249
  %v1707 = vunpack.c.l.b16 %v250
  %v1708 = vunpack.c.h.b16 %v250
  %v1709 = vunpack.c.l.b16 %v251
  %v1710 = vunpack.c.h.b16 %v251
  %v1711 = vunpack.c.l.b16 %v252
  %v1712 = vunpack.c.h.b16 %v252
  %v1713 = vunpack.c.l.b16 %v253
  %v1714 = vunpack.c.h.b16 %v253
  %v1715 = vunpack.c.l.b16 %v254
  %v1716 = vunpack.c.h.b16 %v254
  %v1717 = vunpack.c.l.b16 %v255
  %v1718 = vunpack.c.h.b16 %v255
  %v1719 = vunpack.c.l.b16 %v256
  %v1720 = vunpack.c.h.b16 %v256
  %v1721 = vunpack.c.l.b16 %v257
  %v1722 = vunpack.c.h.b16 %v257
  %v1723 = vunpack.c.l.b16 %v258
  %v1724 = vunpack.c.h.b16 %v258
  %v1725 = vunpack.c.l.b16 %v259
  %v1726 = vunpack.c.h.b16 %v259
  %v1727 = vunpack.c.l.b16 %v260
  %v1728 = vunpack.c.h.b16 %v260
  %v1729 = vunpack.c.l.b16 %v261
  %v1730 = vunpack.c.h.b16 %v261
  %v1731 = vunpack.c.l.b16 %v262
  %v1732 = vunpack.c.h.b16 %v262
  %v1733 = vunpack.c.l.b16 %v263
  %v1734 = vunpack.c.h.b16 %v263
  %v1735 = vunpack.c.l.b16 %v264
  %v1736 = vunpack.c.h.b16 %v264
  %v1737 = vunpack.c.l.b16 %v265
  %v1738 = vunpack.c.h.b16 %v265
  %v1739 = vunpack.c.l.b16 %v266
  %v1740 = vunpack.c.h.b16 %v266
  %v1741 = vunpack.c.l.b16 %v267
  %v1742 = vunpack.c.h.b16 %v267
  %v1743 = vunpack.c.l.b16 %v268
  %v1744 = vunpack.c.h.b16 %v268
  %v1745 = vunpack.c.l.b16 %v269
  %v1746 = vunpack.c.h.b16 %v269
  %v1747 = vunpack.c.l.b16 %v270
  %v1748 = vunpack.c.h.b16 %v270
  %v1749 = vunpack.c.l.b16 %v271
  %v1750 = vunpack.c.h.b16 %v271
  %v1751 = vunpack.c.l.b16 %v272
  %v1752 = vunpack.c.h.b16 %v272
  %v1753 = vunpack.c.l.b16 %v273
  %v1754 = vunpack.c.h.b16 %v273
  %v1755 = vunpack.c.l.b16 %v274
  %v1756 = vunpack.c.h.b16 %v274
  %v1757 = vunpack.c.l.b16 %v275
  %v1758 = vunpack.c.h.b16 %v275
  %v1759 = vunpack.c.l.b16 %v276
  %v1760 = vunpack.c.h.b16 %v276
  %v1761 = vunpack.c.l.b16 %v277
  %v1762 = vunpack.c.h.b16 %v277
  %v1763 = vunpack.c.l.b16 %v278
  %v1764 = vunpack.c.h.b16 %v278
  %v1765 = vunpack.c.l.b16 %v279
  %v1766 = vunpack.c.h.b16 %v279
  %v1767 = vunpack.c.l.b16 %v280
  %v1768 = vunpack.c.h.b16 %v280
  %v1769 = vunpack.c.l.b16 %v281
  %v1770 = vunpack.c.h.b16 %v281
  %v1771 = vunpack.c.l.b16 %v282
  %v1772 = vunpack.c.h.b16 %v282
  %v1773 = vunpack.c.l.b16 %v283
  %v1774 = vunpack.c.h.b16 %v283
  %v1775 = vunpack.c.l.b16 %v284
  %v1776 = vunpack.c.h.b16 %v284
  %v1777 = vunpack.c.l.b16 %v285
  %v1778 = vunpack.c.h.b16 %v285
  %v1779 = vunpack.c.l.b16 %v286
  %v1780 = vunpack.c.h.b16 %v286
  %v1781 = vunpack.c.l.b16 %v287
  %v1782 = vunpack.c.h.b16 %v287
  %v1783 = vunpack.c.l.b16 %v288
  %v1784 = vunpack.c.h.b16 %v288
  %v1785 = vunpack.c.l.b16 %v289
  %v1786 = vunpack.c.h.b16 %v289
  %v1787 = vunpack.c.l.b16 %v290
  %v1788 = vunpack.c.h.b16 %v290
  %v1789 = vunpack.c.l.b16 %v291
  %v1790 = vunpack.c.h.b16 %v291
  %v1791 = vunpack.c.l.b16 %v292
  %v1792 = vunpack.c.h.b16 %v292
  %v1793 = vunpack.c.l.b16 %v293
  %v1794 = vunpack.c.h.b16 %v293
  %v1795 = vunpack.c.l.b16 %v294
  %v1796 = vunpack.c.h.b16 %v294
  %v1797 = vunpack.c.l.b16 %v295
  %v1798 = vunpack.c.h.b16 %v295
  %v1799 = vunpack.c.l.b16 %v296
  %v1800 = vunpack.c.h.b16 %v296
  %v1801 = vunpack.c.l.b16 %v297
  %v1802 = vunpack.c.h.b16 %v297
  %v1803 = vunpack.c.l.b16 %v298
  %v1804 = vunpack.c.h.b16 %v298
  %v1805 = vunpack.c.l.b16 %v299
  %v1806 = vunpack.c.h.b16 %v299
  %v1807 = vunpack.c.l.b16 %v300
  %v1808 = vunpack.c.h.b16 %v300
  %v1809 = vunpack.c.l.b16 %v301
  %v1810 = vunpack.c.h.b16 %v301
  %v1811 = vunpack.c.l.b16 %v302
  %v1812 = vunpack.c.h.b16 %v302
  %v1813 = vunpack.c.l.b16 %v303
  %v1814 = vunpack.c.h.b16 %v303
  %v1815 = vunpack.c.l.b16 %v304
  %v1816 = vunpack.c.h.b16 %v304
  %v1817 = vunpack.c.l.b16 %v305
  %v1818 = vunpack.c.h.b16 %v305
  %v1819 = vunpack.c.l.b16 %v306
  %v1820 = vunpack.c.h.b16 %v306
  %v1821 = vunpack.c.l.b16 %v307
  %v1822 = vunpack.c.h.b16 %v307
  %v1823 = vunpack.c.l.b16 %v308
  %v1824 = vunpack.c.h.b16 %v308
  %v1825 = vunpack.c.l.b16 %v309
  %v1826 = vunpack.c.h.b16 %v309
  %v1827 = vunpack.c.l.b16 %v310
  %v1828 = vunpack.c.h.b16 %v310
  %v1829 = vunpack.c.l.b16 %v311
  %v1830 = vunpack.c.h.b16 %v311
  %v1831 = vunpack.c.l.b16 %v312
  %v1832 = vunpack.c.h.b16 %v312
  %v1833 = vunpack.c.l.b16 %v313
  %v1834 = vunpack.c.h.b16 %v313
  %v1835 = vunpack.c.l.b16 %v314
  %v1836 = vunpack.c.h.b16 %v314
  %v1837 = vunpack.c.l.b16 %v315
  %v1838 = vunpack.c.h.b16 %v315
  %v1839 = vunpack.c.l.b16 %v316
  %v1840 = vunpack.c.h.b16 %v316
  %v1841 = vunpack.c.l.b16 %v317
  %v1842 = vunpack.c.h.b16 %v317
  %v1843 = vunpack.c.l.b16 %v318
  %v1844 = vunpack.c.h.b16 %v318
  %v1845 = vunpack.c.l.b16 %v319
  %v1846 = vunpack.c.h.b16 %v319
  %v1847 = vunpack.c.l.b16 %v320
  %v1848 = vunpack.c.h.b16 %v320
  %v1849 = vunpack.c.l.b16 %v321
  %v1850 = vunpack.c.h.b16 %v321
  %v1851 = vunpack.c.l.b16 %v322
  %v1852 = vunpack.c.h.b16 %v322
  %v1853 = vunpack.c.l.b16 %v323
  %v1854 = vunpack.c.h.b16 %v323
  %v1855 = vunpack.c.l.b16 %v324
  %v1856 = vunpack.c.h.b16 %v324
  %v1857 = vunpack.c.l.b16 %v325
  %v1858 = vunpack.c.h.b16 %v325
  %v1859 = vunpack.c.l.b16 %v326
  %v1860 = vunpack.c.h.b16 %v326
  %v1861 = vunpack.c.l.b16 %v327
  %v1862 = vunpack.c.h.b16 %v327
  %v1863 = vunpack.c.l.b16 %v328
  %v1864 = vunpack.c.h.b16 %v328
  %v1865 = vunpack.c.l.b16 %v329
  %v1866 = vunpack.c.h.b16 %v329
  %v1867 = vunpack.c.l.b16 %v330
  %v1868 = vunpack.c.h.b16 %v330
  %v1869 = vunpack.c.l.b16 %v331
  %v1870 = vunpack.c.h.b16 %v331
  %v1871 = vunpack.c.l.b16 %v332
  %v1872 = vunpack.c.h.b16 %v332
  %v1873 = vunpack.c.l.b16 %v333
  %v1874 = vunpack.c.h.b16 %v333
  %v1875 = vunpack.c.l.b16 %v334
  %v1876 = vunpack.c.h.b16 %v334
  %v1877 = vunpack.c.l.b16 %v335
  %v1878 = vunpack.c.h.b16 %v335
  %v1879 = vunpack.c.l.b16 %v336
  %v1880 = vunpack.c.h.b16 %v336
  %v1881 = vunpack.c.l.b16 %v337
  %v1882 = vunpack.c.h.b16 %v337
  %v1883 = vunpack.c.l.b16 %v338
  %v1884 = vunpack.c.h.b16 %v338
  %v1885 = vunpack.c.l.b16 %v339
  %v1886 = vunpack.c.h.b16 %v339
  %v1887 = vunpack.c.l.b16 %v340
  %v1888 = vunpack.c.h.b16 %v340
  %v1889 = vunpack.c.l.b16 %v341
  %v1890 = vunpack.c.h.b16 %v341
  %v1891 = vunpack.c.l.b16 %v342
  %v1892 = vunpack.c.h.b16 %v342
  %v1893 = vunpack.c.l.b16 %v343
  %v1894 = vunpack.c.h.b16 %v343
  %v1895 = vunpack.c.l.b16 %v344
  %v1896 = vunpack.c.h.b16 %v344
  %v1897 = vunpack.c.l.b16 %v345
  %v1898 = vunpack.c.h.b16 %v345
  %v1899 = vunpack.c.l.b16 %v346
  %v1900 = vunpack.c.h.b16 %v346
  %v1901 = vunpack.c.l.b16 %v347
  %v1902 = vunpack.c.h.b16 %v347
  %v1903 = vunpack.c.l.b16 %v348
  %v1904 = vunpack.c.h.b16 %v348
  %v1905 = vunpack.c.l.b16 %v349
  %v1906 = vunpack.c.h.b16 %v349
  %v1907 = vunpack.c.l.b16 %v350
  %v1908 = vunpack.c.h.b16 %v350
  %v1909 = vunpack.c.l.b16 %v351
  %v1910 = vunpack.c.h.b16 %v351
  %v1911 = vunpack.c.l.b16 %v352
  %v1912 = vunpack.c.h.b16 %v352
  %v1913 = vunpack.c.l.b16 %v353
  %v1914 = vunpack.c.h.b16 %v353
  %v1915 = vunpack.c.l.b16 %v354
  %v1916 = vunpack.c.h.b16 %v354
  %v1917 = vunpack.c.l.b16 %v355
  %v1918 = vunpack.c.h.b16 %v355
  %v1919 = vunpack.c.l.b16 %v356
  %v1920 = vunpack.c.h.b16 %v356
  %v1921 = vunpack.c.l.b16 %v357
  %v1922 = vunpack.c.h.b16 %v357
  %v1923 = vunpack.c.l.b16 %v358
  %v1924 = vunpack.c.h.b16 %v358
  %v1925 = vunpack.c.l.b16 %v359
  %v1926 = vunpack.c.h.b16 %v359
  %v1927 = vunpack.c.l.b16 %v360
  %v1928 = vunpack.c.h.b16 %v360
  %v1929 = vunpack.c.l.b16 %v361
  %v1930 = vunpack.c.h.b16 %v361
  %v1931 = vunpack.c.l.b16 %v362
  %v1932 = vunpack.c.h.b16 %v362
  %v1933 = vunpack.c.l.b16 %v363
  %v1934 = vunpack.c.h.b16 %v363
  %v1935 = vunpack.c.l.b16 %v364
  %v1936 = vunpack.c.h.b16 %v364
  %v1937 = vunpack.c.l.b16 %v365
  %v1938 = vunpack.c.h.b16 %v365
  %v1939 = vunpack.c.l.b16 %v366
  %v1940 = vunpack.c.h.b16 %v366
  %v1941 = vunpack.c.l.b16 %v367
  %v1942 = vunpack.c.h.b16 %v367
  %v1943 = vunpack.c.l.b16 %v368
  %v1944 = vunpack.c.h.b16 %v368
  %v1945 = vunpack.c.l.b16 %v369
  %v1946 = vunpack.c.h.b16 %v369
  %v1947 = vunpack.c.l.b16 %v370
  %v1948 = vunpack.c.h.b16 %v370
  %v1949 = vunpack.c.l.b16 %v371
  %v1950 = vunpack.c.h.b16 %v371
  %v1951 = vunpack.c.l.b16 %v372
  %v1952 = vunpack.c.h.b16 %v372
  %v1953 = vunpack.c.l.b16 %v373
  %v1954 = vunpack.c.h.b16 %v373
  %v1955 = vunpack.c.l.b16 %v374
  %v1956 = vunpack.c.h.b16 %v374
  %v1957 = vunpack.c.l.b16 %v375
  %v1958 = vunpack.c.h.b16 %v375
  %v1959 = vunpack.c.l.b16 %v376
  %v1960 = vunpack.c.h.b16 %v376
  %v1961 = vunpack.c.l.b16 %v377
  %v1962 = vunpack.c.h.b16 %v377
  %v1963 = vunpack.c.l.b16 %v378
  %v1964 = vunpack.c.h.b16 %v378
  %v1965 = vunpack.c.l.b16 %v379
  %v1966 = vunpack.c.h.b16 %v379
  %v1967 = vunpack.c.l.b16 %v380
  %v1968 = vunpack.c.h.b16 %v380
  %v1969 = vunpack.c.l.b16 %v381
  %v1970 = vunpack.c.h.b16 %v381
  %v1971 = vunpack.c.l.b16 %v382
  %v1972 = vunpack.c.h.b16 %v382
  %v1973 = vunpack.c.l.b16 %v383
  %v1974 = vunpack.c.h.b16 %v383
  %v1975 = vunpack.c.l.b16 %v384
  %v1976 = vunpack.c.h.b16 %v384
  %v1977 = vunpack.c.l.b16 %v385
  %v1978 = vunpack.c.h.b16 %v385
  %v1979 = vunpack.c.l.b16 %v386
  %v1980 = vunpack.c.h.b16 %v386
  %v1981 = vunpack.c.l.b16 %v387
  %v1982 = vunpack.c.h.b16 %v387
  %v1983 = vunpack.c.l.b16 %v388
  %v1984 = vunpack.c.h.b16 %v388
  %v1985 = vunpack.c.l.b16 %v389
  %v1986 = vunpack.c.h.b16 %v389
  %v1987 = vunpack.c.l.b16 %v390
  %v1988 = vunpack.c.h.b16 %v390
  %v1989 = vunpack.c.l.b16 %v391
  %v1990 = vunpack.c.h.b16 %v391
  %v1991 = vunpack.c.l.b16 %v392
  %v1992 = vunpack.c.h.b16 %v392
  %v1993 = vunpack.c.l.b16 %v393
  %v1994 = vunpack.c.h.b16 %v393
  %v1995 = vunpack.c.l.b16 %v394
  %v1996 = vunpack.c.h.b16 %v394
  %v1997 = vunpack.c.l.b16 %v395
  %v1998 = vunpack.c.h.b16 %v395
  %v1999 = vunpack.c.l.b16 %v396
  %v2000 = vunpack.c.h.b16 %v396
  %v2001 = vunpack.c.l.b16 %v397
  %v2002 = vunpack.c.h.b16 %v397
  %v2003 = vunpack.c.l.b16 %v398
  %v2004 = vunpack.c.h.b16 %v398
  %v2005 = vunpack.c.l.b16 %v399
  %v2006 = vunpack.c.h.b16 %v399
  %v2007 = vunpack.c.l.b16 %v400
  %v2008 = vunpack.c.h.b16 %v400
  %v2009 = vunpack.c.l.b16 %v401
  %v2010 = vunpack.c.h.b16 %v401
  %v2011 = vunpack.c.l.b16 %v402
  %v2012 = vunpack.c.h.b16 %v402
  %v2013 = vunpack.c.l.b16 %v403
  %v2014 = vunpack.c.h.b16 %v403
  %v2015 = vunpack.c.l.b16 %v404
  %v2016 = vunpack.c.h.b16 %v404
  %v2017 = vunpack.c.l.b16 %v405
  %v2018 = vunpack.c.h.b16 %v405
  %v2019 = vunpack.c.l.b16 %v406
  %v2020 = vunpack.c.h.b16 %v406
  %v2021 = vunpack.c.l.b16 %v407
  %v2022 = vunpack.c.h.b16 %v407
  %v2023 = vunpack.c.l.b16 %v408
  %v2024 = vunpack.c.h.b16 %v408
  %v2025 = vunpack.c.l.b16 %v409
  %v2026 = vunpack.c.h.b16 %v409
  %v2027 = vunpack.c.l.b16 %v410
  %v2028 = vunpack.c.h.b16 %v410
  %v2029 = vunpack.c.l.b16 %v411
  %v2030 = vunpack.c.h.b16 %v411
  %v2031 = vunpack.c.l.b16 %v412
  %v2032 = vunpack.c.h.b16 %v412
  %v2033 = vunpack.c.l.b16 %v413
  %v2034 = vunpack.c.h.b16 %v413
  %v2035 = vunpack.c.l.b16 %v414
  %v2036 = vunpack.c.h.b16 %v414
  %v2037 = vunpack.c.l.b16 %v415
  %v2038 = vunpack.c.h.b16 %v415
  %v2039 = vunpack.c.l.b16 %v416
  %v2040 = vunpack.c.h.b16 %v416
  %v2041 = vunpack.c.l.b16 %v417
  %v2042 = vunpack.c.h.b16 %v417
  %v2043 = vunpack.c.l.b16 %v418
  %v2044 = vunpack.c.h.b16 %v418
  %v2045 = vunpack.c.l.b16 %v419
  %v2046 = vunpack.c.h.b16 %v419
  %v2047 = vunpack.c.l.b16 %v420
  %v2048 = vunpack.c.h.b16 %v420
  %v2049 = vunpack.c.l.b16 %v421
  %v2050 = vunpack.c.h.b16 %v421
  %v2051 = vunpack.c.l.b16 %v422
  %v2052 = vunpack.c.h.b16 %v422
  %v2053 = vunpack.c.l.b16 %v423
  %v2054 = vunpack.c.h.b16 %v423
  %v2055 = vunpack.c.l.b16 %v424
  %v2056 = vunpack.c.h.b16 %v424
  %v2057 = vunpack.c.l.b16 %v425
  %v2058 = vunpack.c.h.b16 %v425
  %v2059 = vunpack.c.l.b16 %v426
  %v2060 = vunpack.c.h.b16 %v426
  %v2061 = vunpack.c.l.b16 %v427
  %v2062 = vunpack.c.h.b16 %v427
  %v2063 = vunpack.c.l.b16 %v428
  %v2064 = vunpack.c.h.b16 %v428
  %v2065 = vunpack.c.l.b16 %v429
  %v2066 = vunpack.c.h.b16 %v429
  %v2067 = vunpack.c.l.b16 %v430
  %v2068 = vunpack.c.h.b16 %v430
  %v2069 = vunpack.c.l.b16 %v431
  %v2070 = vunpack.c.h.b16 %v431
  %v2071 = vunpack.c.l.b16 %v432
  %v2072 = vunpack.c.h.b16 %v432
  %v2073 = vunpack.c.l.b16 %v433
  %v2074 = vunpack.c.h.b16 %v433
  %v2075 = vunpack.c.l.b16 %v434
  %v2076 = vunpack.c.h.b16 %v434
  %v2077 = vunpack.c.l.b16 %v435
  %v2078 = vunpack.c.h.b16 %v435
  %v2079 = vunpack.c.l.b16 %v436
  %v2080 = vunpack.c.h.b16 %v436
  %v2081 = vunpack.c.l.b16 %v437
  %v2082 = vunpack.c.h.b16 %v437
  %v2083 = vunpack.c.l.b16 %v438
  %v2084 = vunpack.c.h.b16 %v438
  %v2085 = vunpack.c.l.b16 %v439
  %v2086 = vunpack.c.h.b16 %v439
  %v2087 = vunpack.c.l.b16 %v440
  %v2088 = vunpack.c.h.b16 %v440
  %v2089 = vunpack.c.l.b16 %v441
  %v2090 = vunpack.c.h.b16 %v441
  %v2091 = vunpack.c.l.b16 %v442
  %v2092 = vunpack.c.h.b16 %v442
  %v2093 = vunpack.c.l.b16 %v443
  %v2094 = vunpack.c.h.b16 %v443
  %v2095 = vunpack.c.l.b16 %v444
  %v2096 = vunpack.c.h.b16 %v444
  %v2097 = vunpack.c.l.b16 %v445
  %v2098 = vunpack.c.h.b16 %v445
  %v2099 = vunpack.c.l.b16 %v446
  %v2100 = vunpack.c.h.b16 %v446
  %v2101 = vunpack.c.l.b16 %v447
  %v2102 = vunpack.c.h.b16 %v447
  %v2103 = vunpack.c.l.b16 %v448
  %v2104 = vunpack.c.h.b16 %v448
  %v2105 = vunpack.c.l.b16 %v449
  %v2106 = vunpack.c.h.b16 %v449
  %v2107 = vunpack.c.l.b16 %v450
  %v2108 = vunpack.c.h.b16 %v450
  %v2109 = vunpack.c.l.b16 %v451
  %v2110 = vunpack.c.h.b16 %v451
  %v2111 = vunpack.c.l.b16 %v452
  %v2112 = vunpack.c.h.b16 %v452
  %v2113 = vunpack.c.l.b16 %v453
  %v2114 = vunpack.c.h.b16 %v453
  %v2115 = vunpack.c.l.b16 %v454
  %v2116 = vunpack.c.h.b16 %v454
  %v2117 = vunpack.c.l.b16 %v455
  %v2118 = vunpack.c.h.b16 %v455
  %v2119 = vunpack.c.l.b16 %v456
  %v2120 = vunpack.c.h.b16 %v456
  %v2121 = vunpack.c.l.b16 %v457
  %v2122 = vunpack.c.h.b16 %v457
  %v2123 = vunpack.c.l.b16 %v458
  %v2124 = vunpack.c.h.b16 %v458
  %v2125 = vunpack.c.l.b16 %v459
  %v2126 = vunpack.c.h.b16 %v459
  %v2127 = vunpack.c.l.b16 %v460
  %v2128 = vunpack.c.h.b16 %v460
  %v2129 = vunpack.c.l.b16 %v461
  %v2130 = vunpack.c.h.b16 %v461
  %v2131 = vunpack.c.l.b16 %v462
  %v2132 = vunpack.c.h.b16 %v462
  %v2133 = vunpack.c.l.b16 %v463
  %v2134 = vunpack.c.h.b16 %v463
  %v2135 = vunpack.c.l.b16 %v464
  %v2136 = vunpack.c.h.b16 %v464
  %v2137 = vunpack.c.l.b16 %v465
  %v2138 = vunpack.c.h.b16 %v465
  %v2139 = vunpack.c.l.b16 %v466
  %v2140 = vunpack.c.h.b16 %v466
  %v2141 = vunpack.c.l.b16 %v467
  %v2142 = vunpack.c.h.b16 %v467
  %v2143 = vunpack.c.l.b16 %v468
  %v2144 = vunpack.c.h.b16 %v468
  %v2145 = vunpack.c.l.b16 %v469
  %v2146 = vunpack.c.h.b16 %v469
  %v2147 = vunpack.c.l.b16 %v470
  %v2148 = vunpack.c.h.b16 %v470
  %v2149 = vunpack.c.l.b16 %v471
  %v2150 = vunpack.c.h.b16 %v471
  %v2151 = vunpack.c.l.b16 %v472
  %v2152 = vunpack.c.h.b16 %v472
  %v2153 = vunpack.c.l.b16 %v473
  %v2154 = vunpack.c.h.b16 %v473
  %v2155 = vunpack.c.l.b16 %v474
  %v2156 = vunpack.c.h.b16 %v474
  %v2157 = vunpack.c.l.b16 %v475
  %v2158 = vunpack.c.h.b16 %v475
  %v2159 = vunpack.c.l.b16 %v476
  %v2160 = vunpack.c.h.b16 %v476
  %v2161 = vunpack.c.l.b16 %v477
  %v2162 = vunpack.c.h.b16 %v477
  %v2163 = vunpack.c.l.b16 %v478
  %v2164 = vunpack.c.h.b16 %v478
  %v2165 = vunpack.c.l.b16 %v479
  %v2166 = vunpack.c.h.b16 %v479
  %v2167 = vunpack.c.l.b16 %v480
  %v2168 = vunpack.c.h.b16 %v480
  %v2169 = vunpack.c.l.b16 %v481
  %v2170 = vunpack.c.h.b16 %v481
  %v2171 = vunpack.c.l.b16 %v482
  %v2172 = vunpack.c.h.b16 %v482
  %v2173 = vunpack.c.l.b16 %v483
  %v2174 = vunpack.c.h.b16 %v483
  %v2175 = vunpack.c.l.b16 %v484
  %v2176 = vunpack.c.h.b16 %v484
  %v2177 = vunpack.c.l.b16 %v485
  %v2178 = vunpack.c.h.b16 %v485
  %v2179 = vunpack.c.l.b16 %v486
  %v2180 = vunpack.c.h.b16 %v486
  %v2181 = vunpack.c.l.b16 %v487
  %v2182 = vunpack.c.h.b16 %v487
  %v2183 = vunpack.c.l.b16 %v488
  %v2184 = vunpack.c.h.b16 %v488
  %v2185 = vunpack.c.l.b16 %v489
  %v2186 = vunpack.c.h.b16 %v489
  %v2187 = vunpack.c.l.b16 %v490
  %v2188 = vunpack.c.h.b16 %v490
  %v2189 = vunpack.c.l.b16 %v491
  %v2190 = vunpack.c.h.b16 %v491
  %v2191 = vunpack.c.l.b16 %v492
  %v2192 = vunpack.c.h.b16 %v492
  %v2193 = vunpack.c.l.b16 %v493
  %v2194 = vunpack.c.h.b16 %v493
  %v2195 = vunpack.c.l.b16 %v494
  %v2196 = vunpack.c.h.b16 %v494
  %v2197 = vunpack.c.l.b16 %v495
  %v2198 = vunpack.c.h.b16 %v495
  %v2199 = vunpack.c.l.b16 %v496
  %v2200 = vunpack.c.h.b16 %v496
  %v2201 = vunpack.c.l.b16 %v497
  %v2202 = vunpack.c.h.b16 %v497
  %v2203 = vunpack.c.l.b16 %v498
  %v2204 = vunpack.c.h.b16 %v498
  %v2205 = vunpack.c.l.b16 %v499
  %v2206 = vunpack.c.h.b16 %v499
  %v2207 = vunpack.c.l.b16 %v500
  %v2208 = vunpack.c.h.b16 %v500
  %v2209 = vunpack.c.l.b16 %v501
  %v2210 = vunpack.c.h.b16 %v501
  %v2211 = vunpack.c.l.b16 %v502
  %v2212 = vunpack.c.h.b16 %v502
  %v2213 = vunpack.c.l.b16 %v503
  %v2214 = vunpack.c.h.b16 %v503
  %v2215 = vunpack.c.l.b16 %v504
  %v2216 = vunpack.c.h.b16 %v504
  %v2217 = vunpack.c.l.b16 %v505
  %v2218 = vunpack.c.h.b16 %v505
  %v2219 = vunpack.c.l.b16 %v506
  %v2220 = vunpack.c.h.b16 %v506
  %v2221 = vunpack.c.l.b16 %v507
  %v2222 = vunpack.c.h.b16 %v507
  %v2223 = vunpack.c.l.b16 %v508
  %v2224 = vunpack.c.h.b16 %v508
  %v2225 = vunpack.c.l.b16 %v509
  %v2226 = vunpack.c.h.b16 %v509
  %v2227 = vunpack.c.l.b16 %v510
  %v2228 = vunpack.c.h.b16 %v510
  %v2229 = vunpack.c.l.b16 %v511
  %v2230 = vunpack.c.h.b16 %v511
  %v2231 = vunpack.c.l.b16 %v512
  %v2232 = vunpack.c.h.b16 %v512
  %v2233 = vunpack.c.l.b16 %v513
  %v2234 = vunpack.c.h.b16 %v513
  %v2235 = vunpack.c.l.b16 %v514
  %v2236 = vunpack.c.h.b16 %v514
  %v2237 = vunpack.c.l.b16 %v515
  %v2238 = vunpack.c.h.b16 %v515
  %v2239 = vunpack.c.l.b16 %v516
  %v2240 = vunpack.c.h.b16 %v516
  %v2241 = vunpack.c.l.b16 %v517
  %v2242 = vunpack.c.h.b16 %v517
  %v2243 = vunpack.c.l.b16 %v518
  %v2244 = vunpack.c.h.b16 %v518
  %v2245 = vunpack.c.l.b16 %v519
  %v2246 = vunpack.c.h.b16 %v519
  %v2247 = vunpack.c.l.b16 %v520
  %v2248 = vunpack.c.h.b16 %v520
  %v2249 = vunpack.c.l.b16 %v521
  %v2250 = vunpack.c.h.b16 %v521
  %v2251 = vunpack.c.l.b16 %v522
  %v2252 = vunpack.c.h.b16 %v522
  %v2253 = vunpack.c.l.b16 %v523
  %v2254 = vunpack.c.h.b16 %v523
  %v2255 = vunpack.c.l.b16 %v524
  %v2256 = vunpack.c.h.b16 %v524
  %v2257 = vunpack.c.l.b16 %v525
  %v2258 = vunpack.c.h.b16 %v525
  %v2259 = vunpack.c.l.b16 %v526
  %v2260 = vunpack.c.h.b16 %v526
  %v2261 = vunpack.c.l.b16 %v527
  %v2262 = vunpack.c.h.b16 %v527
  %v2263 = vunpack.c.l.b16 %v528
  %v2264 = vunpack.c.h.b16 %v528
  %v2265 = vunpack.c.l.b16 %v529
  %v2266 = vunpack.c.h.b16 %v529
  %v2267 = vunpack.c.l.b16 %v530
  %v2268 = vunpack.c.h.b16 %v530
  %v2269 = vunpack.c.l.b16 %v531
  %v2270 = vunpack.c.h.b16 %v531
  %v2271 = vunpack.c.l.b16 %v532
  %v2272 = vunpack.c.h.b16 %v532
  %v2273 = vunpack.c.l.b16 %v533
  %v2274 = vunpack.c.h.b16 %v533
  %v2275 = vunpack.c.l.b16 %v534
  %v2276 = vunpack.c.h.b16 %v534
  %v2277 = vunpack.c.l.b16 %v535
  %v2278 = vunpack.c.h.b16 %v535
  %v2279 = vunpack.c.l.b16 %v536
  %v2280 = vunpack.c.h.b16 %v536
  %v2281 = vunpack.c.l.b16 %v537
  %v2282 = vunpack.c.h.b16 %v537
  %v2283 = vunpack.c.l.b16 %v538
  %v2284 = vunpack.c.h.b16 %v538
  %v2285 = vunpack.c.l.b16 %v539
  %v2286 = vunpack.c.h.b16 %v539
  %v2287 = vunpack.c.l.b16 %v540
  %v2288 = vunpack.c.h.b16 %v540
  %v2289 = vunpack.c.l.b16 %v541
  %v2290 = vunpack.c.h.b16 %v541
  %v2291 = vunpack.c.l.b16 %v542
  %v2292 = vunpack.c.h.b16 %v542
  %v2293 = vunpack.c.l.b16 %v543
  %v2294 = vunpack.c.h.b16 %v543
  %v2295 = vunpack.c.l.b16 %v544
  %v2296 = vunpack.c.h.b16 %v544
  %v2297 = vunpack.c.l.b16 %v545
  %v2298 = vunpack.c.h.b16 %v545
  %v2299 = vunpack.c.l.b16 %v546
  %v2300 = vunpack.c.h.b16 %v546
  %v2301 = vunpack.c.l.b16 %v547
  %v2302 = vunpack.c.h.b16 %v547
  %v2303 = vunpack.c.l.b16 %v548
  %v2304 = vunpack.c.h.b16 %v548
  %v2305 = vunpack.c.l.b16 %v549
  %v2306 = vunpack.c.h.b16 %v549
  %v2307 = vunpack.c.l.b16 %v550
  %v2308 = vunpack.c.h.b16 %v550
  %v2309 = vunpack.c.l.b16 %v551
  %v2310 = vunpack.c.h.b16 %v551
  %v2311 = vunpack.c.l.b16 %v552
  %v2312 = vunpack.c.h.b16 %v552
  %v2313 = vunpack.c.l.b16 %v553
  %v2314 = vunpack.c.h.b16 %v553
  %v2315 = vunpack.c.l.b16 %v554
  %v2316 = vunpack.c.h.b16 %v554
  %v2317 = vunpack.c.l.b16 %v555
  %v2318 = vunpack.c.h.b16 %v555
  %v2319 = vunpack.c.l.b16 %v556
  %v2320 = vunpack.c.h.b16 %v556
  %v2321 = vunpack.c.l.b16 %v557
  %v2322 = vunpack.c.h.b16 %v557
  %v2323 = vunpack.c.l.b16 %v558
  %v2324 = vunpack.c.h.b16 %v558
  %v2325 = vunpack.c.l.b16 %v559
  %v2326 = vunpack.c.h.b16 %v559
  %v2327 = vunpack.c.l.b16 %v560
  %v2328 = vunpack.c.h.b16 %v560
  %v2329 = vunpack.c.l.b16 %v561
  %v2330 = vunpack.c.h.b16 %v561
  %v2331 = vunpack.c.l.b16 %v562
  %v2332 = vunpack.c.h.b16 %v562
  %v2333 = vunpack.c.l.b16 %v563
  %v2334 = vunpack.c.h.b16 %v563
  %v2335 = vunpack.c.l.b16 %v564
  %v2336 = vunpack.c.h.b16 %v564
  %v2337 = vunpack.c.l.b16 %v565
  %v2338 = vunpack.c.h.b16 %v565
  %v2339 = vunpack.c.l.b16 %v566
  %v2340 = vunpack.c.h.b16 %v566
  %v2341 = vunpack.c.l.b16 %v567
  %v2342 = vunpack.c.h.b16 %v567
  %v2343 = vunpack.c.l.b16 %v568
  %v2344 = vunpack.c.h.b16 %v568
  %v2345 = vunpack.c.l.b16 %v569
  %v2346 = vunpack.c.h.b16 %v569
  %v2347 = vunpack.c.l.b16 %v570
  %v2348 = vunpack.c.h.b16 %v570
  %v2349 = vunpack.c.l.b16 %v571
  %v2350 = vunpack.c.h.b16 %v571
  %v2351 = vunpack.c.l.b16 %v572
  %v2352 = vunpack.c.h.b16 %v572
  %v2353 = vunpack.c.l.b16 %v573
  %v2354 = vunpack.c.h.b16 %v573
  %v2355 = vunpack.c.l.b16 %v574
  %v2356 = vunpack.c.h.b16 %v574
  %v2357 = vunpack.c.l.b16 %v575
  %v2358 = vunpack.c.h.b16 %v575
  %v2359 = vunpack.c.l.b16 %v576
  %v2360 = vunpack.c.h.b16 %v576
  %v2361 = vunpack.c.l.b16 %v577
  %v2362 = vunpack.c.h.b16 %v577
  %v2363 = vunpack.c.l.b16 %v578
  %v2364 = vunpack.c.h.b16 %v578
  %v2365 = vunpack.c.l.b16 %v579
  %v2366 = vunpack.c.h.b16 %v579
  %v2367 = vunpack.c.l.b16 %v580
  %v2368 = vunpack.c.h.b16 %v580
  %v2369 = vunpack.c.l.b16 %v581
  %v2370 = vunpack.c.h.b16 %v581
  %v2371 = vunpack.c.l.b16 %v582
  %v2372 = vunpack.c.h.b16 %v582
  %v2373 = vunpack.c.l.b16 %v583
  %v2374 = vunpack.c.h.b16 %v583
  %v2375 = vunpack.c.l.b16 %v584
  %v2376 = vunpack.c.h.b16 %v584
  %v2377 = vunpack.c.l.b16 %v585
  %v2378 = vunpack.c.h.b16 %v585
  %v2379 = vunpack.c.l.b16 %v586
  %v2380 = vunpack.c.h.b16 %v586
  %v2381 = vunpack.c.l.b16 %v587
  %v2382 = vunpack.c.h.b16 %v587
  %v2383 = vunpack.c.l.b16 %v588
  %v2384 = vunpack.c.h.b16 %v588
  %v2385 = vunpack.c.l.b16 %v589
  %v2386 = vunpack.c.h.b16 %v589
  %v2387 = vunpack.c.l.b16 %v590
  %v2388 = vunpack.c.h.b16 %v590
  %v2389 = vunpack.c.l.b16 %v591
  %v2390 = vunpack.c.h.b16 %v591
  %v2391 = vunpack.c.l.b16 %v592
  %v2392 = vunpack.c.h.b16 %v592
  %v2393 = vunpack.c.l.b16 %v593
  %v2394 = vunpack.c.h.b16 %v593
  %v2395 = vunpack.c.l.b16 %v594
  %v2396 = vunpack.c.h.b16 %v594
  %v2397 = vunpack.c.l.b16 %v595
  %v2398 = vunpack.c.h.b16 %v595
  %v2399 = vunpack.c.l.b16 %v596
  %v2400 = vunpack.c.h.b16 %v596
  %v2401 = vunpack.c.l.b16 %v597
  %v2402 = vunpack.c.h.b16 %v597
  %v2403 = vunpack.c.l.b16 %v598
  %v2404 = vunpack.c.h.b16 %v598
  %v2405 = vunpack.c.l.b16 %v599
  %v2406 = vunpack.c.h.b16 %v599
  %v2407 = vunpack.c.l.b16 %v600
  %v2408 = vunpack.c.h.b16 %v600
  %v2409 = vunpack.c.l.b16 %v601
  %v2410 = vunpack.c.h.b16 %v601
  %v2411 = vunpack.c.l.b16 %v602
  %v2412 = vunpack.c.h.b16 %v602
  %v2413 = vunpack.c.l.b16 %v603
  %v2414 = vunpack.c.h.b16 %v603
  %v2415 = vunpack.c.l.b16 %v604
  %v2416 = vunpack.c.h.b16 %v604
  %v2417 = vunpack.c.l.b16 %v605
  %v2418 = vunpack.c.h.b16 %v605
  %v2419 = vpack.c.b16 %v1271, %v1267
  %v2420 = vpack.c.b16 %v1272, %v1268
  %v2421 = vpack.c.b16 %v1273, %v1269
  %v2422 = vpack.c.b16 %v1274, %v1270
  %v2423 = vpack.c.b16 %v1279, %v1275
  %v2424 = vpack.c.b16 %v1280, %v1276
  %v2425 = vpack.c.b16 %v1281, %v1277
  %v2426 = vpack.c.b16 %v1282, %v1278
  %v2427 = vpack.c.b16 %v1287, %v1283
  %v2428 = vpack.c.b16 %v1288, %v1284
  %v2429 = vpack.c.b16 %v1289, %v1285
  %v2430 = vpack.c.b16 %v1290, %v1286
  %v2431 = vpack.c.b16 %v1295, %v1291
  %v2432 = vpack.c.b16 %v1296, %v1292
  %v2433 = vpack.c.b16 %v1297, %v1293
  %v2434 = vpack.c.b16 %v1298, %v1294
  %v2435 = vpack.c.b16 %v1303, %v1299
  %v2436 = vpack.c.b16 %v1304, %v1300
  %v2437 = vpack.c.b16 %v1305, %v1301
  %v2438 = vpack.c.b16 %v1306, %v1302
  %v2439 = vpack.c.b16 %v1311, %v1307
  %v2440 = vpack.c.b16 %v1312, %v1308
  %v2441 = vpack.c.b16 %v1313, %v1309
  %v2442 = vpack.c.b16 %v1314, %v1310
  %v2443 = vpack.c.b16 %v1319, %v1315
  %v2444 = vpack.c.b16 %v1320, %v1316
  %v2445 = vpack.c.b16 %v1321, %v1317
  %v2446 = vpack.c.b16 %v1322, %v1318
  %v2447 = vpack.c.b16 %v1327, %v1323
  %v2448 = vpack.c.b16 %v1328, %v1324
  %v2449 = vpack.c.b16 %v1329, %v1325
  %v2450 = vpack.c.b16 %v1330, %v1326
  %v2451 = vpack.c.b16 %v1335, %v1331
  %v2452 = vpack.c.b16 %v1336, %v1332
  %v2453 = vpack.c.b16 %v1337, %v1333
  %v2454 = vpack.c.b16 %v1338, %v1334
  %v2455 = vpack.c.b16 %v1343, %v1339
  %v2456 = vpack.c.b16 %v1344, %v1340
  %v2457 = vpack.c.b16 %v1345, %v1341
  %v2458 = vpack.c.b16 %v1346, %v1342
  %v2459 = vpack.c.b16 %v1351, %v1347
  %v2460 = vpack.c.b16 %v1352, %v1348
  %v2461 = vpack.c.b16 %v1353, %v1349
  %v2462 = vpack.c.b16 %v1354, %v1350
  %v2463 = vpack.c.b16 %v1359, %v1355
  %v2464 = vpack.c.b16 %v1360, %v1356
  %v2465 = vpack.c.b16 %v1361, %v1357
  %v2466 = vpack.c.b16 %v1362, %v1358
  %v2467 = vpack.c.b16 %v1367, %v1363
  %v2468 = vpack.c.b16 %v1368, %v1364
  %v2469 = vpack.c.b16 %v1369, %v1365
  %v2470 = vpack.c.b16 %v1370, %v1366
  %v2471 = vpack.c.b16 %v1375, %v1371
  %v2472 = vpack.c.b16 %v1376, %v1372
  %v2473 = vpack.c.b16 %v1377, %v1373
  %v2474 = vpack.c.b16 %v1378, %v1374
  %v2475 = vpack.c.b16 %v1383, %v1379
  %v2476 = vpack.c.b16 %v1384, %v1380
  %v2477 = vpack.c.b16 %v1385, %v1381
  %v2478 = vpack.c.b16 %v1386, %v1382
  %v2479 = vpack.c.b16 %v1391, %v1387
  %v2480 = vpack.c.b16 %v1392, %v1388
  %v2481 = vpack.c.b16 %v1393, %v1389
  %v2482 = vpack.c.b16 %v1394, %v1390
  %v2483 = vpack.c.b16 %v1399, %v1395
  %v2484 = vpack.c.b16 %v1400, %v1396
  %v2485 = vpack.c.b16 %v1401, %v1397
  %v2486 = vpack.c.b16 %v1402, %v1398
  %v2487 = vpack.c.b16 %v1407, %v1403
  %v2488 = vpack.c.b16 %v1408, %v1404
  %v2489 = vpack.c.b16 %v1409, %v1405
  %v2490 = vpack.c.b16 %v1410, %v1406
  %v2491 = vpack.c.b16 %v1415, %v1411
  %v2492 = vpack.c.b16 %v1416, %v1412
  %v2493 = vpack.c.b16 %v1417, %v1413
  %v2494 = vpack.c.b16 %v1418, %v1414
  %v2495 = vpack.c.b16 %v1423, %v1419
  %v2496 = vpack.c.b16 %v1424, %v1420
  %v2497 = vpack.c.b16 %v1425, %v1421
  %v2498 = vpack.c.b16 %v1426, %v1422
  %v2499 = vpack.c.b16 %v1431, %v1427
  %v2500 = vpack.c.b16 %v1432, %v1428
  %v2501 = vpack.c.b16 %v1433, %v1429
  %v2502 = vpack.c.b16 %v1434, %v1430
  %v2503 = vpack.c.b16 %v1439, %v1435
  %v2504 = vpack.c.b16 %v1440, %v1436
  %v2505 = vpack.c.b16 %v1441, %v1437
  %v2506 = vpack.c.b16 %v1442, %v1438
  %v2507 = vpack.c.b16 %v1447, %v1443
  %v2508 = vpack.c.b16 %v1448, %v1444
  %v2509 = vpack.c.b16 %v1449, %v1445
  %v2510 = vpack.c.b16 %v1450, %v1446
  %v2511 = vpack.c.b16 %v1455, %v1451
  %v2512 = vpack.c.b16 %v1456, %v1452
  %v2513 = vpack.c.b16 %v1457, %v1453
  %v2514 = vpack.c.b16 %v1458, %v1454
  %v2515 = vpack.c.b16 %v1463, %v1459
  %v2516 = vpack.c.b16 %v1464, %v1460
  %v2517 = vpack.c.b16 %v1465, %v1461
  %v2518 = vpack.c.b16 %v1466, %v1462
  %v2519 = vpack.c.b16 %v1471, %v1467
  %v2520 = vpack.c.b16 %v1472, %v1468
  %v2521 = vpack.c.b16 %v1473, %v1469
  %v2522 = vpack.c.b16 %v1474, %v1470
  %v2523 = vpack.c.b16 %v1479, %v1475
  %v2524 = vpack.c.b16 %v1480, %v1476
  %v2525 = vpack.c.b16 %v1481, %v1477
  %v2526 = vpack.c.b16 %v1482, %v1478
  %v2527 = vpack.c.b16 %v1487, %v1483
  %v2528 = vpack.c.b16 %v1488, %v1484
  %v2529 = vpack.c.b16 %v1489, %v1485
  %v2530 = vpack.c.b16 %v1490, %v1486
  %v2531 = vpack.c.b16 %v1495, %v1491
  %v2532 = vpack.c.b16 %v1496, %v1492
  %v2533 = vpack.c.b16 %v1497, %v1493
  %v2534 = vpack.c.b16 %v1498, %v1494
  %v2535 = vpack.c.b16 %v1503, %v1499
  %v2536 = vpack.c.b16 %v1504, %v1500
  %v2537 = vpack.c.b16 %v1505, %v1501
  %v2538 = vpack.c.b16 %v1506, %v1502
  %v2539 = vpack.c.b16 %v1511, %v1507
  %v2540 = vpack.c.b16 %v1512, %v1508
  %v2541 = vpack.c.b16 %v1513, %v1509
  %v2542 = vpack.c.b16 %v1514, %v1510
  %v2543 = vpack.c.b16 %v1519, %v1515
  %v2544 = vpack.c.b16 %v1520, %v1516
  %v2545 = vpack.c.b16 %v1521, %v1517
  %v2546 = vpack.c.b16 %v1522, %v1518
  %v2547 = vpack.c.b16 %v1527, %v1523
  %v2548 = vpack.c.b16 %v1528, %v1524
  %v2549 = vpack.c.b16 %v1529, %v1525
  %v2550 = vpack.c.b16 %v1530, %v1526
  %v2551 = vpack.c.b16 %v1535, %v1531
  %v2552 = vpack.c.b16 %v1536, %v1532
  %v2553 = vpack.c.b16 %v1537, %v1533
  %v2554 = vpack.c.b16 %v1538, %v1534
  %v2555 = vpack.c.b16 %v1543, %v1539
  %v2556 = vpack.c.b16 %v1544, %v1540
  %v2557 = vpack.c.b16 %v1545, %v1541
  %v2558 = vpack.c.b16 %v1546, %v1542
  %v2559 = vpack.c.b16 %v1551, %v1547
  %v2560 = vpack.c.b16 %v1552, %v1548
  %v2561 = vpack.c.b16 %v1553, %v1549
  %v2562 = vpack.c.b16 %v1554, %v1550
  %v2563 = vpack.c.b16 %v1559, %v1555
  %v2564 = vpack.c.b16 %v1560, %v1556
  %v2565 = vpack.c.b16 %v1561, %v1557
  %v2566 = vpack.c.b16 %v1562, %v1558
  %v2567 = vpack.c.b16 %v1567, %v1563
  %v2568 = vpack.c.b16 %v1568, %v1564
  %v2569 = vpack.c.b16 %v1569, %v1565
  %v2570 = vpack.c.b16 %v1570, %v1566
  %v2571 = vpack.c.b16 %v1575, %v1571
  %v2572 = vpack.c.b16 %v1576, %v1572
  %v2573 = vpack.c.b16 %v1577, %v1573
  %v2574 = vpack.c.b16 %v1578, %v1574
  %v2575 = vpack.c.b16 %v1583, %v1579
  %v2576 = vpack.c.b16 %v1584, %v1580
  %v2577 = vpack.c.b16 %v1585, %v1581
  %v2578 = vpack.c.b16 %v1586, %v1582
  %v2579 = vpack.c.b16 %v1591, %v1587
  %v2580 = vpack.c.b16 %v1592, %v1588
  %v2581 = vpack.c.b16 %v1593, %v1589
  %v2582 = vpack.c.b16 %v1594, %v1590
  %v2583 = vpack.c.b16 %v1599, %v1595
  %v2584 = vpack.c.b16 %v1600, %v1596
  %v2585 = vpack.c.b16 %v1601, %v1597
  %v2586 = vpack.c.b16 %v1602, %v1598
  %v2587 = vpack.c.b16 %v1607, %v1603
  %v2588 = vpack.c.b16 %v1608, %v1604
  %v2589 = vpack.c.b16 %v1609, %v1605
  %v2590 = vpack.c.b16 %v1610, %v1606
  %v2591 = vpack.c.b16 %v1615, %v1611
  %v2592 = vpack.c.b16 %v1616, %v1612
  %v2593 = vpack.c.b16 %v1617, %v1613
  %v2594 = vpack.c.b16 %v1618, %v1614
  %v2595 = vpack.c.b16 %v1623, %v1619
  %v2596 = vpack.c.b16 %v1624, %v1620
  %v2597 = vpack.c.b16 %v1625, %v1621
  %v2598 = vpack.c.b16 %v1626, %v1622
  %v2599 = vpack.c.b16 %v1631, %v1627
  %v2600 = vpack.c.b16 %v1632, %v1628
  %v2601 = vpack.c.b16 %v1633, %v1629
  %v2602 = vpack.c.b16 %v1634, %v1630
  %v2603 = vpack.c.b16 %v1639, %v1635
  %v2604 = vpack.c.b16 %v1640, %v1636
  %v2605 = vpack.c.b16 %v1641, %v1637
  %v2606 = vpack.c.b16 %v1642, %v1638
  %v2607 = vpack.c.b16 %v1647, %v1643
  %v2608 = vpack.c.b16 %v1648, %v1644
  %v2609 = vpack.c.b16 %v1649, %v1645
  %v2610 = vpack.c.b16 %v1650, %v1646
  %v2611 = vpack.c.b16 %v1655, %v1651
  %v2612 = vpack.c.b16 %v1656, %v1652
  %v2613 = vpack.c.b16 %v1657, %v1653
  %v2614 = vpack.c.b16 %v1658, %v1654
  %v2615 = vpack.c.b16 %v1663, %v1659
  %v2616 = vpack.c.b16 %v1664, %v1660
  %v2617 = vpack.c.b16 %v1665, %v1661
  %v2618 = vpack.c.b16 %v1666, %v1662
  %v2619 = vpack.c.b16 %v1671, %v1667
  %v2620 = vpack.c.b16 %v1672, %v1668
  %v2621 = vpack.c.b16 %v1673, %v1669
  %v2622 = vpack.c.b16 %v1674, %v1670
  %v2623 = vpack.c.b16 %v1679, %v1675
  %v2624 = vpack.c.b16 %v1680, %v1676
  %v2625 = vpack.c.b16 %v1681, %v1677
  %v2626 = vpack.c.b16 %v1682, %v1678
  %v2627 = vpack.c.b16 %v1687, %v1683
  %v2628 = vpack.c.b16 %v1688, %v1684
  %v2629 = vpack.c.b16 %v1689, %v1685
  %v2630 = vpack.c.b16 %v1690, %v1686
  %v2631 = vpack.c.b16 %v1695, %v1691
  %v2632 = vpack.c.b16 %v1696, %v1692
  %v2633 = vpack.c.b16 %v1697, %v1693
  %v2634 = vpack.c.b16 %v1698, %v1694
  %v2635 = vpack.c.b16 %v1703, %v1699
  %v2636 = vpack.c.b16 %v1704, %v1700
  %v2637 = vpack.c.b16 %v1705, %v1701
  %v2638 = vpack.c.b16 %v1706, %v1702
  %v2639 = vpack.c.b16 %v1711, %v1707
  %v2640 = vpack.c.b16 %v1712, %v1708
  %v2641 = vpack.c.b16 %v1713, %v1709
  %v2642 = vpack.c.b16 %v1714, %v1710
  %v2643 = vpack.c.b16 %v1719, %v1715
  %v2644 = vpack.c.b16 %v1720, %v1716
  %v2645 = vpack.c.b16 %v1721, %v1717
  %v2646 = vpack.c.b16 %v1722, %v1718
  %v2647 = vpack.c.b16 %v1727, %v1723
  %v2648 = vpack.c.b16 %v1728, %v1724
  %v2649 = vpack.c.b16 %v1729, %v1725
  %v2650 = vpack.c.b16 %v1730, %v1726
  %v2651 = vpack.c.b16 %v1735, %v1731
  %v2652 = vpack.c.b16 %v1736, %v1732
  %v2653 = vpack.c.b16 %v1737, %v1733
  %v2654 = vpack.c.b16 %v1738, %v1734
  %v2655 = vpack.c.b16 %v1743, %v1739
  %v2656 = vpack.c.b16 %v1744, %v1740
  %v2657 = vpack.c.b16 %v1745, %v1741
  %v2658 = vpack.c.b16 %v1746, %v1742
  %v2659 = vpack.c.b16 %v1751, %v1747
  %v2660 = vpack.c.b16 %v1752, %v1748
  %v2661 = vpack.c.b16 %v1753, %v1749
  %v2662 = vpack.c.b16 %v1754, %v1750
  %v2663 = vpack.c.b16 %v1759, %v1755
  %v2664 = vpack.c.b16 %v1760, %v1756
  %v2665 = vpack.c.b16 %v1761, %v1757
  %v2666 = vpack.c.b16 %v1762, %v1758
  %v2667 = vpack.c.b16 %v1767, %v1763
  %v2668 = vpack.c.b16 %v1768, %v1764
  %v2669 = vpack.c.b16 %v1769, %v1765
  %v2670 = vpack.c.b16 %v1770, %v1766
  %v2671 = vpack.c.b16 %v1775, %v1771
  %v2672 = vpack.c.b16 %v1776, %v1772
  %v2673 = vpack.c.b16 %v1777, %v1773
  %v2674 = vpack.c.b16 %v1778, %v1774
  %v2675 = vpack.c.b16 %v1783, %v1779
  %v2676 = vpack.c.b16 %v1784, %v1780
  %v2677 = vpack.c.b16 %v1785, %v1781
  %v2678 = vpack.c.b16 %v1786, %v1782
  %v2679 = vpack.c.b16 %v1791, %v1787
  %v2680 = vpack.c.b16 %v1792, %v1788
  %v2681 = vpack.c.b16 %v1793, %v1789
  %v2682 = vpack.c.b16 %v1794, %v1790
  %v2683 = vpack.c.b16 %v1799, %v1795
  %v2684 = vpack.c.b16 %v1800, %v1796
  %v2685 = vpack.c.b16 %v1801, %v1797
  %v2686 = vpack.c.b16 %v1802, %v1798
  %v2687 = vpack.c.b16 %v1807, %v1803
  %v2688 = vpack.c.b16 %v1808, %v1804
  %v2689 = vpack.c.b16 %v1809, %v1805
  %v2690 = vpack.c.b16 %v1810, %v1806
  %v2691 = vpack.c.b16 %v1815, %v1811
  %v2692 = vpack.c.b16 %v1816, %v1812
  %v2693 = vpack.c.b16 %v1817, %v1813
  %v2694 = vpack.c.b16 %v1818, %v1814
  %v2695 = vpack.c.b16 %v1823, %v1819
  %v2696 = vpack.c.b16 %v1824, %v1820
  %v2697 = vpack.c.b16 %v1825, %v1821
  %v2698 = vpack.c.b16 %v1826, %v1822
  %v2699 = vpack.c.b16 %v1831, %v1827
  %v2700 = vpack.c.b16 %v1832, %v1828
  %v2701 = vpack.c.b16 %v1833, %v1829
  %v2702 = vpack.c.b16 %v1834, %v1830
  %v2703 = vpack.c.b16 %v1839, %v1835
  %v2704 = vpack.c.b16 %v1840, %v1836
  %v2705 = vpack.c.b16 %v1841, %v1837
  %v2706 = vpack.c.b16 %v1842, %v1838
  %v2707 = vpack.c.b16 %v1847, %v1843
  %v2708 = vpack.c.b16 %v1848, %v1844
  %v2709 = vpack.c.b16 %v1849, %v1845
  %v2710 = vpack.c.b16 %v1850, %v1846
  %v2711 = vpack.c.b16 %v1855, %v1851
  %v2712 = vpack.c.b16 %v1856, %v1852
  %v2713 = vpack.c.b16 %v1857, %v1853
  %v2714 = vpack.c.b16 %v1858, %v1854
  %v2715 = vpack.c.b16 %v1863, %v1859
  %v2716 = vpack.c.b16 %v1864, %v1860
  %v2717 = vpack.c.b16 %v1865, %v1861
  %v2718 = vpack.c.b16 %v1866, %v1862
  %v2719 = vpack.c.b16 %v1871, %v1867
  %v2720 = vpack.c.b16 %v1872, %v1868
  %v2721 = vpack.c.b16 %v1873, %v1869
  %v2722 = vpack.c.b16 %v1874, %v1870
  %v2723 = vpack.c.b16 %v1879, %v1875
  %v2724 = vpack.c.b16 %v1880, %v1876
  %v2725 = vpack.c.b16 %v1881, %v1877
  %v2726 = vpack.c.b16 %v1882, %v1878
  %v2727 = vpack.c.b16 %v1887, %v1883
  %v2728 = vpack.c.b16 %v1888, %v1884
  %v2729 = vpack.c.b16 %v1889, %v1885
  %v2730 = vpack.c.b16 %v1890, %v1886
  %v2731 = vpack.c.b16 %v1895, %v1891
  %v2732 = vpack.c.b16 %v1896, %v1892
  %v2733 = vpack.c.b16 %v1897, %v1893
  %v2734 = vpack.c.b16 %v1898, %v1894
  %v2735 = vpack.c.b16 %v1903, %v1899
  %v2736 = vpack.c.b16 %v1904, %v1900
  %v2737 = vpack.c.b16 %v1905, %v1901
  %v2738 = vpack.c.b16 %v1906, %v1902
  %v2739 = vpack.c.b16 %v1911, %v1907
  %v2740 = vpack.c.b16 %v1912, %v1908
  %v2741 = vpack.c.b16 %v1913, %v1909
  %v2742 = vpack.c.b16 %v1914, %v1910
  %v2743 = vpack.c.b16 %v1919, %v1915
  %v2744 = vpack.c.b16 %v1920, %v1916
  %v2745 = vpack.c.b16 %v1921, %v1917
  %v2746 = vpack.c.b16 %v1922, %v1918
  %v2747 = vpack.c.b16 %v1927, %v1923
  %v2748 = vpack.c.b16 %v1928, %v1924
  %v2749 = vpack.c.b16 %v1929, %v1925
  %v2750 = vpack.c.b16 %v1930, %v1926
  %v2751 = vpack.c.b16 %v1935, %v1931
  %v2752 = vpack.c.b16 %v1936, %v1932
  %v2753 = vpack.c.b16 %v1937, %v1933
  %v2754 = vpack.c.b16 %v1938, %v1934
  %v2755 = vpack.c.b16 %v1943, %v1939
  %v2756 = vpack.c.b16 %v1944, %v1940
  %v2757 = vpack.c.b16 %v1945, %v1941
  %v2758 = vpack.c.b16 %v1946, %v1942
  %v2759 = vpack.c.b16 %v1951, %v1947
  %v2760 = vpack.c.b16 %v1952, %v1948
  %v2761 = vpack.c.b16 %v1953, %v1949
  %v2762 = vpack.c.b16 %v1954, %v1950
  %v2763 = vpack.c.b16 %v1959, %v1955
  %v2764 = vpack.c.b16 %v1960, %v1956
  %v2765 = vpack.c.b16 %v1961, %v1957
  %v2766 = vpack.c.b16 %v1962, %v1958
  %v2767 = vpack.c.b16 %v1967, %v1963
  %v2768 = vpack.c.b16 %v1968, %v1964
  %v2769 = vpack.c.b16 %v1969, %v1965
  %v2770 = vpack.c.b16 %v1970, %v1966
  %v2771 = vpack.c.b16 %v1975, %v1971
  %v2772 = vpack.c.b16 %v1976, %v1972
  %v2773 = vpack.c.b16 %v1977, %v1973
  %v2774 = vpack.c.b16 %v1978, %v1974
  %v2775 = vpack.c.b16 %v1983, %v1979
  %v2776 = vpack.c.b16 %v1984, %v1980
  %v2777 = vpack.c.b16 %v1985, %v1981
  %v2778 = vpack.c.b16 %v1986, %v1982
  %v2779 = vpack.c.b16 %v1991, %v1987
  %v2780 = vpack.c.b16 %v1992, %v1988
  %v2781 = vpack.c.b16 %v1993, %v1989
  %v2782 = vpack.c.b16 %v1994, %v1990
  %v2783 = vpack.c.b16 %v1999, %v1995
  %v2784 = vpack.c.b16 %v2000, %v1996
  %v2785 = vpack.c.b16 %v2001, %v1997
  %v2786 = vpack.c.b16 %v2002, %v1998
  %v2787 = vpack.c.b16 %v2007, %v2003
  %v2788 = vpack.c.b16 %v2008, %v2004
  %v2789 = vpack.c.b16 %v2009, %v2005
  %v2790 = vpack.c.b16 %v2010, %v2006
  %v2791 = vpack.c.b16 %v2015, %v2011
  %v2792 = vpack.c.b16 %v2016, %v2012
  %v2793 = vpack.c.b16 %v2017, %v2013
  %v2794 = vpack.c.b16 %v2018, %v2014
  %v2795 = vpack.c.b16 %v2023, %v2019
  %v2796 = vpack.c.b16 %v2024, %v2020
  %v2797 = vpack.c.b16 %v2025, %v2021
  %v2798 = vpack.c.b16 %v2026, %v2022
  %v2799 = vpack.c.b16 %v2031, %v2027
  %v2800 = vpack.c.b16 %v2032, %v2028
  %v2801 = vpack.c.b16 %v2033, %v2029
  %v2802 = vpack.c.b16 %v2034, %v2030
  %v2803 = vpack.c.b16 %v2039, %v2035
  %v2804 = vpack.c.b16 %v2040, %v2036
  %v2805 = vpack.c.b16 %v2041, %v2037
  %v2806 = vpack.c.b16 %v2042, %v2038
  %v2807 = vpack.c.b16 %v2047, %v2043
  %v2808 = vpack.c.b16 %v2048, %v2044
  %v2809 = vpack.c.b16 %v2049, %v2045
  %v2810 = vpack.c.b16 %v2050, %v2046
  %v2811 = vpack.c.b16 %v2055, %v2051
  %v2812 = vpack.c.b16 %v2056, %v2052
  %v2813 = vpack.c.b16 %v2057, %v2053
  %v2814 = vpack.c.b16 %v2058, %v2054
  %v2815 = vpack.c.b16 %v2063, %v2059
  %v2816 = vpack.c.b16 %v2064, %v2060
  %v2817 = vpack.c.b16 %v2065, %v2061
  %v2818 = vpack.c.b16 %v2066, %v2062
  %v2819 = vpack.c.b16 %v2071, %v2067
  %v2820 = vpack.c.b16 %v2072, %v2068
  %v2821 = vpack.c.b16 %v2073, %v2069
  %v2822 = vpack.c.b16 %v2074, %v2070
  %v2823 = vpack.c.b16 %v2079, %v2075
  %v2824 = vpack.c.b16 %v2080, %v2076
  %v2825 = vpack.c.b16 %v2081, %v2077
  %v2826 = vpack.c.b16 %v2082, %v2078
  %v2827 = vpack.c.b16 %v2087, %v2083
  %v2828 = vpack.c.b16 %v2088, %v2084
  %v2829 = vpack.c.b16 %v2089, %v2085
  %v2830 = vpack.c.b16 %v2090, %v2086
  %v2831 = vpack.c.b16 %v2095, %v2091
  %v2832 = vpack.c.b16 %v2096, %v2092
  %v2833 = vpack.c.b16 %v2097, %v2093
  %v2834 = vpack.c.b16 %v2098, %v2094
  %v2835 = vpack.c.b16 %v2103, %v2099
  %v2836 = vpack.c.b16 %v2104, %v2100
  %v2837 = vpack.c.b16 %v2105, %v2101
  %v2838 = vpack.c.b16 %v2106, %v2102
  %v2839 = vpack.c.b16 %v2111, %v2107
  %v2840 = vpack.c.b16 %v2112, %v2108
  %v2841 = vpack.c.b16 %v2113, %v2109
  %v2842 = vpack.c.b16 %v2114, %v2110
  %v2843 = vpack.c.b16 %v2119, %v2115
  %v2844 = vpack.c.b16 %v2120, %v2116
  %v2845 = vpack.c.b16 %v2121, %v2117
  %v2846 = vpack.c.b16 %v2122, %v2118
  %v2847 = vpack.c.b16 %v2127, %v2123
  %v2848 = vpack.c.b16 %v2128, %v2124
  %v2849 = vpack.c.b16 %v2129, %v2125
  %v2850 = vpack.c.b16 %v2130, %v2126
  %v2851 = vpack.c.b16 %v2135, %v2131
  %v2852 = vpack.c.b16 %v2136, %v2132
  %v2853 = vpack.c.b16 %v2137, %v2133
  %v2854 = vpack.c.b16 %v2138, %v2134
  %v2855 = vpack.c.b16 %v2143, %v2139
  %v2856 = vpack.c.b16 %v2144, %v2140
  %v2857 = vpack.c.b16 %v2145, %v2141
  %v2858 = vpack.c.b16 %v2146, %v2142
  %v2859 = vpack.c.b16 %v2151, %v2147
  %v2860 = vpack.c.b16 %v2152, %v2148
  %v2861 = vpack.c.b16 %v2153, %v2149
  %v2862 = vpack.c.b16 %v2154, %v2150
  %v2863 = vpack.c.b16 %v2159, %v2155
  %v2864 = vpack.c.b16 %v2160, %v2156
  %v2865 = vpack.c.b16 %v2161, %v2157
  %v2866 = vpack.c.b16 %v2162, %v2158
  %v2867 = vpack.c.b16 %v2167, %v2163
  %v2868 = vpack.c.b16 %v2168, %v2164
  %v2869 = vpack.c.b16 %v2169, %v2165
  %v2870 = vpack.c.b16 %v2170, %v2166
  %v2871 = vpack.c.b16 %v2175, %v2171
  %v2872 = vpack.c.b16 %v2176, %v2172
  %v2873 = vpack.c.b16 %v2177, %v2173
  %v2874 = vpack.c.b16 %v2178, %v2174
  %v2875 = vpack.c.b16 %v2183, %v2179
  %v2876 = vpack.c.b16 %v2184, %v2180
  %v2877 = vpack.c.b16 %v2185, %v2181
  %v2878 = vpack.c.b16 %v2186, %v2182
  %v2879 = vpack.c.b16 %v2191, %v2187
  %v2880 = vpack.c.b16 %v2192, %v2188
  %v2881 = vpack.c.b16 %v2193, %v2189
  %v2882 = vpack.c.b16 %v2194, %v2190
  %v2883 = vpack.c.b16 %v2199, %v2195
  %v2884 = vpack.c.b16 %v2200, %v2196
  %v2885 = vpack.c.b16 %v2201, %v2197
  %v2886 = vpack.c.b16 %v2202, %v2198
  %v2887 = vpack.c.b16 %v2207, %v2203
  %v2888 = vpack.c.b16 %v2208, %v2204
  %v2889 = vpack.c.b16 %v2209, %v2205
  %v2890 = vpack.c.b16 %v2210, %v2206
  %v2891 = vpack.c.b16 %v2215, %v2211
  %v2892 = vpack.c.b16 %v2216, %v2212
  %v2893 = vpack.c.b16 %v2217, %v2213
  %v2894 = vpack.c.b16 %v2218, %v2214
  %v2895 = vpack.c.b16 %v2223, %v2219
  %v2896 = vpack.c.b16 %v2224, %v2220
  %v2897 = vpack.c.b16 %v2225, %v2221
  %v2898 = vpack.c.b16 %v2226, %v2222
  %v2899 = vpack.c.b16 %v2231, %v2227
  %v2900 = vpack.c.b16 %v2232, %v2228
  %v2901 = vpack.c.b16 %v2233, %v2229
  %v2902 = vpack.c.b16 %v2234, %v2230
  %v2903 = vpack.c.b16 %v2239, %v2235
  %v2904 = vpack.c.b16 %v2240, %v2236
  %v2905 = vpack.c.b16 %v2241, %v2237
  %v2906 = vpack.c.b16 %v2242, %v2238
  %v2907 = vpack.c.b16 %v2247, %v2243
  %v2908 = vpack.c.b16 %v2248, %v2244
  %v2909 = vpack.c.b16 %v2249, %v2245
  %v2910 = vpack.c.b16 %v2250, %v2246
  %v2911 = vpack.c.b16 %v2255, %v2251
  %v2912 = vpack.c.b16 %v2256, %v2252
  %v2913 = vpack.c.b16 %v2257, %v2253
  %v2914 = vpack.c.b16 %v2258, %v2254
  %v2915 = vpack.c.b16 %v2263, %v2259
  %v2916 = vpack.c.b16 %v2264, %v2260
  %v2917 = vpack.c.b16 %v2265, %v2261
  %v2918 = vpack.c.b16 %v2266, %v2262
  %v2919 = vpack.c.b16 %v2271, %v2267
  %v2920 = vpack.c.b16 %v2272, %v2268
  %v2921 = vpack.c.b16 %v2273, %v2269
  %v2922 = vpack.c.b16 %v2274, %v2270
  %v2923 = vpack.c.b16 %v2279, %v2275
  %v2924 = vpack.c.b16 %v2280, %v2276
  %v2925 = vpack.c.b16 %v2281, %v2277
  %v2926 = vpack.c.b16 %v2282, %v2278
  %v2927 = vpack.c.b16 %v2287, %v2283
  %v2928 = vpack.c.b16 %v2288, %v2284
  %v2929 = vpack.c.b16 %v2289, %v2285
  %v2930 = vpack.c.b16 %v2290, %v2286
  %v2931 = vpack.c.b16 %v2295, %v2291
  %v2932 = vpack.c.b16 %v2296, %v2292
  %v2933 = vpack.c.b16 %v2297, %v2293
  %v2934 = vpack.c.b16 %v2298, %v2294
  %v2935 = vpack.c.b16 %v2303, %v2299
  %v2936 = vpack.c.b16 %v2304, %v2300
  %v2937 = vpack.c.b16 %v2305, %v2301
  %v2938 = vpack.c.b16 %v2306, %v2302
  %v2939 = vpack.c.b16 %v2311, %v2307
  %v2940 = vpack.c.b16 %v2312, %v2308
  %v2941 = vpack.c.b16 %v2313, %v2309
  %v2942 = vpack.c.b16 %v2314, %v2310
  %v2943 = vpack.c.b16 %v2319, %v2315
  %v2944 = vpack.c.b16 %v2320, %v2316
  %v2945 = vpack.c.b16 %v2321, %v2317
  %v2946 = vpack.c.b16 %v2322, %v2318
  %v2947 = vpack.c.b16 %v2327, %v2323
  %v2948 = vpack.c.b16 %v2328, %v2324
  %v2949 = vpack.c.b16 %v2329, %v2325
  %v2950 = vpack.c.b16 %v2330, %v2326
  %v2951 = vpack.c.b16 %v2335, %v2331
  %v2952 = vpack.c.b16 %v2336, %v2332
  %v2953 = vpack.c.b16 %v2337, %v2333
  %v2954 = vpack.c.b16 %v2338, %v2334
  %v2955 = vpack.c.b16 %v2343, %v2339
  %v2956 = vpack.c.b16 %v2344, %v2340
  %v2957 = vpack.c.b16 %v2345, %v2341
  %v2958 = vpack.c.b16 %v2346, %v2342
  %v2959 = vpack.c.b16 %v2351, %v2347
  %v2960 = vpack.c.b16 %v2352, %v2348
  %v2961 = vpack.c.b16 %v2353, %v2349
  %v2962 = vpack.c.b16 %v2354, %v2350
  %v2963 = vpack.c.b16 %v2359, %v2355
  %v2964 = vpack.c.b16 %v2360, %v2356
  %v2965 = vpack.c.b16 %v2361, %v2357
  %v2966 = vpack.c.b16 %v2362, %v2358
  %v2967 = vpack.c.b16 %v2367, %v2363
  %v2968 = vpack.c.b16 %v2368, %v2364
  %v2969 = vpack.c.b16 %v2369, %v2365
  %v2970 = vpack.c.b16 %v2370, %v2366
  %v2971 = vpack.c.b16 %v2375, %v2371
  %v2972 = vpack.c.b16 %v2376, %v2372
  %v2973 = vpack.c.b16 %v2377, %v2373
  %v2974 = vpack.c.b16 %v2378, %v2374
  %v2975 = vpack.c.b16 %v2383, %v2379
  %v2976 = vpack.c.b16 %v2384, %v2380
  %v2977 = vpack.c.b16 %v2385, %v2381
  %v2978 = vpack.c.b16 %v2386, %v2382
  %v2979 = vpack.c.b16 %v2391, %v2387
  %v2980 = vpack.c.b16 %v2392, %v2388
  %v2981 = vpack.c.b16 %v2393, %v2389
  %v2982 = vpack.c.b16 %v2394, %v2390
  %v2983 = vpack.c.b16 %v2399, %v2395
  %v2984 = vpack.c.b16 %v2400, %v2396
  %v2985 = vpack.c.b16 %v2401, %v2397
  %v2986 = vpack.c.b16 %v2402, %v2398
  %v2987 = vpack.c.b16 %v2407, %v2403
  %v2988 = vpack.c.b16 %v2408, %v2404
  %v2989 = vpack.c.b16 %v2409, %v2405
  %v2990 = vpack.c.b16 %v2410, %v2406
  %v2991 = vpack.c.b16 %v2415, %v2411
  %v2992 = vpack.c.b16 %v2416, %v2412
  %v2993 = vpack.c.b16 %v2417, %v2413
  %v2994 = vpack.c.b16 %v2418, %v2414
  %3571 = vmatprep.subr.bf16.mxu0 %v2420
  %3572 = vmatpush1.bf16.msra.mxu0 %v2419
  %3573 = vmatprep.subr.bf16.mxu0 %v2424
  %3574 = vmatpush1.bf16.msra.mxu0 %v2423
  %3575 = vmatprep.subr.bf16.mxu0 %v2428
  %3576 = vmatpush1.bf16.msra.mxu0 %v2427
  %3577 = vmatprep.subr.bf16.mxu0 %v2432
  %3578 = vmatpush1.bf16.msra.mxu0 %v2431
  %3579 = vmatprep.subr.bf16.mxu0 %v2436
  %3580 = vmatpush1.bf16.msra.mxu0 %v2435
  %3581 = vmatprep.subr.bf16.mxu0 %v2440
  %3582 = vmatpush1.bf16.msra.mxu0 %v2439
  %3583 = vmatprep.subr.bf16.mxu0 %v2444
  %3584 = vmatpush1.bf16.msra.mxu0 %v2443
  %3585 = vmatprep.subr.bf16.mxu0 %v2448
  %3586 = vmatpush1.bf16.msra.mxu0 %v2447
  %3587 = vmatprep.subr.bf16.mxu0 %v2452
  %3588 = vmatpush1.bf16.msra.mxu0 %v2451
  %3589 = vmatprep.subr.bf16.mxu0 %v2456
  %3590 = vmatpush1.bf16.msra.mxu0 %v2455
  %3591 = vmatprep.subr.bf16.mxu0 %v2460
  %3592 = vmatpush1.bf16.msra.mxu0 %v2459
  %3593 = vmatprep.subr.bf16.mxu0 %v2464
  %3594 = vmatpush1.bf16.msra.mxu0 %v2463
  %3595 = vmatprep.subr.bf16.mxu0 %v2468
  %3596 = vmatpush1.bf16.msra.mxu0 %v2467
  %3597 = vmatprep.subr.bf16.mxu0 %v2472
  %3598 = vmatpush1.bf16.msra.mxu0 %v2471
  %3599 = vmatprep.subr.bf16.mxu0 %v2476
  %3600 = vmatpush1.bf16.msra.mxu0 %v2475
  %3601 = vmatprep.subr.bf16.mxu0 %v2480
  %3602 = vmatpush1.bf16.msra.mxu0 %v2479
  %3603 = vmatprep.mubr.bf16.mxu0 %v656
  %3604 = vmatmul.mubr.bf16.gmra.mrb[0].mxu0 %v655
  %v3605 = vpop.f32.mrb[0].mxu0
  %v3606 = vadd.f32 %v611, %v3605
  %v3607 = vpop.f32.mrb[0].mxu0
  %v3608 = vadd.f32 %v615, %v3607
  %v3609 = vpop.f32.mrb[0].mxu0
  %v3610 = vpop.f32.mrb[0].mxu0
  %3611 = vdwg.mxu0
  %3612 = vmatprep.subr.bf16.mxu0 %v2484
  %3613 = vmatpush1.bf16.msra.mxu0 %v2483
  %3614 = vmatprep.subr.bf16.mxu0 %v2488
  %3615 = vmatpush1.bf16.msra.mxu0 %v2487
  %3616 = vmatprep.subr.bf16.mxu0 %v2492
  %3617 = vmatpush1.bf16.msra.mxu0 %v2491
  %3618 = vmatprep.subr.bf16.mxu0 %v2496
  %3619 = vmatpush1.bf16.msra.mxu0 %v2495
  %3620 = vmatprep.subr.bf16.mxu0 %v2500
  %3621 = vmatpush1.bf16.msra.mxu0 %v2499
  %3622 = vmatprep.subr.bf16.mxu0 %v2504
  %3623 = vmatpush1.bf16.msra.mxu0 %v2503
  %3624 = vmatprep.subr.bf16.mxu0 %v2508
  %3625 = vmatpush1.bf16.msra.mxu0 %v2507
  %3626 = vmatprep.subr.bf16.mxu0 %v2512
  %3627 = vmatpush1.bf16.msra.mxu0 %v2511
  %3628 = vmatprep.subr.bf16.mxu0 %v2516
  %3629 = vmatpush1.bf16.msra.mxu0 %v2515
  %3630 = vmatprep.subr.bf16.mxu0 %v2520
  %3631 = vmatpush1.bf16.msra.mxu0 %v2519
  %3632 = vmatprep.subr.bf16.mxu0 %v2524
  %3633 = vmatpush1.bf16.msra.mxu0 %v2523
  %3634 = vmatprep.subr.bf16.mxu0 %v2528
  %3635 = vmatpush1.bf16.msra.mxu0 %v2527
  %3636 = vmatprep.subr.bf16.mxu0 %v2532
  %3637 = vmatpush1.bf16.msra.mxu0 %v2531
  %3638 = vmatprep.subr.bf16.mxu0 %v2536
  %3639 = vmatpush1.bf16.msra.mxu0 %v2535
  %3640 = vmatprep.subr.bf16.mxu0 %v2540
  %3641 = vmatpush1.bf16.msra.mxu0 %v2539
  %3642 = vmatprep.subr.bf16.mxu0 %v2544
  %3643 = vmatpush1.bf16.msra.mxu0 %v2543
  %3644 = vmatprep.mubr.bf16.mxu0 %v658
  %3645 = vmatmul.mubr.bf16.gmra.mrb[0].mxu0 %v657
  %v3646 = vpop.f32.mrb[0].mxu0
  %v3647 = vadd.f32 %v3606, %v3646
  %v3648 = vpop.f32.mrb[0].mxu0
  %v3649 = vadd.f32 %v3608, %v3648
  %v3650 = vpop.f32.mrb[0].mxu0
  %v3651 = vpop.f32.mrb[0].mxu0
  %3652 = vdwg.mxu0
  %3653 = vmatprep.subr.bf16.mxu0 %v2548
  %3654 = vmatpush1.bf16.msra.mxu0 %v2547
  %3655 = vmatprep.subr.bf16.mxu0 %v2552
  %3656 = vmatpush1.bf16.msra.mxu0 %v2551
  %3657 = vmatprep.subr.bf16.mxu0 %v2556
  %3658 = vmatpush1.bf16.msra.mxu0 %v2555
  %3659 = vmatprep.subr.bf16.mxu0 %v2560
  %3660 = vmatpush1.bf16.msra.mxu0 %v2559
  %3661 = vmatprep.subr.bf16.mxu0 %v2564
  %3662 = vmatpush1.bf16.msra.mxu0 %v2563
  %3663 = vmatprep.subr.bf16.mxu0 %v2568
  %3664 = vmatpush1.bf16.msra.mxu0 %v2567
  %3665 = vmatprep.subr.bf16.mxu0 %v2572
  %3666 = vmatpush1.bf16.msra.mxu0 %v2571
  %3667 = vmatprep.subr.bf16.mxu0 %v2576
  %3668 = vmatpush1.bf16.msra.mxu0 %v2575
  %3669 = vmatprep.subr.bf16.mxu0 %v2580
  %3670 = vmatpush1.bf16.msra.mxu0 %v2579
  %3671 = vmatprep.subr.bf16.mxu0 %v2584
  %3672 = vmatpush1.bf16.msra.mxu0 %v2583
  %3673 = vmatprep.subr.bf16.mxu0 %v2588
  %3674 = vmatpush1.bf16.msra.mxu0 %v2587
  %3675 = vmatprep.subr.bf16.mxu0 %v2592
  %3676 = vmatpush1.bf16.msra.mxu0 %v2591
  %3677 = vmatprep.subr.bf16.mxu0 %v2596
  %3678 = vmatpush1.bf16.msra.mxu0 %v2595
  %3679 = vmatprep.subr.bf16.mxu0 %v2600
  %3680 = vmatpush1.bf16.msra.mxu0 %v2599
  %3681 = vmatprep.subr.bf16.mxu0 %v2604
  %3682 = vmatpush1.bf16.msra.mxu0 %v2603
  %3683 = vmatprep.subr.bf16.mxu0 %v2608
  %3684 = vmatpush1.bf16.msra.mxu0 %v2607
  %3685 = vmatprep.mubr.bf16.mxu0 %v660
  %3686 = vmatmul.mubr.bf16.gmra.mrb[0].mxu0 %v659
  %v3687 = vpop.f32.mrb[0].mxu0
  %v3688 = vadd.f32 %v3647, %v3687
  %v3689 = vpop.f32.mrb[0].mxu0
  %v3690 = vadd.f32 %v3649, %v3689
  %v3691 = vpop.f32.mrb[0].mxu0
  %v3692 = vpop.f32.mrb[0].mxu0
  %3693 = vdwg.mxu0
  %3694 = vmatprep.subr.bf16.mxu0 %v2612
  %3695 = vmatpush1.bf16.msra.mxu0 %v2611
  %3696 = vmatprep.subr.bf16.mxu0 %v2616
  %3697 = vmatpush1.bf16.msra.mxu0 %v2615
  %3698 = vmatprep.subr.bf16.mxu0 %v2620
  %3699 = vmatpush1.bf16.msra.mxu0 %v2619
  %3700 = vmatprep.subr.bf16.mxu0 %v2624
  %3701 = vmatpush1.bf16.msra.mxu0 %v2623
  %3702 = vmatprep.subr.bf16.mxu0 %v2628
  %3703 = vmatpush1.bf16.msra.mxu0 %v2627
  %3704 = vmatprep.subr.bf16.mxu0 %v2632
  %3705 = vmatpush1.bf16.msra.mxu0 %v2631
  %3706 = vmatprep.subr.bf16.mxu0 %v2636
  %3707 = vmatpush1.bf16.msra.mxu0 %v2635
  %3708 = vmatprep.subr.bf16.mxu0 %v2640
  %3709 = vmatpush1.bf16.msra.mxu0 %v2639
  %3710 = vmatprep.subr.bf16.mxu0 %v2644
  %3711 = vmatpush1.bf16.msra.mxu0 %v2643
  %3712 = vmatprep.subr.bf16.mxu0 %v2648
  %3713 = vmatpush1.bf16.msra.mxu0 %v2647
  %3714 = vmatprep.subr.bf16.mxu0 %v2652
  %3715 = vmatpush1.bf16.msra.mxu0 %v2651
  %3716 = vmatprep.subr.bf16.mxu0 %v2656
  %3717 = vmatpush1.bf16.msra.mxu0 %v2655
  %3718 = vmatprep.subr.bf16.mxu0 %v2660
  %3719 = vmatpush1.bf16.msra.mxu0 %v2659
  %3720 = vmatprep.subr.bf16.mxu0 %v2664
  %3721 = vmatpush1.bf16.msra.mxu0 %v2663
  %3722 = vmatprep.subr.bf16.mxu0 %v2668
  %3723 = vmatpush1.bf16.msra.mxu0 %v2667
  %3724 = vmatprep.subr.bf16.mxu0 %v2672
  %3725 = vmatpush1.bf16.msra.mxu0 %v2671
  %3726 = vmatprep.mubr.bf16.mxu0 %v662
  %3727 = vmatmul.mubr.bf16.gmra.mrb[0].mxu0 %v661
  %v3728 = vpop.f32.mrb[0].mxu0
  %v3729 = vadd.f32 %v3688, %v3728
  %v3730 = vpop.f32.mrb[0].mxu0
  %v3731 = vadd.f32 %v3690, %v3730
  %v3732 = vpop.f32.mrb[0].mxu0
  %v3733 = vpop.f32.mrb[0].mxu0
  %3734 = vdwg.mxu0
  %3735 = vmatprep.subr.bf16.mxu0 %v2676
  %3736 = vmatpush1.bf16.msra.mxu0 %v2675
  %3737 = vmatprep.subr.bf16.mxu0 %v2680
  %3738 = vmatpush1.bf16.msra.mxu0 %v2679
  %3739 = vmatprep.subr.bf16.mxu0 %v2684
  %3740 = vmatpush1.bf16.msra.mxu0 %v2683
  %3741 = vmatprep.subr.bf16.mxu0 %v2688
  %3742 = vmatpush1.bf16.msra.mxu0 %v2687
  %3743 = vmatprep.subr.bf16.mxu0 %v2692
  %3744 = vmatpush1.bf16.msra.mxu0 %v2691
  %3745 = vmatprep.subr.bf16.mxu0 %v2696
  %3746 = vmatpush1.bf16.msra.mxu0 %v2695
  %3747 = vmatprep.subr.bf16.mxu0 %v2700
  %3748 = vmatpush1.bf16.msra.mxu0 %v2699
  %3749 = vmatprep.subr.bf16.mxu0 %v2704
  %3750 = vmatpush1.bf16.msra.mxu0 %v2703
  %3751 = vmatprep.subr.bf16.mxu0 %v2708
  %3752 = vmatpush1.bf16.msra.mxu0 %v2707
  %3753 = vmatprep.subr.bf16.mxu0 %v2712
  %3754 = vmatpush1.bf16.msra.mxu0 %v2711
  %3755 = vmatprep.subr.bf16.mxu0 %v2716
  %3756 = vmatpush1.bf16.msra.mxu0 %v2715
  %3757 = vmatprep.subr.bf16.mxu0 %v2720
  %3758 = vmatpush1.bf16.msra.mxu0 %v2719
  %3759 = vmatprep.subr.bf16.mxu0 %v2724
  %3760 = vmatpush1.bf16.msra.mxu0 %v2723
  %3761 = vmatprep.subr.bf16.mxu0 %v2728
  %3762 = vmatpush1.bf16.msra.mxu0 %v2727
  %3763 = vmatprep.subr.bf16.mxu0 %v2732
  %3764 = vmatpush1.bf16.msra.mxu0 %v2731
  %3765 = vmatprep.subr.bf16.mxu0 %v2736
  %3766 = vmatpush1.bf16.msra.mxu0 %v2735
  %3767 = vmatprep.mubr.bf16.mxu0 %v664
  %3768 = vmatmul.mubr.bf16.gmra.mrb[0].mxu0 %v663
  %v3769 = vpop.f32.mrb[0].mxu0
  %v3770 = vadd.f32 %v3729, %v3769
  %v3771 = vpop.f32.mrb[0].mxu0
  %v3772 = vadd.f32 %v3731, %v3771
  %v3773 = vpop.f32.mrb[0].mxu0
  %v3774 = vpop.f32.mrb[0].mxu0
  %3775 = vdwg.mxu0
  %3776 = vmatprep.subr.bf16.mxu0 %v2740
  %3777 = vmatpush1.bf16.msra.mxu0 %v2739
  %3778 = vmatprep.subr.bf16.mxu0 %v2744
  %3779 = vmatpush1.bf16.msra.mxu0 %v2743
  %3780 = vmatprep.subr.bf16.mxu0 %v2748
  %3781 = vmatpush1.bf16.msra.mxu0 %v2747
  %3782 = vmatprep.subr.bf16.mxu0 %v2752
  %3783 = vmatpush1.bf16.msra.mxu0 %v2751
  %3784 = vmatprep.subr.bf16.mxu0 %v2756
  %3785 = vmatpush1.bf16.msra.mxu0 %v2755
  %3786 = vmatprep.subr.bf16.mxu0 %v2760
  %3787 = vmatpush1.bf16.msra.mxu0 %v2759
  %3788 = vmatprep.subr.bf16.mxu0 %v2764
  %3789 = vmatpush1.bf16.msra.mxu0 %v2763
  %3790 = vmatprep.subr.bf16.mxu0 %v2768
  %3791 = vmatpush1.bf16.msra.mxu0 %v2767
  %3792 = vmatprep.subr.bf16.mxu0 %v2772
  %3793 = vmatpush1.bf16.msra.mxu0 %v2771
  %3794 = vmatprep.subr.bf16.mxu0 %v2776
  %3795 = vmatpush1.bf16.msra.mxu0 %v2775
  %3796 = vmatprep.subr.bf16.mxu0 %v2780
  %3797 = vmatpush1.bf16.msra.mxu0 %v2779
  %3798 = vmatprep.subr.bf16.mxu0 %v2784
  %3799 = vmatpush1.bf16.msra.mxu0 %v2783
  %3800 = vmatprep.subr.bf16.mxu0 %v2788
  %3801 = vmatpush1.bf16.msra.mxu0 %v2787
  %3802 = vmatprep.subr.bf16.mxu0 %v2792
  %3803 = vmatpush1.bf16.msra.mxu0 %v2791
  %3804 = vmatprep.subr.bf16.mxu0 %v2796
  %3805 = vmatpush1.bf16.msra.mxu0 %v2795
  %3806 = vmatprep.subr.bf16.mxu0 %v2800
  %3807 = vmatpush1.bf16.msra.mxu0 %v2799
  %3808 = vmatprep.mubr.bf16.mxu0 %v666
  %3809 = vmatmul.mubr.bf16.gmra.mrb[0].mxu0 %v665
  %v3810 = vpop.f32.mrb[0].mxu0
  %v3811 = vadd.f32 %v3770, %v3810
  %v3812 = vpop.f32.mrb[0].mxu0
  %v3813 = vadd.f32 %v3772, %v3812
  %v3814 = vpop.f32.mrb[0].mxu0
  %v3815 = vpop.f32.mrb[0].mxu0
  %3816 = vdwg.mxu0
  %3817 = vmatprep.subr.bf16.mxu0 %v2804
  %3818 = vmatpush1.bf16.msra.mxu0 %v2803
  %3819 = vmatprep.subr.bf16.mxu0 %v2808
  %3820 = vmatpush1.bf16.msra.mxu0 %v2807
  %3821 = vmatprep.subr.bf16.mxu0 %v2812
  %3822 = vmatpush1.bf16.msra.mxu0 %v2811
  %3823 = vmatprep.subr.bf16.mxu0 %v2816
  %3824 = vmatpush1.bf16.msra.mxu0 %v2815
  %3825 = vmatprep.subr.bf16.mxu0 %v2820
  %3826 = vmatpush1.bf16.msra.mxu0 %v2819
  %3827 = vmatprep.subr.bf16.mxu0 %v2824
  %3828 = vmatpush1.bf16.msra.mxu0 %v2823
  %3829 = vmatprep.subr.bf16.mxu0 %v2828
  %3830 = vmatpush1.bf16.msra.mxu0 %v2827
  %3831 = vmatprep.subr.bf16.mxu0 %v2832
  %3832 = vmatpush1.bf16.msra.mxu0 %v2831
  %3833 = vmatprep.subr.bf16.mxu0 %v2836
  %3834 = vmatpush1.bf16.msra.mxu0 %v2835
  %3835 = vmatprep.subr.bf16.mxu0 %v2840
  %3836 = vmatpush1.bf16.msra.mxu0 %v2839
  %3837 = vmatprep.subr.bf16.mxu0 %v2844
  %3838 = vmatpush1.bf16.msra.mxu0 %v2843
  %3839 = vmatprep.subr.bf16.mxu0 %v2848
  %3840 = vmatpush1.bf16.msra.mxu0 %v2847
  %3841 = vmatprep.subr.bf16.mxu0 %v2852
  %3842 = vmatpush1.bf16.msra.mxu0 %v2851
  %3843 = vmatprep.subr.bf16.mxu0 %v2856
  %3844 = vmatpush1.bf16.msra.mxu0 %v2855
  %3845 = vmatprep.subr.bf16.mxu0 %v2860
  %3846 = vmatpush1.bf16.msra.mxu0 %v2859
  %3847 = vmatprep.subr.bf16.mxu0 %v2864
  %3848 = vmatpush1.bf16.msra.mxu0 %v2863
  %3849 = vmatprep.mubr.bf16.mxu0 %v668
  %3850 = vmatmul.mubr.bf16.gmra.mrb[0].mxu0 %v667
  %v3851 = vpop.f32.mrb[0].mxu0
  %v3852 = vadd.f32 %v3811, %v3851
  %v3853 = vpop.f32.mrb[0].mxu0
  %v3854 = vadd.f32 %v3813, %v3853
  %v3855 = vpop.f32.mrb[0].mxu0
  %v3856 = vpop.f32.mrb[0].mxu0
  %3857 = vdwg.mxu0
  %3858 = vmatprep.subr.bf16.mxu0 %v2868
  %3859 = vmatpush1.bf16.msra.mxu0 %v2867
  %3860 = vmatprep.subr.bf16.mxu0 %v2872
  %3861 = vmatpush1.bf16.msra.mxu0 %v2871
  %3862 = vmatprep.subr.bf16.mxu0 %v2876
  %3863 = vmatpush1.bf16.msra.mxu0 %v2875
  %3864 = vmatprep.subr.bf16.mxu0 %v2880
  %3865 = vmatpush1.bf16.msra.mxu0 %v2879
  %3866 = vmatprep.subr.bf16.mxu0 %v2884
  %3867 = vmatpush1.bf16.msra.mxu0 %v2883
  %3868 = vmatprep.subr.bf16.mxu0 %v2888
  %3869 = vmatpush1.bf16.msra.mxu0 %v2887
  %3870 = vmatprep.subr.bf16.mxu0 %v2892
  %3871 = vmatpush1.bf16.msra.mxu0 %v2891
  %3872 = vmatprep.subr.bf16.mxu0 %v2896
  %3873 = vmatpush1.bf16.msra.mxu0 %v2895
  %3874 = vmatprep.subr.bf16.mxu0 %v2900
  %3875 = vmatpush1.bf16.msra.mxu0 %v2899
  %3876 = vmatprep.subr.bf16.mxu0 %v2904
  %3877 = vmatpush1.bf16.msra.mxu0 %v2903
  %3878 = vmatprep.subr.bf16.mxu0 %v2908
  %3879 = vmatpush1.bf16.msra.mxu0 %v2907
  %3880 = vmatprep.subr.bf16.mxu0 %v2912
  %3881 = vmatpush1.bf16.msra.mxu0 %v2911
  %3882 = vmatprep.subr.bf16.mxu0 %v2916
  %3883 = vmatpush1.bf16.msra.mxu0 %v2915
  %3884 = vmatprep.subr.bf16.mxu0 %v2920
  %3885 = vmatpush1.bf16.msra.mxu0 %v2919
  %3886 = vmatprep.subr.bf16.mxu0 %v2924
  %3887 = vmatpush1.bf16.msra.mxu0 %v2923
  %3888 = vmatprep.subr.bf16.mxu0 %v2928
  %3889 = vmatpush1.bf16.msra.mxu0 %v2927
  %3890 = vmatprep.mubr.bf16.mxu0 %v670
  %3891 = vmatmul.mubr.bf16.gmra.mrb[0].mxu0 %v669
  %v3892 = vpop.f32.mrb[0].mxu0
  %v3893 = vadd.f32 %v3852, %v3892
  %v3894 = vpop.f32.mrb[0].mxu0
  %v3895 = vadd.f32 %v3854, %v3894
  %v3896 = vpop.f32.mrb[0].mxu0
  %v3897 = vpop.f32.mrb[0].mxu0
  %3898 = vdwg.mxu0
  %3899 = vmatprep.subr.bf16.mxu0 %v2932
  %3900 = vmatpush1.bf16.msra.mxu0 %v2931
  %3901 = vmatprep.subr.bf16.mxu0 %v2936
  %3902 = vmatpush1.bf16.msra.mxu0 %v2935
  %3903 = vmatprep.subr.bf16.mxu0 %v2940
  %3904 = vmatpush1.bf16.msra.mxu0 %v2939
  %3905 = vmatprep.subr.bf16.mxu0 %v2944
  %3906 = vmatpush1.bf16.msra.mxu0 %v2943
  %3907 = vmatprep.subr.bf16.mxu0 %v2948
  %3908 = vmatpush1.bf16.msra.mxu0 %v2947
  %3909 = vmatprep.subr.bf16.mxu0 %v2952
  %3910 = vmatpush1.bf16.msra.mxu0 %v2951
  %3911 = vmatprep.subr.bf16.mxu0 %v2956
  %3912 = vmatpush1.bf16.msra.mxu0 %v2955
  %3913 = vmatprep.subr.bf16.mxu0 %v2960
  %3914 = vmatpush1.bf16.msra.mxu0 %v2959
  %3915 = vmatprep.subr.bf16.mxu0 %v2964
  %3916 = vmatpush1.bf16.msra.mxu0 %v2963
  %3917 = vmatprep.subr.bf16.mxu0 %v2968
  %3918 = vmatpush1.bf16.msra.mxu0 %v2967
  %3919 = vmatprep.subr.bf16.mxu0 %v2972
  %3920 = vmatpush1.bf16.msra.mxu0 %v2971
  %3921 = vmatprep.subr.bf16.mxu0 %v2976
  %3922 = vmatpush1.bf16.msra.mxu0 %v2975
  %3923 = vmatprep.subr.bf16.mxu0 %v2980
  %3924 = vmatpush1.bf16.msra.mxu0 %v2979
  %3925 = vmatprep.subr.bf16.mxu0 %v2984
  %3926 = vmatpush1.bf16.msra.mxu0 %v2983
  %3927 = vmatprep.subr.bf16.mxu0 %v2988
  %3928 = vmatpush1.bf16.msra.mxu0 %v2987
  %3929 = vmatprep.subr.bf16.mxu0 %v2992
  %3930 = vmatpush1.bf16.msra.mxu0 %v2991
  %3931 = vmatprep.mubr.bf16.mxu0 %v672
  %3932 = vmatmul.mubr.bf16.gmra.mrb[0].mxu0 %v671
  %v3933 = vpop.f32.mrb[0].mxu0
  %v3934 = vadd.f32 %v3893, %v3933
  %v3935 = vpop.f32.mrb[0].mxu0
  %v3936 = vadd.f32 %v3895, %v3935
  %v3937 = vpop.f32.mrb[0].mxu0
  %v3938 = vpop.f32.mrb[0].mxu0
  %3939 = vdwg.mxu0
  %3940 = vmatprep.subr.bf16.mxu0 %v2422
  %3941 = vmatpush1.bf16.msra.mxu0 %v2421
  %3942 = vmatprep.subr.bf16.mxu0 %v2426
  %3943 = vmatpush1.bf16.msra.mxu0 %v2425
  %3944 = vmatprep.subr.bf16.mxu0 %v2430
  %3945 = vmatpush1.bf16.msra.mxu0 %v2429
  %3946 = vmatprep.subr.bf16.mxu0 %v2434
  %3947 = vmatpush1.bf16.msra.mxu0 %v2433
  %3948 = vmatprep.subr.bf16.mxu0 %v2438
  %3949 = vmatpush1.bf16.msra.mxu0 %v2437
  %3950 = vmatprep.subr.bf16.mxu0 %v2442
  %3951 = vmatpush1.bf16.msra.mxu0 %v2441
  %3952 = vmatprep.subr.bf16.mxu0 %v2446
  %3953 = vmatpush1.bf16.msra.mxu0 %v2445
  %3954 = vmatprep.subr.bf16.mxu0 %v2450
  %3955 = vmatpush1.bf16.msra.mxu0 %v2449
  %3956 = vmatprep.subr.bf16.mxu0 %v2454
  %3957 = vmatpush1.bf16.msra.mxu0 %v2453
  %3958 = vmatprep.subr.bf16.mxu0 %v2458
  %3959 = vmatpush1.bf16.msra.mxu0 %v2457
  %3960 = vmatprep.subr.bf16.mxu0 %v2462
  %3961 = vmatpush1.bf16.msra.mxu0 %v2461
  %3962 = vmatprep.subr.bf16.mxu0 %v2466
  %3963 = vmatpush1.bf16.msra.mxu0 %v2465
  %3964 = vmatprep.subr.bf16.mxu0 %v2470
  %3965 = vmatpush1.bf16.msra.mxu0 %v2469
  %3966 = vmatprep.subr.bf16.mxu0 %v2474
  %3967 = vmatpush1.bf16.msra.mxu0 %v2473
  %3968 = vmatprep.subr.bf16.mxu0 %v2478
  %3969 = vmatpush1.bf16.msra.mxu0 %v2477
  %3970 = vmatprep.subr.bf16.mxu0 %v2482
  %3971 = vmatpush1.bf16.msra.mxu0 %v2481
  %3972 = vmatprep.mubr.bf16.mxu0 %v656
  %3973 = vmatmul.mubr.bf16.gmra.mrb[0].mxu0 %v655
  %v3974 = vpop.f32.mrb[0].mxu0
  %v3975 = vadd.f32 %v619, %v3974
  %v3976 = vpop.f32.mrb[0].mxu0
  %v3977 = vadd.f32 %v623, %v3976
  %v3978 = vpop.f32.mrb[0].mxu0
  %v3979 = vpop.f32.mrb[0].mxu0
  %3980 = vdwg.mxu0
  %3981 = vmatprep.subr.bf16.mxu0 %v2486
  %3982 = vmatpush1.bf16.msra.mxu0 %v2485
  %3983 = vmatprep.subr.bf16.mxu0 %v2490
  %3984 = vmatpush1.bf16.msra.mxu0 %v2489
  %3985 = vmatprep.subr.bf16.mxu0 %v2494
  %3986 = vmatpush1.bf16.msra.mxu0 %v2493
  %3987 = vmatprep.subr.bf16.mxu0 %v2498
  %3988 = vmatpush1.bf16.msra.mxu0 %v2497
  %3989 = vmatprep.subr.bf16.mxu0 %v2502
  %3990 = vmatpush1.bf16.msra.mxu0 %v2501
  %3991 = vmatprep.subr.bf16.mxu0 %v2506
  %3992 = vmatpush1.bf16.msra.mxu0 %v2505
  %3993 = vmatprep.subr.bf16.mxu0 %v2510
  %3994 = vmatpush1.bf16.msra.mxu0 %v2509
  %3995 = vmatprep.subr.bf16.mxu0 %v2514
  %3996 = vmatpush1.bf16.msra.mxu0 %v2513
  %3997 = vmatprep.subr.bf16.mxu0 %v2518
  %3998 = vmatpush1.bf16.msra.mxu0 %v2517
  %3999 = vmatprep.subr.bf16.mxu0 %v2522
  %4000 = vmatpush1.bf16.msra.mxu0 %v2521
  %4001 = vmatprep.subr.bf16.mxu0 %v2526
  %4002 = vmatpush1.bf16.msra.mxu0 %v2525
  %4003 = vmatprep.subr.bf16.mxu0 %v2530
  %4004 = vmatpush1.bf16.msra.mxu0 %v2529
  %4005 = vmatprep.subr.bf16.mxu0 %v2534
  %4006 = vmatpush1.bf16.msra.mxu0 %v2533
  %4007 = vmatprep.subr.bf16.mxu0 %v2538
  %4008 = vmatpush1.bf16.msra.mxu0 %v2537
  %4009 = vmatprep.subr.bf16.mxu0 %v2542
  %4010 = vmatpush1.bf16.msra.mxu0 %v2541
  %4011 = vmatprep.subr.bf16.mxu0 %v2546
  %4012 = vmatpush1.bf16.msra.mxu0 %v2545
  %4013 = vmatprep.mubr.bf16.mxu0 %v658
  %4014 = vmatmul.mubr.bf16.gmra.mrb[0].mxu0 %v657
  %v4015 = vpop.f32.mrb[0].mxu0
  %v4016 = vadd.f32 %v3975, %v4015
  %v4017 = vpop.f32.mrb[0].mxu0
  %v4018 = vadd.f32 %v3977, %v4017
  %v4019 = vpop.f32.mrb[0].mxu0
  %v4020 = vpop.f32.mrb[0].mxu0
  %4021 = vdwg.mxu0
  %4022 = vmatprep.subr.bf16.mxu0 %v2550
  %4023 = vmatpush1.bf16.msra.mxu0 %v2549
  %4024 = vmatprep.subr.bf16.mxu0 %v2554
  %4025 = vmatpush1.bf16.msra.mxu0 %v2553
  %4026 = vmatprep.subr.bf16.mxu0 %v2558
  %4027 = vmatpush1.bf16.msra.mxu0 %v2557
  %4028 = vmatprep.subr.bf16.mxu0 %v2562
  %4029 = vmatpush1.bf16.msra.mxu0 %v2561
  %4030 = vmatprep.subr.bf16.mxu0 %v2566
  %4031 = vmatpush1.bf16.msra.mxu0 %v2565
  %4032 = vmatprep.subr.bf16.mxu0 %v2570
  %4033 = vmatpush1.bf16.msra.mxu0 %v2569
  %4034 = vmatprep.subr.bf16.mxu0 %v2574
  %4035 = vmatpush1.bf16.msra.mxu0 %v2573
  %4036 = vmatprep.subr.bf16.mxu0 %v2578
  %4037 = vmatpush1.bf16.msra.mxu0 %v2577
  %4038 = vmatprep.subr.bf16.mxu0 %v2582
  %4039 = vmatpush1.bf16.msra.mxu0 %v2581
  %4040 = vmatprep.subr.bf16.mxu0 %v2586
  %4041 = vmatpush1.bf16.msra.mxu0 %v2585
  %4042 = vmatprep.subr.bf16.mxu0 %v2590
  %4043 = vmatpush1.bf16.msra.mxu0 %v2589
  %4044 = vmatprep.subr.bf16.mxu0 %v2594
  %4045 = vmatpush1.bf16.msra.mxu0 %v2593
  %4046 = vmatprep.subr.bf16.mxu0 %v2598
  %4047 = vmatpush1.bf16.msra.mxu0 %v2597
  %4048 = vmatprep.subr.bf16.mxu0 %v2602
  %4049 = vmatpush1.bf16.msra.mxu0 %v2601
  %4050 = vmatprep.subr.bf16.mxu0 %v2606
  %4051 = vmatpush1.bf16.msra.mxu0 %v2605
  %4052 = vmatprep.subr.bf16.mxu0 %v2610
  %4053 = vmatpush1.bf16.msra.mxu0 %v2609
  %4054 = vmatprep.mubr.bf16.mxu0 %v660
  %4055 = vmatmul.mubr.bf16.gmra.mrb[0].mxu0 %v659
  %v4056 = vpop.f32.mrb[0].mxu0
  %v4057 = vadd.f32 %v4016, %v4056
  %v4058 = vpop.f32.mrb[0].mxu0
  %v4059 = vadd.f32 %v4018, %v4058
  %v4060 = vpop.f32.mrb[0].mxu0
  %v4061 = vpop.f32.mrb[0].mxu0
  %4062 = vdwg.mxu0
  %4063 = vmatprep.subr.bf16.mxu0 %v2614
  %4064 = vmatpush1.bf16.msra.mxu0 %v2613
  %4065 = vmatprep.subr.bf16.mxu0 %v2618
  %4066 = vmatpush1.bf16.msra.mxu0 %v2617
  %4067 = vmatprep.subr.bf16.mxu0 %v2622
  %4068 = vmatpush1.bf16.msra.mxu0 %v2621
  %4069 = vmatprep.subr.bf16.mxu0 %v2626
  %4070 = vmatpush1.bf16.msra.mxu0 %v2625
  %4071 = vmatprep.subr.bf16.mxu0 %v2630
  %4072 = vmatpush1.bf16.msra.mxu0 %v2629
  %4073 = vmatprep.subr.bf16.mxu0 %v2634
  %4074 = vmatpush1.bf16.msra.mxu0 %v2633
  %4075 = vmatprep.subr.bf16.mxu0 %v2638
  %4076 = vmatpush1.bf16.msra.mxu0 %v2637
  %4077 = vmatprep.subr.bf16.mxu0 %v2642
  %4078 = vmatpush1.bf16.msra.mxu0 %v2641
  %4079 = vmatprep.subr.bf16.mxu0 %v2646
  %4080 = vmatpush1.bf16.msra.mxu0 %v2645
  %4081 = vmatprep.subr.bf16.mxu0 %v2650
  %4082 = vmatpush1.bf16.msra.mxu0 %v2649
  %4083 = vmatprep.subr.bf16.mxu0 %v2654
  %4084 = vmatpush1.bf16.msra.mxu0 %v2653
  %4085 = vmatprep.subr.bf16.mxu0 %v2658
  %4086 = vmatpush1.bf16.msra.mxu0 %v2657
  %4087 = vmatprep.subr.bf16.mxu0 %v2662
  %4088 = vmatpush1.bf16.msra.mxu0 %v2661
  %4089 = vmatprep.subr.bf16.mxu0 %v2666
  %4090 = vmatpush1.bf16.msra.mxu0 %v2665
  %4091 = vmatprep.subr.bf16.mxu0 %v2670
  %4092 = vmatpush1.bf16.msra.mxu0 %v2669
  %4093 = vmatprep.subr.bf16.mxu0 %v2674
  %4094 = vmatpush1.bf16.msra.mxu0 %v2673
  %4095 = vmatprep.mubr.bf16.mxu0 %v662
  %4096 = vmatmul.mubr.bf16.gmra.mrb[0].mxu0 %v661
  %v4097 = vpop.f32.mrb[0].mxu0
  %v4098 = vadd.f32 %v4057, %v4097
  %v4099 = vpop.f32.mrb[0].mxu0
  %v4100 = vadd.f32 %v4059, %v4099
  %v4101 = vpop.f32.mrb[0].mxu0
  %v4102 = vpop.f32.mrb[0].mxu0
  %4103 = vdwg.mxu0
  %4104 = vmatprep.subr.bf16.mxu0 %v2678
  %4105 = vmatpush1.bf16.msra.mxu0 %v2677
  %4106 = vmatprep.subr.bf16.mxu0 %v2682
  %4107 = vmatpush1.bf16.msra.mxu0 %v2681
  %4108 = vmatprep.subr.bf16.mxu0 %v2686
  %4109 = vmatpush1.bf16.msra.mxu0 %v2685
  %4110 = vmatprep.subr.bf16.mxu0 %v2690
  %4111 = vmatpush1.bf16.msra.mxu0 %v2689
  %4112 = vmatprep.subr.bf16.mxu0 %v2694
  %4113 = vmatpush1.bf16.msra.mxu0 %v2693
  %4114 = vmatprep.subr.bf16.mxu0 %v2698
  %4115 = vmatpush1.bf16.msra.mxu0 %v2697
  %4116 = vmatprep.subr.bf16.mxu0 %v2702
  %4117 = vmatpush1.bf16.msra.mxu0 %v2701
  %4118 = vmatprep.subr.bf16.mxu0 %v2706
  %4119 = vmatpush1.bf16.msra.mxu0 %v2705
  %4120 = vmatprep.subr.bf16.mxu0 %v2710
  %4121 = vmatpush1.bf16.msra.mxu0 %v2709
  %4122 = vmatprep.subr.bf16.mxu0 %v2714
  %4123 = vmatpush1.bf16.msra.mxu0 %v2713
  %4124 = vmatprep.subr.bf16.mxu0 %v2718
  %4125 = vmatpush1.bf16.msra.mxu0 %v2717
  %4126 = vmatprep.subr.bf16.mxu0 %v2722
  %4127 = vmatpush1.bf16.msra.mxu0 %v2721
  %4128 = vmatprep.subr.bf16.mxu0 %v2726
  %4129 = vmatpush1.bf16.msra.mxu0 %v2725
  %4130 = vmatprep.subr.bf16.mxu0 %v2730
  %4131 = vmatpush1.bf16.msra.mxu0 %v2729
  %4132 = vmatprep.subr.bf16.mxu0 %v2734
  %4133 = vmatpush1.bf16.msra.mxu0 %v2733
  %4134 = vmatprep.subr.bf16.mxu0 %v2738
  %4135 = vmatpush1.bf16.msra.mxu0 %v2737
  %4136 = vmatprep.mubr.bf16.mxu0 %v664
  %4137 = vmatmul.mubr.bf16.gmra.mrb[0].mxu0 %v663
  %v4138 = vpop.f32.mrb[0].mxu0
  %v4139 = vadd.f32 %v4098, %v4138
  %v4140 = vpop.f32.mrb[0].mxu0
  %v4141 = vadd.f32 %v4100, %v4140
  %v4142 = vpop.f32.mrb[0].mxu0
  %v4143 = vpop.f32.mrb[0].mxu0
  %4144 = vdwg.mxu0
  %4145 = vmatprep.subr.bf16.mxu0 %v2742
  %4146 = vmatpush1.bf16.msra.mxu0 %v2741
  %4147 = vmatprep.subr.bf16.mxu0 %v2746
  %4148 = vmatpush1.bf16.msra.mxu0 %v2745
  %4149 = vmatprep.subr.bf16.mxu0 %v2750
  %4150 = vmatpush1.bf16.msra.mxu0 %v2749
  %4151 = vmatprep.subr.bf16.mxu0 %v2754
  %4152 = vmatpush1.bf16.msra.mxu0 %v2753
  %4153 = vmatprep.subr.bf16.mxu0 %v2758
  %4154 = vmatpush1.bf16.msra.mxu0 %v2757
  %4155 = vmatprep.subr.bf16.mxu0 %v2762
  %4156 = vmatpush1.bf16.msra.mxu0 %v2761
  %4157 = vmatprep.subr.bf16.mxu0 %v2766
  %4158 = vmatpush1.bf16.msra.mxu0 %v2765
  %4159 = vmatprep.subr.bf16.mxu0 %v2770
  %4160 = vmatpush1.bf16.msra.mxu0 %v2769
  %4161 = vmatprep.subr.bf16.mxu0 %v2774
  %4162 = vmatpush1.bf16.msra.mxu0 %v2773
  %4163 = vmatprep.subr.bf16.mxu0 %v2778
  %4164 = vmatpush1.bf16.msra.mxu0 %v2777
  %4165 = vmatprep.subr.bf16.mxu0 %v2782
  %4166 = vmatpush1.bf16.msra.mxu0 %v2781
  %4167 = vmatprep.subr.bf16.mxu0 %v2786
  %4168 = vmatpush1.bf16.msra.mxu0 %v2785
  %4169 = vmatprep.subr.bf16.mxu0 %v2790
  %4170 = vmatpush1.bf16.msra.mxu0 %v2789
  %4171 = vmatprep.subr.bf16.mxu0 %v2794
  %4172 = vmatpush1.bf16.msra.mxu0 %v2793
  %4173 = vmatprep.subr.bf16.mxu0 %v2798
  %4174 = vmatpush1.bf16.msra.mxu0 %v2797
  %4175 = vmatprep.subr.bf16.mxu0 %v2802
  %4176 = vmatpush1.bf16.msra.mxu0 %v2801
  %4177 = vmatprep.mubr.bf16.mxu0 %v666
  %4178 = vmatmul.mubr.bf16.gmra.mrb[0].mxu0 %v665
  %v4179 = vpop.f32.mrb[0].mxu0
  %v4180 = vadd.f32 %v4139, %v4179
  %v4181 = vpop.f32.mrb[0].mxu0
  %v4182 = vadd.f32 %v4141, %v4181
  %v4183 = vpop.f32.mrb[0].mxu0
  %v4184 = vpop.f32.mrb[0].mxu0
  %4185 = vdwg.mxu0
  %4186 = vmatprep.subr.bf16.mxu0 %v2806
  %4187 = vmatpush1.bf16.msra.mxu0 %v2805
  %4188 = vmatprep.subr.bf16.mxu0 %v2810
  %4189 = vmatpush1.bf16.msra.mxu0 %v2809
  %4190 = vmatprep.subr.bf16.mxu0 %v2814
  %4191 = vmatpush1.bf16.msra.mxu0 %v2813
  %4192 = vmatprep.subr.bf16.mxu0 %v2818
  %4193 = vmatpush1.bf16.msra.mxu0 %v2817
  %4194 = vmatprep.subr.bf16.mxu0 %v2822
  %4195 = vmatpush1.bf16.msra.mxu0 %v2821
  %4196 = vmatprep.subr.bf16.mxu0 %v2826
  %4197 = vmatpush1.bf16.msra.mxu0 %v2825
  %4198 = vmatprep.subr.bf16.mxu0 %v2830
  %4199 = vmatpush1.bf16.msra.mxu0 %v2829
  %4200 = vmatprep.subr.bf16.mxu0 %v2834
  %4201 = vmatpush1.bf16.msra.mxu0 %v2833
  %4202 = vmatprep.subr.bf16.mxu0 %v2838
  %4203 = vmatpush1.bf16.msra.mxu0 %v2837
  %4204 = vmatprep.subr.bf16.mxu0 %v2842
  %4205 = vmatpush1.bf16.msra.mxu0 %v2841
  %4206 = vmatprep.subr.bf16.mxu0 %v2846
  %4207 = vmatpush1.bf16.msra.mxu0 %v2845
  %4208 = vmatprep.subr.bf16.mxu0 %v2850
  %4209 = vmatpush1.bf16.msra.mxu0 %v2849
  %4210 = vmatprep.subr.bf16.mxu0 %v2854
  %4211 = vmatpush1.bf16.msra.mxu0 %v2853
  %4212 = vmatprep.subr.bf16.mxu0 %v2858
  %4213 = vmatpush1.bf16.msra.mxu0 %v2857
  %4214 = vmatprep.subr.bf16.mxu0 %v2862
  %4215 = vmatpush1.bf16.msra.mxu0 %v2861
  %4216 = vmatprep.subr.bf16.mxu0 %v2866
  %4217 = vmatpush1.bf16.msra.mxu0 %v2865
  %4218 = vmatprep.mubr.bf16.mxu0 %v668
  %4219 = vmatmul.mubr.bf16.gmra.mrb[0].mxu0 %v667
  %v4220 = vpop.f32.mrb[0].mxu0
  %v4221 = vadd.f32 %v4180, %v4220
  %v4222 = vpop.f32.mrb[0].mxu0
  %v4223 = vadd.f32 %v4182, %v4222
  %v4224 = vpop.f32.mrb[0].mxu0
  %v4225 = vpop.f32.mrb[0].mxu0
  %4226 = vdwg.mxu0
  %4227 = vmatprep.subr.bf16.mxu0 %v2870
  %4228 = vmatpush1.bf16.msra.mxu0 %v2869
  %4229 = vmatprep.subr.bf16.mxu0 %v2874
  %4230 = vmatpush1.bf16.msra.mxu0 %v2873
  %4231 = vmatprep.subr.bf16.mxu0 %v2878
  %4232 = vmatpush1.bf16.msra.mxu0 %v2877
  %4233 = vmatprep.subr.bf16.mxu0 %v2882
  %4234 = vmatpush1.bf16.msra.mxu0 %v2881
  %4235 = vmatprep.subr.bf16.mxu0 %v2886
  %4236 = vmatpush1.bf16.msra.mxu0 %v2885
  %4237 = vmatprep.subr.bf16.mxu0 %v2890
  %4238 = vmatpush1.bf16.msra.mxu0 %v2889
  %4239 = vmatprep.subr.bf16.mxu0 %v2894
  %4240 = vmatpush1.bf16.msra.mxu0 %v2893
  %4241 = vmatprep.subr.bf16.mxu0 %v2898
  %4242 = vmatpush1.bf16.msra.mxu0 %v2897
  %4243 = vmatprep.subr.bf16.mxu0 %v2902
  %4244 = vmatpush1.bf16.msra.mxu0 %v2901
  %4245 = vmatprep.subr.bf16.mxu0 %v2906
  %4246 = vmatpush1.bf16.msra.mxu0 %v2905
  %4247 = vmatprep.subr.bf16.mxu0 %v2910
  %4248 = vmatpush1.bf16.msra.mxu0 %v2909
  %4249 = vmatprep.subr.bf16.mxu0 %v2914
  %4250 = vmatpush1.bf16.msra.mxu0 %v2913
  %4251 = vmatprep.subr.bf16.mxu0 %v2918
  %4252 = vmatpush1.bf16.msra.mxu0 %v2917
  %4253 = vmatprep.subr.bf16.mxu0 %v2922
  %4254 = vmatpush1.bf16.msra.mxu0 %v2921
  %4255 = vmatprep.subr.bf16.mxu0 %v2926
  %4256 = vmatpush1.bf16.msra.mxu0 %v2925
  %4257 = vmatprep.subr.bf16.mxu0 %v2930
  %4258 = vmatpush1.bf16.msra.mxu0 %v2929
  %4259 = vmatprep.mubr.bf16.mxu0 %v670
  %4260 = vmatmul.mubr.bf16.gmra.mrb[0].mxu0 %v669
  %v4261 = vpop.f32.mrb[0].mxu0
  %v4262 = vadd.f32 %v4221, %v4261
  %v4263 = vpop.f32.mrb[0].mxu0
  %v4264 = vadd.f32 %v4223, %v4263
  %v4265 = vpop.f32.mrb[0].mxu0
  %v4266 = vpop.f32.mrb[0].mxu0
  %4267 = vdwg.mxu0
  %4268 = vmatprep.subr.bf16.mxu0 %v2934
  %4269 = vmatpush1.bf16.msra.mxu0 %v2933
  %4270 = vmatprep.subr.bf16.mxu0 %v2938
  %4271 = vmatpush1.bf16.msra.mxu0 %v2937
  %4272 = vmatprep.subr.bf16.mxu0 %v2942
  %4273 = vmatpush1.bf16.msra.mxu0 %v2941
  %4274 = vmatprep.subr.bf16.mxu0 %v2946
  %4275 = vmatpush1.bf16.msra.mxu0 %v2945
  %4276 = vmatprep.subr.bf16.mxu0 %v2950
  %4277 = vmatpush1.bf16.msra.mxu0 %v2949
  %4278 = vmatprep.subr.bf16.mxu0 %v2954
  %4279 = vmatpush1.bf16.msra.mxu0 %v2953
  %4280 = vmatprep.subr.bf16.mxu0 %v2958
  %4281 = vmatpush1.bf16.msra.mxu0 %v2957
  %4282 = vmatprep.subr.bf16.mxu0 %v2962
  %4283 = vmatpush1.bf16.msra.mxu0 %v2961
  %4284 = vmatprep.subr.bf16.mxu0 %v2966
  %4285 = vmatpush1.bf16.msra.mxu0 %v2965
  %4286 = vmatprep.subr.bf16.mxu0 %v2970
  %4287 = vmatpush1.bf16.msra.mxu0 %v2969
  %4288 = vmatprep.subr.bf16.mxu0 %v2974
  %4289 = vmatpush1.bf16.msra.mxu0 %v2973
  %4290 = vmatprep.subr.bf16.mxu0 %v2978
  %4291 = vmatpush1.bf16.msra.mxu0 %v2977
  %4292 = vmatprep.subr.bf16.mxu0 %v2982
  %4293 = vmatpush1.bf16.msra.mxu0 %v2981
  %4294 = vmatprep.subr.bf16.mxu0 %v2986
  %4295 = vmatpush1.bf16.msra.mxu0 %v2985
  %4296 = vmatprep.subr.bf16.mxu0 %v2990
  %4297 = vmatpush1.bf16.msra.mxu0 %v2989
  %4298 = vmatprep.subr.bf16.mxu0 %v2994
  %4299 = vmatpush1.bf16.msra.mxu0 %v2993
  %4300 = vmatprep.mubr.bf16.mxu0 %v672
  %4301 = vmatmul.mubr.bf16.gmra.mrb[0].mxu0 %v671
  %v4302 = vpop.f32.mrb[0].mxu0
  %v4303 = vadd.f32 %v4262, %v4302
  %v4304 = vpop.f32.mrb[0].mxu0
  %v4305 = vadd.f32 %v4264, %v4304
  %v4306 = vpop.f32.mrb[0].mxu0
  %v4307 = vpop.f32.mrb[0].mxu0
  %4308 = vdwg.mxu0
  %v4309 = vmax.f32 %v3934, 0.0
  %v4310 = vmax.f32 %v3936, 0.0
  %v4311 = vmax.f32 %v4303, 0.0
  %v4312 = vmax.f32 %v4305, 0.0
  %v4313 = vpack.c.bf16 %v4309, %v4309
  %v4314 = vpack.c.bf16 %v4310, %v4310
  %v4315 = vpack.c.bf16 %v4311, %v4311
  %v4316 = vpack.c.bf16 %v4312, %v4312
  %v4317 = vld [vmem:[%s3] sm:$0xf]
  %v4318 = vld [vmem:[%s3 + $0x4] sm:$0xf]
  %v4319 = vld [vmem:[%s3 + $0x8] sm:$0xf]
  %v4320 = vld [vmem:[%s3 + $0xc] sm:$0xf]
  %v4321 = vld [vmem:[%s3 + $0x10] sm:$0xf]
  %v4322 = vld [vmem:[%s3 + $0x14] sm:$0xf]
  %v4323 = vld [vmem:[%s3 + $0x18] sm:$0xf]
  %v4324 = vld [vmem:[%s3 + $0x1c] sm:$0xf]
  %v4325 = vld [vmem:[%s3 + $0x20] sm:$0xf]
  %v4326 = vld [vmem:[%s3 + $0x24] sm:$0xf]
  %v4327 = vld [vmem:[%s3 + $0x28] sm:$0xf]
  %v4328 = vld [vmem:[%s3 + $0x2c] sm:$0xf]
  %v4329 = vld [vmem:[%s3 + $0x30] sm:$0xf]
  %v4330 = vld [vmem:[%s3 + $0x34] sm:$0xf]
  %v4331 = vld [vmem:[%s3 + $0x38] sm:$0xf]
  %v4332 = vld [vmem:[%s3 + $0x3c] sm:$0xf]
  %v4333 = vld [vmem:[%s3 + $0x40] sm:$0xf]
  %v4334 = vld [vmem:[%s3 + $0x44] sm:$0xf]
  %v4335 = vld [vmem:[%s3 + $0x48] sm:$0xf]
  %v4336 = vld [vmem:[%s3 + $0x4c] sm:$0xf]
  %v4337 = vld [vmem:[%s3 + $0x50] sm:$0xf]
  %v4338 = vld [vmem:[%s3 + $0x54] sm:$0xf]
  %v4339 = vld [vmem:[%s3 + $0x58] sm:$0xf]
  %v4340 = vld [vmem:[%s3 + $0x5c] sm:$0xf]
  %v4341 = vld [vmem:[%s3 + $0x60] sm:$0xf]
  %v4342 = vld [vmem:[%s3 + $0x64] sm:$0xf]
  %v4343 = vld [vmem:[%s3 + $0x68] sm:$0xf]
  %v4344 = vld [vmem:[%s3 + $0x6c] sm:$0xf]
  %v4345 = vld [vmem:[%s3 + $0x70] sm:$0xf]
  %v4346 = vld [vmem:[%s3 + $0x74] sm:$0xf]
  %v4347 = vld [vmem:[%s3 + $0x78] sm:$0xf]
  %v4348 = vld [vmem:[%s3 + $0x7c] sm:$0xf]
  %v4349 = vld [vmem:[%s3 + $0x80] sm:$0xf]
  %v4350 = vld [vmem:[%s3 + $0x84] sm:$0xf]
  %v4351 = vld [vmem:[%s3 + $0x88] sm:$0xf]
  %v4352 = vld [vmem:[%s3 + $0x8c] sm:$0xf]
  %v4353 = vld [vmem:[%s3 + $0x90] sm:$0xf]
  %v4354 = vld [vmem:[%s3 + $0x94] sm:$0xf]
  %v4355 = vld [vmem:[%s3 + $0x98] sm:$0xf]
  %v4356 = vld [vmem:[%s3 + $0x9c] sm:$0xf]
  %v4357 = vld [vmem:[%s3 + $0xa0] sm:$0xf]
  %v4358 = vld [vmem:[%s3 + $0xa4] sm:$0xf]
  %v4359 = vld [vmem:[%s3 + $0xa8] sm:$0xf]
  %v4360 = vld [vmem:[%s3 + $0xac] sm:$0xf]
  %v4361 = vld [vmem:[%s3 + $0xb0] sm:$0xf]
  %v4362 = vld [vmem:[%s3 + $0xb4] sm:$0xf]
  %v4363 = vld [vmem:[%s3 + $0xb8] sm:$0xf]
  %v4364 = vld [vmem:[%s3 + $0xbc] sm:$0xf]
  %v4365 = vld [vmem:[%s3 + $0xc0] sm:$0xf]
  %v4366 = vld [vmem:[%s3 + $0xc4] sm:$0xf]
  %v4367 = vld [vmem:[%s3 + $0xc8] sm:$0xf]
  %v4368 = vld [vmem:[%s3 + $0xcc] sm:$0xf]
  %v4369 = vld [vmem:[%s3 + $0xd0] sm:$0xf]
  %v4370 = vld [vmem:[%s3 + $0xd4] sm:$0xf]
  %v4371 = vld [vmem:[%s3 + $0xd8] sm:$0xf]
  %v4372 = vld [vmem:[%s3 + $0xdc] sm:$0xf]
  %v4373 = vld [vmem:[%s3 + $0xe0] sm:$0xf]
  %v4374 = vld [vmem:[%s3 + $0xe4] sm:$0xf]
  %v4375 = vld [vmem:[%s3 + $0xe8] sm:$0xf]
  %v4376 = vld [vmem:[%s3 + $0xec] sm:$0xf]
  %v4377 = vld [vmem:[%s3 + $0xf0] sm:$0xf]
  %v4378 = vld [vmem:[%s3 + $0xf4] sm:$0xf]
  %v4379 = vld [vmem:[%s3 + $0xf8] sm:$0xf]
  %v4380 = vld [vmem:[%s3 + $0xfc] sm:$0xf]
  %v4381 = vld [vmem:[%s4] sm:$0x1]
  %v4383 = vlaneseq
  %v4384 = vshrl.u32 %v4383, 7
  %v4385 = vsub.s32 0, %v4384
  %v4386 = vrot.slane %v4381, %v4385
  %v4452 = vunpack.c.l.b16 %v4317
  %v4453 = vunpack.c.l.b16 %v4318
  %v4454 = vunpack.c.l.b16 %v4319
  %v4455 = vunpack.c.l.b16 %v4320
  %v4456 = vunpack.c.l.b16 %v4321
  %v4457 = vunpack.c.l.b16 %v4322
  %v4458 = vunpack.c.l.b16 %v4323
  %v4459 = vunpack.c.l.b16 %v4324
  %v4460 = vunpack.c.l.b16 %v4325
  %v4461 = vunpack.c.l.b16 %v4326
  %v4462 = vunpack.c.l.b16 %v4327
  %v4463 = vunpack.c.l.b16 %v4328
  %v4464 = vunpack.c.l.b16 %v4329
  %v4465 = vunpack.c.l.b16 %v4330
  %v4466 = vunpack.c.l.b16 %v4331
  %v4467 = vunpack.c.l.b16 %v4332
  %v4468 = vunpack.c.l.b16 %v4333
  %v4469 = vunpack.c.l.b16 %v4334
  %v4470 = vunpack.c.l.b16 %v4335
  %v4471 = vunpack.c.l.b16 %v4336
  %v4472 = vunpack.c.l.b16 %v4337
  %v4473 = vunpack.c.l.b16 %v4338
  %v4474 = vunpack.c.l.b16 %v4339
  %v4475 = vunpack.c.l.b16 %v4340
  %v4476 = vunpack.c.l.b16 %v4341
  %v4477 = vunpack.c.l.b16 %v4342
  %v4478 = vunpack.c.l.b16 %v4343
  %v4479 = vunpack.c.l.b16 %v4344
  %v4480 = vunpack.c.l.b16 %v4345
  %v4481 = vunpack.c.l.b16 %v4346
  %v4482 = vunpack.c.l.b16 %v4347
  %v4483 = vunpack.c.l.b16 %v4348
  %v4484 = vunpack.c.l.b16 %v4349
  %v4485 = vunpack.c.l.b16 %v4350
  %v4486 = vunpack.c.l.b16 %v4351
  %v4487 = vunpack.c.l.b16 %v4352
  %v4488 = vunpack.c.l.b16 %v4353
  %v4489 = vunpack.c.l.b16 %v4354
  %v4490 = vunpack.c.l.b16 %v4355
  %v4491 = vunpack.c.l.b16 %v4356
  %v4492 = vunpack.c.l.b16 %v4357
  %v4493 = vunpack.c.l.b16 %v4358
  %v4494 = vunpack.c.l.b16 %v4359
  %v4495 = vunpack.c.l.b16 %v4360
  %v4496 = vunpack.c.l.b16 %v4361
  %v4497 = vunpack.c.l.b16 %v4362
  %v4498 = vunpack.c.l.b16 %v4363
  %v4499 = vunpack.c.l.b16 %v4364
  %v4500 = vunpack.c.l.b16 %v4365
  %v4501 = vunpack.c.l.b16 %v4366
  %v4502 = vunpack.c.l.b16 %v4367
  %v4503 = vunpack.c.l.b16 %v4368
  %v4504 = vunpack.c.l.b16 %v4369
  %v4505 = vunpack.c.l.b16 %v4370
  %v4506 = vunpack.c.l.b16 %v4371
  %v4507 = vunpack.c.l.b16 %v4372
  %v4508 = vunpack.c.l.b16 %v4373
  %v4509 = vunpack.c.l.b16 %v4374
  %v4510 = vunpack.c.l.b16 %v4375
  %v4511 = vunpack.c.l.b16 %v4376
  %v4512 = vunpack.c.l.b16 %v4377
  %v4513 = vunpack.c.l.b16 %v4378
  %v4514 = vunpack.c.l.b16 %v4379
  %v4515 = vunpack.c.l.b16 %v4380
  %v4516 = vpack.c.b16 %v4453, %v4452
  %v4517 = vpack.c.b16 %v4455, %v4454
  %v4518 = vpack.c.b16 %v4457, %v4456
  %v4519 = vpack.c.b16 %v4459, %v4458
  %v4520 = vpack.c.b16 %v4461, %v4460
  %v4521 = vpack.c.b16 %v4463, %v4462
  %v4522 = vpack.c.b16 %v4465, %v4464
  %v4523 = vpack.c.b16 %v4467, %v4466
  %v4524 = vpack.c.b16 %v4469, %v4468
  %v4525 = vpack.c.b16 %v4471, %v4470
  %v4526 = vpack.c.b16 %v4473, %v4472
  %v4527 = vpack.c.b16 %v4475, %v4474
  %v4528 = vpack.c.b16 %v4477, %v4476
  %v4529 = vpack.c.b16 %v4479, %v4478
  %v4530 = vpack.c.b16 %v4481, %v4480
  %v4531 = vpack.c.b16 %v4483, %v4482
  %v4532 = vpack.c.b16 %v4485, %v4484
  %v4533 = vpack.c.b16 %v4487, %v4486
  %v4534 = vpack.c.b16 %v4489, %v4488
  %v4535 = vpack.c.b16 %v4491, %v4490
  %v4536 = vpack.c.b16 %v4493, %v4492
  %v4537 = vpack.c.b16 %v4495, %v4494
  %v4538 = vpack.c.b16 %v4497, %v4496
  %v4539 = vpack.c.b16 %v4499, %v4498
  %v4540 = vpack.c.b16 %v4501, %v4500
  %v4541 = vpack.c.b16 %v4503, %v4502
  %v4542 = vpack.c.b16 %v4505, %v4504
  %v4543 = vpack.c.b16 %v4507, %v4506
  %v4544 = vpack.c.b16 %v4509, %v4508
  %v4545 = vpack.c.b16 %v4511, %v4510
  %v4546 = vpack.c.b16 %v4513, %v4512
  %v4547 = vpack.c.b16 %v4515, %v4514
  %4580 = vmatprep.subr.bf16.mxu0 0
  %4581 = vmatpush1.bf16.msra.mxu0 %v4516
  %4582 = vmatprep.subr.bf16.mxu0 0
  %4583 = vmatpush1.bf16.msra.mxu0 %v4517
  %4584 = vmatprep.subr.bf16.mxu0 0
  %4585 = vmatpush1.bf16.msra.mxu0 %v4518
  %4586 = vmatprep.subr.bf16.mxu0 0
  %4587 = vmatpush1.bf16.msra.mxu0 %v4519
  %4588 = vmatprep.subr.bf16.mxu0 0
  %4589 = vmatpush1.bf16.msra.mxu0 %v4520
  %4590 = vmatprep.subr.bf16.mxu0 0
  %4591 = vmatpush1.bf16.msra.mxu0 %v4521
  %4592 = vmatprep.subr.bf16.mxu0 0
  %4593 = vmatpush1.bf16.msra.mxu0 %v4522
  %4594 = vmatprep.subr.bf16.mxu0 0
  %4595 = vmatpush1.bf16.msra.mxu0 %v4523
  %4596 = vmatprep.subr.bf16.mxu0 0
  %4597 = vmatpush1.bf16.msra.mxu0 %v4524
  %4598 = vmatprep.subr.bf16.mxu0 0
  %4599 = vmatpush1.bf16.msra.mxu0 %v4525
  %4600 = vmatprep.subr.bf16.mxu0 0
  %4601 = vmatpush1.bf16.msra.mxu0 %v4526
  %4602 = vmatprep.subr.bf16.mxu0 0
  %4603 = vmatpush1.bf16.msra.mxu0 %v4527
  %4604 = vmatprep.subr.bf16.mxu0 0
  %4605 = vmatpush1.bf16.msra.mxu0 %v4528
  %4606 = vmatprep.subr.bf16.mxu0 0
  %4607 = vmatpush1.bf16.msra.mxu0 %v4529
  %4608 = vmatprep.subr.bf16.mxu0 0
  %4609 = vmatpush1.bf16.msra.mxu0 %v4530
  %4610 = vmatprep.subr.bf16.mxu0 0
  %4611 = vmatpush1.bf16.msra.mxu0 %v4531
  %4612 = vmatprep.mubr.bf16.mxu0 %v4314
  %4613 = vmatmul.mubr.bf16.gmra.mrb[0].mxu0 %v4313
  %v4614 = vpop.f32.mrb[0].mxu0
  %v4615 = vadd.f32 %v4386, %v4614
  %v4616 = vpop.f32.mrb[0].mxu0
  %v4617 = vpop.f32.mrb[0].mxu0
  %v4618 = vpop.f32.mrb[0].mxu0
  %4619 = vdwg.mxu0
  %4620 = vmatprep.subr.bf16.mxu0 0
  %4621 = vmatpush1.bf16.msra.mxu0 %v4532
  %4622 = vmatprep.subr.bf16.mxu0 0
  %4623 = vmatpush1.bf16.msra.mxu0 %v4533
  %4624 = vmatprep.subr.bf16.mxu0 0
  %4625 = vmatpush1.bf16.msra.mxu0 %v4534
  %4626 = vmatprep.subr.bf16.mxu0 0
  %4627 = vmatpush1.bf16.msra.mxu0 %v4535
  %4628 = vmatprep.subr.bf16.mxu0 0
  %4629 = vmatpush1.bf16.msra.mxu0 %v4536
  %4630 = vmatprep.subr.bf16.mxu0 0
  %4631 = vmatpush1.bf16.msra.mxu0 %v4537
  %4632 = vmatprep.subr.bf16.mxu0 0
  %4633 = vmatpush1.bf16.msra.mxu0 %v4538
  %4634 = vmatprep.subr.bf16.mxu0 0
  %4635 = vmatpush1.bf16.msra.mxu0 %v4539
  %4636 = vmatprep.subr.bf16.mxu0 0
  %4637 = vmatpush1.bf16.msra.mxu0 %v4540
  %4638 = vmatprep.subr.bf16.mxu0 0
  %4639 = vmatpush1.bf16.msra.mxu0 %v4541
  %4640 = vmatprep.subr.bf16.mxu0 0
  %4641 = vmatpush1.bf16.msra.mxu0 %v4542
  %4642 = vmatprep.subr.bf16.mxu0 0
  %4643 = vmatpush1.bf16.msra.mxu0 %v4543
  %4644 = vmatprep.subr.bf16.mxu0 0
  %4645 = vmatpush1.bf16.msra.mxu0 %v4544
  %4646 = vmatprep.subr.bf16.mxu0 0
  %4647 = vmatpush1.bf16.msra.mxu0 %v4545
  %4648 = vmatprep.subr.bf16.mxu0 0
  %4649 = vmatpush1.bf16.msra.mxu0 %v4546
  %4650 = vmatprep.subr.bf16.mxu0 0
  %4651 = vmatpush1.bf16.msra.mxu0 %v4547
  %4652 = vmatprep.mubr.bf16.mxu0 %v4316
  %4653 = vmatmul.mubr.bf16.gmra.mrb[0].mxu0 %v4315
  %v4654 = vpop.f32.mrb[0].mxu0
  %v4655 = vadd.f32 %v4615, %v4654
  %v4656 = vpop.f32.mrb[0].mxu0
  %v4657 = vpop.f32.mrb[0].mxu0
  %v4658 = vpop.f32.mrb[0].mxu0
  %4659 = vdwg.mxu0
  %4660 = vmax.xlane.f32.xlu0 %v4655
  %v4661 = vpop.xlane.xlu0 %4660
  %v4662 = vsub.f32 %v4655, %v4661
  %v4663 = vmul.f32 %v4662, 1.442695
  %v4664 = vpow.pop %v4663
  %4665 = vadd.xlane.f32.xlu0 %v4664
  %v4666 = vpop.xlane.xlu0 %4665
  %v4667 = vrcp.pop %v4666
  %v4668 = vmul.f32 %v4664, %v4667
  %4669 = vst [vmem:[%s5] sm:$0xff] %v4668
  // Predicated region
  $region22: #{cnn_forward.5} parent=0 // pred_check
    _
  $region23: #{cnn_forward.5} parent=0 // pred_check_branch
    %4671 = sbr.rel (0) target = $region25
  $region24: #{cnn_forward.5} parent=0 // pred_region
    _
  $region25: #{cnn_forward.5} parent=0 // pred_fallthru
    _
  // Predicated region
  $region26: #{cnn_forward.5} parent=0 // pred_check
    _
  $region27: #{cnn_forward.5} parent=0 // pred_check_branch
    %4673 = sbr.rel (0) target = $region29
  $region28: #{cnn_forward.5} parent=0 // pred_region
    _
  $region29: #{cnn_forward.5} parent=0 // pred_fallthru
    _

// kernel: cnn_forward.4
$region0: #{cnn_forward.4}
  #allocation0 [shape = 'u32[]', space=smem, size = 0x4, offset = 0x4, fixed_abs, tag = 'smem constant byte address 0x4 - core index']
  #allocation1 [shape = 'u32[144,128]{1,0:T(1,128)}', space=vmem, size = 0x12000, scoped, tag = 'internal scratch']
  %s0 = inlined_call_operand.vmem [shape: bf16[48,1536], index: 0, kind: input, shape index: {}]
  %s1 = inlined_call_operand.vmem [shape: bf16[48,1536], index: 1, kind: input, shape index: {}]
  %s2 = inlined_call_operand.vmem [shape: bf16[1536,768], index: 2, kind: input, shape index: {}]
  %s3 = inlined_call_operand.vmem [shape: f32[1,768], index: 3, kind: input, shape index: {}]
  %s4 = inlined_call_operand.vmem [shape: bf16[48,384], index: 4, kind: output, shape index: {}]
  %s5 = sld [smem:[#allocation0]]
  $region26: #{cnn_forward.4} parent=0
    _
  %s7 = ssub.s32 1, %s5
  %s8 = scalar_select 0, %s7, %s5
  // Predicated region
  $region2: #{cnn_forward.4} parent=0 // pred_check
    _
  $region3: #{cnn_forward.4} parent=0 // pred_check_branch
    %10 = sbr.rel (0) target = $region5
  $region4: #{cnn_forward.4} parent=0 // pred_region
    _
  $region5: #{cnn_forward.4} parent=0 // pred_fallthru
    _
  // Predicated region
  $region6: #{cnn_forward.4} parent=0 // pred_check
    _
  $region7: #{cnn_forward.4} parent=0 // pred_check_branch
    %12 = sbr.rel (0) target = $region9
  $region8: #{cnn_forward.4} parent=0 // pred_region
    _
  $region9: #{cnn_forward.4} parent=0 // pred_fallthru
    _
  // Predicated region
  $region10: #{cnn_forward.4} parent=0 // pred_check
    _
  $region11: #{cnn_forward.4} parent=0 // pred_check_branch
    %14 = sbr.rel (0) target = $region13
  $region12: #{cnn_forward.4} parent=0 // pred_region
    _
  $region13: #{cnn_forward.4} parent=0 // pred_fallthru
    _
  // Predicated region
  $region14: #{cnn_forward.4} parent=0 // pred_check
    _
  $region15: #{cnn_forward.4} parent=0 // pred_check_branch
    %16 = sbr.rel (0) target = $region17
  $region16: #{cnn_forward.4} parent=0 // pred_region
    _
  $region17: #{cnn_forward.4} parent=0 // pred_fallthru
    _
  %v17 = vld [vmem:[%s0] sm:$0xff]
  %v18 = vld [vmem:[%s0 + $0x8] sm:$0xff]
  %v19 = vld [vmem:[%s0 + $0x10] sm:$0xff]
  %v20 = vld [vmem:[%s0 + $0x18] sm:$0xff]
  %v21 = vld [vmem:[%s0 + $0x20] sm:$0xff]
  %v22 = vld [vmem:[%s0 + $0x28] sm:$0xff]
  %v23 = vld [vmem:[%s0 + $0x30] sm:$0xff]
  %v24 = vld [vmem:[%s0 + $0x38] sm:$0xff]
  %v25 = vld [vmem:[%s0 + $0x40] sm:$0xff]
  %v26 = vld [vmem:[%s0 + $0x48] sm:$0xff]
  %v27 = vld [vmem:[%s0 + $0x50] sm:$0xff]
  %v28 = vld [vmem:[%s0 + $0x58] sm:$0xff]
  %v29 = vld [vmem:[%s0 + $0x60] sm:$0xff]
  %v30 = vld [vmem:[%s0 + $0x68] sm:$0xff]
  %v31 = vld [vmem:[%s0 + $0x70] sm:$0xff]
  %v32 = vld [vmem:[%s0 + $0x78] sm:$0xff]
  %v33 = vld [vmem:[%s0 + $0x80] sm:$0xff]
  %v34 = vld [vmem:[%s0 + $0x88] sm:$0xff]
  %v35 = vld [vmem:[%s0 + $0x90] sm:$0xff]
  %v36 = vld [vmem:[%s0 + $0x98] sm:$0xff]
  %v37 = vld [vmem:[%s0 + $0xa0] sm:$0xff]
  %v38 = vld [vmem:[%s0 + $0xa8] sm:$0xff]
  %v39 = vld [vmem:[%s0 + $0xb0] sm:$0xff]
  %v40 = vld [vmem:[%s0 + $0xb8] sm:$0xff]
  %v41 = vld [vmem:[%s0 + $0xc0] sm:$0xff]
  %v42 = vld [vmem:[%s0 + $0xc8] sm:$0xff]
  %v43 = vld [vmem:[%s0 + $0xd0] sm:$0xff]
  %v44 = vld [vmem:[%s0 + $0xd8] sm:$0xff]
  %v45 = vld [vmem:[%s0 + $0xe0] sm:$0xff]
  %v46 = vld [vmem:[%s0 + $0xe8] sm:$0xff]
  %v47 = vld [vmem:[%s0 + $0xf0] sm:$0xff]
  %v48 = vld [vmem:[%s0 + $0xf8] sm:$0xff]
  %v49 = vld [vmem:[%s0 + $0x100] sm:$0xff]
  %v50 = vld [vmem:[%s0 + $0x108] sm:$0xff]
  %v51 = vld [vmem:[%s0 + $0x110] sm:$0xff]
  %v52 = vld [vmem:[%s0 + $0x118] sm:$0xff]
  %v53 = vld [vmem:[%s1] sm:$0xff]
  %v54 = vld [vmem:[%s1 + $0x8] sm:$0xff]
  %v55 = vld [vmem:[%s1 + $0x10] sm:$0xff]
  %v56 = vld [vmem:[%s1 + $0x18] sm:$0xff]
  %v57 = vld [vmem:[%s1 + $0x20] sm:$0xff]
  %v58 = vld [vmem:[%s1 + $0x28] sm:$0xff]
  %v59 = vld [vmem:[%s1 + $0x30] sm:$0xff]
  %v60 = vld [vmem:[%s1 + $0x38] sm:$0xff]
  %v61 = vld [vmem:[%s1 + $0x40] sm:$0xff]
  %v62 = vld [vmem:[%s1 + $0x48] sm:$0xff]
  %v63 = vld [vmem:[%s1 + $0x50] sm:$0xff]
  %v64 = vld [vmem:[%s1 + $0x58] sm:$0xff]
  %v65 = vld [vmem:[%s1 + $0x60] sm:$0xff]
  %v66 = vld [vmem:[%s1 + $0x68] sm:$0xff]
  %v67 = vld [vmem:[%s1 + $0x70] sm:$0xff]
  %v68 = vld [vmem:[%s1 + $0x78] sm:$0xff]
  %v69 = vld [vmem:[%s1 + $0x80] sm:$0xff]
  %v70 = vld [vmem:[%s1 + $0x88] sm:$0xff]
  %v71 = vld [vmem:[%s1 + $0x90] sm:$0xff]
  %v72 = vld [vmem:[%s1 + $0x98] sm:$0xff]
  %v73 = vld [vmem:[%s1 + $0xa0] sm:$0xff]
  %v74 = vld [vmem:[%s1 + $0xa8] sm:$0xff]
  %v75 = vld [vmem:[%s1 + $0xb0] sm:$0xff]
  %v76 = vld [vmem:[%s1 + $0xb8] sm:$0xff]
  %v77 = vld [vmem:[%s1 + $0xc0] sm:$0xff]
  %v78 = vld [vmem:[%s1 + $0xc8] sm:$0xff]
  %v79 = vld [vmem:[%s1 + $0xd0] sm:$0xff]
  %v80 = vld [vmem:[%s1 + $0xd8] sm:$0xff]
  %v81 = vld [vmem:[%s1 + $0xe0] sm:$0xff]
  %v82 = vld [vmem:[%s1 + $0xe8] sm:$0xff]
  %v83 = vld [vmem:[%s1 + $0xf0] sm:$0xff]
  %v84 = vld [vmem:[%s1 + $0xf8] sm:$0xff]
  %v85 = vld [vmem:[%s1 + $0x100] sm:$0xff]
  %v86 = vld [vmem:[%s1 + $0x108] sm:$0xff]
  %v87 = vld [vmem:[%s1 + $0x110] sm:$0xff]
  %v88 = vld [vmem:[%s1 + $0x118] sm:$0xff]
  %v125 = vunpack.c.l.b16 %v17
  %v126 = vunpack.c.h.b16 %v17
  %v127 = vunpack.c.l.b16 %v18
  %v128 = vunpack.c.h.b16 %v18
  %v129 = vunpack.c.l.b16 %v19
  %v130 = vunpack.c.h.b16 %v19
  %v131 = vunpack.c.l.b16 %v20
  %v132 = vunpack.c.h.b16 %v20
  %v133 = vunpack.c.l.b16 %v21
  %v134 = vunpack.c.h.b16 %v21
  %v135 = vunpack.c.l.b16 %v22
  %v136 = vunpack.c.h.b16 %v22
  %v137 = vunpack.c.l.b16 %v23
  %v138 = vunpack.c.h.b16 %v23
  %v139 = vunpack.c.l.b16 %v24
  %v140 = vunpack.c.h.b16 %v24
  %v141 = vunpack.c.l.b16 %v25
  %v142 = vunpack.c.h.b16 %v25
  %v143 = vunpack.c.l.b16 %v26
  %v144 = vunpack.c.h.b16 %v26
  %v145 = vunpack.c.l.b16 %v27
  %v146 = vunpack.c.h.b16 %v27
  %v147 = vunpack.c.l.b16 %v28
  %v148 = vunpack.c.h.b16 %v28
  %v149 = vunpack.c.l.b16 %v29
  %v150 = vunpack.c.h.b16 %v29
  %v151 = vunpack.c.l.b16 %v30
  %v152 = vunpack.c.h.b16 %v30
  %v153 = vunpack.c.l.b16 %v31
  %v154 = vunpack.c.h.b16 %v31
  %v155 = vunpack.c.l.b16 %v32
  %v156 = vunpack.c.h.b16 %v32
  %v157 = vunpack.c.l.b16 %v33
  %v158 = vunpack.c.h.b16 %v33
  %v159 = vunpack.c.l.b16 %v34
  %v160 = vunpack.c.h.b16 %v34
  %v161 = vunpack.c.l.b16 %v35
  %v162 = vunpack.c.h.b16 %v35
  %v163 = vunpack.c.l.b16 %v36
  %v164 = vunpack.c.h.b16 %v36
  %v165 = vunpack.c.l.b16 %v37
  %v166 = vunpack.c.h.b16 %v37
  %v167 = vunpack.c.l.b16 %v38
  %v168 = vunpack.c.h.b16 %v38
  %v169 = vunpack.c.l.b16 %v39
  %v170 = vunpack.c.h.b16 %v39
  %v171 = vunpack.c.l.b16 %v40
  %v172 = vunpack.c.h.b16 %v40
  %v173 = vunpack.c.l.b16 %v41
  %v174 = vunpack.c.h.b16 %v41
  %v175 = vunpack.c.l.b16 %v42
  %v176 = vunpack.c.h.b16 %v42
  %v177 = vunpack.c.l.b16 %v43
  %v178 = vunpack.c.h.b16 %v43
  %v179 = vunpack.c.l.b16 %v44
  %v180 = vunpack.c.h.b16 %v44
  %v181 = vunpack.c.l.b16 %v45
  %v182 = vunpack.c.h.b16 %v45
  %v183 = vunpack.c.l.b16 %v46
  %v184 = vunpack.c.h.b16 %v46
  %v185 = vunpack.c.l.b16 %v47
  %v186 = vunpack.c.h.b16 %v47
  %v187 = vunpack.c.l.b16 %v48
  %v188 = vunpack.c.h.b16 %v48
  %v189 = vunpack.c.l.b16 %v49
  %v190 = vunpack.c.h.b16 %v49
  %v191 = vunpack.c.l.b16 %v50
  %v192 = vunpack.c.h.b16 %v50
  %v193 = vunpack.c.l.b16 %v51
  %v194 = vunpack.c.h.b16 %v51
  %v195 = vunpack.c.l.b16 %v52
  %v196 = vunpack.c.h.b16 %v52
  %v197 = vpack.c.b16 %v137, %v125
  %v198 = vpack.c.b16 %v138, %v126
  %v199 = vpack.c.b16 %v139, %v127
  %v200 = vpack.c.b16 %v140, %v128
  %v201 = vpack.c.b16 %v141, %v129
  %v202 = vpack.c.b16 %v142, %v130
  %v203 = vpack.c.b16 %v143, %v131
  %v204 = vpack.c.b16 %v144, %v132
  %v205 = vpack.c.b16 %v145, %v133
  %v206 = vpack.c.b16 %v146, %v134
  %v207 = vpack.c.b16 %v147, %v135
  %v208 = vpack.c.b16 %v148, %v136
  %v209 = vpack.c.b16 %v161, %v149
  %v210 = vpack.c.b16 %v162, %v150
  %v211 = vpack.c.b16 %v163, %v151
  %v212 = vpack.c.b16 %v164, %v152
  %v213 = vpack.c.b16 %v165, %v153
  %v214 = vpack.c.b16 %v166, %v154
  %v215 = vpack.c.b16 %v167, %v155
  %v216 = vpack.c.b16 %v168, %v156
  %v217 = vpack.c.b16 %v169, %v157
  %v218 = vpack.c.b16 %v170, %v158
  %v219 = vpack.c.b16 %v171, %v159
  %v220 = vpack.c.b16 %v172, %v160
  %v221 = vpack.c.b16 %v185, %v173
  %v222 = vpack.c.b16 %v186, %v174
  %v223 = vpack.c.b16 %v187, %v175
  %v224 = vpack.c.b16 %v188, %v176
  %v225 = vpack.c.b16 %v189, %v177
  %v226 = vpack.c.b16 %v190, %v178
  %v227 = vpack.c.b16 %v191, %v179
  %v228 = vpack.c.b16 %v192, %v180
  %v229 = vpack.c.b16 %v193, %v181
  %v230 = vpack.c.b16 %v194, %v182
  %v231 = vpack.c.b16 %v195, %v183
  %v232 = vpack.c.b16 %v196, %v184
  %v305 = vunpack.c.l.b16 %v53
  %v306 = vunpack.c.h.b16 %v53
  %v307 = vunpack.c.l.b16 %v54
  %v308 = vunpack.c.h.b16 %v54
  %v309 = vunpack.c.l.b16 %v55
  %v310 = vunpack.c.h.b16 %v55
  %v311 = vunpack.c.l.b16 %v56
  %v312 = vunpack.c.h.b16 %v56
  %v313 = vunpack.c.l.b16 %v57
  %v314 = vunpack.c.h.b16 %v57
  %v315 = vunpack.c.l.b16 %v58
  %v316 = vunpack.c.h.b16 %v58
  %v317 = vunpack.c.l.b16 %v59
  %v318 = vunpack.c.h.b16 %v59
  %v319 = vunpack.c.l.b16 %v60
  %v320 = vunpack.c.h.b16 %v60
  %v321 = vunpack.c.l.b16 %v61
  %v322 = vunpack.c.h.b16 %v61
  %v323 = vunpack.c.l.b16 %v62
  %v324 = vunpack.c.h.b16 %v62
  %v325 = vunpack.c.l.b16 %v63
  %v326 = vunpack.c.h.b16 %v63
  %v327 = vunpack.c.l.b16 %v64
  %v328 = vunpack.c.h.b16 %v64
  %v329 = vunpack.c.l.b16 %v65
  %v330 = vunpack.c.h.b16 %v65
  %v331 = vunpack.c.l.b16 %v66
  %v332 = vunpack.c.h.b16 %v66
  %v333 = vunpack.c.l.b16 %v67
  %v334 = vunpack.c.h.b16 %v67
  %v335 = vunpack.c.l.b16 %v68
  %v336 = vunpack.c.h.b16 %v68
  %v337 = vunpack.c.l.b16 %v69
  %v338 = vunpack.c.h.b16 %v69
  %v339 = vunpack.c.l.b16 %v70
  %v340 = vunpack.c.h.b16 %v70
  %v341 = vunpack.c.l.b16 %v71
  %v342 = vunpack.c.h.b16 %v71
  %v343 = vunpack.c.l.b16 %v72
  %v344 = vunpack.c.h.b16 %v72
  %v345 = vunpack.c.l.b16 %v73
  %v346 = vunpack.c.h.b16 %v73
  %v347 = vunpack.c.l.b16 %v74
  %v348 = vunpack.c.h.b16 %v74
  %v349 = vunpack.c.l.b16 %v75
  %v350 = vunpack.c.h.b16 %v75
  %v351 = vunpack.c.l.b16 %v76
  %v352 = vunpack.c.h.b16 %v76
  %v353 = vunpack.c.l.b16 %v77
  %v354 = vunpack.c.h.b16 %v77
  %v355 = vunpack.c.l.b16 %v78
  %v356 = vunpack.c.h.b16 %v78
  %v357 = vunpack.c.l.b16 %v79
  %v358 = vunpack.c.h.b16 %v79
  %v359 = vunpack.c.l.b16 %v80
  %v360 = vunpack.c.h.b16 %v80
  %v361 = vunpack.c.l.b16 %v81
  %v362 = vunpack.c.h.b16 %v81
  %v363 = vunpack.c.l.b16 %v82
  %v364 = vunpack.c.h.b16 %v82
  %v365 = vunpack.c.l.b16 %v83
  %v366 = vunpack.c.h.b16 %v83
  %v367 = vunpack.c.l.b16 %v84
  %v368 = vunpack.c.h.b16 %v84
  %v369 = vunpack.c.l.b16 %v85
  %v370 = vunpack.c.h.b16 %v85
  %v371 = vunpack.c.l.b16 %v86
  %v372 = vunpack.c.h.b16 %v86
  %v373 = vunpack.c.l.b16 %v87
  %v374 = vunpack.c.h.b16 %v87
  %v375 = vunpack.c.l.b16 %v88
  %v376 = vunpack.c.h.b16 %v88
  %v377 = vpack.c.b16 %v317, %v305
  %v378 = vpack.c.b16 %v318, %v306
  %v379 = vpack.c.b16 %v319, %v307
  %v380 = vpack.c.b16 %v320, %v308
  %v381 = vpack.c.b16 %v321, %v309
  %v382 = vpack.c.b16 %v322, %v310
  %v383 = vpack.c.b16 %v323, %v311
  %v384 = vpack.c.b16 %v324, %v312
  %v385 = vpack.c.b16 %v325, %v313
  %v386 = vpack.c.b16 %v326, %v314
  %v387 = vpack.c.b16 %v327, %v315
  %v388 = vpack.c.b16 %v328, %v316
  %v389 = vpack.c.b16 %v341, %v329
  %v390 = vpack.c.b16 %v342, %v330
  %v391 = vpack.c.b16 %v343, %v331
  %v392 = vpack.c.b16 %v344, %v332
  %v393 = vpack.c.b16 %v345, %v333
  %v394 = vpack.c.b16 %v346, %v334
  %v395 = vpack.c.b16 %v347, %v335
  %v396 = vpack.c.b16 %v348, %v336
  %v397 = vpack.c.b16 %v349, %v337
  %v398 = vpack.c.b16 %v350, %v338
  %v399 = vpack.c.b16 %v351, %v339
  %v400 = vpack.c.b16 %v352, %v340
  %v401 = vpack.c.b16 %v365, %v353
  %v402 = vpack.c.b16 %v366, %v354
  %v403 = vpack.c.b16 %v367, %v355
  %v404 = vpack.c.b16 %v368, %v356
  %v405 = vpack.c.b16 %v369, %v357
  %v406 = vpack.c.b16 %v370, %v358
  %v407 = vpack.c.b16 %v371, %v359
  %v408 = vpack.c.b16 %v372, %v360
  %v409 = vpack.c.b16 %v373, %v361
  %v410 = vpack.c.b16 %v374, %v362
  %v411 = vpack.c.b16 %v375, %v363
  %v412 = vpack.c.b16 %v376, %v364
  %v449 = vld [vmem:[%s2] sm:$0xff]
  %v450 = vld [vmem:[%s2 + $0x8] sm:$0xff]
  %v451 = vld [vmem:[%s2 + $0x10] sm:$0xff]
  %v452 = vld [vmem:[%s2 + $0x18] sm:$0xff]
  %v453 = vld [vmem:[%s2 + $0x20] sm:$0xff]
  %v454 = vld [vmem:[%s2 + $0x28] sm:$0xff]
  %v455 = vld [vmem:[%s2 + $0x30] sm:$0xff]
  %v456 = vld [vmem:[%s2 + $0x38] sm:$0xff]
  %v457 = vld [vmem:[%s2 + $0x40] sm:$0xff]
  %v458 = vld [vmem:[%s2 + $0x48] sm:$0xff]
  %v459 = vld [vmem:[%s2 + $0x50] sm:$0xff]
  %v460 = vld [vmem:[%s2 + $0x58] sm:$0xff]
  %v461 = vld [vmem:[%s2 + $0x60] sm:$0xff]
  %v462 = vld [vmem:[%s2 + $0x68] sm:$0xff]
  %v463 = vld [vmem:[%s2 + $0x70] sm:$0xff]
  %v464 = vld [vmem:[%s2 + $0x78] sm:$0xff]
  %v465 = vld [vmem:[%s2 + $0x80] sm:$0xff]
  %v466 = vld [vmem:[%s2 + $0x88] sm:$0xff]
  %v467 = vld [vmem:[%s2 + $0x90] sm:$0xff]
  %v468 = vld [vmem:[%s2 + $0x98] sm:$0xff]
  %v469 = vld [vmem:[%s2 + $0xa0] sm:$0xff]
  %v470 = vld [vmem:[%s2 + $0xa8] sm:$0xff]
  %v471 = vld [vmem:[%s2 + $0xb0] sm:$0xff]
  %v472 = vld [vmem:[%s2 + $0xb8] sm:$0xff]
  %v473 = vld [vmem:[%s2 + $0xc0] sm:$0xff]
  %v474 = vld [vmem:[%s2 + $0xc8] sm:$0xff]
  %v475 = vld [vmem:[%s2 + $0xd0] sm:$0xff]
  %v476 = vld [vmem:[%s2 + $0xd8] sm:$0xff]
  %v477 = vld [vmem:[%s2 + $0xe0] sm:$0xff]
  %v478 = vld [vmem:[%s2 + $0xe8] sm:$0xff]
  %v479 = vld [vmem:[%s2 + $0xf0] sm:$0xff]
  %v480 = vld [vmem:[%s2 + $0xf8] sm:$0xff]
  %v481 = vld [vmem:[%s2 + $0x100] sm:$0xff]
  %v482 = vld [vmem:[%s2 + $0x108] sm:$0xff]
  %v483 = vld [vmem:[%s2 + $0x110] sm:$0xff]
  %v484 = vld [vmem:[%s2 + $0x118] sm:$0xff]
  %v485 = vld [vmem:[%s2 + $0x120] sm:$0xff]
  %v486 = vld [vmem:[%s2 + $0x128] sm:$0xff]
  %v487 = vld [vmem:[%s2 + $0x130] sm:$0xff]
  %v488 = vld [vmem:[%s2 + $0x138] sm:$0xff]
  %v489 = vld [vmem:[%s2 + $0x140] sm:$0xff]
  %v490 = vld [vmem:[%s2 + $0x148] sm:$0xff]
  %v491 = vld [vmem:[%s2 + $0x150] sm:$0xff]
  %v492 = vld [vmem:[%s2 + $0x158] sm:$0xff]
  %v493 = vld [vmem:[%s2 + $0x160] sm:$0xff]
  %v494 = vld [vmem:[%s2 + $0x168] sm:$0xff]
  %v495 = vld [vmem:[%s2 + $0x170] sm:$0xff]
  %v496 = vld [vmem:[%s2 + $0x178] sm:$0xff]
  %v497 = vld [vmem:[%s2 + $0x180] sm:$0xff]
  %v498 = vld [vmem:[%s2 + $0x188] sm:$0xff]
  %v499 = vld [vmem:[%s2 + $0x190] sm:$0xff]
  %v500 = vld [vmem:[%s2 + $0x198] sm:$0xff]
  %v501 = vld [vmem:[%s2 + $0x1a0] sm:$0xff]
  %v502 = vld [vmem:[%s2 + $0x1a8] sm:$0xff]
  %v503 = vld [vmem:[%s2 + $0x1b0] sm:$0xff]
  %v504 = vld [vmem:[%s2 + $0x1b8] sm:$0xff]
  %v505 = vld [vmem:[%s2 + $0x1c0] sm:$0xff]
  %v506 = vld [vmem:[%s2 + $0x1c8] sm:$0xff]
  %v507 = vld [vmem:[%s2 + $0x1d0] sm:$0xff]
  %v508 = vld [vmem:[%s2 + $0x1d8] sm:$0xff]
  %v509 = vld [vmem:[%s2 + $0x1e0] sm:$0xff]
  %v510 = vld [vmem:[%s2 + $0x1e8] sm:$0xff]
  %v511 = vld [vmem:[%s2 + $0x1f0] sm:$0xff]
  %v512 = vld [vmem:[%s2 + $0x1f8] sm:$0xff]
  %v513 = vld [vmem:[%s2 + $0x200] sm:$0xff]
  %v514 = vld [vmem:[%s2 + $0x208] sm:$0xff]
  %v515 = vld [vmem:[%s2 + $0x210] sm:$0xff]
  %v516 = vld [vmem:[%s2 + $0x218] sm:$0xff]
  %v517 = vld [vmem:[%s2 + $0x220] sm:$0xff]
  %v518 = vld [vmem:[%s2 + $0x228] sm:$0xff]
  %v519 = vld [vmem:[%s2 + $0x230] sm:$0xff]
  %v520 = vld [vmem:[%s2 + $0x238] sm:$0xff]
  %v521 = vld [vmem:[%s2 + $0x240] sm:$0xff]
  %v522 = vld [vmem:[%s2 + $0x248] sm:$0xff]
  %v523 = vld [vmem:[%s2 + $0x250] sm:$0xff]
  %v524 = vld [vmem:[%s2 + $0x258] sm:$0xff]
  %v525 = vld [vmem:[%s2 + $0x260] sm:$0xff]
  %v526 = vld [vmem:[%s2 + $0x268] sm:$0xff]
  %v527 = vld [vmem:[%s2 + $0x270] sm:$0xff]
  %v528 = vld [vmem:[%s2 + $0x278] sm:$0xff]
  %v529 = vld [vmem:[%s2 + $0x280] sm:$0xff]
  %v530 = vld [vmem:[%s2 + $0x288] sm:$0xff]
  %v531 = vld [vmem:[%s2 + $0x290] sm:$0xff]
  %v532 = vld [vmem:[%s2 + $0x298] sm:$0xff]
  %v533 = vld [vmem:[%s2 + $0x2a0] sm:$0xff]
  %v534 = vld [vmem:[%s2 + $0x2a8] sm:$0xff]
  %v535 = vld [vmem:[%s2 + $0x2b0] sm:$0xff]
  %v536 = vld [vmem:[%s2 + $0x2b8] sm:$0xff]
  %v537 = vld [vmem:[%s2 + $0x2c0] sm:$0xff]
  %v538 = vld [vmem:[%s2 + $0x2c8] sm:$0xff]
  %v539 = vld [vmem:[%s2 + $0x2d0] sm:$0xff]
  %v540 = vld [vmem:[%s2 + $0x2d8] sm:$0xff]
  %v541 = vld [vmem:[%s2 + $0x2e0] sm:$0xff]
  %v542 = vld [vmem:[%s2 + $0x2e8] sm:$0xff]
  %v543 = vld [vmem:[%s2 + $0x2f0] sm:$0xff]
  %v544 = vld [vmem:[%s2 + $0x2f8] sm:$0xff]
  %v545 = vld [vmem:[%s2 + $0x300] sm:$0xff]
  %v546 = vld [vmem:[%s2 + $0x308] sm:$0xff]
  %v547 = vld [vmem:[%s2 + $0x310] sm:$0xff]
  %v548 = vld [vmem:[%s2 + $0x318] sm:$0xff]
  %v549 = vld [vmem:[%s2 + $0x320] sm:$0xff]
  %v550 = vld [vmem:[%s2 + $0x328] sm:$0xff]
  %v551 = vld [vmem:[%s2 + $0x330] sm:$0xff]
  %v552 = vld [vmem:[%s2 + $0x338] sm:$0xff]
  %v553 = vld [vmem:[%s2 + $0x340] sm:$0xff]
  %v554 = vld [vmem:[%s2 + $0x348] sm:$0xff]
  %v555 = vld [vmem:[%s2 + $0x350] sm:$0xff]
  %v556 = vld [vmem:[%s2 + $0x358] sm:$0xff]
  %v557 = vld [vmem:[%s2 + $0x360] sm:$0xff]
  %v558 = vld [vmem:[%s2 + $0x368] sm:$0xff]
  %v559 = vld [vmem:[%s2 + $0x370] sm:$0xff]
  %v560 = vld [vmem:[%s2 + $0x378] sm:$0xff]
  %v561 = vld [vmem:[%s2 + $0x380] sm:$0xff]
  %v562 = vld [vmem:[%s2 + $0x388] sm:$0xff]
  %v563 = vld [vmem:[%s2 + $0x390] sm:$0xff]
  %v564 = vld [vmem:[%s2 + $0x398] sm:$0xff]
  %v565 = vld [vmem:[%s2 + $0x3a0] sm:$0xff]
  %v566 = vld [vmem:[%s2 + $0x3a8] sm:$0xff]
  %v567 = vld [vmem:[%s2 + $0x3b0] sm:$0xff]
  %v568 = vld [vmem:[%s2 + $0x3b8] sm:$0xff]
  %v569 = vld [vmem:[%s2 + $0x3c0] sm:$0xff]
  %v570 = vld [vmem:[%s2 + $0x3c8] sm:$0xff]
  %v571 = vld [vmem:[%s2 + $0x3d0] sm:$0xff]
  %v572 = vld [vmem:[%s2 + $0x3d8] sm:$0xff]
  %v573 = vld [vmem:[%s2 + $0x3e0] sm:$0xff]
  %v574 = vld [vmem:[%s2 + $0x3e8] sm:$0xff]
  %v575 = vld [vmem:[%s2 + $0x3f0] sm:$0xff]
  %v576 = vld [vmem:[%s2 + $0x3f8] sm:$0xff]
  %v577 = vld [vmem:[%s2 + $0x400] sm:$0xff]
  %v578 = vld [vmem:[%s2 + $0x408] sm:$0xff]
  %v579 = vld [vmem:[%s2 + $0x410] sm:$0xff]
  %v580 = vld [vmem:[%s2 + $0x418] sm:$0xff]
  %v581 = vld [vmem:[%s2 + $0x420] sm:$0xff]
  %v582 = vld [vmem:[%s2 + $0x428] sm:$0xff]
  %v583 = vld [vmem:[%s2 + $0x430] sm:$0xff]
  %v584 = vld [vmem:[%s2 + $0x438] sm:$0xff]
  %v585 = vld [vmem:[%s2 + $0x440] sm:$0xff]
  %v586 = vld [vmem:[%s2 + $0x448] sm:$0xff]
  %v587 = vld [vmem:[%s2 + $0x450] sm:$0xff]
  %v588 = vld [vmem:[%s2 + $0x458] sm:$0xff]
  %v589 = vld [vmem:[%s2 + $0x460] sm:$0xff]
  %v590 = vld [vmem:[%s2 + $0x468] sm:$0xff]
  %v591 = vld [vmem:[%s2 + $0x470] sm:$0xff]
  %v592 = vld [vmem:[%s2 + $0x478] sm:$0xff]
  %v593 = vld [vmem:[%s2 + $0x480] sm:$0xff]
  %v594 = vld [vmem:[%s2 + $0x488] sm:$0xff]
  %v595 = vld [vmem:[%s2 + $0x490] sm:$0xff]
  %v596 = vld [vmem:[%s2 + $0x498] sm:$0xff]
  %v597 = vld [vmem:[%s2 + $0x4a0] sm:$0xff]
  %v598 = vld [vmem:[%s2 + $0x4a8] sm:$0xff]
  %v599 = vld [vmem:[%s2 + $0x4b0] sm:$0xff]
  %v600 = vld [vmem:[%s2 + $0x4b8] sm:$0xff]
  %v601 = vld [vmem:[%s2 + $0x4c0] sm:$0xff]
  %v602 = vld [vmem:[%s2 + $0x4c8] sm:$0xff]
  %v603 = vld [vmem:[%s2 + $0x4d0] sm:$0xff]
  %v604 = vld [vmem:[%s2 + $0x4d8] sm:$0xff]
  %v605 = vld [vmem:[%s2 + $0x4e0] sm:$0xff]
  %v606 = vld [vmem:[%s2 + $0x4e8] sm:$0xff]
  %v607 = vld [vmem:[%s2 + $0x4f0] sm:$0xff]
  %v608 = vld [vmem:[%s2 + $0x4f8] sm:$0xff]
  %v609 = vld [vmem:[%s2 + $0x500] sm:$0xff]
  %v610 = vld [vmem:[%s2 + $0x508] sm:$0xff]
  %v611 = vld [vmem:[%s2 + $0x510] sm:$0xff]
  %v612 = vld [vmem:[%s2 + $0x518] sm:$0xff]
  %v613 = vld [vmem:[%s2 + $0x520] sm:$0xff]
  %v614 = vld [vmem:[%s2 + $0x528] sm:$0xff]
  %v615 = vld [vmem:[%s2 + $0x530] sm:$0xff]
  %v616 = vld [vmem:[%s2 + $0x538] sm:$0xff]
  %v617 = vld [vmem:[%s2 + $0x540] sm:$0xff]
  %v618 = vld [vmem:[%s2 + $0x548] sm:$0xff]
  %v619 = vld [vmem:[%s2 + $0x550] sm:$0xff]
  %v620 = vld [vmem:[%s2 + $0x558] sm:$0xff]
  %v621 = vld [vmem:[%s2 + $0x560] sm:$0xff]
  %v622 = vld [vmem:[%s2 + $0x568] sm:$0xff]
  %v623 = vld [vmem:[%s2 + $0x570] sm:$0xff]
  %v624 = vld [vmem:[%s2 + $0x578] sm:$0xff]
  %v625 = vld [vmem:[%s2 + $0x580] sm:$0xff]
  %v626 = vld [vmem:[%s2 + $0x588] sm:$0xff]
  %v627 = vld [vmem:[%s2 + $0x590] sm:$0xff]
  %v628 = vld [vmem:[%s2 + $0x598] sm:$0xff]
  %v629 = vld [vmem:[%s2 + $0x5a0] sm:$0xff]
  %v630 = vld [vmem:[%s2 + $0x5a8] sm:$0xff]
  %v631 = vld [vmem:[%s2 + $0x5b0] sm:$0xff]
  %v632 = vld [vmem:[%s2 + $0x5b8] sm:$0xff]
  %v633 = vld [vmem:[%s2 + $0x5c0] sm:$0xff]
  %v634 = vld [vmem:[%s2 + $0x5c8] sm:$0xff]
  %v635 = vld [vmem:[%s2 + $0x5d0] sm:$0xff]
  %v636 = vld [vmem:[%s2 + $0x5d8] sm:$0xff]
  %v637 = vld [vmem:[%s2 + $0x5e0] sm:$0xff]
  %v638 = vld [vmem:[%s2 + $0x5e8] sm:$0xff]
  %v639 = vld [vmem:[%s2 + $0x5f0] sm:$0xff]
  %v640 = vld [vmem:[%s2 + $0x5f8] sm:$0xff]
  %v641 = vld [vmem:[%s2 + $0x600] sm:$0xff]
  %v642 = vld [vmem:[%s2 + $0x608] sm:$0xff]
  %v643 = vld [vmem:[%s2 + $0x610] sm:$0xff]
  %v644 = vld [vmem:[%s2 + $0x618] sm:$0xff]
  %v645 = vld [vmem:[%s2 + $0x620] sm:$0xff]
  %v646 = vld [vmem:[%s2 + $0x628] sm:$0xff]
  %v647 = vld [vmem:[%s2 + $0x630] sm:$0xff]
  %v648 = vld [vmem:[%s2 + $0x638] sm:$0xff]
  %v649 = vld [vmem:[%s2 + $0x640] sm:$0xff]
  %v650 = vld [vmem:[%s2 + $0x648] sm:$0xff]
  %v651 = vld [vmem:[%s2 + $0x650] sm:$0xff]
  %v652 = vld [vmem:[%s2 + $0x658] sm:$0xff]
  %v653 = vld [vmem:[%s2 + $0x660] sm:$0xff]
  %v654 = vld [vmem:[%s2 + $0x668] sm:$0xff]
  %v655 = vld [vmem:[%s2 + $0x670] sm:$0xff]
  %v656 = vld [vmem:[%s2 + $0x678] sm:$0xff]
  %v657 = vld [vmem:[%s2 + $0x680] sm:$0xff]
  %v658 = vld [vmem:[%s2 + $0x688] sm:$0xff]
  %v659 = vld [vmem:[%s2 + $0x690] sm:$0xff]
  %v660 = vld [vmem:[%s2 + $0x698] sm:$0xff]
  %v661 = vld [vmem:[%s2 + $0x6a0] sm:$0xff]
  %v662 = vld [vmem:[%s2 + $0x6a8] sm:$0xff]
  %v663 = vld [vmem:[%s2 + $0x6b0] sm:$0xff]
  %v664 = vld [vmem:[%s2 + $0x6b8] sm:$0xff]
  %v665 = vld [vmem:[%s2 + $0x6c0] sm:$0xff]
  %v666 = vld [vmem:[%s2 + $0x6c8] sm:$0xff]
  %v667 = vld [vmem:[%s2 + $0x6d0] sm:$0xff]
  %v668 = vld [vmem:[%s2 + $0x6d8] sm:$0xff]
  %v669 = vld [vmem:[%s2 + $0x6e0] sm:$0xff]
  %v670 = vld [vmem:[%s2 + $0x6e8] sm:$0xff]
  %v671 = vld [vmem:[%s2 + $0x6f0] sm:$0xff]
  %v672 = vld [vmem:[%s2 + $0x6f8] sm:$0xff]
  %v673 = vld [vmem:[%s2 + $0x700] sm:$0xff]
  %v674 = vld [vmem:[%s2 + $0x708] sm:$0xff]
  %v675 = vld [vmem:[%s2 + $0x710] sm:$0xff]
  %v676 = vld [vmem:[%s2 + $0x718] sm:$0xff]
  %v677 = vld [vmem:[%s2 + $0x720] sm:$0xff]
  %v678 = vld [vmem:[%s2 + $0x728] sm:$0xff]
  %v679 = vld [vmem:[%s2 + $0x730] sm:$0xff]
  %v680 = vld [vmem:[%s2 + $0x738] sm:$0xff]
  %v681 = vld [vmem:[%s2 + $0x740] sm:$0xff]
  %v682 = vld [vmem:[%s2 + $0x748] sm:$0xff]
  %v683 = vld [vmem:[%s2 + $0x750] sm:$0xff]
  %v684 = vld [vmem:[%s2 + $0x758] sm:$0xff]
  %v685 = vld [vmem:[%s2 + $0x760] sm:$0xff]
  %v686 = vld [vmem:[%s2 + $0x768] sm:$0xff]
  %v687 = vld [vmem:[%s2 + $0x770] sm:$0xff]
  %v688 = vld [vmem:[%s2 + $0x778] sm:$0xff]
  %v689 = vld [vmem:[%s2 + $0x780] sm:$0xff]
  %v690 = vld [vmem:[%s2 + $0x788] sm:$0xff]
  %v691 = vld [vmem:[%s2 + $0x790] sm:$0xff]
  %v692 = vld [vmem:[%s2 + $0x798] sm:$0xff]
  %v693 = vld [vmem:[%s2 + $0x7a0] sm:$0xff]
  %v694 = vld [vmem:[%s2 + $0x7a8] sm:$0xff]
  %v695 = vld [vmem:[%s2 + $0x7b0] sm:$0xff]
  %v696 = vld [vmem:[%s2 + $0x7b8] sm:$0xff]
  %v697 = vld [vmem:[%s2 + $0x7c0] sm:$0xff]
  %v698 = vld [vmem:[%s2 + $0x7c8] sm:$0xff]
  %v699 = vld [vmem:[%s2 + $0x7d0] sm:$0xff]
  %v700 = vld [vmem:[%s2 + $0x7d8] sm:$0xff]
  %v701 = vld [vmem:[%s2 + $0x7e0] sm:$0xff]
  %v702 = vld [vmem:[%s2 + $0x7e8] sm:$0xff]
  %v703 = vld [vmem:[%s2 + $0x7f0] sm:$0xff]
  %v704 = vld [vmem:[%s2 + $0x7f8] sm:$0xff]
  %v705 = vld [vmem:[%s2 + $0x800] sm:$0xff]
  %v706 = vld [vmem:[%s2 + $0x808] sm:$0xff]
  %v707 = vld [vmem:[%s2 + $0x810] sm:$0xff]
  %v708 = vld [vmem:[%s2 + $0x818] sm:$0xff]
  %v709 = vld [vmem:[%s2 + $0x820] sm:$0xff]
  %v710 = vld [vmem:[%s2 + $0x828] sm:$0xff]
  %v711 = vld [vmem:[%s2 + $0x830] sm:$0xff]
  %v712 = vld [vmem:[%s2 + $0x838] sm:$0xff]
  %v713 = vld [vmem:[%s2 + $0x840] sm:$0xff]
  %v714 = vld [vmem:[%s2 + $0x848] sm:$0xff]
  %v715 = vld [vmem:[%s2 + $0x850] sm:$0xff]
  %v716 = vld [vmem:[%s2 + $0x858] sm:$0xff]
  %v717 = vld [vmem:[%s2 + $0x860] sm:$0xff]
  %v718 = vld [vmem:[%s2 + $0x868] sm:$0xff]
  %v719 = vld [vmem:[%s2 + $0x870] sm:$0xff]
  %v720 = vld [vmem:[%s2 + $0x878] sm:$0xff]
  %v721 = vld [vmem:[%s2 + $0x880] sm:$0xff]
  %v722 = vld [vmem:[%s2 + $0x888] sm:$0xff]
  %v723 = vld [vmem:[%s2 + $0x890] sm:$0xff]
  %v724 = vld [vmem:[%s2 + $0x898] sm:$0xff]
  %v725 = vld [vmem:[%s2 + $0x8a0] sm:$0xff]
  %v726 = vld [vmem:[%s2 + $0x8a8] sm:$0xff]
  %v727 = vld [vmem:[%s2 + $0x8b0] sm:$0xff]
  %v728 = vld [vmem:[%s2 + $0x8b8] sm:$0xff]
  %v729 = vld [vmem:[%s2 + $0x8c0] sm:$0xff]
  %v730 = vld [vmem:[%s2 + $0x8c8] sm:$0xff]
  %v731 = vld [vmem:[%s2 + $0x8d0] sm:$0xff]
  %v732 = vld [vmem:[%s2 + $0x8d8] sm:$0xff]
  %v733 = vld [vmem:[%s2 + $0x8e0] sm:$0xff]
  %v734 = vld [vmem:[%s2 + $0x8e8] sm:$0xff]
  %v735 = vld [vmem:[%s2 + $0x8f0] sm:$0xff]
  %v736 = vld [vmem:[%s2 + $0x8f8] sm:$0xff]
  %v737 = vld [vmem:[%s2 + $0x900] sm:$0xff]
  %v738 = vld [vmem:[%s2 + $0x908] sm:$0xff]
  %v739 = vld [vmem:[%s2 + $0x910] sm:$0xff]
  %v740 = vld [vmem:[%s2 + $0x918] sm:$0xff]
  %v741 = vld [vmem:[%s2 + $0x920] sm:$0xff]
  %v742 = vld [vmem:[%s2 + $0x928] sm:$0xff]
  %v743 = vld [vmem:[%s2 + $0x930] sm:$0xff]
  %v744 = vld [vmem:[%s2 + $0x938] sm:$0xff]
  %v745 = vld [vmem:[%s2 + $0x940] sm:$0xff]
  %v746 = vld [vmem:[%s2 + $0x948] sm:$0xff]
  %v747 = vld [vmem:[%s2 + $0x950] sm:$0xff]
  %v748 = vld [vmem:[%s2 + $0x958] sm:$0xff]
  %v749 = vld [vmem:[%s2 + $0x960] sm:$0xff]
  %v750 = vld [vmem:[%s2 + $0x968] sm:$0xff]
  %v751 = vld [vmem:[%s2 + $0x970] sm:$0xff]
  %v752 = vld [vmem:[%s2 + $0x978] sm:$0xff]
  %v753 = vld [vmem:[%s2 + $0x980] sm:$0xff]
  %v754 = vld [vmem:[%s2 + $0x988] sm:$0xff]
  %v755 = vld [vmem:[%s2 + $0x990] sm:$0xff]
  %v756 = vld [vmem:[%s2 + $0x998] sm:$0xff]
  %v757 = vld [vmem:[%s2 + $0x9a0] sm:$0xff]
  %v758 = vld [vmem:[%s2 + $0x9a8] sm:$0xff]
  %v759 = vld [vmem:[%s2 + $0x9b0] sm:$0xff]
  %v760 = vld [vmem:[%s2 + $0x9b8] sm:$0xff]
  %v761 = vld [vmem:[%s2 + $0x9c0] sm:$0xff]
  %v762 = vld [vmem:[%s2 + $0x9c8] sm:$0xff]
  %v763 = vld [vmem:[%s2 + $0x9d0] sm:$0xff]
  %v764 = vld [vmem:[%s2 + $0x9d8] sm:$0xff]
  %v765 = vld [vmem:[%s2 + $0x9e0] sm:$0xff]
  %v766 = vld [vmem:[%s2 + $0x9e8] sm:$0xff]
  %v767 = vld [vmem:[%s2 + $0x9f0] sm:$0xff]
  %v768 = vld [vmem:[%s2 + $0x9f8] sm:$0xff]
  %v769 = vld [vmem:[%s2 + $0xa00] sm:$0xff]
  %v770 = vld [vmem:[%s2 + $0xa08] sm:$0xff]
  %v771 = vld [vmem:[%s2 + $0xa10] sm:$0xff]
  %v772 = vld [vmem:[%s2 + $0xa18] sm:$0xff]
  %v773 = vld [vmem:[%s2 + $0xa20] sm:$0xff]
  %v774 = vld [vmem:[%s2 + $0xa28] sm:$0xff]
  %v775 = vld [vmem:[%s2 + $0xa30] sm:$0xff]
  %v776 = vld [vmem:[%s2 + $0xa38] sm:$0xff]
  %v777 = vld [vmem:[%s2 + $0xa40] sm:$0xff]
  %v778 = vld [vmem:[%s2 + $0xa48] sm:$0xff]
  %v779 = vld [vmem:[%s2 + $0xa50] sm:$0xff]
  %v780 = vld [vmem:[%s2 + $0xa58] sm:$0xff]
  %v781 = vld [vmem:[%s2 + $0xa60] sm:$0xff]
  %v782 = vld [vmem:[%s2 + $0xa68] sm:$0xff]
  %v783 = vld [vmem:[%s2 + $0xa70] sm:$0xff]
  %v784 = vld [vmem:[%s2 + $0xa78] sm:$0xff]
  %v785 = vld [vmem:[%s2 + $0xa80] sm:$0xff]
  %v786 = vld [vmem:[%s2 + $0xa88] sm:$0xff]
  %v787 = vld [vmem:[%s2 + $0xa90] sm:$0xff]
  %v788 = vld [vmem:[%s2 + $0xa98] sm:$0xff]
  %v789 = vld [vmem:[%s2 + $0xaa0] sm:$0xff]
  %v790 = vld [vmem:[%s2 + $0xaa8] sm:$0xff]
  %v791 = vld [vmem:[%s2 + $0xab0] sm:$0xff]
  %v792 = vld [vmem:[%s2 + $0xab8] sm:$0xff]
  %v793 = vld [vmem:[%s2 + $0xac0] sm:$0xff]
  %v794 = vld [vmem:[%s2 + $0xac8] sm:$0xff]
  %v795 = vld [vmem:[%s2 + $0xad0] sm:$0xff]
  %v796 = vld [vmem:[%s2 + $0xad8] sm:$0xff]
  %v797 = vld [vmem:[%s2 + $0xae0] sm:$0xff]
  %v798 = vld [vmem:[%s2 + $0xae8] sm:$0xff]
  %v799 = vld [vmem:[%s2 + $0xaf0] sm:$0xff]
  %v800 = vld [vmem:[%s2 + $0xaf8] sm:$0xff]
  %v801 = vld [vmem:[%s2 + $0xb00] sm:$0xff]
  %v802 = vld [vmem:[%s2 + $0xb08] sm:$0xff]
  %v803 = vld [vmem:[%s2 + $0xb10] sm:$0xff]
  %v804 = vld [vmem:[%s2 + $0xb18] sm:$0xff]
  %v805 = vld [vmem:[%s2 + $0xb20] sm:$0xff]
  %v806 = vld [vmem:[%s2 + $0xb28] sm:$0xff]
  %v807 = vld [vmem:[%s2 + $0xb30] sm:$0xff]
  %v808 = vld [vmem:[%s2 + $0xb38] sm:$0xff]
  %v809 = vld [vmem:[%s2 + $0xb40] sm:$0xff]
  %v810 = vld [vmem:[%s2 + $0xb48] sm:$0xff]
  %v811 = vld [vmem:[%s2 + $0xb50] sm:$0xff]
  %v812 = vld [vmem:[%s2 + $0xb58] sm:$0xff]
  %v813 = vld [vmem:[%s2 + $0xb60] sm:$0xff]
  %v814 = vld [vmem:[%s2 + $0xb68] sm:$0xff]
  %v815 = vld [vmem:[%s2 + $0xb70] sm:$0xff]
  %v816 = vld [vmem:[%s2 + $0xb78] sm:$0xff]
  %v817 = vld [vmem:[%s2 + $0xb80] sm:$0xff]
  %v818 = vld [vmem:[%s2 + $0xb88] sm:$0xff]
  %v819 = vld [vmem:[%s2 + $0xb90] sm:$0xff]
  %v820 = vld [vmem:[%s2 + $0xb98] sm:$0xff]
  %v821 = vld [vmem:[%s2 + $0xba0] sm:$0xff]
  %v822 = vld [vmem:[%s2 + $0xba8] sm:$0xff]
  %v823 = vld [vmem:[%s2 + $0xbb0] sm:$0xff]
  %v824 = vld [vmem:[%s2 + $0xbb8] sm:$0xff]
  %v825 = vld [vmem:[%s2 + $0xbc0] sm:$0xff]
  %v826 = vld [vmem:[%s2 + $0xbc8] sm:$0xff]
  %v827 = vld [vmem:[%s2 + $0xbd0] sm:$0xff]
  %v828 = vld [vmem:[%s2 + $0xbd8] sm:$0xff]
  %v829 = vld [vmem:[%s2 + $0xbe0] sm:$0xff]
  %v830 = vld [vmem:[%s2 + $0xbe8] sm:$0xff]
  %v831 = vld [vmem:[%s2 + $0xbf0] sm:$0xff]
  %v832 = vld [vmem:[%s2 + $0xbf8] sm:$0xff]
  %v833 = vld [vmem:[%s2 + $0xc00] sm:$0xff]
  %v834 = vld [vmem:[%s2 + $0xc08] sm:$0xff]
  %v835 = vld [vmem:[%s2 + $0xc10] sm:$0xff]
  %v836 = vld [vmem:[%s2 + $0xc18] sm:$0xff]
  %v837 = vld [vmem:[%s2 + $0xc20] sm:$0xff]
  %v838 = vld [vmem:[%s2 + $0xc28] sm:$0xff]
  %v839 = vld [vmem:[%s2 + $0xc30] sm:$0xff]
  %v840 = vld [vmem:[%s2 + $0xc38] sm:$0xff]
  %v841 = vld [vmem:[%s2 + $0xc40] sm:$0xff]
  %v842 = vld [vmem:[%s2 + $0xc48] sm:$0xff]
  %v843 = vld [vmem:[%s2 + $0xc50] sm:$0xff]
  %v844 = vld [vmem:[%s2 + $0xc58] sm:$0xff]
  %v845 = vld [vmem:[%s2 + $0xc60] sm:$0xff]
  %v846 = vld [vmem:[%s2 + $0xc68] sm:$0xff]
  %v847 = vld [vmem:[%s2 + $0xc70] sm:$0xff]
  %v848 = vld [vmem:[%s2 + $0xc78] sm:$0xff]
  %v849 = vld [vmem:[%s2 + $0xc80] sm:$0xff]
  %v850 = vld [vmem:[%s2 + $0xc88] sm:$0xff]
  %v851 = vld [vmem:[%s2 + $0xc90] sm:$0xff]
  %v852 = vld [vmem:[%s2 + $0xc98] sm:$0xff]
  %v853 = vld [vmem:[%s2 + $0xca0] sm:$0xff]
  %v854 = vld [vmem:[%s2 + $0xca8] sm:$0xff]
  %v855 = vld [vmem:[%s2 + $0xcb0] sm:$0xff]
  %v856 = vld [vmem:[%s2 + $0xcb8] sm:$0xff]
  %v857 = vld [vmem:[%s2 + $0xcc0] sm:$0xff]
  %v858 = vld [vmem:[%s2 + $0xcc8] sm:$0xff]
  %v859 = vld [vmem:[%s2 + $0xcd0] sm:$0xff]
  %v860 = vld [vmem:[%s2 + $0xcd8] sm:$0xff]
  %v861 = vld [vmem:[%s2 + $0xce0] sm:$0xff]
  %v862 = vld [vmem:[%s2 + $0xce8] sm:$0xff]
  %v863 = vld [vmem:[%s2 + $0xcf0] sm:$0xff]
  %v864 = vld [vmem:[%s2 + $0xcf8] sm:$0xff]
  %v865 = vld [vmem:[%s2 + $0xd00] sm:$0xff]
  %v866 = vld [vmem:[%s2 + $0xd08] sm:$0xff]
  %v867 = vld [vmem:[%s2 + $0xd10] sm:$0xff]
  %v868 = vld [vmem:[%s2 + $0xd18] sm:$0xff]
  %v869 = vld [vmem:[%s2 + $0xd20] sm:$0xff]
  %v870 = vld [vmem:[%s2 + $0xd28] sm:$0xff]
  %v871 = vld [vmem:[%s2 + $0xd30] sm:$0xff]
  %v872 = vld [vmem:[%s2 + $0xd38] sm:$0xff]
  %v873 = vld [vmem:[%s2 + $0xd40] sm:$0xff]
  %v874 = vld [vmem:[%s2 + $0xd48] sm:$0xff]
  %v875 = vld [vmem:[%s2 + $0xd50] sm:$0xff]
  %v876 = vld [vmem:[%s2 + $0xd58] sm:$0xff]
  %v877 = vld [vmem:[%s2 + $0xd60] sm:$0xff]
  %v878 = vld [vmem:[%s2 + $0xd68] sm:$0xff]
  %v879 = vld [vmem:[%s2 + $0xd70] sm:$0xff]
  %v880 = vld [vmem:[%s2 + $0xd78] sm:$0xff]
  %v881 = vld [vmem:[%s2 + $0xd80] sm:$0xff]
  %v882 = vld [vmem:[%s2 + $0xd88] sm:$0xff]
  %v883 = vld [vmem:[%s2 + $0xd90] sm:$0xff]
  %v884 = vld [vmem:[%s2 + $0xd98] sm:$0xff]
  %v885 = vld [vmem:[%s2 + $0xda0] sm:$0xff]
  %v886 = vld [vmem:[%s2 + $0xda8] sm:$0xff]
  %v887 = vld [vmem:[%s2 + $0xdb0] sm:$0xff]
  %v888 = vld [vmem:[%s2 + $0xdb8] sm:$0xff]
  %v889 = vld [vmem:[%s2 + $0xdc0] sm:$0xff]
  %v890 = vld [vmem:[%s2 + $0xdc8] sm:$0xff]
  %v891 = vld [vmem:[%s2 + $0xdd0] sm:$0xff]
  %v892 = vld [vmem:[%s2 + $0xdd8] sm:$0xff]
  %v893 = vld [vmem:[%s2 + $0xde0] sm:$0xff]
  %v894 = vld [vmem:[%s2 + $0xde8] sm:$0xff]
  %v895 = vld [vmem:[%s2 + $0xdf0] sm:$0xff]
  %v896 = vld [vmem:[%s2 + $0xdf8] sm:$0xff]
  %v897 = vld [vmem:[%s2 + $0xe00] sm:$0xff]
  %v898 = vld [vmem:[%s2 + $0xe08] sm:$0xff]
  %v899 = vld [vmem:[%s2 + $0xe10] sm:$0xff]
  %v900 = vld [vmem:[%s2 + $0xe18] sm:$0xff]
  %v901 = vld [vmem:[%s2 + $0xe20] sm:$0xff]
  %v902 = vld [vmem:[%s2 + $0xe28] sm:$0xff]
  %v903 = vld [vmem:[%s2 + $0xe30] sm:$0xff]
  %v904 = vld [vmem:[%s2 + $0xe38] sm:$0xff]
  %v905 = vld [vmem:[%s2 + $0xe40] sm:$0xff]
  %v906 = vld [vmem:[%s2 + $0xe48] sm:$0xff]
  %v907 = vld [vmem:[%s2 + $0xe50] sm:$0xff]
  %v908 = vld [vmem:[%s2 + $0xe58] sm:$0xff]
  %v909 = vld [vmem:[%s2 + $0xe60] sm:$0xff]
  %v910 = vld [vmem:[%s2 + $0xe68] sm:$0xff]
  %v911 = vld [vmem:[%s2 + $0xe70] sm:$0xff]
  %v912 = vld [vmem:[%s2 + $0xe78] sm:$0xff]
  %v913 = vld [vmem:[%s2 + $0xe80] sm:$0xff]
  %v914 = vld [vmem:[%s2 + $0xe88] sm:$0xff]
  %v915 = vld [vmem:[%s2 + $0xe90] sm:$0xff]
  %v916 = vld [vmem:[%s2 + $0xe98] sm:$0xff]
  %v917 = vld [vmem:[%s2 + $0xea0] sm:$0xff]
  %v918 = vld [vmem:[%s2 + $0xea8] sm:$0xff]
  %v919 = vld [vmem:[%s2 + $0xeb0] sm:$0xff]
  %v920 = vld [vmem:[%s2 + $0xeb8] sm:$0xff]
  %v921 = vld [vmem:[%s2 + $0xec0] sm:$0xff]
  %v922 = vld [vmem:[%s2 + $0xec8] sm:$0xff]
  %v923 = vld [vmem:[%s2 + $0xed0] sm:$0xff]
  %v924 = vld [vmem:[%s2 + $0xed8] sm:$0xff]
  %v925 = vld [vmem:[%s2 + $0xee0] sm:$0xff]
  %v926 = vld [vmem:[%s2 + $0xee8] sm:$0xff]
  %v927 = vld [vmem:[%s2 + $0xef0] sm:$0xff]
  %v928 = vld [vmem:[%s2 + $0xef8] sm:$0xff]
  %v929 = vld [vmem:[%s2 + $0xf00] sm:$0xff]
  %v930 = vld [vmem:[%s2 + $0xf08] sm:$0xff]
  %v931 = vld [vmem:[%s2 + $0xf10] sm:$0xff]
  %v932 = vld [vmem:[%s2 + $0xf18] sm:$0xff]
  %v933 = vld [vmem:[%s2 + $0xf20] sm:$0xff]
  %v934 = vld [vmem:[%s2 + $0xf28] sm:$0xff]
  %v935 = vld [vmem:[%s2 + $0xf30] sm:$0xff]
  %v936 = vld [vmem:[%s2 + $0xf38] sm:$0xff]
  %v937 = vld [vmem:[%s2 + $0xf40] sm:$0xff]
  %v938 = vld [vmem:[%s2 + $0xf48] sm:$0xff]
  %v939 = vld [vmem:[%s2 + $0xf50] sm:$0xff]
  %v940 = vld [vmem:[%s2 + $0xf58] sm:$0xff]
  %v941 = vld [vmem:[%s2 + $0xf60] sm:$0xff]
  %v942 = vld [vmem:[%s2 + $0xf68] sm:$0xff]
  %v943 = vld [vmem:[%s2 + $0xf70] sm:$0xff]
  %v944 = vld [vmem:[%s2 + $0xf78] sm:$0xff]
  %v945 = vld [vmem:[%s2 + $0xf80] sm:$0xff]
  %v946 = vld [vmem:[%s2 + $0xf88] sm:$0xff]
  %v947 = vld [vmem:[%s2 + $0xf90] sm:$0xff]
  %v948 = vld [vmem:[%s2 + $0xf98] sm:$0xff]
  %v949 = vld [vmem:[%s2 + $0xfa0] sm:$0xff]
  %v950 = vld [vmem:[%s2 + $0xfa8] sm:$0xff]
  %v951 = vld [vmem:[%s2 + $0xfb0] sm:$0xff]
  %v952 = vld [vmem:[%s2 + $0xfb8] sm:$0xff]
  %v953 = vld [vmem:[%s2 + $0xfc0] sm:$0xff]
  %v954 = vld [vmem:[%s2 + $0xfc8] sm:$0xff]
  %v955 = vld [vmem:[%s2 + $0xfd0] sm:$0xff]
  %v956 = vld [vmem:[%s2 + $0xfd8] sm:$0xff]
  %v957 = vld [vmem:[%s2 + $0xfe0] sm:$0xff]
  %v958 = vld [vmem:[%s2 + $0xfe8] sm:$0xff]
  %v959 = vld [vmem:[%s2 + $0xff0] sm:$0xff]
  %v960 = vld [vmem:[%s2 + $0xff8] sm:$0xff]
  %v961 = vld [vmem:[%s2 + $0x1000] sm:$0xff]
  %v962 = vld [vmem:[%s2 + $0x1008] sm:$0xff]
  %v963 = vld [vmem:[%s2 + $0x1010] sm:$0xff]
  %v964 = vld [vmem:[%s2 + $0x1018] sm:$0xff]
  %v965 = vld [vmem:[%s2 + $0x1020] sm:$0xff]
  %v966 = vld [vmem:[%s2 + $0x1028] sm:$0xff]
  %v967 = vld [vmem:[%s2 + $0x1030] sm:$0xff]
  %v968 = vld [vmem:[%s2 + $0x1038] sm:$0xff]
  %v969 = vld [vmem:[%s2 + $0x1040] sm:$0xff]
  %v970 = vld [vmem:[%s2 + $0x1048] sm:$0xff]
  %v971 = vld [vmem:[%s2 + $0x1050] sm:$0xff]
  %v972 = vld [vmem:[%s2 + $0x1058] sm:$0xff]
  %v973 = vld [vmem:[%s2 + $0x1060] sm:$0xff]
  %v974 = vld [vmem:[%s2 + $0x1068] sm:$0xff]
  %v975 = vld [vmem:[%s2 + $0x1070] sm:$0xff]
  %v976 = vld [vmem:[%s2 + $0x1078] sm:$0xff]
  %v977 = vld [vmem:[%s2 + $0x1080] sm:$0xff]
  %v978 = vld [vmem:[%s2 + $0x1088] sm:$0xff]
  %v979 = vld [vmem:[%s2 + $0x1090] sm:$0xff]
  %v980 = vld [vmem:[%s2 + $0x1098] sm:$0xff]
  %v981 = vld [vmem:[%s2 + $0x10a0] sm:$0xff]
  %v982 = vld [vmem:[%s2 + $0x10a8] sm:$0xff]
  %v983 = vld [vmem:[%s2 + $0x10b0] sm:$0xff]
  %v984 = vld [vmem:[%s2 + $0x10b8] sm:$0xff]
  %v985 = vld [vmem:[%s2 + $0x10c0] sm:$0xff]
  %v986 = vld [vmem:[%s2 + $0x10c8] sm:$0xff]
  %v987 = vld [vmem:[%s2 + $0x10d0] sm:$0xff]
  %v988 = vld [vmem:[%s2 + $0x10d8] sm:$0xff]
  %v989 = vld [vmem:[%s2 + $0x10e0] sm:$0xff]
  %v990 = vld [vmem:[%s2 + $0x10e8] sm:$0xff]
  %v991 = vld [vmem:[%s2 + $0x10f0] sm:$0xff]
  %v992 = vld [vmem:[%s2 + $0x10f8] sm:$0xff]
  %v993 = vld [vmem:[%s2 + $0x1100] sm:$0xff]
  %v994 = vld [vmem:[%s2 + $0x1108] sm:$0xff]
  %v995 = vld [vmem:[%s2 + $0x1110] sm:$0xff]
  %v996 = vld [vmem:[%s2 + $0x1118] sm:$0xff]
  %v997 = vld [vmem:[%s2 + $0x1120] sm:$0xff]
  %v998 = vld [vmem:[%s2 + $0x1128] sm:$0xff]
  %v999 = vld [vmem:[%s2 + $0x1130] sm:$0xff]
  %v1000 = vld [vmem:[%s2 + $0x1138] sm:$0xff]
  %v1001 = vld [vmem:[%s2 + $0x1140] sm:$0xff]
  %v1002 = vld [vmem:[%s2 + $0x1148] sm:$0xff]
  %v1003 = vld [vmem:[%s2 + $0x1150] sm:$0xff]
  %v1004 = vld [vmem:[%s2 + $0x1158] sm:$0xff]
  %v1005 = vld [vmem:[%s2 + $0x1160] sm:$0xff]
  %v1006 = vld [vmem:[%s2 + $0x1168] sm:$0xff]
  %v1007 = vld [vmem:[%s2 + $0x1170] sm:$0xff]
  %v1008 = vld [vmem:[%s2 + $0x1178] sm:$0xff]
  %v1009 = vld [vmem:[%s2 + $0x1180] sm:$0xff]
  %v1010 = vld [vmem:[%s2 + $0x1188] sm:$0xff]
  %v1011 = vld [vmem:[%s2 + $0x1190] sm:$0xff]
  %v1012 = vld [vmem:[%s2 + $0x1198] sm:$0xff]
  %v1013 = vld [vmem:[%s2 + $0x11a0] sm:$0xff]
  %v1014 = vld [vmem:[%s2 + $0x11a8] sm:$0xff]
  %v1015 = vld [vmem:[%s2 + $0x11b0] sm:$0xff]
  %v1016 = vld [vmem:[%s2 + $0x11b8] sm:$0xff]
  %v1017 = vld [vmem:[%s2 + $0x11c0] sm:$0xff]
  %v1018 = vld [vmem:[%s2 + $0x11c8] sm:$0xff]
  %v1019 = vld [vmem:[%s2 + $0x11d0] sm:$0xff]
  %v1020 = vld [vmem:[%s2 + $0x11d8] sm:$0xff]
  %v1021 = vld [vmem:[%s2 + $0x11e0] sm:$0xff]
  %v1022 = vld [vmem:[%s2 + $0x11e8] sm:$0xff]
  %v1023 = vld [vmem:[%s2 + $0x11f0] sm:$0xff]
  %v1024 = vld [vmem:[%s2 + $0x11f8] sm:$0xff]
  %v1025 = vld [vmem:[%s3] sm:$0x3f]
  %v1027 = vlaneseq
  %v1028 = vshrl.u32 %v1027, 7
  %v1029 = vsub.s32 0, %v1028
  %v1030 = vrot.slane %v1025, %v1029
  %v1031 = vlaneseq
  %v1032 = vshrl.u32 %v1031, 7
  %v1033 = vsub.s32 1, %v1032
  %v1034 = vrot.slane %v1025, %v1033
  %v1035 = vlaneseq
  %v1036 = vshrl.u32 %v1035, 7
  %v1037 = vsub.s32 2, %v1036
  %v1038 = vrot.slane %v1025, %v1037
  %v1039 = vlaneseq
  %v1040 = vshrl.u32 %v1039, 7
  %v1041 = vsub.s32 3, %v1040
  %v1042 = vrot.slane %v1025, %v1041
  %v1043 = vlaneseq
  %v1044 = vshrl.u32 %v1043, 7
  %v1045 = vsub.s32 4, %v1044
  %v1046 = vrot.slane %v1025, %v1045
  %v1047 = vlaneseq
  %v1048 = vshrl.u32 %v1047, 7
  %v1049 = vsub.s32 5, %v1048
  %v1050 = vrot.slane %v1025, %v1049
  %v1633 = vunpack.c.l.b16 %v449
  %v1634 = vunpack.c.h.b16 %v449
  %v1635 = vunpack.c.l.b16 %v450
  %v1636 = vunpack.c.h.b16 %v450
  %v1637 = vunpack.c.l.b16 %v451
  %v1638 = vunpack.c.h.b16 %v451
  %v1639 = vunpack.c.l.b16 %v452
  %v1640 = vunpack.c.h.b16 %v452
  %v1641 = vunpack.c.l.b16 %v453
  %v1642 = vunpack.c.h.b16 %v453
  %v1643 = vunpack.c.l.b16 %v454
  %v1644 = vunpack.c.h.b16 %v454
  %v1645 = vunpack.c.l.b16 %v455
  %v1646 = vunpack.c.h.b16 %v455
  %v1647 = vunpack.c.l.b16 %v456
  %v1648 = vunpack.c.h.b16 %v456
  %v1649 = vunpack.c.l.b16 %v457
  %v1650 = vunpack.c.h.b16 %v457
  %v1651 = vunpack.c.l.b16 %v458
  %v1652 = vunpack.c.h.b16 %v458
  %v1653 = vunpack.c.l.b16 %v459
  %v1654 = vunpack.c.h.b16 %v459
  %v1655 = vunpack.c.l.b16 %v460
  %v1656 = vunpack.c.h.b16 %v460
  %v1657 = vunpack.c.l.b16 %v461
  %v1658 = vunpack.c.h.b16 %v461
  %v1659 = vunpack.c.l.b16 %v462
  %v1660 = vunpack.c.h.b16 %v462
  %v1661 = vunpack.c.l.b16 %v463
  %v1662 = vunpack.c.h.b16 %v463
  %v1663 = vunpack.c.l.b16 %v464
  %v1664 = vunpack.c.h.b16 %v464
  %v1665 = vunpack.c.l.b16 %v465
  %v1666 = vunpack.c.h.b16 %v465
  %v1667 = vunpack.c.l.b16 %v466
  %v1668 = vunpack.c.h.b16 %v466
  %v1669 = vunpack.c.l.b16 %v467
  %v1670 = vunpack.c.h.b16 %v467
  %v1671 = vunpack.c.l.b16 %v468
  %v1672 = vunpack.c.h.b16 %v468
  %v1673 = vunpack.c.l.b16 %v469
  %v1674 = vunpack.c.h.b16 %v469
  %v1675 = vunpack.c.l.b16 %v470
  %v1676 = vunpack.c.h.b16 %v470
  %v1677 = vunpack.c.l.b16 %v471
  %v1678 = vunpack.c.h.b16 %v471
  %v1679 = vunpack.c.l.b16 %v472
  %v1680 = vunpack.c.h.b16 %v472
  %v1681 = vunpack.c.l.b16 %v473
  %v1682 = vunpack.c.h.b16 %v473
  %v1683 = vunpack.c.l.b16 %v474
  %v1684 = vunpack.c.h.b16 %v474
  %v1685 = vunpack.c.l.b16 %v475
  %v1686 = vunpack.c.h.b16 %v475
  %v1687 = vunpack.c.l.b16 %v476
  %v1688 = vunpack.c.h.b16 %v476
  %v1689 = vunpack.c.l.b16 %v477
  %v1690 = vunpack.c.h.b16 %v477
  %v1691 = vunpack.c.l.b16 %v478
  %v1692 = vunpack.c.h.b16 %v478
  %v1693 = vunpack.c.l.b16 %v479
  %v1694 = vunpack.c.h.b16 %v479
  %v1695 = vunpack.c.l.b16 %v480
  %v1696 = vunpack.c.h.b16 %v480
  %v1697 = vunpack.c.l.b16 %v481
  %v1698 = vunpack.c.h.b16 %v481
  %v1699 = vunpack.c.l.b16 %v482
  %v1700 = vunpack.c.h.b16 %v482
  %v1701 = vunpack.c.l.b16 %v483
  %v1702 = vunpack.c.h.b16 %v483
  %v1703 = vunpack.c.l.b16 %v484
  %v1704 = vunpack.c.h.b16 %v484
  %v1705 = vunpack.c.l.b16 %v485
  %v1706 = vunpack.c.h.b16 %v485
  %v1707 = vunpack.c.l.b16 %v486
  %v1708 = vunpack.c.h.b16 %v486
  %v1709 = vunpack.c.l.b16 %v487
  %v1710 = vunpack.c.h.b16 %v487
  %v1711 = vunpack.c.l.b16 %v488
  %v1712 = vunpack.c.h.b16 %v488
  %v1713 = vunpack.c.l.b16 %v489
  %v1714 = vunpack.c.h.b16 %v489
  %v1715 = vunpack.c.l.b16 %v490
  %v1716 = vunpack.c.h.b16 %v490
  %v1717 = vunpack.c.l.b16 %v491
  %v1718 = vunpack.c.h.b16 %v491
  %v1719 = vunpack.c.l.b16 %v492
  %v1720 = vunpack.c.h.b16 %v492
  %v1721 = vunpack.c.l.b16 %v493
  %v1722 = vunpack.c.h.b16 %v493
  %v1723 = vunpack.c.l.b16 %v494
  %v1724 = vunpack.c.h.b16 %v494
  %v1725 = vunpack.c.l.b16 %v495
  %v1726 = vunpack.c.h.b16 %v495
  %v1727 = vunpack.c.l.b16 %v496
  %v1728 = vunpack.c.h.b16 %v496
  %v1729 = vunpack.c.l.b16 %v497
  %v1730 = vunpack.c.h.b16 %v497
  %v1731 = vunpack.c.l.b16 %v498
  %v1732 = vunpack.c.h.b16 %v498
  %v1733 = vunpack.c.l.b16 %v499
  %v1734 = vunpack.c.h.b16 %v499
  %v1735 = vunpack.c.l.b16 %v500
  %v1736 = vunpack.c.h.b16 %v500
  %v1737 = vunpack.c.l.b16 %v501
  %v1738 = vunpack.c.h.b16 %v501
  %v1739 = vunpack.c.l.b16 %v502
  %v1740 = vunpack.c.h.b16 %v502
  %v1741 = vunpack.c.l.b16 %v503
  %v1742 = vunpack.c.h.b16 %v503
  %v1743 = vunpack.c.l.b16 %v504
  %v1744 = vunpack.c.h.b16 %v504
  %v1745 = vunpack.c.l.b16 %v505
  %v1746 = vunpack.c.h.b16 %v505
  %v1747 = vunpack.c.l.b16 %v506
  %v1748 = vunpack.c.h.b16 %v506
  %v1749 = vunpack.c.l.b16 %v507
  %v1750 = vunpack.c.h.b16 %v507
  %v1751 = vunpack.c.l.b16 %v508
  %v1752 = vunpack.c.h.b16 %v508
  %v1753 = vunpack.c.l.b16 %v509
  %v1754 = vunpack.c.h.b16 %v509
  %v1755 = vunpack.c.l.b16 %v510
  %v1756 = vunpack.c.h.b16 %v510
  %v1757 = vunpack.c.l.b16 %v511
  %v1758 = vunpack.c.h.b16 %v511
  %v1759 = vunpack.c.l.b16 %v512
  %v1760 = vunpack.c.h.b16 %v512
  %v1761 = vunpack.c.l.b16 %v513
  %v1762 = vunpack.c.h.b16 %v513
  %v1763 = vunpack.c.l.b16 %v514
  %v1764 = vunpack.c.h.b16 %v514
  %v1765 = vunpack.c.l.b16 %v515
  %v1766 = vunpack.c.h.b16 %v515
  %v1767 = vunpack.c.l.b16 %v516
  %v1768 = vunpack.c.h.b16 %v516
  %v1769 = vunpack.c.l.b16 %v517
  %v1770 = vunpack.c.h.b16 %v517
  %v1771 = vunpack.c.l.b16 %v518
  %v1772 = vunpack.c.h.b16 %v518
  %v1773 = vunpack.c.l.b16 %v519
  %v1774 = vunpack.c.h.b16 %v519
  %v1775 = vunpack.c.l.b16 %v520
  %v1776 = vunpack.c.h.b16 %v520
  %v1777 = vunpack.c.l.b16 %v521
  %v1778 = vunpack.c.h.b16 %v521
  %v1779 = vunpack.c.l.b16 %v522
  %v1780 = vunpack.c.h.b16 %v522
  %v1781 = vunpack.c.l.b16 %v523
  %v1782 = vunpack.c.h.b16 %v523
  %v1783 = vunpack.c.l.b16 %v524
  %v1784 = vunpack.c.h.b16 %v524
  %v1785 = vunpack.c.l.b16 %v525
  %v1786 = vunpack.c.h.b16 %v525
  %v1787 = vunpack.c.l.b16 %v526
  %v1788 = vunpack.c.h.b16 %v526
  %v1789 = vunpack.c.l.b16 %v527
  %v1790 = vunpack.c.h.b16 %v527
  %v1791 = vunpack.c.l.b16 %v528
  %v1792 = vunpack.c.h.b16 %v528
  %v1793 = vunpack.c.l.b16 %v529
  %v1794 = vunpack.c.h.b16 %v529
  %v1795 = vunpack.c.l.b16 %v530
  %v1796 = vunpack.c.h.b16 %v530
  %v1797 = vunpack.c.l.b16 %v531
  %v1798 = vunpack.c.h.b16 %v531
  %v1799 = vunpack.c.l.b16 %v532
  %v1800 = vunpack.c.h.b16 %v532
  %v1801 = vunpack.c.l.b16 %v533
  %v1802 = vunpack.c.h.b16 %v533
  %v1803 = vunpack.c.l.b16 %v534
  %v1804 = vunpack.c.h.b16 %v534
  %v1805 = vunpack.c.l.b16 %v535
  %v1806 = vunpack.c.h.b16 %v535
  %v1807 = vunpack.c.l.b16 %v536
  %v1808 = vunpack.c.h.b16 %v536
  %v1809 = vunpack.c.l.b16 %v537
  %v1810 = vunpack.c.h.b16 %v537
  %v1811 = vunpack.c.l.b16 %v538
  %v1812 = vunpack.c.h.b16 %v538
  %v1813 = vunpack.c.l.b16 %v539
  %v1814 = vunpack.c.h.b16 %v539
  %v1815 = vunpack.c.l.b16 %v540
  %v1816 = vunpack.c.h.b16 %v540
  %v1817 = vunpack.c.l.b16 %v541
  %v1818 = vunpack.c.h.b16 %v541
  %v1819 = vunpack.c.l.b16 %v542
  %v1820 = vunpack.c.h.b16 %v542
  %v1821 = vunpack.c.l.b16 %v543
  %v1822 = vunpack.c.h.b16 %v543
  %v1823 = vunpack.c.l.b16 %v544
  %v1824 = vunpack.c.h.b16 %v544
  %v1825 = vunpack.c.l.b16 %v545
  %v1826 = vunpack.c.h.b16 %v545
  %v1827 = vunpack.c.l.b16 %v546
  %v1828 = vunpack.c.h.b16 %v546
  %v1829 = vunpack.c.l.b16 %v547
  %v1830 = vunpack.c.h.b16 %v547
  %v1831 = vunpack.c.l.b16 %v548
  %v1832 = vunpack.c.h.b16 %v548
  %v1833 = vunpack.c.l.b16 %v549
  %v1834 = vunpack.c.h.b16 %v549
  %v1835 = vunpack.c.l.b16 %v550
  %v1836 = vunpack.c.h.b16 %v550
  %v1837 = vunpack.c.l.b16 %v551
  %v1838 = vunpack.c.h.b16 %v551
  %v1839 = vunpack.c.l.b16 %v552
  %v1840 = vunpack.c.h.b16 %v552
  %v1841 = vunpack.c.l.b16 %v553
  %v1842 = vunpack.c.h.b16 %v553
  %v1843 = vunpack.c.l.b16 %v554
  %v1844 = vunpack.c.h.b16 %v554
  %v1845 = vunpack.c.l.b16 %v555
  %v1846 = vunpack.c.h.b16 %v555
  %v1847 = vunpack.c.l.b16 %v556
  %v1848 = vunpack.c.h.b16 %v556
  %v1849 = vunpack.c.l.b16 %v557
  %v1850 = vunpack.c.h.b16 %v557
  %v1851 = vunpack.c.l.b16 %v558
  %v1852 = vunpack.c.h.b16 %v558
  %v1853 = vunpack.c.l.b16 %v559
  %v1854 = vunpack.c.h.b16 %v559
  %v1855 = vunpack.c.l.b16 %v560
  %v1856 = vunpack.c.h.b16 %v560
  %v1857 = vunpack.c.l.b16 %v561
  %v1858 = vunpack.c.h.b16 %v561
  %v1859 = vunpack.c.l.b16 %v562
  %v1860 = vunpack.c.h.b16 %v562
  %v1861 = vunpack.c.l.b16 %v563
  %v1862 = vunpack.c.h.b16 %v563
  %v1863 = vunpack.c.l.b16 %v564
  %v1864 = vunpack.c.h.b16 %v564
  %v1865 = vunpack.c.l.b16 %v565
  %v1866 = vunpack.c.h.b16 %v565
  %v1867 = vunpack.c.l.b16 %v566
  %v1868 = vunpack.c.h.b16 %v566
  %v1869 = vunpack.c.l.b16 %v567
  %v1870 = vunpack.c.h.b16 %v567
  %v1871 = vunpack.c.l.b16 %v568
  %v1872 = vunpack.c.h.b16 %v568
  %v1873 = vunpack.c.l.b16 %v569
  %v1874 = vunpack.c.h.b16 %v569
  %v1875 = vunpack.c.l.b16 %v570
  %v1876 = vunpack.c.h.b16 %v570
  %v1877 = vunpack.c.l.b16 %v571
  %v1878 = vunpack.c.h.b16 %v571
  %v1879 = vunpack.c.l.b16 %v572
  %v1880 = vunpack.c.h.b16 %v572
  %v1881 = vunpack.c.l.b16 %v573
  %v1882 = vunpack.c.h.b16 %v573
  %v1883 = vunpack.c.l.b16 %v574
  %v1884 = vunpack.c.h.b16 %v574
  %v1885 = vunpack.c.l.b16 %v575
  %v1886 = vunpack.c.h.b16 %v575
  %v1887 = vunpack.c.l.b16 %v576
  %v1888 = vunpack.c.h.b16 %v576
  %v1889 = vunpack.c.l.b16 %v577
  %v1890 = vunpack.c.h.b16 %v577
  %v1891 = vunpack.c.l.b16 %v578
  %v1892 = vunpack.c.h.b16 %v578
  %v1893 = vunpack.c.l.b16 %v579
  %v1894 = vunpack.c.h.b16 %v579
  %v1895 = vunpack.c.l.b16 %v580
  %v1896 = vunpack.c.h.b16 %v580
  %v1897 = vunpack.c.l.b16 %v581
  %v1898 = vunpack.c.h.b16 %v581
  %v1899 = vunpack.c.l.b16 %v582
  %v1900 = vunpack.c.h.b16 %v582
  %v1901 = vunpack.c.l.b16 %v583
  %v1902 = vunpack.c.h.b16 %v583
  %v1903 = vunpack.c.l.b16 %v584
  %v1904 = vunpack.c.h.b16 %v584
  %v1905 = vunpack.c.l.b16 %v585
  %v1906 = vunpack.c.h.b16 %v585
  %v1907 = vunpack.c.l.b16 %v586
  %v1908 = vunpack.c.h.b16 %v586
  %v1909 = vunpack.c.l.b16 %v587
  %v1910 = vunpack.c.h.b16 %v587
  %v1911 = vunpack.c.l.b16 %v588
  %v1912 = vunpack.c.h.b16 %v588
  %v1913 = vunpack.c.l.b16 %v589
  %v1914 = vunpack.c.h.b16 %v589
  %v1915 = vunpack.c.l.b16 %v590
  %v1916 = vunpack.c.h.b16 %v590
  %v1917 = vunpack.c.l.b16 %v591
  %v1918 = vunpack.c.h.b16 %v591
  %v1919 = vunpack.c.l.b16 %v592
  %v1920 = vunpack.c.h.b16 %v592
  %v1921 = vunpack.c.l.b16 %v593
  %v1922 = vunpack.c.h.b16 %v593
  %v1923 = vunpack.c.l.b16 %v594
  %v1924 = vunpack.c.h.b16 %v594
  %v1925 = vunpack.c.l.b16 %v595
  %v1926 = vunpack.c.h.b16 %v595
  %v1927 = vunpack.c.l.b16 %v596
  %v1928 = vunpack.c.h.b16 %v596
  %v1929 = vunpack.c.l.b16 %v597
  %v1930 = vunpack.c.h.b16 %v597
  %v1931 = vunpack.c.l.b16 %v598
  %v1932 = vunpack.c.h.b16 %v598
  %v1933 = vunpack.c.l.b16 %v599
  %v1934 = vunpack.c.h.b16 %v599
  %v1935 = vunpack.c.l.b16 %v600
  %v1936 = vunpack.c.h.b16 %v600
  %v1937 = vunpack.c.l.b16 %v601
  %v1938 = vunpack.c.h.b16 %v601
  %v1939 = vunpack.c.l.b16 %v602
  %v1940 = vunpack.c.h.b16 %v602
  %v1941 = vunpack.c.l.b16 %v603
  %v1942 = vunpack.c.h.b16 %v603
  %v1943 = vunpack.c.l.b16 %v604
  %v1944 = vunpack.c.h.b16 %v604
  %v1945 = vunpack.c.l.b16 %v605
  %v1946 = vunpack.c.h.b16 %v605
  %v1947 = vunpack.c.l.b16 %v606
  %v1948 = vunpack.c.h.b16 %v606
  %v1949 = vunpack.c.l.b16 %v607
  %v1950 = vunpack.c.h.b16 %v607
  %v1951 = vunpack.c.l.b16 %v608
  %v1952 = vunpack.c.h.b16 %v608
  %v1953 = vunpack.c.l.b16 %v609
  %v1954 = vunpack.c.h.b16 %v609
  %v1955 = vunpack.c.l.b16 %v610
  %v1956 = vunpack.c.h.b16 %v610
  %v1957 = vunpack.c.l.b16 %v611
  %v1958 = vunpack.c.h.b16 %v611
  %v1959 = vunpack.c.l.b16 %v612
  %v1960 = vunpack.c.h.b16 %v612
  %v1961 = vunpack.c.l.b16 %v613
  %v1962 = vunpack.c.h.b16 %v613
  %v1963 = vunpack.c.l.b16 %v614
  %v1964 = vunpack.c.h.b16 %v614
  %v1965 = vunpack.c.l.b16 %v615
  %v1966 = vunpack.c.h.b16 %v615
  %v1967 = vunpack.c.l.b16 %v616
  %v1968 = vunpack.c.h.b16 %v616
  %v1969 = vunpack.c.l.b16 %v617
  %v1970 = vunpack.c.h.b16 %v617
  %v1971 = vunpack.c.l.b16 %v618
  %v1972 = vunpack.c.h.b16 %v618
  %v1973 = vunpack.c.l.b16 %v619
  %v1974 = vunpack.c.h.b16 %v619
  %v1975 = vunpack.c.l.b16 %v620
  %v1976 = vunpack.c.h.b16 %v620
  %v1977 = vunpack.c.l.b16 %v621
  %v1978 = vunpack.c.h.b16 %v621
  %v1979 = vunpack.c.l.b16 %v622
  %v1980 = vunpack.c.h.b16 %v622
  %v1981 = vunpack.c.l.b16 %v623
  %v1982 = vunpack.c.h.b16 %v623
  %v1983 = vunpack.c.l.b16 %v624
  %v1984 = vunpack.c.h.b16 %v624
  %v1985 = vunpack.c.l.b16 %v625
  %v1986 = vunpack.c.h.b16 %v625
  %v1987 = vunpack.c.l.b16 %v626
  %v1988 = vunpack.c.h.b16 %v626
  %v1989 = vunpack.c.l.b16 %v627
  %v1990 = vunpack.c.h.b16 %v627
  %v1991 = vunpack.c.l.b16 %v628
  %v1992 = vunpack.c.h.b16 %v628
  %v1993 = vunpack.c.l.b16 %v629
  %v1994 = vunpack.c.h.b16 %v629
  %v1995 = vunpack.c.l.b16 %v630
  %v1996 = vunpack.c.h.b16 %v630
  %v1997 = vunpack.c.l.b16 %v631
  %v1998 = vunpack.c.h.b16 %v631
  %v1999 = vunpack.c.l.b16 %v632
  %v2000 = vunpack.c.h.b16 %v632
  %v2001 = vunpack.c.l.b16 %v633
  %v2002 = vunpack.c.h.b16 %v633
  %v2003 = vunpack.c.l.b16 %v634
  %v2004 = vunpack.c.h.b16 %v634
  %v2005 = vunpack.c.l.b16 %v635
  %v2006 = vunpack.c.h.b16 %v635
  %v2007 = vunpack.c.l.b16 %v636
  %v2008 = vunpack.c.h.b16 %v636
  %v2009 = vunpack.c.l.b16 %v637
  %v2010 = vunpack.c.h.b16 %v637
  %v2011 = vunpack.c.l.b16 %v638
  %v2012 = vunpack.c.h.b16 %v638
  %v2013 = vunpack.c.l.b16 %v639
  %v2014 = vunpack.c.h.b16 %v639
  %v2015 = vunpack.c.l.b16 %v640
  %v2016 = vunpack.c.h.b16 %v640
  %v2017 = vunpack.c.l.b16 %v641
  %v2018 = vunpack.c.h.b16 %v641
  %v2019 = vunpack.c.l.b16 %v642
  %v2020 = vunpack.c.h.b16 %v642
  %v2021 = vunpack.c.l.b16 %v643
  %v2022 = vunpack.c.h.b16 %v643
  %v2023 = vunpack.c.l.b16 %v644
  %v2024 = vunpack.c.h.b16 %v644
  %v2025 = vunpack.c.l.b16 %v645
  %v2026 = vunpack.c.h.b16 %v645
  %v2027 = vunpack.c.l.b16 %v646
  %v2028 = vunpack.c.h.b16 %v646
  %v2029 = vunpack.c.l.b16 %v647
  %v2030 = vunpack.c.h.b16 %v647
  %v2031 = vunpack.c.l.b16 %v648
  %v2032 = vunpack.c.h.b16 %v648
  %v2033 = vunpack.c.l.b16 %v649
  %v2034 = vunpack.c.h.b16 %v649
  %v2035 = vunpack.c.l.b16 %v650
  %v2036 = vunpack.c.h.b16 %v650
  %v2037 = vunpack.c.l.b16 %v651
  %v2038 = vunpack.c.h.b16 %v651
  %v2039 = vunpack.c.l.b16 %v652
  %v2040 = vunpack.c.h.b16 %v652
  %v2041 = vunpack.c.l.b16 %v653
  %v2042 = vunpack.c.h.b16 %v653
  %v2043 = vunpack.c.l.b16 %v654
  %v2044 = vunpack.c.h.b16 %v654
  %v2045 = vunpack.c.l.b16 %v655
  %v2046 = vunpack.c.h.b16 %v655
  %v2047 = vunpack.c.l.b16 %v656
  %v2048 = vunpack.c.h.b16 %v656
  %v2049 = vunpack.c.l.b16 %v657
  %v2050 = vunpack.c.h.b16 %v657
  %v2051 = vunpack.c.l.b16 %v658
  %v2052 = vunpack.c.h.b16 %v658
  %v2053 = vunpack.c.l.b16 %v659
  %v2054 = vunpack.c.h.b16 %v659
  %v2055 = vunpack.c.l.b16 %v660
  %v2056 = vunpack.c.h.b16 %v660
  %v2057 = vunpack.c.l.b16 %v661
  %v2058 = vunpack.c.h.b16 %v661
  %v2059 = vunpack.c.l.b16 %v662
  %v2060 = vunpack.c.h.b16 %v662
  %v2061 = vunpack.c.l.b16 %v663
  %v2062 = vunpack.c.h.b16 %v663
  %v2063 = vunpack.c.l.b16 %v664
  %v2064 = vunpack.c.h.b16 %v664
  %v2065 = vunpack.c.l.b16 %v665
  %v2066 = vunpack.c.h.b16 %v665
  %v2067 = vunpack.c.l.b16 %v666
  %v2068 = vunpack.c.h.b16 %v666
  %v2069 = vunpack.c.l.b16 %v667
  %v2070 = vunpack.c.h.b16 %v667
  %v2071 = vunpack.c.l.b16 %v668
  %v2072 = vunpack.c.h.b16 %v668
  %v2073 = vunpack.c.l.b16 %v669
  %v2074 = vunpack.c.h.b16 %v669
  %v2075 = vunpack.c.l.b16 %v670
  %v2076 = vunpack.c.h.b16 %v670
  %v2077 = vunpack.c.l.b16 %v671
  %v2078 = vunpack.c.h.b16 %v671
  %v2079 = vunpack.c.l.b16 %v672
  %v2080 = vunpack.c.h.b16 %v672
  %v2081 = vunpack.c.l.b16 %v673
  %v2082 = vunpack.c.h.b16 %v673
  %v2083 = vunpack.c.l.b16 %v674
  %v2084 = vunpack.c.h.b16 %v674
  %v2085 = vunpack.c.l.b16 %v675
  %v2086 = vunpack.c.h.b16 %v675
  %v2087 = vunpack.c.l.b16 %v676
  %v2088 = vunpack.c.h.b16 %v676
  %v2089 = vunpack.c.l.b16 %v677
  %v2090 = vunpack.c.h.b16 %v677
  %v2091 = vunpack.c.l.b16 %v678
  %v2092 = vunpack.c.h.b16 %v678
  %v2093 = vunpack.c.l.b16 %v679
  %v2094 = vunpack.c.h.b16 %v679
  %v2095 = vunpack.c.l.b16 %v680
  %v2096 = vunpack.c.h.b16 %v680
  %v2097 = vunpack.c.l.b16 %v681
  %v2098 = vunpack.c.h.b16 %v681
  %v2099 = vunpack.c.l.b16 %v682
  %v2100 = vunpack.c.h.b16 %v682
  %v2101 = vunpack.c.l.b16 %v683
  %v2102 = vunpack.c.h.b16 %v683
  %v2103 = vunpack.c.l.b16 %v684
  %v2104 = vunpack.c.h.b16 %v684
  %v2105 = vunpack.c.l.b16 %v685
  %v2106 = vunpack.c.h.b16 %v685
  %v2107 = vunpack.c.l.b16 %v686
  %v2108 = vunpack.c.h.b16 %v686
  %v2109 = vunpack.c.l.b16 %v687
  %v2110 = vunpack.c.h.b16 %v687
  %v2111 = vunpack.c.l.b16 %v688
  %v2112 = vunpack.c.h.b16 %v688
  %v2113 = vunpack.c.l.b16 %v689
  %v2114 = vunpack.c.h.b16 %v689
  %v2115 = vunpack.c.l.b16 %v690
  %v2116 = vunpack.c.h.b16 %v690
  %v2117 = vunpack.c.l.b16 %v691
  %v2118 = vunpack.c.h.b16 %v691
  %v2119 = vunpack.c.l.b16 %v692
  %v2120 = vunpack.c.h.b16 %v692
  %v2121 = vunpack.c.l.b16 %v693
  %v2122 = vunpack.c.h.b16 %v693
  %v2123 = vunpack.c.l.b16 %v694
  %v2124 = vunpack.c.h.b16 %v694
  %v2125 = vunpack.c.l.b16 %v695
  %v2126 = vunpack.c.h.b16 %v695
  %v2127 = vunpack.c.l.b16 %v696
  %v2128 = vunpack.c.h.b16 %v696
  %v2129 = vunpack.c.l.b16 %v697
  %v2130 = vunpack.c.h.b16 %v697
  %v2131 = vunpack.c.l.b16 %v698
  %v2132 = vunpack.c.h.b16 %v698
  %v2133 = vunpack.c.l.b16 %v699
  %v2134 = vunpack.c.h.b16 %v699
  %v2135 = vunpack.c.l.b16 %v700
  %v2136 = vunpack.c.h.b16 %v700
  %v2137 = vunpack.c.l.b16 %v701
  %v2138 = vunpack.c.h.b16 %v701
  %v2139 = vunpack.c.l.b16 %v702
  %v2140 = vunpack.c.h.b16 %v702
  %v2141 = vunpack.c.l.b16 %v703
  %v2142 = vunpack.c.h.b16 %v703
  %v2143 = vunpack.c.l.b16 %v704
  %v2144 = vunpack.c.h.b16 %v704
  %v2145 = vunpack.c.l.b16 %v705
  %v2146 = vunpack.c.h.b16 %v705
  %v2147 = vunpack.c.l.b16 %v706
  %v2148 = vunpack.c.h.b16 %v706
  %v2149 = vunpack.c.l.b16 %v707
  %v2150 = vunpack.c.h.b16 %v707
  %v2151 = vunpack.c.l.b16 %v708
  %v2152 = vunpack.c.h.b16 %v708
  %v2153 = vunpack.c.l.b16 %v709
  %v2154 = vunpack.c.h.b16 %v709
  %v2155 = vunpack.c.l.b16 %v710
  %v2156 = vunpack.c.h.b16 %v710
  %v2157 = vunpack.c.l.b16 %v711
  %v2158 = vunpack.c.h.b16 %v711
  %v2159 = vunpack.c.l.b16 %v712
  %v2160 = vunpack.c.h.b16 %v712
  %v2161 = vunpack.c.l.b16 %v713
  %v2162 = vunpack.c.h.b16 %v713
  %v2163 = vunpack.c.l.b16 %v714
  %v2164 = vunpack.c.h.b16 %v714
  %v2165 = vunpack.c.l.b16 %v715
  %v2166 = vunpack.c.h.b16 %v715
  %v2167 = vunpack.c.l.b16 %v716
  %v2168 = vunpack.c.h.b16 %v716
  %v2169 = vunpack.c.l.b16 %v717
  %v2170 = vunpack.c.h.b16 %v717
  %v2171 = vunpack.c.l.b16 %v718
  %v2172 = vunpack.c.h.b16 %v718
  %v2173 = vunpack.c.l.b16 %v719
  %v2174 = vunpack.c.h.b16 %v719
  %v2175 = vunpack.c.l.b16 %v720
  %v2176 = vunpack.c.h.b16 %v720
  %v2177 = vunpack.c.l.b16 %v721
  %v2178 = vunpack.c.h.b16 %v721
  %v2179 = vunpack.c.l.b16 %v722
  %v2180 = vunpack.c.h.b16 %v722
  %v2181 = vunpack.c.l.b16 %v723
  %v2182 = vunpack.c.h.b16 %v723
  %v2183 = vunpack.c.l.b16 %v724
  %v2184 = vunpack.c.h.b16 %v724
  %v2185 = vunpack.c.l.b16 %v725
  %v2186 = vunpack.c.h.b16 %v725
  %v2187 = vunpack.c.l.b16 %v726
  %v2188 = vunpack.c.h.b16 %v726
  %v2189 = vunpack.c.l.b16 %v727
  %v2190 = vunpack.c.h.b16 %v727
  %v2191 = vunpack.c.l.b16 %v728
  %v2192 = vunpack.c.h.b16 %v728
  %v2193 = vunpack.c.l.b16 %v729
  %v2194 = vunpack.c.h.b16 %v729
  %v2195 = vunpack.c.l.b16 %v730
  %v2196 = vunpack.c.h.b16 %v730
  %v2197 = vunpack.c.l.b16 %v731
  %v2198 = vunpack.c.h.b16 %v731
  %v2199 = vunpack.c.l.b16 %v732
  %v2200 = vunpack.c.h.b16 %v732
  %v2201 = vunpack.c.l.b16 %v733
  %v2202 = vunpack.c.h.b16 %v733
  %v2203 = vunpack.c.l.b16 %v734
  %v2204 = vunpack.c.h.b16 %v734
  %v2205 = vunpack.c.l.b16 %v735
  %v2206 = vunpack.c.h.b16 %v735
  %v2207 = vunpack.c.l.b16 %v736
  %v2208 = vunpack.c.h.b16 %v736
  %v2209 = vunpack.c.l.b16 %v737
  %v2210 = vunpack.c.h.b16 %v737
  %v2211 = vunpack.c.l.b16 %v738
  %v2212 = vunpack.c.h.b16 %v738
  %v2213 = vunpack.c.l.b16 %v739
  %v2214 = vunpack.c.h.b16 %v739
  %v2215 = vunpack.c.l.b16 %v740
  %v2216 = vunpack.c.h.b16 %v740
  %v2217 = vunpack.c.l.b16 %v741
  %v2218 = vunpack.c.h.b16 %v741
  %v2219 = vunpack.c.l.b16 %v742
  %v2220 = vunpack.c.h.b16 %v742
  %v2221 = vunpack.c.l.b16 %v743
  %v2222 = vunpack.c.h.b16 %v743
  %v2223 = vunpack.c.l.b16 %v744
  %v2224 = vunpack.c.h.b16 %v744
  %v2225 = vunpack.c.l.b16 %v745
  %v2226 = vunpack.c.h.b16 %v745
  %v2227 = vunpack.c.l.b16 %v746
  %v2228 = vunpack.c.h.b16 %v746
  %v2229 = vunpack.c.l.b16 %v747
  %v2230 = vunpack.c.h.b16 %v747
  %v2231 = vunpack.c.l.b16 %v748
  %v2232 = vunpack.c.h.b16 %v748
  %v2233 = vunpack.c.l.b16 %v749
  %v2234 = vunpack.c.h.b16 %v749
  %v2235 = vunpack.c.l.b16 %v750
  %v2236 = vunpack.c.h.b16 %v750
  %v2237 = vunpack.c.l.b16 %v751
  %v2238 = vunpack.c.h.b16 %v751
  %v2239 = vunpack.c.l.b16 %v752
  %v2240 = vunpack.c.h.b16 %v752
  %v2241 = vunpack.c.l.b16 %v753
  %v2242 = vunpack.c.h.b16 %v753
  %v2243 = vunpack.c.l.b16 %v754
  %v2244 = vunpack.c.h.b16 %v754
  %v2245 = vunpack.c.l.b16 %v755
  %v2246 = vunpack.c.h.b16 %v755
  %v2247 = vunpack.c.l.b16 %v756
  %v2248 = vunpack.c.h.b16 %v756
  %v2249 = vunpack.c.l.b16 %v757
  %v2250 = vunpack.c.h.b16 %v757
  %v2251 = vunpack.c.l.b16 %v758
  %v2252 = vunpack.c.h.b16 %v758
  %v2253 = vunpack.c.l.b16 %v759
  %v2254 = vunpack.c.h.b16 %v759
  %v2255 = vunpack.c.l.b16 %v760
  %v2256 = vunpack.c.h.b16 %v760
  %v2257 = vunpack.c.l.b16 %v761
  %v2258 = vunpack.c.h.b16 %v761
  %v2259 = vunpack.c.l.b16 %v762
  %v2260 = vunpack.c.h.b16 %v762
  %v2261 = vunpack.c.l.b16 %v763
  %v2262 = vunpack.c.h.b16 %v763
  %v2263 = vunpack.c.l.b16 %v764
  %v2264 = vunpack.c.h.b16 %v764
  %v2265 = vunpack.c.l.b16 %v765
  %v2266 = vunpack.c.h.b16 %v765
  %v2267 = vunpack.c.l.b16 %v766
  %v2268 = vunpack.c.h.b16 %v766
  %v2269 = vunpack.c.l.b16 %v767
  %v2270 = vunpack.c.h.b16 %v767
  %v2271 = vunpack.c.l.b16 %v768
  %v2272 = vunpack.c.h.b16 %v768
  %v2273 = vunpack.c.l.b16 %v769
  %v2274 = vunpack.c.h.b16 %v769
  %v2275 = vunpack.c.l.b16 %v770
  %v2276 = vunpack.c.h.b16 %v770
  %v2277 = vunpack.c.l.b16 %v771
  %v2278 = vunpack.c.h.b16 %v771
  %v2279 = vunpack.c.l.b16 %v772
  %v2280 = vunpack.c.h.b16 %v772
  %v2281 = vunpack.c.l.b16 %v773
  %v2282 = vunpack.c.h.b16 %v773
  %v2283 = vunpack.c.l.b16 %v774
  %v2284 = vunpack.c.h.b16 %v774
  %v2285 = vunpack.c.l.b16 %v775
  %v2286 = vunpack.c.h.b16 %v775
  %v2287 = vunpack.c.l.b16 %v776
  %v2288 = vunpack.c.h.b16 %v776
  %v2289 = vunpack.c.l.b16 %v777
  %v2290 = vunpack.c.h.b16 %v777
  %v2291 = vunpack.c.l.b16 %v778
  %v2292 = vunpack.c.h.b16 %v778
  %v2293 = vunpack.c.l.b16 %v779
  %v2294 = vunpack.c.h.b16 %v779
  %v2295 = vunpack.c.l.b16 %v780
  %v2296 = vunpack.c.h.b16 %v780
  %v2297 = vunpack.c.l.b16 %v781
  %v2298 = vunpack.c.h.b16 %v781
  %v2299 = vunpack.c.l.b16 %v782
  %v2300 = vunpack.c.h.b16 %v782
  %v2301 = vunpack.c.l.b16 %v783
  %v2302 = vunpack.c.h.b16 %v783
  %v2303 = vunpack.c.l.b16 %v784
  %v2304 = vunpack.c.h.b16 %v784
  %v2305 = vunpack.c.l.b16 %v785
  %v2306 = vunpack.c.h.b16 %v785
  %v2307 = vunpack.c.l.b16 %v786
  %v2308 = vunpack.c.h.b16 %v786
  %v2309 = vunpack.c.l.b16 %v787
  %v2310 = vunpack.c.h.b16 %v787
  %v2311 = vunpack.c.l.b16 %v788
  %v2312 = vunpack.c.h.b16 %v788
  %v2313 = vunpack.c.l.b16 %v789
  %v2314 = vunpack.c.h.b16 %v789
  %v2315 = vunpack.c.l.b16 %v790
  %v2316 = vunpack.c.h.b16 %v790
  %v2317 = vunpack.c.l.b16 %v791
  %v2318 = vunpack.c.h.b16 %v791
  %v2319 = vunpack.c.l.b16 %v792
  %v2320 = vunpack.c.h.b16 %v792
  %v2321 = vunpack.c.l.b16 %v793
  %v2322 = vunpack.c.h.b16 %v793
  %v2323 = vunpack.c.l.b16 %v794
  %v2324 = vunpack.c.h.b16 %v794
  %v2325 = vunpack.c.l.b16 %v795
  %v2326 = vunpack.c.h.b16 %v795
  %v2327 = vunpack.c.l.b16 %v796
  %v2328 = vunpack.c.h.b16 %v796
  %v2329 = vunpack.c.l.b16 %v797
  %v2330 = vunpack.c.h.b16 %v797
  %v2331 = vunpack.c.l.b16 %v798
  %v2332 = vunpack.c.h.b16 %v798
  %v2333 = vunpack.c.l.b16 %v799
  %v2334 = vunpack.c.h.b16 %v799
  %v2335 = vunpack.c.l.b16 %v800
  %v2336 = vunpack.c.h.b16 %v800
  %v2337 = vunpack.c.l.b16 %v801
  %v2338 = vunpack.c.h.b16 %v801
  %v2339 = vunpack.c.l.b16 %v802
  %v2340 = vunpack.c.h.b16 %v802
  %v2341 = vunpack.c.l.b16 %v803
  %v2342 = vunpack.c.h.b16 %v803
  %v2343 = vunpack.c.l.b16 %v804
  %v2344 = vunpack.c.h.b16 %v804
  %v2345 = vunpack.c.l.b16 %v805
  %v2346 = vunpack.c.h.b16 %v805
  %v2347 = vunpack.c.l.b16 %v806
  %v2348 = vunpack.c.h.b16 %v806
  %v2349 = vunpack.c.l.b16 %v807
  %v2350 = vunpack.c.h.b16 %v807
  %v2351 = vunpack.c.l.b16 %v808
  %v2352 = vunpack.c.h.b16 %v808
  %v2353 = vunpack.c.l.b16 %v809
  %v2354 = vunpack.c.h.b16 %v809
  %v2355 = vunpack.c.l.b16 %v810
  %v2356 = vunpack.c.h.b16 %v810
  %v2357 = vunpack.c.l.b16 %v811
  %v2358 = vunpack.c.h.b16 %v811
  %v2359 = vunpack.c.l.b16 %v812
  %v2360 = vunpack.c.h.b16 %v812
  %v2361 = vunpack.c.l.b16 %v813
  %v2362 = vunpack.c.h.b16 %v813
  %v2363 = vunpack.c.l.b16 %v814
  %v2364 = vunpack.c.h.b16 %v814
  %v2365 = vunpack.c.l.b16 %v815
  %v2366 = vunpack.c.h.b16 %v815
  %v2367 = vunpack.c.l.b16 %v816
  %v2368 = vunpack.c.h.b16 %v816
  %v2369 = vunpack.c.l.b16 %v817
  %v2370 = vunpack.c.h.b16 %v817
  %v2371 = vunpack.c.l.b16 %v818
  %v2372 = vunpack.c.h.b16 %v818
  %v2373 = vunpack.c.l.b16 %v819
  %v2374 = vunpack.c.h.b16 %v819
  %v2375 = vunpack.c.l.b16 %v820
  %v2376 = vunpack.c.h.b16 %v820
  %v2377 = vunpack.c.l.b16 %v821
  %v2378 = vunpack.c.h.b16 %v821
  %v2379 = vunpack.c.l.b16 %v822
  %v2380 = vunpack.c.h.b16 %v822
  %v2381 = vunpack.c.l.b16 %v823
  %v2382 = vunpack.c.h.b16 %v823
  %v2383 = vunpack.c.l.b16 %v824
  %v2384 = vunpack.c.h.b16 %v824
  %v2385 = vunpack.c.l.b16 %v825
  %v2386 = vunpack.c.h.b16 %v825
  %v2387 = vunpack.c.l.b16 %v826
  %v2388 = vunpack.c.h.b16 %v826
  %v2389 = vunpack.c.l.b16 %v827
  %v2390 = vunpack.c.h.b16 %v827
  %v2391 = vunpack.c.l.b16 %v828
  %v2392 = vunpack.c.h.b16 %v828
  %v2393 = vunpack.c.l.b16 %v829
  %v2394 = vunpack.c.h.b16 %v829
  %v2395 = vunpack.c.l.b16 %v830
  %v2396 = vunpack.c.h.b16 %v830
  %v2397 = vunpack.c.l.b16 %v831
  %v2398 = vunpack.c.h.b16 %v831
  %v2399 = vunpack.c.l.b16 %v832
  %v2400 = vunpack.c.h.b16 %v832
  %v2401 = vunpack.c.l.b16 %v833
  %v2402 = vunpack.c.h.b16 %v833
  %v2403 = vunpack.c.l.b16 %v834
  %v2404 = vunpack.c.h.b16 %v834
  %v2405 = vunpack.c.l.b16 %v835
  %v2406 = vunpack.c.h.b16 %v835
  %v2407 = vunpack.c.l.b16 %v836
  %v2408 = vunpack.c.h.b16 %v836
  %v2409 = vunpack.c.l.b16 %v837
  %v2410 = vunpack.c.h.b16 %v837
  %v2411 = vunpack.c.l.b16 %v838
  %v2412 = vunpack.c.h.b16 %v838
  %v2413 = vunpack.c.l.b16 %v839
  %v2414 = vunpack.c.h.b16 %v839
  %v2415 = vunpack.c.l.b16 %v840
  %v2416 = vunpack.c.h.b16 %v840
  %v2417 = vunpack.c.l.b16 %v841
  %v2418 = vunpack.c.h.b16 %v841
  %v2419 = vunpack.c.l.b16 %v842
  %v2420 = vunpack.c.h.b16 %v842
  %v2421 = vunpack.c.l.b16 %v843
  %v2422 = vunpack.c.h.b16 %v843
  %v2423 = vunpack.c.l.b16 %v844
  %v2424 = vunpack.c.h.b16 %v844
  %v2425 = vunpack.c.l.b16 %v845
  %v2426 = vunpack.c.h.b16 %v845
  %v2427 = vunpack.c.l.b16 %v846
  %v2428 = vunpack.c.h.b16 %v846
  %v2429 = vunpack.c.l.b16 %v847
  %v2430 = vunpack.c.h.b16 %v847
  %v2431 = vunpack.c.l.b16 %v848
  %v2432 = vunpack.c.h.b16 %v848
  %v2433 = vunpack.c.l.b16 %v849
  %v2434 = vunpack.c.h.b16 %v849
  %v2435 = vunpack.c.l.b16 %v850
  %v2436 = vunpack.c.h.b16 %v850
  %v2437 = vunpack.c.l.b16 %v851
  %v2438 = vunpack.c.h.b16 %v851
  %v2439 = vunpack.c.l.b16 %v852
  %v2440 = vunpack.c.h.b16 %v852
  %v2441 = vunpack.c.l.b16 %v853
  %v2442 = vunpack.c.h.b16 %v853
  %v2443 = vunpack.c.l.b16 %v854
  %v2444 = vunpack.c.h.b16 %v854
  %v2445 = vunpack.c.l.b16 %v855
  %v2446 = vunpack.c.h.b16 %v855
  %v2447 = vunpack.c.l.b16 %v856
  %v2448 = vunpack.c.h.b16 %v856
  %v2449 = vunpack.c.l.b16 %v857
  %v2450 = vunpack.c.h.b16 %v857
  %v2451 = vunpack.c.l.b16 %v858
  %v2452 = vunpack.c.h.b16 %v858
  %v2453 = vunpack.c.l.b16 %v859
  %v2454 = vunpack.c.h.b16 %v859
  %v2455 = vunpack.c.l.b16 %v860
  %v2456 = vunpack.c.h.b16 %v860
  %v2457 = vunpack.c.l.b16 %v861
  %v2458 = vunpack.c.h.b16 %v861
  %v2459 = vunpack.c.l.b16 %v862
  %v2460 = vunpack.c.h.b16 %v862
  %v2461 = vunpack.c.l.b16 %v863
  %v2462 = vunpack.c.h.b16 %v863
  %v2463 = vunpack.c.l.b16 %v864
  %v2464 = vunpack.c.h.b16 %v864
  %v2465 = vunpack.c.l.b16 %v865
  %v2466 = vunpack.c.h.b16 %v865
  %v2467 = vunpack.c.l.b16 %v866
  %v2468 = vunpack.c.h.b16 %v866
  %v2469 = vunpack.c.l.b16 %v867
  %v2470 = vunpack.c.h.b16 %v867
  %v2471 = vunpack.c.l.b16 %v868
  %v2472 = vunpack.c.h.b16 %v868
  %v2473 = vunpack.c.l.b16 %v869
  %v2474 = vunpack.c.h.b16 %v869
  %v2475 = vunpack.c.l.b16 %v870
  %v2476 = vunpack.c.h.b16 %v870
  %v2477 = vunpack.c.l.b16 %v871
  %v2478 = vunpack.c.h.b16 %v871
  %v2479 = vunpack.c.l.b16 %v872
  %v2480 = vunpack.c.h.b16 %v872
  %v2481 = vunpack.c.l.b16 %v873
  %v2482 = vunpack.c.h.b16 %v873
  %v2483 = vunpack.c.l.b16 %v874
  %v2484 = vunpack.c.h.b16 %v874
  %v2485 = vunpack.c.l.b16 %v875
  %v2486 = vunpack.c.h.b16 %v875
  %v2487 = vunpack.c.l.b16 %v876
  %v2488 = vunpack.c.h.b16 %v876
  %v2489 = vunpack.c.l.b16 %v877
  %v2490 = vunpack.c.h.b16 %v877
  %v2491 = vunpack.c.l.b16 %v878
  %v2492 = vunpack.c.h.b16 %v878
  %v2493 = vunpack.c.l.b16 %v879
  %v2494 = vunpack.c.h.b16 %v879
  %v2495 = vunpack.c.l.b16 %v880
  %v2496 = vunpack.c.h.b16 %v880
  %v2497 = vunpack.c.l.b16 %v881
  %v2498 = vunpack.c.h.b16 %v881
  %v2499 = vunpack.c.l.b16 %v882
  %v2500 = vunpack.c.h.b16 %v882
  %v2501 = vunpack.c.l.b16 %v883
  %v2502 = vunpack.c.h.b16 %v883
  %v2503 = vunpack.c.l.b16 %v884
  %v2504 = vunpack.c.h.b16 %v884
  %v2505 = vunpack.c.l.b16 %v885
  %v2506 = vunpack.c.h.b16 %v885
  %v2507 = vunpack.c.l.b16 %v886
  %v2508 = vunpack.c.h.b16 %v886
  %v2509 = vunpack.c.l.b16 %v887
  %v2510 = vunpack.c.h.b16 %v887
  %v2511 = vunpack.c.l.b16 %v888
  %v2512 = vunpack.c.h.b16 %v888
  %v2513 = vunpack.c.l.b16 %v889
  %v2514 = vunpack.c.h.b16 %v889
  %v2515 = vunpack.c.l.b16 %v890
  %v2516 = vunpack.c.h.b16 %v890
  %v2517 = vunpack.c.l.b16 %v891
  %v2518 = vunpack.c.h.b16 %v891
  %v2519 = vunpack.c.l.b16 %v892
  %v2520 = vunpack.c.h.b16 %v892
  %v2521 = vunpack.c.l.b16 %v893
  %v2522 = vunpack.c.h.b16 %v893
  %v2523 = vunpack.c.l.b16 %v894
  %v2524 = vunpack.c.h.b16 %v894
  %v2525 = vunpack.c.l.b16 %v895
  %v2526 = vunpack.c.h.b16 %v895
  %v2527 = vunpack.c.l.b16 %v896
  %v2528 = vunpack.c.h.b16 %v896
  %v2529 = vunpack.c.l.b16 %v897
  %v2530 = vunpack.c.h.b16 %v897
  %v2531 = vunpack.c.l.b16 %v898
  %v2532 = vunpack.c.h.b16 %v898
  %v2533 = vunpack.c.l.b16 %v899
  %v2534 = vunpack.c.h.b16 %v899
  %v2535 = vunpack.c.l.b16 %v900
  %v2536 = vunpack.c.h.b16 %v900
  %v2537 = vunpack.c.l.b16 %v901
  %v2538 = vunpack.c.h.b16 %v901
  %v2539 = vunpack.c.l.b16 %v902
  %v2540 = vunpack.c.h.b16 %v902
  %v2541 = vunpack.c.l.b16 %v903
  %v2542 = vunpack.c.h.b16 %v903
  %v2543 = vunpack.c.l.b16 %v904
  %v2544 = vunpack.c.h.b16 %v904
  %v2545 = vunpack.c.l.b16 %v905
  %v2546 = vunpack.c.h.b16 %v905
  %v2547 = vunpack.c.l.b16 %v906
  %v2548 = vunpack.c.h.b16 %v906
  %v2549 = vunpack.c.l.b16 %v907
  %v2550 = vunpack.c.h.b16 %v907
  %v2551 = vunpack.c.l.b16 %v908
  %v2552 = vunpack.c.h.b16 %v908
  %v2553 = vunpack.c.l.b16 %v909
  %v2554 = vunpack.c.h.b16 %v909
  %v2555 = vunpack.c.l.b16 %v910
  %v2556 = vunpack.c.h.b16 %v910
  %v2557 = vunpack.c.l.b16 %v911
  %v2558 = vunpack.c.h.b16 %v911
  %v2559 = vunpack.c.l.b16 %v912
  %v2560 = vunpack.c.h.b16 %v912
  %v2561 = vunpack.c.l.b16 %v913
  %v2562 = vunpack.c.h.b16 %v913
  %v2563 = vunpack.c.l.b16 %v914
  %v2564 = vunpack.c.h.b16 %v914
  %v2565 = vunpack.c.l.b16 %v915
  %v2566 = vunpack.c.h.b16 %v915
  %v2567 = vunpack.c.l.b16 %v916
  %v2568 = vunpack.c.h.b16 %v916
  %v2569 = vunpack.c.l.b16 %v917
  %v2570 = vunpack.c.h.b16 %v917
  %v2571 = vunpack.c.l.b16 %v918
  %v2572 = vunpack.c.h.b16 %v918
  %v2573 = vunpack.c.l.b16 %v919
  %v2574 = vunpack.c.h.b16 %v919
  %v2575 = vunpack.c.l.b16 %v920
  %v2576 = vunpack.c.h.b16 %v920
  %v2577 = vunpack.c.l.b16 %v921
  %v2578 = vunpack.c.h.b16 %v921
  %v2579 = vunpack.c.l.b16 %v922
  %v2580 = vunpack.c.h.b16 %v922
  %v2581 = vunpack.c.l.b16 %v923
  %v2582 = vunpack.c.h.b16 %v923
  %v2583 = vunpack.c.l.b16 %v924
  %v2584 = vunpack.c.h.b16 %v924
  %v2585 = vunpack.c.l.b16 %v925
  %v2586 = vunpack.c.h.b16 %v925
  %v2587 = vunpack.c.l.b16 %v926
  %v2588 = vunpack.c.h.b16 %v926
  %v2589 = vunpack.c.l.b16 %v927
  %v2590 = vunpack.c.h.b16 %v927
  %v2591 = vunpack.c.l.b16 %v928
  %v2592 = vunpack.c.h.b16 %v928
  %v2593 = vunpack.c.l.b16 %v929
  %v2594 = vunpack.c.h.b16 %v929
  %v2595 = vunpack.c.l.b16 %v930
  %v2596 = vunpack.c.h.b16 %v930
  %v2597 = vunpack.c.l.b16 %v931
  %v2598 = vunpack.c.h.b16 %v931
  %v2599 = vunpack.c.l.b16 %v932
  %v2600 = vunpack.c.h.b16 %v932
  %v2601 = vunpack.c.l.b16 %v933
  %v2602 = vunpack.c.h.b16 %v933
  %v2603 = vunpack.c.l.b16 %v934
  %v2604 = vunpack.c.h.b16 %v934
  %v2605 = vunpack.c.l.b16 %v935
  %v2606 = vunpack.c.h.b16 %v935
  %v2607 = vunpack.c.l.b16 %v936
  %v2608 = vunpack.c.h.b16 %v936
  %v2609 = vunpack.c.l.b16 %v937
  %v2610 = vunpack.c.h.b16 %v937
  %v2611 = vunpack.c.l.b16 %v938
  %v2612 = vunpack.c.h.b16 %v938
  %v2613 = vunpack.c.l.b16 %v939
  %v2614 = vunpack.c.h.b16 %v939
  %v2615 = vunpack.c.l.b16 %v940
  %v2616 = vunpack.c.h.b16 %v940
  %v2617 = vunpack.c.l.b16 %v941
  %v2618 = vunpack.c.h.b16 %v941
  %v2619 = vunpack.c.l.b16 %v942
  %v2620 = vunpack.c.h.b16 %v942
  %v2621 = vunpack.c.l.b16 %v943
  %v2622 = vunpack.c.h.b16 %v943
  %v2623 = vunpack.c.l.b16 %v944
  %v2624 = vunpack.c.h.b16 %v944
  %v2625 = vunpack.c.l.b16 %v945
  %v2626 = vunpack.c.h.b16 %v945
  %v2627 = vunpack.c.l.b16 %v946
  %v2628 = vunpack.c.h.b16 %v946
  %v2629 = vunpack.c.l.b16 %v947
  %v2630 = vunpack.c.h.b16 %v947
  %v2631 = vunpack.c.l.b16 %v948
  %v2632 = vunpack.c.h.b16 %v948
  %v2633 = vunpack.c.l.b16 %v949
  %v2634 = vunpack.c.h.b16 %v949
  %v2635 = vunpack.c.l.b16 %v950
  %v2636 = vunpack.c.h.b16 %v950
  %v2637 = vunpack.c.l.b16 %v951
  %v2638 = vunpack.c.h.b16 %v951
  %v2639 = vunpack.c.l.b16 %v952
  %v2640 = vunpack.c.h.b16 %v952
  %v2641 = vunpack.c.l.b16 %v953
  %v2642 = vunpack.c.h.b16 %v953
  %v2643 = vunpack.c.l.b16 %v954
  %v2644 = vunpack.c.h.b16 %v954
  %v2645 = vunpack.c.l.b16 %v955
  %v2646 = vunpack.c.h.b16 %v955
  %v2647 = vunpack.c.l.b16 %v956
  %v2648 = vunpack.c.h.b16 %v956
  %v2649 = vunpack.c.l.b16 %v957
  %v2650 = vunpack.c.h.b16 %v957
  %v2651 = vunpack.c.l.b16 %v958
  %v2652 = vunpack.c.h.b16 %v958
  %v2653 = vunpack.c.l.b16 %v959
  %v2654 = vunpack.c.h.b16 %v959
  %v2655 = vunpack.c.l.b16 %v960
  %v2656 = vunpack.c.h.b16 %v960
  %v2657 = vunpack.c.l.b16 %v961
  %v2658 = vunpack.c.h.b16 %v961
  %v2659 = vunpack.c.l.b16 %v962
  %v2660 = vunpack.c.h.b16 %v962
  %v2661 = vunpack.c.l.b16 %v963
  %v2662 = vunpack.c.h.b16 %v963
  %v2663 = vunpack.c.l.b16 %v964
  %v2664 = vunpack.c.h.b16 %v964
  %v2665 = vunpack.c.l.b16 %v965
  %v2666 = vunpack.c.h.b16 %v965
  %v2667 = vunpack.c.l.b16 %v966
  %v2668 = vunpack.c.h.b16 %v966
  %v2669 = vunpack.c.l.b16 %v967
  %v2670 = vunpack.c.h.b16 %v967
  %v2671 = vunpack.c.l.b16 %v968
  %v2672 = vunpack.c.h.b16 %v968
  %v2673 = vunpack.c.l.b16 %v969
  %v2674 = vunpack.c.h.b16 %v969
  %v2675 = vunpack.c.l.b16 %v970
  %v2676 = vunpack.c.h.b16 %v970
  %v2677 = vunpack.c.l.b16 %v971
  %v2678 = vunpack.c.h.b16 %v971
  %v2679 = vunpack.c.l.b16 %v972
  %v2680 = vunpack.c.h.b16 %v972
  %v2681 = vunpack.c.l.b16 %v973
  %v2682 = vunpack.c.h.b16 %v973
  %v2683 = vunpack.c.l.b16 %v974
  %v2684 = vunpack.c.h.b16 %v974
  %v2685 = vunpack.c.l.b16 %v975
  %v2686 = vunpack.c.h.b16 %v975
  %v2687 = vunpack.c.l.b16 %v976
  %v2688 = vunpack.c.h.b16 %v976
  %v2689 = vunpack.c.l.b16 %v977
  %v2690 = vunpack.c.h.b16 %v977
  %v2691 = vunpack.c.l.b16 %v978
  %v2692 = vunpack.c.h.b16 %v978
  %v2693 = vunpack.c.l.b16 %v979
  %v2694 = vunpack.c.h.b16 %v979
  %v2695 = vunpack.c.l.b16 %v980
  %v2696 = vunpack.c.h.b16 %v980
  %v2697 = vunpack.c.l.b16 %v981
  %v2698 = vunpack.c.h.b16 %v981
  %v2699 = vunpack.c.l.b16 %v982
  %v2700 = vunpack.c.h.b16 %v982
  %v2701 = vunpack.c.l.b16 %v983
  %v2702 = vunpack.c.h.b16 %v983
  %v2703 = vunpack.c.l.b16 %v984
  %v2704 = vunpack.c.h.b16 %v984
  %v2705 = vunpack.c.l.b16 %v985
  %v2706 = vunpack.c.h.b16 %v985
  %v2707 = vunpack.c.l.b16 %v986
  %v2708 = vunpack.c.h.b16 %v986
  %v2709 = vunpack.c.l.b16 %v987
  %v2710 = vunpack.c.h.b16 %v987
  %v2711 = vunpack.c.l.b16 %v988
  %v2712 = vunpack.c.h.b16 %v988
  %v2713 = vunpack.c.l.b16 %v989
  %v2714 = vunpack.c.h.b16 %v989
  %v2715 = vunpack.c.l.b16 %v990
  %v2716 = vunpack.c.h.b16 %v990
  %v2717 = vunpack.c.l.b16 %v991
  %v2718 = vunpack.c.h.b16 %v991
  %v2719 = vunpack.c.l.b16 %v992
  %v2720 = vunpack.c.h.b16 %v992
  %v2721 = vunpack.c.l.b16 %v993
  %v2722 = vunpack.c.h.b16 %v993
  %v2723 = vunpack.c.l.b16 %v994
  %v2724 = vunpack.c.h.b16 %v994
  %v2725 = vunpack.c.l.b16 %v995
  %v2726 = vunpack.c.h.b16 %v995
  %v2727 = vunpack.c.l.b16 %v996
  %v2728 = vunpack.c.h.b16 %v996
  %v2729 = vunpack.c.l.b16 %v997
  %v2730 = vunpack.c.h.b16 %v997
  %v2731 = vunpack.c.l.b16 %v998
  %v2732 = vunpack.c.h.b16 %v998
  %v2733 = vunpack.c.l.b16 %v999
  %v2734 = vunpack.c.h.b16 %v999
  %v2735 = vunpack.c.l.b16 %v1000
  %v2736 = vunpack.c.h.b16 %v1000
  %v2737 = vunpack.c.l.b16 %v1001
  %v2738 = vunpack.c.h.b16 %v1001
  %v2739 = vunpack.c.l.b16 %v1002
  %v2740 = vunpack.c.h.b16 %v1002
  %v2741 = vunpack.c.l.b16 %v1003
  %v2742 = vunpack.c.h.b16 %v1003
  %v2743 = vunpack.c.l.b16 %v1004
  %v2744 = vunpack.c.h.b16 %v1004
  %v2745 = vunpack.c.l.b16 %v1005
  %v2746 = vunpack.c.h.b16 %v1005
  %v2747 = vunpack.c.l.b16 %v1006
  %v2748 = vunpack.c.h.b16 %v1006
  %v2749 = vunpack.c.l.b16 %v1007
  %v2750 = vunpack.c.h.b16 %v1007
  %v2751 = vunpack.c.l.b16 %v1008
  %v2752 = vunpack.c.h.b16 %v1008
  %v2753 = vunpack.c.l.b16 %v1009
  %v2754 = vunpack.c.h.b16 %v1009
  %v2755 = vunpack.c.l.b16 %v1010
  %v2756 = vunpack.c.h.b16 %v1010
  %v2757 = vunpack.c.l.b16 %v1011
  %v2758 = vunpack.c.h.b16 %v1011
  %v2759 = vunpack.c.l.b16 %v1012
  %v2760 = vunpack.c.h.b16 %v1012
  %v2761 = vunpack.c.l.b16 %v1013
  %v2762 = vunpack.c.h.b16 %v1013
  %v2763 = vunpack.c.l.b16 %v1014
  %v2764 = vunpack.c.h.b16 %v1014
  %v2765 = vunpack.c.l.b16 %v1015
  %v2766 = vunpack.c.h.b16 %v1015
  %v2767 = vunpack.c.l.b16 %v1016
  %v2768 = vunpack.c.h.b16 %v1016
  %v2769 = vunpack.c.l.b16 %v1017
  %v2770 = vunpack.c.h.b16 %v1017
  %v2771 = vunpack.c.l.b16 %v1018
  %v2772 = vunpack.c.h.b16 %v1018
  %v2773 = vunpack.c.l.b16 %v1019
  %v2774 = vunpack.c.h.b16 %v1019
  %v2775 = vunpack.c.l.b16 %v1020
  %v2776 = vunpack.c.h.b16 %v1020
  %v2777 = vunpack.c.l.b16 %v1021
  %v2778 = vunpack.c.h.b16 %v1021
  %v2779 = vunpack.c.l.b16 %v1022
  %v2780 = vunpack.c.h.b16 %v1022
  %v2781 = vunpack.c.l.b16 %v1023
  %v2782 = vunpack.c.h.b16 %v1023
  %v2783 = vunpack.c.l.b16 %v1024
  %v2784 = vunpack.c.h.b16 %v1024
  %v2785 = vpack.c.b16 %v1639, %v1633
  %v2786 = vpack.c.b16 %v1640, %v1634
  %v2787 = vpack.c.b16 %v1641, %v1635
  %v2788 = vpack.c.b16 %v1642, %v1636
  %v2789 = vpack.c.b16 %v1643, %v1637
  %v2790 = vpack.c.b16 %v1644, %v1638
  %v2791 = vpack.c.b16 %v1651, %v1645
  %v2792 = vpack.c.b16 %v1652, %v1646
  %v2793 = vpack.c.b16 %v1653, %v1647
  %v2794 = vpack.c.b16 %v1654, %v1648
  %v2795 = vpack.c.b16 %v1655, %v1649
  %v2796 = vpack.c.b16 %v1656, %v1650
  %v2797 = vpack.c.b16 %v1663, %v1657
  %v2798 = vpack.c.b16 %v1664, %v1658
  %v2799 = vpack.c.b16 %v1665, %v1659
  %v2800 = vpack.c.b16 %v1666, %v1660
  %v2801 = vpack.c.b16 %v1667, %v1661
  %v2802 = vpack.c.b16 %v1668, %v1662
  %v2803 = vpack.c.b16 %v1675, %v1669
  %v2804 = vpack.c.b16 %v1676, %v1670
  %v2805 = vpack.c.b16 %v1677, %v1671
  %v2806 = vpack.c.b16 %v1678, %v1672
  %v2807 = vpack.c.b16 %v1679, %v1673
  %v2808 = vpack.c.b16 %v1680, %v1674
  %v2809 = vpack.c.b16 %v1687, %v1681
  %v2810 = vpack.c.b16 %v1688, %v1682
  %v2811 = vpack.c.b16 %v1689, %v1683
  %v2812 = vpack.c.b16 %v1690, %v1684
  %v2813 = vpack.c.b16 %v1691, %v1685
  %v2814 = vpack.c.b16 %v1692, %v1686
  %v2815 = vpack.c.b16 %v1699, %v1693
  %v2816 = vpack.c.b16 %v1700, %v1694
  %v2817 = vpack.c.b16 %v1701, %v1695
  %v2818 = vpack.c.b16 %v1702, %v1696
  %v2819 = vpack.c.b16 %v1703, %v1697
  %v2820 = vpack.c.b16 %v1704, %v1698
  %v2821 = vpack.c.b16 %v1711, %v1705
  %v2822 = vpack.c.b16 %v1712, %v1706
  %v2823 = vpack.c.b16 %v1713, %v1707
  %v2824 = vpack.c.b16 %v1714, %v1708
  %v2825 = vpack.c.b16 %v1715, %v1709
  %v2826 = vpack.c.b16 %v1716, %v1710
  %v2827 = vpack.c.b16 %v1723, %v1717
  %v2828 = vpack.c.b16 %v1724, %v1718
  %v2829 = vpack.c.b16 %v1725, %v1719
  %v2830 = vpack.c.b16 %v1726, %v1720
  %v2831 = vpack.c.b16 %v1727, %v1721
  %v2832 = vpack.c.b16 %v1728, %v1722
  %v2833 = vpack.c.b16 %v1735, %v1729
  %v2834 = vpack.c.b16 %v1736, %v1730
  %v2835 = vpack.c.b16 %v1737, %v1731
  %v2836 = vpack.c.b16 %v1738, %v1732
  %v2837 = vpack.c.b16 %v1739, %v1733
  %v2838 = vpack.c.b16 %v1740, %v1734
  %v2839 = vpack.c.b16 %v1747, %v1741
  %v2840 = vpack.c.b16 %v1748, %v1742
  %v2841 = vpack.c.b16 %v1749, %v1743
  %v2842 = vpack.c.b16 %v1750, %v1744
  %v2843 = vpack.c.b16 %v1751, %v1745
  %v2844 = vpack.c.b16 %v1752, %v1746
  %v2845 = vpack.c.b16 %v1759, %v1753
  %v2846 = vpack.c.b16 %v1760, %v1754
  %v2847 = vpack.c.b16 %v1761, %v1755
  %v2848 = vpack.c.b16 %v1762, %v1756
  %v2849 = vpack.c.b16 %v1763, %v1757
  %v2850 = vpack.c.b16 %v1764, %v1758
  %v2851 = vpack.c.b16 %v1771, %v1765
  %v2852 = vpack.c.b16 %v1772, %v1766
  %v2853 = vpack.c.b16 %v1773, %v1767
  %v2854 = vpack.c.b16 %v1774, %v1768
  %v2855 = vpack.c.b16 %v1775, %v1769
  %v2856 = vpack.c.b16 %v1776, %v1770
  %v2857 = vpack.c.b16 %v1783, %v1777
  %v2858 = vpack.c.b16 %v1784, %v1778
  %v2859 = vpack.c.b16 %v1785, %v1779
  %v2860 = vpack.c.b16 %v1786, %v1780
  %v2861 = vpack.c.b16 %v1787, %v1781
  %v2862 = vpack.c.b16 %v1788, %v1782
  %v2863 = vpack.c.b16 %v1795, %v1789
  %v2864 = vpack.c.b16 %v1796, %v1790
  %v2865 = vpack.c.b16 %v1797, %v1791
  %v2866 = vpack.c.b16 %v1798, %v1792
  %v2867 = vpack.c.b16 %v1799, %v1793
  %v2868 = vpack.c.b16 %v1800, %v1794
  %v2869 = vpack.c.b16 %v1807, %v1801
  %v2870 = vpack.c.b16 %v1808, %v1802
  %v2871 = vpack.c.b16 %v1809, %v1803
  %v2872 = vpack.c.b16 %v1810, %v1804
  %v2873 = vpack.c.b16 %v1811, %v1805
  %v2874 = vpack.c.b16 %v1812, %v1806
  %v2875 = vpack.c.b16 %v1819, %v1813
  %v2876 = vpack.c.b16 %v1820, %v1814
  %v2877 = vpack.c.b16 %v1821, %v1815
  %v2878 = vpack.c.b16 %v1822, %v1816
  %v2879 = vpack.c.b16 %v1823, %v1817
  %v2880 = vpack.c.b16 %v1824, %v1818
  %v2881 = vpack.c.b16 %v1831, %v1825
  %v2882 = vpack.c.b16 %v1832, %v1826
  %v2883 = vpack.c.b16 %v1833, %v1827
  %v2884 = vpack.c.b16 %v1834, %v1828
  %v2885 = vpack.c.b16 %v1835, %v1829
  %v2886 = vpack.c.b16 %v1836, %v1830
  %v2887 = vpack.c.b16 %v1843, %v1837
  %v2888 = vpack.c.b16 %v1844, %v1838
  %v2889 = vpack.c.b16 %v1845, %v1839
  %v2890 = vpack.c.b16 %v1846, %v1840
  %v2891 = vpack.c.b16 %v1847, %v1841
  %v2892 = vpack.c.b16 %v1848, %v1842
  %v2893 = vpack.c.b16 %v1855, %v1849
  %v2894 = vpack.c.b16 %v1856, %v1850
  %v2895 = vpack.c.b16 %v1857, %v1851
  %v2896 = vpack.c.b16 %v1858, %v1852
  %v2897 = vpack.c.b16 %v1859, %v1853
  %v2898 = vpack.c.b16 %v1860, %v1854
  %v2899 = vpack.c.b16 %v1867, %v1861
  %v2900 = vpack.c.b16 %v1868, %v1862
  %v2901 = vpack.c.b16 %v1869, %v1863
  %v2902 = vpack.c.b16 %v1870, %v1864
  %v2903 = vpack.c.b16 %v1871, %v1865
  %v2904 = vpack.c.b16 %v1872, %v1866
  %v2905 = vpack.c.b16 %v1879, %v1873
  %v2906 = vpack.c.b16 %v1880, %v1874
  %v2907 = vpack.c.b16 %v1881, %v1875
  %v2908 = vpack.c.b16 %v1882, %v1876
  %v2909 = vpack.c.b16 %v1883, %v1877
  %v2910 = vpack.c.b16 %v1884, %v1878
  %v2911 = vpack.c.b16 %v1891, %v1885
  %v2912 = vpack.c.b16 %v1892, %v1886
  %v2913 = vpack.c.b16 %v1893, %v1887
  %v2914 = vpack.c.b16 %v1894, %v1888
  %v2915 = vpack.c.b16 %v1895, %v1889
  %v2916 = vpack.c.b16 %v1896, %v1890
  %v2917 = vpack.c.b16 %v1903, %v1897
  %v2918 = vpack.c.b16 %v1904, %v1898
  %v2919 = vpack.c.b16 %v1905, %v1899
  %v2920 = vpack.c.b16 %v1906, %v1900
  %v2921 = vpack.c.b16 %v1907, %v1901
  %v2922 = vpack.c.b16 %v1908, %v1902
  %v2923 = vpack.c.b16 %v1915, %v1909
  %v2924 = vpack.c.b16 %v1916, %v1910
  %v2925 = vpack.c.b16 %v1917, %v1911
  %v2926 = vpack.c.b16 %v1918, %v1912
  %v2927 = vpack.c.b16 %v1919, %v1913
  %v2928 = vpack.c.b16 %v1920, %v1914
  %v2929 = vpack.c.b16 %v1927, %v1921
  %v2930 = vpack.c.b16 %v1928, %v1922
  %v2931 = vpack.c.b16 %v1929, %v1923
  %v2932 = vpack.c.b16 %v1930, %v1924
  %v2933 = vpack.c.b16 %v1931, %v1925
  %v2934 = vpack.c.b16 %v1932, %v1926
  %v2935 = vpack.c.b16 %v1939, %v1933
  %v2936 = vpack.c.b16 %v1940, %v1934
  %v2937 = vpack.c.b16 %v1941, %v1935
  %v2938 = vpack.c.b16 %v1942, %v1936
  %v2939 = vpack.c.b16 %v1943, %v1937
  %v2940 = vpack.c.b16 %v1944, %v1938
  %v2941 = vpack.c.b16 %v1951, %v1945
  %v2942 = vpack.c.b16 %v1952, %v1946
  %v2943 = vpack.c.b16 %v1953, %v1947
  %v2944 = vpack.c.b16 %v1954, %v1948
  %v2945 = vpack.c.b16 %v1955, %v1949
  %v2946 = vpack.c.b16 %v1956, %v1950
  %v2947 = vpack.c.b16 %v1963, %v1957
  %v2948 = vpack.c.b16 %v1964, %v1958
  %v2949 = vpack.c.b16 %v1965, %v1959
  %v2950 = vpack.c.b16 %v1966, %v1960
  %v2951 = vpack.c.b16 %v1967, %v1961
  %v2952 = vpack.c.b16 %v1968, %v1962
  %v2953 = vpack.c.b16 %v1975, %v1969
  %v2954 = vpack.c.b16 %v1976, %v1970
  %v2955 = vpack.c.b16 %v1977, %v1971
  %v2956 = vpack.c.b16 %v1978, %v1972
  %v2957 = vpack.c.b16 %v1979, %v1973
  %v2958 = vpack.c.b16 %v1980, %v1974
  %v2959 = vpack.c.b16 %v1987, %v1981
  %v2960 = vpack.c.b16 %v1988, %v1982
  %v2961 = vpack.c.b16 %v1989, %v1983
  %v2962 = vpack.c.b16 %v1990, %v1984
  %v2963 = vpack.c.b16 %v1991, %v1985
  %v2964 = vpack.c.b16 %v1992, %v1986
  %v2965 = vpack.c.b16 %v1999, %v1993
  %v2966 = vpack.c.b16 %v2000, %v1994
  %v2967 = vpack.c.b16 %v2001, %v1995
  %v2968 = vpack.c.b16 %v2002, %v1996
  %v2969 = vpack.c.b16 %v2003, %v1997
  %v2970 = vpack.c.b16 %v2004, %v1998
  %v2971 = vpack.c.b16 %v2011, %v2005
  %v2972 = vpack.c.b16 %v2012, %v2006
  %v2973 = vpack.c.b16 %v2013, %v2007
  %v2974 = vpack.c.b16 %v2014, %v2008
  %v2975 = vpack.c.b16 %v2015, %v2009
  %v2976 = vpack.c.b16 %v2016, %v2010
  %v2977 = vpack.c.b16 %v2023, %v2017
  %v2978 = vpack.c.b16 %v2024, %v2018
  %v2979 = vpack.c.b16 %v2025, %v2019
  %v2980 = vpack.c.b16 %v2026, %v2020
  %v2981 = vpack.c.b16 %v2027, %v2021
  %v2982 = vpack.c.b16 %v2028, %v2022
  %v2983 = vpack.c.b16 %v2035, %v2029
  %v2984 = vpack.c.b16 %v2036, %v2030
  %v2985 = vpack.c.b16 %v2037, %v2031
  %v2986 = vpack.c.b16 %v2038, %v2032
  %v2987 = vpack.c.b16 %v2039, %v2033
  %v2988 = vpack.c.b16 %v2040, %v2034
  %v2989 = vpack.c.b16 %v2047, %v2041
  %v2990 = vpack.c.b16 %v2048, %v2042
  %v2991 = vpack.c.b16 %v2049, %v2043
  %v2992 = vpack.c.b16 %v2050, %v2044
  %v2993 = vpack.c.b16 %v2051, %v2045
  %v2994 = vpack.c.b16 %v2052, %v2046
  %v2995 = vpack.c.b16 %v2059, %v2053
  %v2996 = vpack.c.b16 %v2060, %v2054
  %v2997 = vpack.c.b16 %v2061, %v2055
  %v2998 = vpack.c.b16 %v2062, %v2056
  %v2999 = vpack.c.b16 %v2063, %v2057
  %v3000 = vpack.c.b16 %v2064, %v2058
  %v3001 = vpack.c.b16 %v2071, %v2065
  %v3002 = vpack.c.b16 %v2072, %v2066
  %v3003 = vpack.c.b16 %v2073, %v2067
  %v3004 = vpack.c.b16 %v2074, %v2068
  %v3005 = vpack.c.b16 %v2075, %v2069
  %v3006 = vpack.c.b16 %v2076, %v2070
  %v3007 = vpack.c.b16 %v2083, %v2077
  %v3008 = vpack.c.b16 %v2084, %v2078
  %v3009 = vpack.c.b16 %v2085, %v2079
  %v3010 = vpack.c.b16 %v2086, %v2080
  %v3011 = vpack.c.b16 %v2087, %v2081
  %v3012 = vpack.c.b16 %v2088, %v2082
  %v3013 = vpack.c.b16 %v2095, %v2089
  %v3014 = vpack.c.b16 %v2096, %v2090
  %v3015 = vpack.c.b16 %v2097, %v2091
  %v3016 = vpack.c.b16 %v2098, %v2092
  %v3017 = vpack.c.b16 %v2099, %v2093
  %v3018 = vpack.c.b16 %v2100, %v2094
  %v3019 = vpack.c.b16 %v2107, %v2101
  %v3020 = vpack.c.b16 %v2108, %v2102
  %v3021 = vpack.c.b16 %v2109, %v2103
  %v3022 = vpack.c.b16 %v2110, %v2104
  %v3023 = vpack.c.b16 %v2111, %v2105
  %v3024 = vpack.c.b16 %v2112, %v2106
  %v3025 = vpack.c.b16 %v2119, %v2113
  %v3026 = vpack.c.b16 %v2120, %v2114
  %v3027 = vpack.c.b16 %v2121, %v2115
  %v3028 = vpack.c.b16 %v2122, %v2116
  %v3029 = vpack.c.b16 %v2123, %v2117
  %v3030 = vpack.c.b16 %v2124, %v2118
  %v3031 = vpack.c.b16 %v2131, %v2125
  %v3032 = vpack.c.b16 %v2132, %v2126
  %v3033 = vpack.c.b16 %v2133, %v2127
  %v3034 = vpack.c.b16 %v2134, %v2128
  %v3035 = vpack.c.b16 %v2135, %v2129
  %v3036 = vpack.c.b16 %v2136, %v2130
  %v3037 = vpack.c.b16 %v2143, %v2137
  %v3038 = vpack.c.b16 %v2144, %v2138
  %v3039 = vpack.c.b16 %v2145, %v2139
  %v3040 = vpack.c.b16 %v2146, %v2140
  %v3041 = vpack.c.b16 %v2147, %v2141
  %v3042 = vpack.c.b16 %v2148, %v2142
  %v3043 = vpack.c.b16 %v2155, %v2149
  %v3044 = vpack.c.b16 %v2156, %v2150
  %v3045 = vpack.c.b16 %v2157, %v2151
  %v3046 = vpack.c.b16 %v2158, %v2152
  %v3047 = vpack.c.b16 %v2159, %v2153
  %v3048 = vpack.c.b16 %v2160, %v2154
  %v3049 = vpack.c.b16 %v2167, %v2161
  %v3050 = vpack.c.b16 %v2168, %v2162
  %v3051 = vpack.c.b16 %v2169, %v2163
  %v3052 = vpack.c.b16 %v2170, %v2164
  %v3053 = vpack.c.b16 %v2171, %v2165
  %v3054 = vpack.c.b16 %v2172, %v2166
  %v3055 = vpack.c.b16 %v2179, %v2173
  %v3056 = vpack.c.b16 %v2180, %v2174
  %v3057 = vpack.c.b16 %v2181, %v2175
  %v3058 = vpack.c.b16 %v2182, %v2176
  %v3059 = vpack.c.b16 %v2183, %v2177
  %v3060 = vpack.c.b16 %v2184, %v2178
  %v3061 = vpack.c.b16 %v2191, %v2185
  %v3062 = vpack.c.b16 %v2192, %v2186
  %v3063 = vpack.c.b16 %v2193, %v2187
  %v3064 = vpack.c.b16 %v2194, %v2188
  %v3065 = vpack.c.b16 %v2195, %v2189
  %v3066 = vpack.c.b16 %v2196, %v2190
  %v3067 = vpack.c.b16 %v2203, %v2197
  %v3068 = vpack.c.b16 %v2204, %v2198
  %v3069 = vpack.c.b16 %v2205, %v2199
  %v3070 = vpack.c.b16 %v2206, %v2200
  %v3071 = vpack.c.b16 %v2207, %v2201
  %v3072 = vpack.c.b16 %v2208, %v2202
  %v3073 = vpack.c.b16 %v2215, %v2209
  %v3074 = vpack.c.b16 %v2216, %v2210
  %v3075 = vpack.c.b16 %v2217, %v2211
  %v3076 = vpack.c.b16 %v2218, %v2212
  %v3077 = vpack.c.b16 %v2219, %v2213
  %v3078 = vpack.c.b16 %v2220, %v2214
  %v3079 = vpack.c.b16 %v2227, %v2221
  %v3080 = vpack.c.b16 %v2228, %v2222
  %v3081 = vpack.c.b16 %v2229, %v2223
  %v3082 = vpack.c.b16 %v2230, %v2224
  %v3083 = vpack.c.b16 %v2231, %v2225
  %v3084 = vpack.c.b16 %v2232, %v2226
  %v3085 = vpack.c.b16 %v2239, %v2233
  %v3086 = vpack.c.b16 %v2240, %v2234
  %v3087 = vpack.c.b16 %v2241, %v2235
  %v3088 = vpack.c.b16 %v2242, %v2236
  %v3089 = vpack.c.b16 %v2243, %v2237
  %v3090 = vpack.c.b16 %v2244, %v2238
  %v3091 = vpack.c.b16 %v2251, %v2245
  %v3092 = vpack.c.b16 %v2252, %v2246
  %v3093 = vpack.c.b16 %v2253, %v2247
  %v3094 = vpack.c.b16 %v2254, %v2248
  %v3095 = vpack.c.b16 %v2255, %v2249
  %v3096 = vpack.c.b16 %v2256, %v2250
  %v3097 = vpack.c.b16 %v2263, %v2257
  %v3098 = vpack.c.b16 %v2264, %v2258
  %v3099 = vpack.c.b16 %v2265, %v2259
  %v3100 = vpack.c.b16 %v2266, %v2260
  %v3101 = vpack.c.b16 %v2267, %v2261
  %v3102 = vpack.c.b16 %v2268, %v2262
  %v3103 = vpack.c.b16 %v2275, %v2269
  %v3104 = vpack.c.b16 %v2276, %v2270
  %v3105 = vpack.c.b16 %v2277, %v2271
  %v3106 = vpack.c.b16 %v2278, %v2272
  %v3107 = vpack.c.b16 %v2279, %v2273
  %v3108 = vpack.c.b16 %v2280, %v2274
  %v3109 = vpack.c.b16 %v2287, %v2281
  %v3110 = vpack.c.b16 %v2288, %v2282
  %v3111 = vpack.c.b16 %v2289, %v2283
  %v3112 = vpack.c.b16 %v2290, %v2284
  %v3113 = vpack.c.b16 %v2291, %v2285
  %v3114 = vpack.c.b16 %v2292, %v2286
  %v3115 = vpack.c.b16 %v2299, %v2293
  %v3116 = vpack.c.b16 %v2300, %v2294
  %v3117 = vpack.c.b16 %v2301, %v2295
  %v3118 = vpack.c.b16 %v2302, %v2296
  %v3119 = vpack.c.b16 %v2303, %v2297
  %v3120 = vpack.c.b16 %v2304, %v2298
  %v3121 = vpack.c.b16 %v2311, %v2305
  %v3122 = vpack.c.b16 %v2312, %v2306
  %v3123 = vpack.c.b16 %v2313, %v2307
  %v3124 = vpack.c.b16 %v2314, %v2308
  %v3125 = vpack.c.b16 %v2315, %v2309
  %v3126 = vpack.c.b16 %v2316, %v2310
  %v3127 = vpack.c.b16 %v2323, %v2317
  %v3128 = vpack.c.b16 %v2324, %v2318
  %v3129 = vpack.c.b16 %v2325, %v2319
  %v3130 = vpack.c.b16 %v2326, %v2320
  %v3131 = vpack.c.b16 %v2327, %v2321
  %v3132 = vpack.c.b16 %v2328, %v2322
  %v3133 = vpack.c.b16 %v2335, %v2329
  %v3134 = vpack.c.b16 %v2336, %v2330
  %v3135 = vpack.c.b16 %v2337, %v2331
  %v3136 = vpack.c.b16 %v2338, %v2332
  %v3137 = vpack.c.b16 %v2339, %v2333
  %v3138 = vpack.c.b16 %v2340, %v2334
  %v3139 = vpack.c.b16 %v2347, %v2341
  %v3140 = vpack.c.b16 %v2348, %v2342
  %v3141 = vpack.c.b16 %v2349, %v2343
  %v3142 = vpack.c.b16 %v2350, %v2344
  %v3143 = vpack.c.b16 %v2351, %v2345
  %v3144 = vpack.c.b16 %v2352, %v2346
  %v3145 = vpack.c.b16 %v2359, %v2353
  %v3146 = vpack.c.b16 %v2360, %v2354
  %v3147 = vpack.c.b16 %v2361, %v2355
  %v3148 = vpack.c.b16 %v2362, %v2356
  %v3149 = vpack.c.b16 %v2363, %v2357
  %v3150 = vpack.c.b16 %v2364, %v2358
  %v3151 = vpack.c.b16 %v2371, %v2365
  %v3152 = vpack.c.b16 %v2372, %v2366
  %v3153 = vpack.c.b16 %v2373, %v2367
  %v3154 = vpack.c.b16 %v2374, %v2368
  %v3155 = vpack.c.b16 %v2375, %v2369
  %v3156 = vpack.c.b16 %v2376, %v2370
  %v3157 = vpack.c.b16 %v2383, %v2377
  %v3158 = vpack.c.b16 %v2384, %v2378
  %v3159 = vpack.c.b16 %v2385, %v2379
  %v3160 = vpack.c.b16 %v2386, %v2380
  %v3161 = vpack.c.b16 %v2387, %v2381
  %v3162 = vpack.c.b16 %v2388, %v2382
  %v3163 = vpack.c.b16 %v2395, %v2389
  %v3164 = vpack.c.b16 %v2396, %v2390
  %v3165 = vpack.c.b16 %v2397, %v2391
  %v3166 = vpack.c.b16 %v2398, %v2392
  %v3167 = vpack.c.b16 %v2399, %v2393
  %v3168 = vpack.c.b16 %v2400, %v2394
  %v3169 = vpack.c.b16 %v2407, %v2401
  %v3170 = vpack.c.b16 %v2408, %v2402
  %v3171 = vpack.c.b16 %v2409, %v2403
  %v3172 = vpack.c.b16 %v2410, %v2404
  %v3173 = vpack.c.b16 %v2411, %v2405
  %v3174 = vpack.c.b16 %v2412, %v2406
  %v3175 = vpack.c.b16 %v2419, %v2413
  %v3176 = vpack.c.b16 %v2420, %v2414
  %v3177 = vpack.c.b16 %v2421, %v2415
  %v3178 = vpack.c.b16 %v2422, %v2416
  %v3179 = vpack.c.b16 %v2423, %v2417
  %v3180 = vpack.c.b16 %v2424, %v2418
  %v3181 = vpack.c.b16 %v2431, %v2425
  %v3182 = vpack.c.b16 %v2432, %v2426
  %v3183 = vpack.c.b16 %v2433, %v2427
  %v3184 = vpack.c.b16 %v2434, %v2428
  %v3185 = vpack.c.b16 %v2435, %v2429
  %v3186 = vpack.c.b16 %v2436, %v2430
  %v3187 = vpack.c.b16 %v2443, %v2437
  %v3188 = vpack.c.b16 %v2444, %v2438
  %v3189 = vpack.c.b16 %v2445, %v2439
  %v3190 = vpack.c.b16 %v2446, %v2440
  %v3191 = vpack.c.b16 %v2447, %v2441
  %v3192 = vpack.c.b16 %v2448, %v2442
  %v3193 = vpack.c.b16 %v2455, %v2449
  %v3194 = vpack.c.b16 %v2456, %v2450
  %v3195 = vpack.c.b16 %v2457, %v2451
  %v3196 = vpack.c.b16 %v2458, %v2452
  %v3197 = vpack.c.b16 %v2459, %v2453
  %v3198 = vpack.c.b16 %v2460, %v2454
  %v3199 = vpack.c.b16 %v2467, %v2461
  %v3200 = vpack.c.b16 %v2468, %v2462
  %v3201 = vpack.c.b16 %v2469, %v2463
  %v3202 = vpack.c.b16 %v2470, %v2464
  %v3203 = vpack.c.b16 %v2471, %v2465
  %v3204 = vpack.c.b16 %v2472, %v2466
  %v3205 = vpack.c.b16 %v2479, %v2473
  %v3206 = vpack.c.b16 %v2480, %v2474
  %v3207 = vpack.c.b16 %v2481, %v2475
  %v3208 = vpack.c.b16 %v2482, %v2476
  %v3209 = vpack.c.b16 %v2483, %v2477
  %v3210 = vpack.c.b16 %v2484, %v2478
  %v3211 = vpack.c.b16 %v2491, %v2485
  %v3212 = vpack.c.b16 %v2492, %v2486
  %v3213 = vpack.c.b16 %v2493, %v2487
  %v3214 = vpack.c.b16 %v2494, %v2488
  %v3215 = vpack.c.b16 %v2495, %v2489
  %v3216 = vpack.c.b16 %v2496, %v2490
  %v3217 = vpack.c.b16 %v2503, %v2497
  %v3218 = vpack.c.b16 %v2504, %v2498
  %v3219 = vpack.c.b16 %v2505, %v2499
  %v3220 = vpack.c.b16 %v2506, %v2500
  %v3221 = vpack.c.b16 %v2507, %v2501
  %v3222 = vpack.c.b16 %v2508, %v2502
  %v3223 = vpack.c.b16 %v2515, %v2509
  %v3224 = vpack.c.b16 %v2516, %v2510
  %v3225 = vpack.c.b16 %v2517, %v2511
  %v3226 = vpack.c.b16 %v2518, %v2512
  %v3227 = vpack.c.b16 %v2519, %v2513
  %v3228 = vpack.c.b16 %v2520, %v2514
  %v3229 = vpack.c.b16 %v2527, %v2521
  %v3230 = vpack.c.b16 %v2528, %v2522
  %v3231 = vpack.c.b16 %v2529, %v2523
  %v3232 = vpack.c.b16 %v2530, %v2524
  %v3233 = vpack.c.b16 %v2531, %v2525
  %v3234 = vpack.c.b16 %v2532, %v2526
  %v3235 = vpack.c.b16 %v2539, %v2533
  %v3236 = vpack.c.b16 %v2540, %v2534
  %v3237 = vpack.c.b16 %v2541, %v2535
  %v3238 = vpack.c.b16 %v2542, %v2536
  %v3239 = vpack.c.b16 %v2543, %v2537
  %v3240 = vpack.c.b16 %v2544, %v2538
  %v3241 = vpack.c.b16 %v2551, %v2545
  %v3242 = vpack.c.b16 %v2552, %v2546
  %v3243 = vpack.c.b16 %v2553, %v2547
  %v3244 = vpack.c.b16 %v2554, %v2548
  %v3245 = vpack.c.b16 %v2555, %v2549
  %v3246 = vpack.c.b16 %v2556, %v2550
  %v3247 = vpack.c.b16 %v2563, %v2557
  %v3248 = vpack.c.b16 %v2564, %v2558
  %v3249 = vpack.c.b16 %v2565, %v2559
  %v3250 = vpack.c.b16 %v2566, %v2560
  %v3251 = vpack.c.b16 %v2567, %v2561
  %v3252 = vpack.c.b16 %v2568, %v2562
  %v3253 = vpack.c.b16 %v2575, %v2569
  %v3254 = vpack.c.b16 %v2576, %v2570
  %v3255 = vpack.c.b16 %v2577, %v2571
  %v3256 = vpack.c.b16 %v2578, %v2572
  %v3257 = vpack.c.b16 %v2579, %v2573
  %v3258 = vpack.c.b16 %v2580, %v2574
  %v3259 = vpack.c.b16 %v2587, %v2581
  %v3260 = vpack.c.b16 %v2588, %v2582
  %v3261 = vpack.c.b16 %v2589, %v2583
  %v3262 = vpack.c.b16 %v2590, %v2584
  %v3263 = vpack.c.b16 %v2591, %v2585
  %v3264 = vpack.c.b16 %v2592, %v2586
  %v3265 = vpack.c.b16 %v2599, %v2593
  %v3266 = vpack.c.b16 %v2600, %v2594
  %v3267 = vpack.c.b16 %v2601, %v2595
  %v3268 = vpack.c.b16 %v2602, %v2596
  %v3269 = vpack.c.b16 %v2603, %v2597
  %v3270 = vpack.c.b16 %v2604, %v2598
  %v3271 = vpack.c.b16 %v2611, %v2605
  %v3272 = vpack.c.b16 %v2612, %v2606
  %v3273 = vpack.c.b16 %v2613, %v2607
  %v3274 = vpack.c.b16 %v2614, %v2608
  %v3275 = vpack.c.b16 %v2615, %v2609
  %v3276 = vpack.c.b16 %v2616, %v2610
  %v3277 = vpack.c.b16 %v2623, %v2617
  %v3278 = vpack.c.b16 %v2624, %v2618
  %v3279 = vpack.c.b16 %v2625, %v2619
  %v3280 = vpack.c.b16 %v2626, %v2620
  %v3281 = vpack.c.b16 %v2627, %v2621
  %v3282 = vpack.c.b16 %v2628, %v2622
  %v3283 = vpack.c.b16 %v2635, %v2629
  %v3284 = vpack.c.b16 %v2636, %v2630
  %v3285 = vpack.c.b16 %v2637, %v2631
  %v3286 = vpack.c.b16 %v2638, %v2632
  %v3287 = vpack.c.b16 %v2639, %v2633
  %v3288 = vpack.c.b16 %v2640, %v2634
  %v3289 = vpack.c.b16 %v2647, %v2641
  %v3290 = vpack.c.b16 %v2648, %v2642
  %v3291 = vpack.c.b16 %v2649, %v2643
  %v3292 = vpack.c.b16 %v2650, %v2644
  %v3293 = vpack.c.b16 %v2651, %v2645
  %v3294 = vpack.c.b16 %v2652, %v2646
  %v3295 = vpack.c.b16 %v2659, %v2653
  %v3296 = vpack.c.b16 %v2660, %v2654
  %v3297 = vpack.c.b16 %v2661, %v2655
  %v3298 = vpack.c.b16 %v2662, %v2656
  %v3299 = vpack.c.b16 %v2663, %v2657
  %v3300 = vpack.c.b16 %v2664, %v2658
  %v3301 = vpack.c.b16 %v2671, %v2665
  %v3302 = vpack.c.b16 %v2672, %v2666
  %v3303 = vpack.c.b16 %v2673, %v2667
  %v3304 = vpack.c.b16 %v2674, %v2668
  %v3305 = vpack.c.b16 %v2675, %v2669
  %v3306 = vpack.c.b16 %v2676, %v2670
  %v3307 = vpack.c.b16 %v2683, %v2677
  %v3308 = vpack.c.b16 %v2684, %v2678
  %v3309 = vpack.c.b16 %v2685, %v2679
  %v3310 = vpack.c.b16 %v2686, %v2680
  %v3311 = vpack.c.b16 %v2687, %v2681
  %v3312 = vpack.c.b16 %v2688, %v2682
  %v3313 = vpack.c.b16 %v2695, %v2689
  %v3314 = vpack.c.b16 %v2696, %v2690
  %v3315 = vpack.c.b16 %v2697, %v2691
  %v3316 = vpack.c.b16 %v2698, %v2692
  %v3317 = vpack.c.b16 %v2699, %v2693
  %v3318 = vpack.c.b16 %v2700, %v2694
  %v3319 = vpack.c.b16 %v2707, %v2701
  %v3320 = vpack.c.b16 %v2708, %v2702
  %v3321 = vpack.c.b16 %v2709, %v2703
  %v3322 = vpack.c.b16 %v2710, %v2704
  %v3323 = vpack.c.b16 %v2711, %v2705
  %v3324 = vpack.c.b16 %v2712, %v2706
  %v3325 = vpack.c.b16 %v2719, %v2713
  %v3326 = vpack.c.b16 %v2720, %v2714
  %v3327 = vpack.c.b16 %v2721, %v2715
  %v3328 = vpack.c.b16 %v2722, %v2716
  %v3329 = vpack.c.b16 %v2723, %v2717
  %v3330 = vpack.c.b16 %v2724, %v2718
  %v3331 = vpack.c.b16 %v2731, %v2725
  %v3332 = vpack.c.b16 %v2732, %v2726
  %v3333 = vpack.c.b16 %v2733, %v2727
  %v3334 = vpack.c.b16 %v2734, %v2728
  %v3335 = vpack.c.b16 %v2735, %v2729
  %v3336 = vpack.c.b16 %v2736, %v2730
  %v3337 = vpack.c.b16 %v2743, %v2737
  %v3338 = vpack.c.b16 %v2744, %v2738
  %v3339 = vpack.c.b16 %v2745, %v2739
  %v3340 = vpack.c.b16 %v2746, %v2740
  %v3341 = vpack.c.b16 %v2747, %v2741
  %v3342 = vpack.c.b16 %v2748, %v2742
  %v3343 = vpack.c.b16 %v2755, %v2749
  %v3344 = vpack.c.b16 %v2756, %v2750
  %v3345 = vpack.c.b16 %v2757, %v2751
  %v3346 = vpack.c.b16 %v2758, %v2752
  %v3347 = vpack.c.b16 %v2759, %v2753
  %v3348 = vpack.c.b16 %v2760, %v2754
  %v3349 = vpack.c.b16 %v2767, %v2761
  %v3350 = vpack.c.b16 %v2768, %v2762
  %v3351 = vpack.c.b16 %v2769, %v2763
  %v3352 = vpack.c.b16 %v2770, %v2764
  %v3353 = vpack.c.b16 %v2771, %v2765
  %v3354 = vpack.c.b16 %v2772, %v2766
  %v3355 = vpack.c.b16 %v2779, %v2773
  %v3356 = vpack.c.b16 %v2780, %v2774
  %v3357 = vpack.c.b16 %v2781, %v2775
  %v3358 = vpack.c.b16 %v2782, %v2776
  %v3359 = vpack.c.b16 %v2783, %v2777
  %v3360 = vpack.c.b16 %v2784, %v2778
  %3937 = vmatprep.subr.bf16.mxu0 %v2786
  %3938 = vmatpush1.bf16.msra.mxu0 %v2785
  %3939 = vmatprep.subr.bf16.mxu0 %v2792
  %3940 = vmatpush1.bf16.msra.mxu0 %v2791
  %3941 = vmatprep.subr.bf16.mxu0 %v2798
  %3942 = vmatpush1.bf16.msra.mxu0 %v2797
  %3943 = vmatprep.subr.bf16.mxu0 %v2804
  %3944 = vmatpush1.bf16.msra.mxu0 %v2803
  %3945 = vmatprep.subr.bf16.mxu0 %v2810
  %3946 = vmatpush1.bf16.msra.mxu0 %v2809
  %3947 = vmatprep.subr.bf16.mxu0 %v2816
  %3948 = vmatpush1.bf16.msra.mxu0 %v2815
  %3949 = vmatprep.subr.bf16.mxu0 %v2822
  %3950 = vmatpush1.bf16.msra.mxu0 %v2821
  %3951 = vmatprep.subr.bf16.mxu0 %v2828
  %3952 = vmatpush1.bf16.msra.mxu0 %v2827
  %3953 = vmatprep.subr.bf16.mxu0 %v2834
  %3954 = vmatpush1.bf16.msra.mxu0 %v2833
  %3955 = vmatprep.subr.bf16.mxu0 %v2840
  %3956 = vmatpush1.bf16.msra.mxu0 %v2839
  %3957 = vmatprep.subr.bf16.mxu0 %v2846
  %3958 = vmatpush1.bf16.msra.mxu0 %v2845
  %3959 = vmatprep.subr.bf16.mxu0 %v2852
  %3960 = vmatpush1.bf16.msra.mxu0 %v2851
  %3961 = vmatprep.subr.bf16.mxu0 %v2858
  %3962 = vmatpush1.bf16.msra.mxu0 %v2857
  %3963 = vmatprep.subr.bf16.mxu0 %v2864
  %3964 = vmatpush1.bf16.msra.mxu0 %v2863
  %3965 = vmatprep.subr.bf16.mxu0 %v2870
  %3966 = vmatpush1.bf16.msra.mxu0 %v2869
  %3967 = vmatprep.subr.bf16.mxu0 %v2876
  %3968 = vmatpush1.bf16.msra.mxu0 %v2875
  %3969 = vmatprep.mubr.bf16.mxu0 %v198
  %3970 = vmatmul.mubr.bf16.gmra.mrb[0].mxu0 %v197
  %v3971 = vpop.f32.mrb[0].mxu0
  %v3972 = vadd.f32 %v1030, %v3971
  %v3973 = vpop.f32.mrb[0].mxu0
  %v3974 = vadd.f32 %v1034, %v3973
  %v3975 = vpop.f32.mrb[0].mxu0
  %v3976 = vadd.f32 %v1030, %v3975
  %v3977 = vpop.f32.mrb[0].mxu0
  %v3978 = vadd.f32 %v1034, %v3977
  %3979 = vmatprep.mubr.bf16.mxu0 %v210
  %3980 = vmatmul.mubr.bf16.gmra.mrb[0].mxu0 %v209
  %v3981 = vpop.f32.mrb[0].mxu0
  %v3982 = vadd.f32 %v1030, %v3981
  %v3983 = vpop.f32.mrb[0].mxu0
  %v3984 = vadd.f32 %v1034, %v3983
  %v3985 = vpop.f32.mrb[0].mxu0
  %v3986 = vadd.f32 %v1030, %v3985
  %v3987 = vpop.f32.mrb[0].mxu0
  %v3988 = vadd.f32 %v1034, %v3987
  %3989 = vmatprep.mubr.bf16.mxu0 %v222
  %3990 = vmatmul.mubr.bf16.gmra.mrb[0].mxu0 %v221
  %v3991 = vpop.f32.mrb[0].mxu0
  %v3992 = vadd.f32 %v1030, %v3991
  %v3993 = vpop.f32.mrb[0].mxu0
  %v3994 = vadd.f32 %v1034, %v3993
  %v3995 = vpop.f32.mrb[0].mxu0
  %v3996 = vadd.f32 %v1030, %v3995
  %v3997 = vpop.f32.mrb[0].mxu0
  %v3998 = vadd.f32 %v1034, %v3997
  %3999 = vmatprep.mubr.bf16.mxu0 %v378
  %4000 = vmatmul.mubr.bf16.gmra.mrb[0].mxu0 %v377
  %v4001 = vpop.f32.mrb[0].mxu0
  %v4002 = vadd.f32 %v1030, %v4001
  %v4003 = vpop.f32.mrb[0].mxu0
  %v4004 = vadd.f32 %v1034, %v4003
  %v4005 = vpop.f32.mrb[0].mxu0
  %v4006 = vadd.f32 %v1030, %v4005
  %v4007 = vpop.f32.mrb[0].mxu0
  %v4008 = vadd.f32 %v1034, %v4007
  %4009 = vmatprep.mubr.bf16.mxu0 %v390
  %4010 = vmatmul.mubr.bf16.gmra.mrb[0].mxu0 %v389
  %v4011 = vpop.f32.mrb[0].mxu0
  %v4012 = vadd.f32 %v1030, %v4011
  %v4013 = vpop.f32.mrb[0].mxu0
  %v4014 = vadd.f32 %v1034, %v4013
  %v4015 = vpop.f32.mrb[0].mxu0
  %v4016 = vadd.f32 %v1030, %v4015
  %v4017 = vpop.f32.mrb[0].mxu0
  %v4018 = vadd.f32 %v1034, %v4017
  %4019 = vmatprep.mubr.bf16.mxu0 %v402
  %4020 = vmatmul.mubr.bf16.gmra.mrb[0].mxu0 %v401
  %v4021 = vpop.f32.mrb[0].mxu0
  %v4022 = vadd.f32 %v1030, %v4021
  %v4023 = vpop.f32.mrb[0].mxu0
  %v4024 = vadd.f32 %v1034, %v4023
  %v4025 = vpop.f32.mrb[0].mxu0
  %v4026 = vadd.f32 %v1030, %v4025
  %v4027 = vpop.f32.mrb[0].mxu0
  %v4028 = vadd.f32 %v1034, %v4027
  %4029 = vdwg.mxu0
  %4030 = vmatprep.subr.bf16.mxu0 %v2882
  %4031 = vmatpush1.bf16.msra.mxu0 %v2881
  %4032 = vmatprep.subr.bf16.mxu0 %v2888
  %4033 = vmatpush1.bf16.msra.mxu0 %v2887
  %4034 = vmatprep.subr.bf16.mxu0 %v2894
  %4035 = vmatpush1.bf16.msra.mxu0 %v2893
  %4036 = vmatprep.subr.bf16.mxu0 %v2900
  %4037 = vmatpush1.bf16.msra.mxu0 %v2899
  %4038 = vmatprep.subr.bf16.mxu0 %v2906
  %4039 = vmatpush1.bf16.msra.mxu0 %v2905
  %4040 = vmatprep.subr.bf16.mxu0 %v2912
  %4041 = vmatpush1.bf16.msra.mxu0 %v2911
  %4042 = vmatprep.subr.bf16.mxu0 %v2918
  %4043 = vmatpush1.bf16.msra.mxu0 %v2917
  %4044 = vmatprep.subr.bf16.mxu0 %v2924
  %4045 = vmatpush1.bf16.msra.mxu0 %v2923
  %4046 = vmatprep.subr.bf16.mxu0 %v2930
  %4047 = vmatpush1.bf16.msra.mxu0 %v2929
  %4048 = vmatprep.subr.bf16.mxu0 %v2936
  %4049 = vmatpush1.bf16.msra.mxu0 %v2935
  %4050 = vmatprep.subr.bf16.mxu0 %v2942
  %4051 = vmatpush1.bf16.msra.mxu0 %v2941
  %4052 = vmatprep.subr.bf16.mxu0 %v2948
  %4053 = vmatpush1.bf16.msra.mxu0 %v2947
  %4054 = vmatprep.subr.bf16.mxu0 %v2954
  %4055 = vmatpush1.bf16.msra.mxu0 %v2953
  %4056 = vmatprep.subr.bf16.mxu0 %v2960
  %4057 = vmatpush1.bf16.msra.mxu0 %v2959
  %4058 = vmatprep.subr.bf16.mxu0 %v2966
  %4059 = vmatpush1.bf16.msra.mxu0 %v2965
  %4060 = vmatprep.subr.bf16.mxu0 %v2972
  %4061 = vmatpush1.bf16.msra.mxu0 %v2971
  %4062 = vmatprep.mubr.bf16.mxu0 %v200
  %4063 = vmatmul.mubr.bf16.gmra.mrb[0].mxu0 %v199
  %v4064 = vpop.f32.mrb[0].mxu0
  %v4065 = vadd.f32 %v3972, %v4064
  %v4066 = vpop.f32.mrb[0].mxu0
  %v4067 = vadd.f32 %v3974, %v4066
  %v4068 = vpop.f32.mrb[0].mxu0
  %v4069 = vadd.f32 %v3976, %v4068
  %v4070 = vpop.f32.mrb[0].mxu0
  %v4071 = vadd.f32 %v3978, %v4070
  %4072 = vmatprep.mubr.bf16.mxu0 %v212
  %4073 = vmatmul.mubr.bf16.gmra.mrb[0].mxu0 %v211
  %v4074 = vpop.f32.mrb[0].mxu0
  %v4075 = vadd.f32 %v3982, %v4074
  %v4076 = vpop.f32.mrb[0].mxu0
  %v4077 = vadd.f32 %v3984, %v4076
  %v4078 = vpop.f32.mrb[0].mxu0
  %v4079 = vadd.f32 %v3986, %v4078
  %v4080 = vpop.f32.mrb[0].mxu0
  %v4081 = vadd.f32 %v3988, %v4080
  %4082 = vmatprep.mubr.bf16.mxu0 %v224
  %4083 = vmatmul.mubr.bf16.gmra.mrb[0].mxu0 %v223
  %v4084 = vpop.f32.mrb[0].mxu0
  %v4085 = vadd.f32 %v3992, %v4084
  %v4086 = vpop.f32.mrb[0].mxu0
  %v4087 = vadd.f32 %v3994, %v4086
  %v4088 = vpop.f32.mrb[0].mxu0
  %v4089 = vadd.f32 %v3996, %v4088
  %v4090 = vpop.f32.mrb[0].mxu0
  %v4091 = vadd.f32 %v3998, %v4090
  %4092 = vmatprep.mubr.bf16.mxu0 %v380
  %4093 = vmatmul.mubr.bf16.gmra.mrb[0].mxu0 %v379
  %v4094 = vpop.f32.mrb[0].mxu0
  %v4095 = vadd.f32 %v4002, %v4094
  %v4096 = vpop.f32.mrb[0].mxu0
  %v4097 = vadd.f32 %v4004, %v4096
  %v4098 = vpop.f32.mrb[0].mxu0
  %v4099 = vadd.f32 %v4006, %v4098
  %v4100 = vpop.f32.mrb[0].mxu0
  %v4101 = vadd.f32 %v4008, %v4100
  %4102 = vmatprep.mubr.bf16.mxu0 %v392
  %4103 = vmatmul.mubr.bf16.gmra.mrb[0].mxu0 %v391
  %v4104 = vpop.f32.mrb[0].mxu0
  %v4105 = vadd.f32 %v4012, %v4104
  %v4106 = vpop.f32.mrb[0].mxu0
  %v4107 = vadd.f32 %v4014, %v4106
  %v4108 = vpop.f32.mrb[0].mxu0
  %v4109 = vadd.f32 %v4016, %v4108
  %v4110 = vpop.f32.mrb[0].mxu0
  %v4111 = vadd.f32 %v4018, %v4110
  %4112 = vmatprep.mubr.bf16.mxu0 %v404
  %4113 = vmatmul.mubr.bf16.gmra.mrb[0].mxu0 %v403
  %v4114 = vpop.f32.mrb[0].mxu0
  %v4115 = vadd.f32 %v4022, %v4114
  %v4116 = vpop.f32.mrb[0].mxu0
  %v4117 = vadd.f32 %v4024, %v4116
  %v4118 = vpop.f32.mrb[0].mxu0
  %v4119 = vadd.f32 %v4026, %v4118
  %v4120 = vpop.f32.mrb[0].mxu0
  %v4121 = vadd.f32 %v4028, %v4120
  %4122 = vdwg.mxu0
  %4123 = vmatprep.subr.bf16.mxu0 %v2978
  %4124 = vmatpush1.bf16.msra.mxu0 %v2977
  %4125 = vmatprep.subr.bf16.mxu0 %v2984
  %4126 = vmatpush1.bf16.msra.mxu0 %v2983
  %4127 = vmatprep.subr.bf16.mxu0 %v2990
  %4128 = vmatpush1.bf16.msra.mxu0 %v2989
  %4129 = vmatprep.subr.bf16.mxu0 %v2996
  %4130 = vmatpush1.bf16.msra.mxu0 %v2995
  %4131 = vmatprep.subr.bf16.mxu0 %v3002
  %4132 = vmatpush1.bf16.msra.mxu0 %v3001
  %4133 = vmatprep.subr.bf16.mxu0 %v3008
  %4134 = vmatpush1.bf16.msra.mxu0 %v3007
  %4135 = vmatprep.subr.bf16.mxu0 %v3014
  %4136 = vmatpush1.bf16.msra.mxu0 %v3013
  %4137 = vmatprep.subr.bf16.mxu0 %v3020
  %4138 = vmatpush1.bf16.msra.mxu0 %v3019
  %4139 = vmatprep.subr.bf16.mxu0 %v3026
  %4140 = vmatpush1.bf16.msra.mxu0 %v3025
  %4141 = vmatprep.subr.bf16.mxu0 %v3032
  %4142 = vmatpush1.bf16.msra.mxu0 %v3031
  %4143 = vmatprep.subr.bf16.mxu0 %v3038
  %4144 = vmatpush1.bf16.msra.mxu0 %v3037
  %4145 = vmatprep.subr.bf16.mxu0 %v3044
  %4146 = vmatpush1.bf16.msra.mxu0 %v3043
  %4147 = vmatprep.subr.bf16.mxu0 %v3050
  %4148 = vmatpush1.bf16.msra.mxu0 %v3049
  %4149 = vmatprep.subr.bf16.mxu0 %v3056
  %4150 = vmatpush1.bf16.msra.mxu0 %v3055
  %4151 = vmatprep.subr.bf16.mxu0 %v3062
  %4152 = vmatpush1.bf16.msra.mxu0 %v3061
  %4153 = vmatprep.subr.bf16.mxu0 %v3068
  %4154 = vmatpush1.bf16.msra.mxu0 %v3067
  %4155 = vmatprep.mubr.bf16.mxu0 %v202
  %4156 = vmatmul.mubr.bf16.gmra.mrb[0].mxu0 %v201
  %v4157 = vpop.f32.mrb[0].mxu0
  %v4158 = vadd.f32 %v4065, %v4157
  %v4159 = vpop.f32.mrb[0].mxu0
  %v4160 = vadd.f32 %v4067, %v4159
  %v4161 = vpop.f32.mrb[0].mxu0
  %v4162 = vadd.f32 %v4069, %v4161
  %v4163 = vpop.f32.mrb[0].mxu0
  %v4164 = vadd.f32 %v4071, %v4163
  %4165 = vmatprep.mubr.bf16.mxu0 %v214
  %4166 = vmatmul.mubr.bf16.gmra.mrb[0].mxu0 %v213
  %v4167 = vpop.f32.mrb[0].mxu0
  %v4168 = vadd.f32 %v4075, %v4167
  %v4169 = vpop.f32.mrb[0].mxu0
  %v4170 = vadd.f32 %v4077, %v4169
  %v4171 = vpop.f32.mrb[0].mxu0
  %v4172 = vadd.f32 %v4079, %v4171
  %v4173 = vpop.f32.mrb[0].mxu0
  %v4174 = vadd.f32 %v4081, %v4173
  %4175 = vmatprep.mubr.bf16.mxu0 %v226
  %4176 = vmatmul.mubr.bf16.gmra.mrb[0].mxu0 %v225
  %v4177 = vpop.f32.mrb[0].mxu0
  %v4178 = vadd.f32 %v4085, %v4177
  %v4179 = vpop.f32.mrb[0].mxu0
  %v4180 = vadd.f32 %v4087, %v4179
  %v4181 = vpop.f32.mrb[0].mxu0
  %v4182 = vadd.f32 %v4089, %v4181
  %v4183 = vpop.f32.mrb[0].mxu0
  %v4184 = vadd.f32 %v4091, %v4183
  %4185 = vmatprep.mubr.bf16.mxu0 %v382
  %4186 = vmatmul.mubr.bf16.gmra.mrb[0].mxu0 %v381
  %v4187 = vpop.f32.mrb[0].mxu0
  %v4188 = vadd.f32 %v4095, %v4187
  %v4189 = vpop.f32.mrb[0].mxu0
  %v4190 = vadd.f32 %v4097, %v4189
  %v4191 = vpop.f32.mrb[0].mxu0
  %v4192 = vadd.f32 %v4099, %v4191
  %v4193 = vpop.f32.mrb[0].mxu0
  %v4194 = vadd.f32 %v4101, %v4193
  %4195 = vmatprep.mubr.bf16.mxu0 %v394
  %4196 = vmatmul.mubr.bf16.gmra.mrb[0].mxu0 %v393
  %v4197 = vpop.f32.mrb[0].mxu0
  %v4198 = vadd.f32 %v4105, %v4197
  %v4199 = vpop.f32.mrb[0].mxu0
  %v4200 = vadd.f32 %v4107, %v4199
  %v4201 = vpop.f32.mrb[0].mxu0
  %v4202 = vadd.f32 %v4109, %v4201
  %v4203 = vpop.f32.mrb[0].mxu0
  %v4204 = vadd.f32 %v4111, %v4203
  %4205 = vmatprep.mubr.bf16.mxu0 %v406
  %4206 = vmatmul.mubr.bf16.gmra.mrb[0].mxu0 %v405
  %v4207 = vpop.f32.mrb[0].mxu0
  %v4208 = vadd.f32 %v4115, %v4207
  %v4209 = vpop.f32.mrb[0].mxu0
  %v4210 = vadd.f32 %v4117, %v4209
  %v4211 = vpop.f32.mrb[0].mxu0
  %v4212 = vadd.f32 %v4119, %v4211
  %v4213 = vpop.f32.mrb[0].mxu0
  %v4214 = vadd.f32 %v4121, %v4213
  %4215 = vdwg.mxu0
  %4216 = vmatprep.subr.bf16.mxu0 %v3074
  %4217 = vmatpush1.bf16.msra.mxu0 %v3073
  %4218 = vmatprep.subr.bf16.mxu0 %v3080
  %4219 = vmatpush1.bf16.msra.mxu0 %v3079
  %4220 = vmatprep.subr.bf16.mxu0 %v3086
  %4221 = vmatpush1.bf16.msra.mxu0 %v3085
  %4222 = vmatprep.subr.bf16.mxu0 %v3092
  %4223 = vmatpush1.bf16.msra.mxu0 %v3091
  %4224 = vmatprep.subr.bf16.mxu0 %v3098
  %4225 = vmatpush1.bf16.msra.mxu0 %v3097
  %4226 = vmatprep.subr.bf16.mxu0 %v3104
  %4227 = vmatpush1.bf16.msra.mxu0 %v3103
  %4228 = vmatprep.subr.bf16.mxu0 %v3110
  %4229 = vmatpush1.bf16.msra.mxu0 %v3109
  %4230 = vmatprep.subr.bf16.mxu0 %v3116
  %4231 = vmatpush1.bf16.msra.mxu0 %v3115
  %4232 = vmatprep.subr.bf16.mxu0 %v3122
  %4233 = vmatpush1.bf16.msra.mxu0 %v3121
  %4234 = vmatprep.subr.bf16.mxu0 %v3128
  %4235 = vmatpush1.bf16.msra.mxu0 %v3127
  %4236 = vmatprep.subr.bf16.mxu0 %v3134
  %4237 = vmatpush1.bf16.msra.mxu0 %v3133
  %4238 = vmatprep.subr.bf16.mxu0 %v3140
  %4239 = vmatpush1.bf16.msra.mxu0 %v3139
  %4240 = vmatprep.subr.bf16.mxu0 %v3146
  %4241 = vmatpush1.bf16.msra.mxu0 %v3145
  %4242 = vmatprep.subr.bf16.mxu0 %v3152
  %4243 = vmatpush1.bf16.msra.mxu0 %v3151
  %4244 = vmatprep.subr.bf16.mxu0 %v3158
  %4245 = vmatpush1.bf16.msra.mxu0 %v3157
  %4246 = vmatprep.subr.bf16.mxu0 %v3164
  %4247 = vmatpush1.bf16.msra.mxu0 %v3163
  %4248 = vmatprep.mubr.bf16.mxu0 %v204
  %4249 = vmatmul.mubr.bf16.gmra.mrb[0].mxu0 %v203
  %v4250 = vpop.f32.mrb[0].mxu0
  %v4251 = vadd.f32 %v4158, %v4250
  %v4252 = vpop.f32.mrb[0].mxu0
  %v4253 = vadd.f32 %v4160, %v4252
  %v4254 = vpop.f32.mrb[0].mxu0
  %v4255 = vadd.f32 %v4162, %v4254
  %v4256 = vpop.f32.mrb[0].mxu0
  %v4257 = vadd.f32 %v4164, %v4256
  %4258 = vmatprep.mubr.bf16.mxu0 %v216
  %4259 = vmatmul.mubr.bf16.gmra.mrb[0].mxu0 %v215
  %v4260 = vpop.f32.mrb[0].mxu0
  %v4261 = vadd.f32 %v4168, %v4260
  %v4262 = vpop.f32.mrb[0].mxu0
  %v4263 = vadd.f32 %v4170, %v4262
  %v4264 = vpop.f32.mrb[0].mxu0
  %v4265 = vadd.f32 %v4172, %v4264
  %v4266 = vpop.f32.mrb[0].mxu0
  %v4267 = vadd.f32 %v4174, %v4266
  %4268 = vmatprep.mubr.bf16.mxu0 %v228
  %4269 = vmatmul.mubr.bf16.gmra.mrb[0].mxu0 %v227
  %v4270 = vpop.f32.mrb[0].mxu0
  %v4271 = vadd.f32 %v4178, %v4270
  %v4272 = vpop.f32.mrb[0].mxu0
  %v4273 = vadd.f32 %v4180, %v4272
  %v4274 = vpop.f32.mrb[0].mxu0
  %v4275 = vadd.f32 %v4182, %v4274
  %v4276 = vpop.f32.mrb[0].mxu0
  %v4277 = vadd.f32 %v4184, %v4276
  %4278 = vmatprep.mubr.bf16.mxu0 %v384
  %4279 = vmatmul.mubr.bf16.gmra.mrb[0].mxu0 %v383
  %v4280 = vpop.f32.mrb[0].mxu0
  %v4281 = vadd.f32 %v4188, %v4280
  %v4282 = vpop.f32.mrb[0].mxu0
  %v4283 = vadd.f32 %v4190, %v4282
  %v4284 = vpop.f32.mrb[0].mxu0
  %v4285 = vadd.f32 %v4192, %v4284
  %v4286 = vpop.f32.mrb[0].mxu0
  %v4287 = vadd.f32 %v4194, %v4286
  %4288 = vmatprep.mubr.bf16.mxu0 %v396
  %4289 = vmatmul.mubr.bf16.gmra.mrb[0].mxu0 %v395
  %v4290 = vpop.f32.mrb[0].mxu0
  %v4291 = vadd.f32 %v4198, %v4290
  %v4292 = vpop.f32.mrb[0].mxu0
  %v4293 = vadd.f32 %v4200, %v4292
  %v4294 = vpop.f32.mrb[0].mxu0
  %v4295 = vadd.f32 %v4202, %v4294
  %v4296 = vpop.f32.mrb[0].mxu0
  %v4297 = vadd.f32 %v4204, %v4296
  %4298 = vmatprep.mubr.bf16.mxu0 %v408
  %4299 = vmatmul.mubr.bf16.gmra.mrb[0].mxu0 %v407
  %v4300 = vpop.f32.mrb[0].mxu0
  %v4301 = vadd.f32 %v4208, %v4300
  %v4302 = vpop.f32.mrb[0].mxu0
  %v4303 = vadd.f32 %v4210, %v4302
  %v4304 = vpop.f32.mrb[0].mxu0
  %v4305 = vadd.f32 %v4212, %v4304
  %v4306 = vpop.f32.mrb[0].mxu0
  %v4307 = vadd.f32 %v4214, %v4306
  %4308 = vdwg.mxu0
  %4309 = vmatprep.subr.bf16.mxu0 %v3170
  %4310 = vmatpush1.bf16.msra.mxu0 %v3169
  %4311 = vmatprep.subr.bf16.mxu0 %v3176
  %4312 = vmatpush1.bf16.msra.mxu0 %v3175
  %4313 = vmatprep.subr.bf16.mxu0 %v3182
  %4314 = vmatpush1.bf16.msra.mxu0 %v3181
  %4315 = vmatprep.subr.bf16.mxu0 %v3188
  %4316 = vmatpush1.bf16.msra.mxu0 %v3187
  %4317 = vmatprep.subr.bf16.mxu0 %v3194
  %4318 = vmatpush1.bf16.msra.mxu0 %v3193
  %4319 = vmatprep.subr.bf16.mxu0 %v3200
  %4320 = vmatpush1.bf16.msra.mxu0 %v3199
  %4321 = vmatprep.subr.bf16.mxu0 %v3206
  %4322 = vmatpush1.bf16.msra.mxu0 %v3205
  %4323 = vmatprep.subr.bf16.mxu0 %v3212
  %4324 = vmatpush1.bf16.msra.mxu0 %v3211
  %4325 = vmatprep.subr.bf16.mxu0 %v3218
  %4326 = vmatpush1.bf16.msra.mxu0 %v3217
  %4327 = vmatprep.subr.bf16.mxu0 %v3224
  %4328 = vmatpush1.bf16.msra.mxu0 %v3223
  %4329 = vmatprep.subr.bf16.mxu0 %v3230
  %4330 = vmatpush1.bf16.msra.mxu0 %v3229
  %4331 = vmatprep.subr.bf16.mxu0 %v3236
  %4332 = vmatpush1.bf16.msra.mxu0 %v3235
  %4333 = vmatprep.subr.bf16.mxu0 %v3242
  %4334 = vmatpush1.bf16.msra.mxu0 %v3241
  %4335 = vmatprep.subr.bf16.mxu0 %v3248
  %4336 = vmatpush1.bf16.msra.mxu0 %v3247
  %4337 = vmatprep.subr.bf16.mxu0 %v3254
  %4338 = vmatpush1.bf16.msra.mxu0 %v3253
  %4339 = vmatprep.subr.bf16.mxu0 %v3260
  %4340 = vmatpush1.bf16.msra.mxu0 %v3259
  %4341 = vmatprep.mubr.bf16.mxu0 %v206
  %4342 = vmatmul.mubr.bf16.gmra.mrb[0].mxu0 %v205
  %v4343 = vpop.f32.mrb[0].mxu0
  %v4344 = vadd.f32 %v4251, %v4343
  %v4345 = vpop.f32.mrb[0].mxu0
  %v4346 = vadd.f32 %v4253, %v4345
  %v4347 = vpop.f32.mrb[0].mxu0
  %v4348 = vadd.f32 %v4255, %v4347
  %v4349 = vpop.f32.mrb[0].mxu0
  %v4350 = vadd.f32 %v4257, %v4349
  %4351 = vmatprep.mubr.bf16.mxu0 %v218
  %4352 = vmatmul.mubr.bf16.gmra.mrb[0].mxu0 %v217
  %v4353 = vpop.f32.mrb[0].mxu0
  %v4354 = vadd.f32 %v4261, %v4353
  %v4355 = vpop.f32.mrb[0].mxu0
  %v4356 = vadd.f32 %v4263, %v4355
  %v4357 = vpop.f32.mrb[0].mxu0
  %v4358 = vadd.f32 %v4265, %v4357
  %v4359 = vpop.f32.mrb[0].mxu0
  %v4360 = vadd.f32 %v4267, %v4359
  %4361 = vmatprep.mubr.bf16.mxu0 %v230
  %4362 = vmatmul.mubr.bf16.gmra.mrb[0].mxu0 %v229
  %v4363 = vpop.f32.mrb[0].mxu0
  %v4364 = vadd.f32 %v4271, %v4363
  %v4365 = vpop.f32.mrb[0].mxu0
  %v4366 = vadd.f32 %v4273, %v4365
  %v4367 = vpop.f32.mrb[0].mxu0
  %v4368 = vadd.f32 %v4275, %v4367
  %v4369 = vpop.f32.mrb[0].mxu0
  %v4370 = vadd.f32 %v4277, %v4369
  %4371 = vmatprep.mubr.bf16.mxu0 %v386
  %4372 = vmatmul.mubr.bf16.gmra.mrb[0].mxu0 %v385
  %v4373 = vpop.f32.mrb[0].mxu0
  %v4374 = vadd.f32 %v4281, %v4373
  %v4375 = vpop.f32.mrb[0].mxu0
  %v4376 = vadd.f32 %v4283, %v4375
  %v4377 = vpop.f32.mrb[0].mxu0
  %v4378 = vadd.f32 %v4285, %v4377
  %v4379 = vpop.f32.mrb[0].mxu0
  %v4380 = vadd.f32 %v4287, %v4379
  %4381 = vmatprep.mubr.bf16.mxu0 %v398
  %4382 = vmatmul.mubr.bf16.gmra.mrb[0].mxu0 %v397
  %v4383 = vpop.f32.mrb[0].mxu0
  %v4384 = vadd.f32 %v4291, %v4383
  %v4385 = vpop.f32.mrb[0].mxu0
  %v4386 = vadd.f32 %v4293, %v4385
  %v4387 = vpop.f32.mrb[0].mxu0
  %v4388 = vadd.f32 %v4295, %v4387
  %v4389 = vpop.f32.mrb[0].mxu0
  %v4390 = vadd.f32 %v4297, %v4389
  %4391 = vmatprep.mubr.bf16.mxu0 %v410
  %4392 = vmatmul.mubr.bf16.gmra.mrb[0].mxu0 %v409
  %v4393 = vpop.f32.mrb[0].mxu0
  %v4394 = vadd.f32 %v4301, %v4393
  %v4395 = vpop.f32.mrb[0].mxu0
  %v4396 = vadd.f32 %v4303, %v4395
  %v4397 = vpop.f32.mrb[0].mxu0
  %v4398 = vadd.f32 %v4305, %v4397
  %v4399 = vpop.f32.mrb[0].mxu0
  %v4400 = vadd.f32 %v4307, %v4399
  %4401 = vdwg.mxu0
  %4402 = vmatprep.subr.bf16.mxu0 %v3266
  %4403 = vmatpush1.bf16.msra.mxu0 %v3265
  %4404 = vmatprep.subr.bf16.mxu0 %v3272
  %4405 = vmatpush1.bf16.msra.mxu0 %v3271
  %4406 = vmatprep.subr.bf16.mxu0 %v3278
  %4407 = vmatpush1.bf16.msra.mxu0 %v3277
  %4408 = vmatprep.subr.bf16.mxu0 %v3284
  %4409 = vmatpush1.bf16.msra.mxu0 %v3283
  %4410 = vmatprep.subr.bf16.mxu0 %v3290
  %4411 = vmatpush1.bf16.msra.mxu0 %v3289
  %4412 = vmatprep.subr.bf16.mxu0 %v3296
  %4413 = vmatpush1.bf16.msra.mxu0 %v3295
  %4414 = vmatprep.subr.bf16.mxu0 %v3302
  %4415 = vmatpush1.bf16.msra.mxu0 %v3301
  %4416 = vmatprep.subr.bf16.mxu0 %v3308
  %4417 = vmatpush1.bf16.msra.mxu0 %v3307
  %4418 = vmatprep.subr.bf16.mxu0 %v3314
  %4419 = vmatpush1.bf16.msra.mxu0 %v3313
  %4420 = vmatprep.subr.bf16.mxu0 %v3320
  %4421 = vmatpush1.bf16.msra.mxu0 %v3319
  %4422 = vmatprep.subr.bf16.mxu0 %v3326
  %4423 = vmatpush1.bf16.msra.mxu0 %v3325
  %4424 = vmatprep.subr.bf16.mxu0 %v3332
  %4425 = vmatpush1.bf16.msra.mxu0 %v3331
  %4426 = vmatprep.subr.bf16.mxu0 %v3338
  %4427 = vmatpush1.bf16.msra.mxu0 %v3337
  %4428 = vmatprep.subr.bf16.mxu0 %v3344
  %4429 = vmatpush1.bf16.msra.mxu0 %v3343
  %4430 = vmatprep.subr.bf16.mxu0 %v3350
  %4431 = vmatpush1.bf16.msra.mxu0 %v3349
  %4432 = vmatprep.subr.bf16.mxu0 %v3356
  %4433 = vmatpush1.bf16.msra.mxu0 %v3355
  %4434 = vmatprep.mubr.bf16.mxu0 %v208
  %4435 = vmatmul.mubr.bf16.gmra.mrb[0].mxu0 %v207
  %v4436 = vpop.f32.mrb[0].mxu0
  %v4437 = vadd.f32 %v4344, %v4436
  %v4438 = vpop.f32.mrb[0].mxu0
  %v4439 = vadd.f32 %v4346, %v4438
  %v4440 = vpop.f32.mrb[0].mxu0
  %v4441 = vadd.f32 %v4348, %v4440
  %v4442 = vpop.f32.mrb[0].mxu0
  %v4443 = vadd.f32 %v4350, %v4442
  %4444 = vmatprep.mubr.bf16.mxu0 %v220
  %4445 = vmatmul.mubr.bf16.gmra.mrb[0].mxu0 %v219
  %v4446 = vpop.f32.mrb[0].mxu0
  %v4447 = vadd.f32 %v4354, %v4446
  %v4448 = vpop.f32.mrb[0].mxu0
  %v4449 = vadd.f32 %v4356, %v4448
  %v4450 = vpop.f32.mrb[0].mxu0
  %v4451 = vadd.f32 %v4358, %v4450
  %v4452 = vpop.f32.mrb[0].mxu0
  %v4453 = vadd.f32 %v4360, %v4452
  %4454 = vmatprep.mubr.bf16.mxu0 %v232
  %4455 = vmatmul.mubr.bf16.gmra.mrb[0].mxu0 %v231
  %v4456 = vpop.f32.mrb[0].mxu0
  %v4457 = vadd.f32 %v4364, %v4456
  %v4458 = vpop.f32.mrb[0].mxu0
  %v4459 = vadd.f32 %v4366, %v4458
  %v4460 = vpop.f32.mrb[0].mxu0
  %v4461 = vadd.f32 %v4368, %v4460
  %v4462 = vpop.f32.mrb[0].mxu0
  %v4463 = vadd.f32 %v4370, %v4462
  %4464 = vmatprep.mubr.bf16.mxu0 %v388
  %4465 = vmatmul.mubr.bf16.gmra.mrb[0].mxu0 %v387
  %v4466 = vpop.f32.mrb[0].mxu0
  %v4467 = vadd.f32 %v4374, %v4466
  %v4468 = vpop.f32.mrb[0].mxu0
  %v4469 = vadd.f32 %v4376, %v4468
  %v4470 = vpop.f32.mrb[0].mxu0
  %v4471 = vadd.f32 %v4378, %v4470
  %v4472 = vpop.f32.mrb[0].mxu0
  %v4473 = vadd.f32 %v4380, %v4472
  %4474 = vmatprep.mubr.bf16.mxu0 %v400
  %4475 = vmatmul.mubr.bf16.gmra.mrb[0].mxu0 %v399
  %v4476 = vpop.f32.mrb[0].mxu0
  %v4477 = vadd.f32 %v4384, %v4476
  %v4478 = vpop.f32.mrb[0].mxu0
  %v4479 = vadd.f32 %v4386, %v4478
  %v4480 = vpop.f32.mrb[0].mxu0
  %v4481 = vadd.f32 %v4388, %v4480
  %v4482 = vpop.f32.mrb[0].mxu0
  %v4483 = vadd.f32 %v4390, %v4482
  %4484 = vmatprep.mubr.bf16.mxu0 %v412
  %4485 = vmatmul.mubr.bf16.gmra.mrb[0].mxu0 %v411
  %v4486 = vpop.f32.mrb[0].mxu0
  %v4487 = vadd.f32 %v4394, %v4486
  %v4488 = vpop.f32.mrb[0].mxu0
  %v4489 = vadd.f32 %v4396, %v4488
  %v4490 = vpop.f32.mrb[0].mxu0
  %v4491 = vadd.f32 %v4398, %v4490
  %v4492 = vpop.f32.mrb[0].mxu0
  %v4493 = vadd.f32 %v4400, %v4492
  %4494 = vdwg.mxu0
  %4495 = vmatprep.subr.bf16.mxu0 %v2788
  %4496 = vmatpush1.bf16.msra.mxu0 %v2787
  %4497 = vmatprep.subr.bf16.mxu0 %v2794
  %4498 = vmatpush1.bf16.msra.mxu0 %v2793
  %4499 = vmatprep.subr.bf16.mxu0 %v2800
  %4500 = vmatpush1.bf16.msra.mxu0 %v2799
  %4501 = vmatprep.subr.bf16.mxu0 %v2806
  %4502 = vmatpush1.bf16.msra.mxu0 %v2805
  %4503 = vmatprep.subr.bf16.mxu0 %v2812
  %4504 = vmatpush1.bf16.msra.mxu0 %v2811
  %4505 = vmatprep.subr.bf16.mxu0 %v2818
  %4506 = vmatpush1.bf16.msra.mxu0 %v2817
  %4507 = vmatprep.subr.bf16.mxu0 %v2824
  %4508 = vmatpush1.bf16.msra.mxu0 %v2823
  %4509 = vmatprep.subr.bf16.mxu0 %v2830
  %4510 = vmatpush1.bf16.msra.mxu0 %v2829
  %4511 = vmatprep.subr.bf16.mxu0 %v2836
  %4512 = vmatpush1.bf16.msra.mxu0 %v2835
  %4513 = vmatprep.subr.bf16.mxu0 %v2842
  %4514 = vmatpush1.bf16.msra.mxu0 %v2841
  %4515 = vmatprep.subr.bf16.mxu0 %v2848
  %4516 = vmatpush1.bf16.msra.mxu0 %v2847
  %4517 = vmatprep.subr.bf16.mxu0 %v2854
  %4518 = vmatpush1.bf16.msra.mxu0 %v2853
  %4519 = vmatprep.subr.bf16.mxu0 %v2860
  %4520 = vmatpush1.bf16.msra.mxu0 %v2859
  %4521 = vmatprep.subr.bf16.mxu0 %v2866
  %4522 = vmatpush1.bf16.msra.mxu0 %v2865
  %4523 = vmatprep.subr.bf16.mxu0 %v2872
  %4524 = vmatpush1.bf16.msra.mxu0 %v2871
  %4525 = vmatprep.subr.bf16.mxu0 %v2878
  %4526 = vmatpush1.bf16.msra.mxu0 %v2877
  %4527 = vmatprep.mubr.bf16.mxu0 %v198
  %4528 = vmatmul.mubr.bf16.gmra.mrb[0].mxu0 %v197
  %v4529 = vpop.f32.mrb[0].mxu0
  %v4530 = vadd.f32 %v1038, %v4529
  %v4531 = vpop.f32.mrb[0].mxu0
  %v4532 = vadd.f32 %v1042, %v4531
  %v4533 = vpop.f32.mrb[0].mxu0
  %v4534 = vadd.f32 %v1038, %v4533
  %v4535 = vpop.f32.mrb[0].mxu0
  %v4536 = vadd.f32 %v1042, %v4535
  %4537 = vmatprep.mubr.bf16.mxu0 %v210
  %4538 = vmatmul.mubr.bf16.gmra.mrb[0].mxu0 %v209
  %v4539 = vpop.f32.mrb[0].mxu0
  %v4540 = vadd.f32 %v1038, %v4539
  %v4541 = vpop.f32.mrb[0].mxu0
  %v4542 = vadd.f32 %v1042, %v4541
  %v4543 = vpop.f32.mrb[0].mxu0
  %v4544 = vadd.f32 %v1038, %v4543
  %v4545 = vpop.f32.mrb[0].mxu0
  %v4546 = vadd.f32 %v1042, %v4545
  %4547 = vmatprep.mubr.bf16.mxu0 %v222
  %4548 = vmatmul.mubr.bf16.gmra.mrb[0].mxu0 %v221
  %v4549 = vpop.f32.mrb[0].mxu0
  %v4550 = vadd.f32 %v1038, %v4549
  %v4551 = vpop.f32.mrb[0].mxu0
  %v4552 = vadd.f32 %v1042, %v4551
  %v4553 = vpop.f32.mrb[0].mxu0
  %v4554 = vadd.f32 %v1038, %v4553
  %v4555 = vpop.f32.mrb[0].mxu0
  %v4556 = vadd.f32 %v1042, %v4555
  %4557 = vmatprep.mubr.bf16.mxu0 %v378
  %4558 = vmatmul.mubr.bf16.gmra.mrb[0].mxu0 %v377
  %v4559 = vpop.f32.mrb[0].mxu0
  %v4560 = vadd.f32 %v1038, %v4559
  %v4561 = vpop.f32.mrb[0].mxu0
  %v4562 = vadd.f32 %v1042, %v4561
  %v4563 = vpop.f32.mrb[0].mxu0
  %v4564 = vadd.f32 %v1038, %v4563
  %v4565 = vpop.f32.mrb[0].mxu0
  %v4566 = vadd.f32 %v1042, %v4565
  %4567 = vmatprep.mubr.bf16.mxu0 %v390
  %4568 = vmatmul.mubr.bf16.gmra.mrb[0].mxu0 %v389
  %v4569 = vpop.f32.mrb[0].mxu0
  %v4570 = vadd.f32 %v1038, %v4569
  %v4571 = vpop.f32.mrb[0].mxu0
  %v4572 = vadd.f32 %v1042, %v4571
  %v4573 = vpop.f32.mrb[0].mxu0
  %v4574 = vadd.f32 %v1038, %v4573
  %v4575 = vpop.f32.mrb[0].mxu0
  %v4576 = vadd.f32 %v1042, %v4575
  %4577 = vmatprep.mubr.bf16.mxu0 %v402
  %4578 = vmatmul.mubr.bf16.gmra.mrb[0].mxu0 %v401
  %v4579 = vpop.f32.mrb[0].mxu0
  %v4580 = vadd.f32 %v1038, %v4579
  %v4581 = vpop.f32.mrb[0].mxu0
  %v4582 = vadd.f32 %v1042, %v4581
  %v4583 = vpop.f32.mrb[0].mxu0
  %v4584 = vadd.f32 %v1038, %v4583
  %v4585 = vpop.f32.mrb[0].mxu0
  %v4586 = vadd.f32 %v1042, %v4585
  %4587 = vdwg.mxu0
  %4588 = vmatprep.subr.bf16.mxu0 %v2884
  %4589 = vmatpush1.bf16.msra.mxu0 %v2883
  %4590 = vmatprep.subr.bf16.mxu0 %v2890
  %4591 = vmatpush1.bf16.msra.mxu0 %v2889
  %4592 = vmatprep.subr.bf16.mxu0 %v2896
  %4593 = vmatpush1.bf16.msra.mxu0 %v2895
  %4594 = vmatprep.subr.bf16.mxu0 %v2902
  %4595 = vmatpush1.bf16.msra.mxu0 %v2901
  %4596 = vmatprep.subr.bf16.mxu0 %v2908
  %4597 = vmatpush1.bf16.msra.mxu0 %v2907
  %4598 = vmatprep.subr.bf16.mxu0 %v2914
  %4599 = vmatpush1.bf16.msra.mxu0 %v2913
  %4600 = vmatprep.subr.bf16.mxu0 %v2920
  %4601 = vmatpush1.bf16.msra.mxu0 %v2919
  %4602 = vmatprep.subr.bf16.mxu0 %v2926
  %4603 = vmatpush1.bf16.msra.mxu0 %v2925
  %4604 = vmatprep.subr.bf16.mxu0 %v2932
  %4605 = vmatpush1.bf16.msra.mxu0 %v2931
  %4606 = vmatprep.subr.bf16.mxu0 %v2938
  %4607 = vmatpush1.bf16.msra.mxu0 %v2937
  %4608 = vmatprep.subr.bf16.mxu0 %v2944
  %4609 = vmatpush1.bf16.msra.mxu0 %v2943
  %4610 = vmatprep.subr.bf16.mxu0 %v2950
  %4611 = vmatpush1.bf16.msra.mxu0 %v2949
  %4612 = vmatprep.subr.bf16.mxu0 %v2956
  %4613 = vmatpush1.bf16.msra.mxu0 %v2955
  %4614 = vmatprep.subr.bf16.mxu0 %v2962
  %4615 = vmatpush1.bf16.msra.mxu0 %v2961
  %4616 = vmatprep.subr.bf16.mxu0 %v2968
  %4617 = vmatpush1.bf16.msra.mxu0 %v2967
  %4618 = vmatprep.subr.bf16.mxu0 %v2974
  %4619 = vmatpush1.bf16.msra.mxu0 %v2973
  %4620 = vmatprep.mubr.bf16.mxu0 %v200
  %4621 = vmatmul.mubr.bf16.gmra.mrb[0].mxu0 %v199
  %v4622 = vpop.f32.mrb[0].mxu0
  %v4623 = vadd.f32 %v4530, %v4622
  %v4624 = vpop.f32.mrb[0].mxu0
  %v4625 = vadd.f32 %v4532, %v4624
  %v4626 = vpop.f32.mrb[0].mxu0
  %v4627 = vadd.f32 %v4534, %v4626
  %v4628 = vpop.f32.mrb[0].mxu0
  %v4629 = vadd.f32 %v4536, %v4628
  %4630 = vmatprep.mubr.bf16.mxu0 %v212
  %4631 = vmatmul.mubr.bf16.gmra.mrb[0].mxu0 %v211
  %v4632 = vpop.f32.mrb[0].mxu0
  %v4633 = vadd.f32 %v4540, %v4632
  %v4634 = vpop.f32.mrb[0].mxu0
  %v4635 = vadd.f32 %v4542, %v4634
  %v4636 = vpop.f32.mrb[0].mxu0
  %v4637 = vadd.f32 %v4544, %v4636
  %v4638 = vpop.f32.mrb[0].mxu0
  %v4639 = vadd.f32 %v4546, %v4638
  %4640 = vmatprep.mubr.bf16.mxu0 %v224
  %4641 = vmatmul.mubr.bf16.gmra.mrb[0].mxu0 %v223
  %v4642 = vpop.f32.mrb[0].mxu0
  %v4643 = vadd.f32 %v4550, %v4642
  %v4644 = vpop.f32.mrb[0].mxu0
  %v4645 = vadd.f32 %v4552, %v4644
  %v4646 = vpop.f32.mrb[0].mxu0
  %v4647 = vadd.f32 %v4554, %v4646
  %v4648 = vpop.f32.mrb[0].mxu0
  %v4649 = vadd.f32 %v4556, %v4648
  %4650 = vmatprep.mubr.bf16.mxu0 %v380
  %4651 = vmatmul.mubr.bf16.gmra.mrb[0].mxu0 %v379
  %v4652 = vpop.f32.mrb[0].mxu0
  %v4653 = vadd.f32 %v4560, %v4652
  %v4654 = vpop.f32.mrb[0].mxu0
  %v4655 = vadd.f32 %v4562, %v4654
  %v4656 = vpop.f32.mrb[0].mxu0
  %v4657 = vadd.f32 %v4564, %v4656
  %v4658 = vpop.f32.mrb[0].mxu0
  %v4659 = vadd.f32 %v4566, %v4658
  %4660 = vmatprep.mubr.bf16.mxu0 %v392
  %4661 = vmatmul.mubr.bf16.gmra.mrb[0].mxu0 %v391
  %v4662 = vpop.f32.mrb[0].mxu0
  %v4663 = vadd.f32 %v4570, %v4662
  %v4664 = vpop.f32.mrb[0].mxu0
  %v4665 = vadd.f32 %v4572, %v4664
  %v4666 = vpop.f32.mrb[0].mxu0
  %v4667 = vadd.f32 %v4574, %v4666
  %v4668 = vpop.f32.mrb[0].mxu0
  %v4669 = vadd.f32 %v4576, %v4668
  %4670 = vmatprep.mubr.bf16.mxu0 %v404
  %4671 = vmatmul.mubr.bf16.gmra.mrb[0].mxu0 %v403
  %v4672 = vpop.f32.mrb[0].mxu0
  %v4673 = vadd.f32 %v4580, %v4672
  %v4674 = vpop.f32.mrb[0].mxu0
  %v4675 = vadd.f32 %v4582, %v4674
  %v4676 = vpop.f32.mrb[0].mxu0
  %v4677 = vadd.f32 %v4584, %v4676
  %v4678 = vpop.f32.mrb[0].mxu0
  %v4679 = vadd.f32 %v4586, %v4678
  %4680 = vdwg.mxu0
  %4681 = vmatprep.subr.bf16.mxu0 %v2980
  %4682 = vmatpush1.bf16.msra.mxu0 %v2979
  %4683 = vmatprep.subr.bf16.mxu0 %v2986
  %4684 = vmatpush1.bf16.msra.mxu0 %v2985
  %4685 = vmatprep.subr.bf16.mxu0 %v2992
  %4686 = vmatpush1.bf16.msra.mxu0 %v2991
  %4687 = vmatprep.subr.bf16.mxu0 %v2998
  %4688 = vmatpush1.bf16.msra.mxu0 %v2997
  %4689 = vmatprep.subr.bf16.mxu0 %v3004
  %4690 = vmatpush1.bf16.msra.mxu0 %v3003
  %4691 = vmatprep.subr.bf16.mxu0 %v3010
  %4692 = vmatpush1.bf16.msra.mxu0 %v3009
  %4693 = vmatprep.subr.bf16.mxu0 %v3016
  %4694 = vmatpush1.bf16.msra.mxu0 %v3015
  %4695 = vmatprep.subr.bf16.mxu0 %v3022
  %4696 = vmatpush1.bf16.msra.mxu0 %v3021
  %4697 = vmatprep.subr.bf16.mxu0 %v3028
  %4698 = vmatpush1.bf16.msra.mxu0 %v3027
  %4699 = vmatprep.subr.bf16.mxu0 %v3034
  %4700 = vmatpush1.bf16.msra.mxu0 %v3033
  %4701 = vmatprep.subr.bf16.mxu0 %v3040
  %4702 = vmatpush1.bf16.msra.mxu0 %v3039
  %4703 = vmatprep.subr.bf16.mxu0 %v3046
  %4704 = vmatpush1.bf16.msra.mxu0 %v3045
  %4705 = vmatprep.subr.bf16.mxu0 %v3052
  %4706 = vmatpush1.bf16.msra.mxu0 %v3051
  %4707 = vmatprep.subr.bf16.mxu0 %v3058
  %4708 = vmatpush1.bf16.msra.mxu0 %v3057
  %4709 = vmatprep.subr.bf16.mxu0 %v3064
  %4710 = vmatpush1.bf16.msra.mxu0 %v3063
  %4711 = vmatprep.subr.bf16.mxu0 %v3070
  %4712 = vmatpush1.bf16.msra.mxu0 %v3069
  %4713 = vmatprep.mubr.bf16.mxu0 %v202
  %4714 = vmatmul.mubr.bf16.gmra.mrb[0].mxu0 %v201
  %v4715 = vpop.f32.mrb[0].mxu0
  %v4716 = vadd.f32 %v4623, %v4715
  %v4717 = vpop.f32.mrb[0].mxu0
  %v4718 = vadd.f32 %v4625, %v4717
  %v4719 = vpop.f32.mrb[0].mxu0
  %v4720 = vadd.f32 %v4627, %v4719
  %v4721 = vpop.f32.mrb[0].mxu0
  %v4722 = vadd.f32 %v4629, %v4721
  %4723 = vmatprep.mubr.bf16.mxu0 %v214
  %4724 = vmatmul.mubr.bf16.gmra.mrb[0].mxu0 %v213
  %v4725 = vpop.f32.mrb[0].mxu0
  %v4726 = vadd.f32 %v4633, %v4725
  %v4727 = vpop.f32.mrb[0].mxu0
  %v4728 = vadd.f32 %v4635, %v4727
  %v4729 = vpop.f32.mrb[0].mxu0
  %v4730 = vadd.f32 %v4637, %v4729
  %v4731 = vpop.f32.mrb[0].mxu0
  %v4732 = vadd.f32 %v4639, %v4731
  %4733 = vmatprep.mubr.bf16.mxu0 %v226
  %4734 = vmatmul.mubr.bf16.gmra.mrb[0].mxu0 %v225
  %v4735 = vpop.f32.mrb[0].mxu0
  %v4736 = vadd.f32 %v4643, %v4735
  %v4737 = vpop.f32.mrb[0].mxu0
  %v4738 = vadd.f32 %v4645, %v4737
  %v4739 = vpop.f32.mrb[0].mxu0
  %v4740 = vadd.f32 %v4647, %v4739
  %v4741 = vpop.f32.mrb[0].mxu0
  %v4742 = vadd.f32 %v4649, %v4741
  %4743 = vmatprep.mubr.bf16.mxu0 %v382
  %4744 = vmatmul.mubr.bf16.gmra.mrb[0].mxu0 %v381
  %v4745 = vpop.f32.mrb[0].mxu0
  %v4746 = vadd.f32 %v4653, %v4745
  %v4747 = vpop.f32.mrb[0].mxu0
  %v4748 = vadd.f32 %v4655, %v4747
  %v4749 = vpop.f32.mrb[0].mxu0
  %v4750 = vadd.f32 %v4657, %v4749
  %v4751 = vpop.f32.mrb[0].mxu0
  %v4752 = vadd.f32 %v4659, %v4751
  %4753 = vmatprep.mubr.bf16.mxu0 %v394
  %4754 = vmatmul.mubr.bf16.gmra.mrb[0].mxu0 %v393
  %v4755 = vpop.f32.mrb[0].mxu0
  %v4756 = vadd.f32 %v4663, %v4755
  %v4757 = vpop.f32.mrb[0].mxu0
  %v4758 = vadd.f32 %v4665, %v4757
  %v4759 = vpop.f32.mrb[0].mxu0
  %v4760 = vadd.f32 %v4667, %v4759
  %v4761 = vpop.f32.mrb[0].mxu0
  %v4762 = vadd.f32 %v4669, %v4761
  %4763 = vmatprep.mubr.bf16.mxu0 %v406
  %4764 = vmatmul.mubr.bf16.gmra.mrb[0].mxu0 %v405
  %v4765 = vpop.f32.mrb[0].mxu0
  %v4766 = vadd.f32 %v4673, %v4765
  %v4767 = vpop.f32.mrb[0].mxu0
  %v4768 = vadd.f32 %v4675, %v4767
  %v4769 = vpop.f32.mrb[0].mxu0
  %v4770 = vadd.f32 %v4677, %v4769
  %v4771 = vpop.f32.mrb[0].mxu0
  %v4772 = vadd.f32 %v4679, %v4771
  %4773 = vdwg.mxu0
  %4774 = vmatprep.subr.bf16.mxu0 %v3076
  %4775 = vmatpush1.bf16.msra.mxu0 %v3075
  %4776 = vmatprep.subr.bf16.mxu0 %v3082
  %4777 = vmatpush1.bf16.msra.mxu0 %v3081
  %4778 = vmatprep.subr.bf16.mxu0 %v3088
  %4779 = vmatpush1.bf16.msra.mxu0 %v3087
  %4780 = vmatprep.subr.bf16.mxu0 %v3094
  %4781 = vmatpush1.bf16.msra.mxu0 %v3093
  %4782 = vmatprep.subr.bf16.mxu0 %v3100
  %4783 = vmatpush1.bf16.msra.mxu0 %v3099
  %4784 = vmatprep.subr.bf16.mxu0 %v3106
  %4785 = vmatpush1.bf16.msra.mxu0 %v3105
  %4786 = vmatprep.subr.bf16.mxu0 %v3112
  %4787 = vmatpush1.bf16.msra.mxu0 %v3111
  %4788 = vmatprep.subr.bf16.mxu0 %v3118
  %4789 = vmatpush1.bf16.msra.mxu0 %v3117
  %4790 = vmatprep.subr.bf16.mxu0 %v3124
  %4791 = vmatpush1.bf16.msra.mxu0 %v3123
  %4792 = vmatprep.subr.bf16.mxu0 %v3130
  %4793 = vmatpush1.bf16.msra.mxu0 %v3129
  %4794 = vmatprep.subr.bf16.mxu0 %v3136
  %4795 = vmatpush1.bf16.msra.mxu0 %v3135
  %4796 = vmatprep.subr.bf16.mxu0 %v3142
  %4797 = vmatpush1.bf16.msra.mxu0 %v3141
  %4798 = vmatprep.subr.bf16.mxu0 %v3148
  %4799 = vmatpush1.bf16.msra.mxu0 %v3147
  %4800 = vmatprep.subr.bf16.mxu0 %v3154
  %4801 = vmatpush1.bf16.msra.mxu0 %v3153
  %4802 = vmatprep.subr.bf16.mxu0 %v3160
  %4803 = vmatpush1.bf16.msra.mxu0 %v3159
  %4804 = vmatprep.subr.bf16.mxu0 %v3166
  %4805 = vmatpush1.bf16.msra.mxu0 %v3165
  %4806 = vmatprep.mubr.bf16.mxu0 %v204
  %4807 = vmatmul.mubr.bf16.gmra.mrb[0].mxu0 %v203
  %v4808 = vpop.f32.mrb[0].mxu0
  %v4809 = vadd.f32 %v4716, %v4808
  %v4810 = vpop.f32.mrb[0].mxu0
  %v4811 = vadd.f32 %v4718, %v4810
  %v4812 = vpop.f32.mrb[0].mxu0
  %v4813 = vadd.f32 %v4720, %v4812
  %v4814 = vpop.f32.mrb[0].mxu0
  %v4815 = vadd.f32 %v4722, %v4814
  %4816 = vmatprep.mubr.bf16.mxu0 %v216
  %4817 = vmatmul.mubr.bf16.gmra.mrb[0].mxu0 %v215
  %v4818 = vpop.f32.mrb[0].mxu0
  %v4819 = vadd.f32 %v4726, %v4818
  %v4820 = vpop.f32.mrb[0].mxu0
  %v4821 = vadd.f32 %v4728, %v4820
  %v4822 = vpop.f32.mrb[0].mxu0
  %v4823 = vadd.f32 %v4730, %v4822
  %v4824 = vpop.f32.mrb[0].mxu0
  %v4825 = vadd.f32 %v4732, %v4824
  %4826 = vmatprep.mubr.bf16.mxu0 %v228
  %4827 = vmatmul.mubr.bf16.gmra.mrb[0].mxu0 %v227
  %v4828 = vpop.f32.mrb[0].mxu0
  %v4829 = vadd.f32 %v4736, %v4828
  %v4830 = vpop.f32.mrb[0].mxu0
  %v4831 = vadd.f32 %v4738, %v4830
  %v4832 = vpop.f32.mrb[0].mxu0
  %v4833 = vadd.f32 %v4740, %v4832
  %v4834 = vpop.f32.mrb[0].mxu0
  %v4835 = vadd.f32 %v4742, %v4834
  %4836 = vmatprep.mubr.bf16.mxu0 %v384
  %4837 = vmatmul.mubr.bf16.gmra.mrb[0].mxu0 %v383
  %v4838 = vpop.f32.mrb[0].mxu0
  %v4839 = vadd.f32 %v4746, %v4838
  %v4840 = vpop.f32.mrb[0].mxu0
  %v4841 = vadd.f32 %v4748, %v4840
  %v4842 = vpop.f32.mrb[0].mxu0
  %v4843 = vadd.f32 %v4750, %v4842
  %v4844 = vpop.f32.mrb[0].mxu0
  %v4845 = vadd.f32 %v4752, %v4844
  %4846 = vmatprep.mubr.bf16.mxu0 %v396
  %4847 = vmatmul.mubr.bf16.gmra.mrb[0].mxu0 %v395
  %v4848 = vpop.f32.mrb[0].mxu0
  %v4849 = vadd.f32 %v4756, %v4848
  %v4850 = vpop.f32.mrb[0].mxu0
  %v4851 = vadd.f32 %v4758, %v4850
  %v4852 = vpop.f32.mrb[0].mxu0
  %v4853 = vadd.f32 %v4760, %v4852
  %v4854 = vpop.f32.mrb[0].mxu0
  %v4855 = vadd.f32 %v4762, %v4854
  %4856 = vmatprep.mubr.bf16.mxu0 %v408
  %4857 = vmatmul.mubr.bf16.gmra.mrb[0].mxu0 %v407
  %v4858 = vpop.f32.mrb[0].mxu0
  %v4859 = vadd.f32 %v4766, %v4858
  %v4860 = vpop.f32.mrb[0].mxu0
  %v4861 = vadd.f32 %v4768, %v4860
  %v4862 = vpop.f32.mrb[0].mxu0
  %v4863 = vadd.f32 %v4770, %v4862
  %v4864 = vpop.f32.mrb[0].mxu0
  %v4865 = vadd.f32 %v4772, %v4864
  %4866 = vdwg.mxu0
  %4867 = vmatprep.subr.bf16.mxu0 %v3172
  %4868 = vmatpush1.bf16.msra.mxu0 %v3171
  %4869 = vmatprep.subr.bf16.mxu0 %v3178
  %4870 = vmatpush1.bf16.msra.mxu0 %v3177
  %4871 = vmatprep.subr.bf16.mxu0 %v3184
  %4872 = vmatpush1.bf16.msra.mxu0 %v3183
  %4873 = vmatprep.subr.bf16.mxu0 %v3190
  %4874 = vmatpush1.bf16.msra.mxu0 %v3189
  %4875 = vmatprep.subr.bf16.mxu0 %v3196
  %4876 = vmatpush1.bf16.msra.mxu0 %v3195
  %4877 = vmatprep.subr.bf16.mxu0 %v3202
  %4878 = vmatpush1.bf16.msra.mxu0 %v3201
  %4879 = vmatprep.subr.bf16.mxu0 %v3208
  %4880 = vmatpush1.bf16.msra.mxu0 %v3207
  %4881 = vmatprep.subr.bf16.mxu0 %v3214
  %4882 = vmatpush1.bf16.msra.mxu0 %v3213
  %4883 = vmatprep.subr.bf16.mxu0 %v3220
  %4884 = vmatpush1.bf16.msra.mxu0 %v3219
  %4885 = vmatprep.subr.bf16.mxu0 %v3226
  %4886 = vmatpush1.bf16.msra.mxu0 %v3225
  %4887 = vmatprep.subr.bf16.mxu0 %v3232
  %4888 = vmatpush1.bf16.msra.mxu0 %v3231
  %4889 = vmatprep.subr.bf16.mxu0 %v3238
  %4890 = vmatpush1.bf16.msra.mxu0 %v3237
  %4891 = vmatprep.subr.bf16.mxu0 %v3244
  %4892 = vmatpush1.bf16.msra.mxu0 %v3243
  %4893 = vmatprep.subr.bf16.mxu0 %v3250
  %4894 = vmatpush1.bf16.msra.mxu0 %v3249
  %4895 = vmatprep.subr.bf16.mxu0 %v3256
  %4896 = vmatpush1.bf16.msra.mxu0 %v3255
  %4897 = vmatprep.subr.bf16.mxu0 %v3262
  %4898 = vmatpush1.bf16.msra.mxu0 %v3261
  %4899 = vmatprep.mubr.bf16.mxu0 %v206
  %4900 = vmatmul.mubr.bf16.gmra.mrb[0].mxu0 %v205
  %v4901 = vpop.f32.mrb[0].mxu0
  %v4902 = vadd.f32 %v4809, %v4901
  %v4903 = vpop.f32.mrb[0].mxu0
  %v4904 = vadd.f32 %v4811, %v4903
  %v4905 = vpop.f32.mrb[0].mxu0
  %v4906 = vadd.f32 %v4813, %v4905
  %v4907 = vpop.f32.mrb[0].mxu0
  %v4908 = vadd.f32 %v4815, %v4907
  %4909 = vmatprep.mubr.bf16.mxu0 %v218
  %4910 = vmatmul.mubr.bf16.gmra.mrb[0].mxu0 %v217
  %v4911 = vpop.f32.mrb[0].mxu0
  %v4912 = vadd.f32 %v4819, %v4911
  %v4913 = vpop.f32.mrb[0].mxu0
  %v4914 = vadd.f32 %v4821, %v4913
  %v4915 = vpop.f32.mrb[0].mxu0
  %v4916 = vadd.f32 %v4823, %v4915
  %v4917 = vpop.f32.mrb[0].mxu0
  %v4918 = vadd.f32 %v4825, %v4917
  %4919 = vmatprep.mubr.bf16.mxu0 %v230
  %4920 = vmatmul.mubr.bf16.gmra.mrb[0].mxu0 %v229
  %v4921 = vpop.f32.mrb[0].mxu0
  %v4922 = vadd.f32 %v4829, %v4921
  %v4923 = vpop.f32.mrb[0].mxu0
  %v4924 = vadd.f32 %v4831, %v4923
  %v4925 = vpop.f32.mrb[0].mxu0
  %v4926 = vadd.f32 %v4833, %v4925
  %v4927 = vpop.f32.mrb[0].mxu0
  %v4928 = vadd.f32 %v4835, %v4927
  %4929 = vmatprep.mubr.bf16.mxu0 %v386
  %4930 = vmatmul.mubr.bf16.gmra.mrb[0].mxu0 %v385
  %v4931 = vpop.f32.mrb[0].mxu0
  %v4932 = vadd.f32 %v4839, %v4931
  %v4933 = vpop.f32.mrb[0].mxu0
  %v4934 = vadd.f32 %v4841, %v4933
  %v4935 = vpop.f32.mrb[0].mxu0
  %v4936 = vadd.f32 %v4843, %v4935
  %v4937 = vpop.f32.mrb[0].mxu0
  %v4938 = vadd.f32 %v4845, %v4937
  %4939 = vmatprep.mubr.bf16.mxu0 %v398
  %4940 = vmatmul.mubr.bf16.gmra.mrb[0].mxu0 %v397
  %v4941 = vpop.f32.mrb[0].mxu0
  %v4942 = vadd.f32 %v4849, %v4941
  %v4943 = vpop.f32.mrb[0].mxu0
  %v4944 = vadd.f32 %v4851, %v4943
  %v4945 = vpop.f32.mrb[0].mxu0
  %v4946 = vadd.f32 %v4853, %v4945
  %v4947 = vpop.f32.mrb[0].mxu0
  %v4948 = vadd.f32 %v4855, %v4947
  %4949 = vmatprep.mubr.bf16.mxu0 %v410
  %4950 = vmatmul.mubr.bf16.gmra.mrb[0].mxu0 %v409
  %v4951 = vpop.f32.mrb[0].mxu0
  %v4952 = vadd.f32 %v4859, %v4951
  %v4953 = vpop.f32.mrb[0].mxu0
  %v4954 = vadd.f32 %v4861, %v4953
  %v4955 = vpop.f32.mrb[0].mxu0
  %v4956 = vadd.f32 %v4863, %v4955
  %v4957 = vpop.f32.mrb[0].mxu0
  %v4958 = vadd.f32 %v4865, %v4957
  %4959 = vdwg.mxu0
  %4960 = vmatprep.subr.bf16.mxu0 %v3268
  %4961 = vmatpush1.bf16.msra.mxu0 %v3267
  %4962 = vmatprep.subr.bf16.mxu0 %v3274
  %4963 = vmatpush1.bf16.msra.mxu0 %v3273
  %4964 = vmatprep.subr.bf16.mxu0 %v3280
  %4965 = vmatpush1.bf16.msra.mxu0 %v3279
  %4966 = vmatprep.subr.bf16.mxu0 %v3286
  %4967 = vmatpush1.bf16.msra.mxu0 %v3285
  %4968 = vmatprep.subr.bf16.mxu0 %v3292
  %4969 = vmatpush1.bf16.msra.mxu0 %v3291
  %4970 = vmatprep.subr.bf16.mxu0 %v3298
  %4971 = vmatpush1.bf16.msra.mxu0 %v3297
  %4972 = vmatprep.subr.bf16.mxu0 %v3304
  %4973 = vmatpush1.bf16.msra.mxu0 %v3303
  %4974 = vmatprep.subr.bf16.mxu0 %v3310
  %4975 = vmatpush1.bf16.msra.mxu0 %v3309
  %4976 = vmatprep.subr.bf16.mxu0 %v3316
  %4977 = vmatpush1.bf16.msra.mxu0 %v3315
  %4978 = vmatprep.subr.bf16.mxu0 %v3322
  %4979 = vmatpush1.bf16.msra.mxu0 %v3321
  %4980 = vmatprep.subr.bf16.mxu0 %v3328
  %4981 = vmatpush1.bf16.msra.mxu0 %v3327
  %4982 = vmatprep.subr.bf16.mxu0 %v3334
  %4983 = vmatpush1.bf16.msra.mxu0 %v3333
  %4984 = vmatprep.subr.bf16.mxu0 %v3340
  %4985 = vmatpush1.bf16.msra.mxu0 %v3339
  %4986 = vmatprep.subr.bf16.mxu0 %v3346
  %4987 = vmatpush1.bf16.msra.mxu0 %v3345
  %4988 = vmatprep.subr.bf16.mxu0 %v3352
  %4989 = vmatpush1.bf16.msra.mxu0 %v3351
  %4990 = vmatprep.subr.bf16.mxu0 %v3358
  %4991 = vmatpush1.bf16.msra.mxu0 %v3357
  %4992 = vmatprep.mubr.bf16.mxu0 %v208
  %4993 = vmatmul.mubr.bf16.gmra.mrb[0].mxu0 %v207
  %v4994 = vpop.f32.mrb[0].mxu0
  %v4995 = vadd.f32 %v4902, %v4994
  %v4996 = vpop.f32.mrb[0].mxu0
  %v4997 = vadd.f32 %v4904, %v4996
  %v4998 = vpop.f32.mrb[0].mxu0
  %v4999 = vadd.f32 %v4906, %v4998
  %v5000 = vpop.f32.mrb[0].mxu0
  %v5001 = vadd.f32 %v4908, %v5000
  %5002 = vmatprep.mubr.bf16.mxu0 %v220
  %5003 = vmatmul.mubr.bf16.gmra.mrb[0].mxu0 %v219
  %v5004 = vpop.f32.mrb[0].mxu0
  %v5005 = vadd.f32 %v4912, %v5004
  %v5006 = vpop.f32.mrb[0].mxu0
  %v5007 = vadd.f32 %v4914, %v5006
  %v5008 = vpop.f32.mrb[0].mxu0
  %v5009 = vadd.f32 %v4916, %v5008
  %v5010 = vpop.f32.mrb[0].mxu0
  %v5011 = vadd.f32 %v4918, %v5010
  %5012 = vmatprep.mubr.bf16.mxu0 %v232
  %5013 = vmatmul.mubr.bf16.gmra.mrb[0].mxu0 %v231
  %v5014 = vpop.f32.mrb[0].mxu0
  %v5015 = vadd.f32 %v4922, %v5014
  %v5016 = vpop.f32.mrb[0].mxu0
  %v5017 = vadd.f32 %v4924, %v5016
  %v5018 = vpop.f32.mrb[0].mxu0
  %v5019 = vadd.f32 %v4926, %v5018
  %v5020 = vpop.f32.mrb[0].mxu0
  %v5021 = vadd.f32 %v4928, %v5020
  %5022 = vmatprep.mubr.bf16.mxu0 %v388
  %5023 = vmatmul.mubr.bf16.gmra.mrb[0].mxu0 %v387
  %v5024 = vpop.f32.mrb[0].mxu0
  %v5025 = vadd.f32 %v4932, %v5024
  %v5026 = vpop.f32.mrb[0].mxu0
  %v5027 = vadd.f32 %v4934, %v5026
  %v5028 = vpop.f32.mrb[0].mxu0
  %v5029 = vadd.f32 %v4936, %v5028
  %v5030 = vpop.f32.mrb[0].mxu0
  %v5031 = vadd.f32 %v4938, %v5030
  %5032 = vmatprep.mubr.bf16.mxu0 %v400
  %5033 = vmatmul.mubr.bf16.gmra.mrb[0].mxu0 %v399
  %v5034 = vpop.f32.mrb[0].mxu0
  %v5035 = vadd.f32 %v4942, %v5034
  %v5036 = vpop.f32.mrb[0].mxu0
  %v5037 = vadd.f32 %v4944, %v5036
  %v5038 = vpop.f32.mrb[0].mxu0
  %v5039 = vadd.f32 %v4946, %v5038
  %v5040 = vpop.f32.mrb[0].mxu0
  %v5041 = vadd.f32 %v4948, %v5040
  %5042 = vmatprep.mubr.bf16.mxu0 %v412
  %5043 = vmatmul.mubr.bf16.gmra.mrb[0].mxu0 %v411
  %v5044 = vpop.f32.mrb[0].mxu0
  %v5045 = vadd.f32 %v4952, %v5044
  %v5046 = vpop.f32.mrb[0].mxu0
  %v5047 = vadd.f32 %v4954, %v5046
  %v5048 = vpop.f32.mrb[0].mxu0
  %v5049 = vadd.f32 %v4956, %v5048
  %v5050 = vpop.f32.mrb[0].mxu0
  %v5051 = vadd.f32 %v4958, %v5050
  %5052 = vdwg.mxu0
  %5053 = vmatprep.subr.bf16.mxu0 %v2790
  %5054 = vmatpush1.bf16.msra.mxu0 %v2789
  %5055 = vmatprep.subr.bf16.mxu0 %v2796
  %5056 = vmatpush1.bf16.msra.mxu0 %v2795
  %5057 = vmatprep.subr.bf16.mxu0 %v2802
  %5058 = vmatpush1.bf16.msra.mxu0 %v2801
  %5059 = vmatprep.subr.bf16.mxu0 %v2808
  %5060 = vmatpush1.bf16.msra.mxu0 %v2807
  %5061 = vmatprep.subr.bf16.mxu0 %v2814
  %5062 = vmatpush1.bf16.msra.mxu0 %v2813
  %5063 = vmatprep.subr.bf16.mxu0 %v2820
  %5064 = vmatpush1.bf16.msra.mxu0 %v2819
  %5065 = vmatprep.subr.bf16.mxu0 %v2826
  %5066 = vmatpush1.bf16.msra.mxu0 %v2825
  %5067 = vmatprep.subr.bf16.mxu0 %v2832
  %5068 = vmatpush1.bf16.msra.mxu0 %v2831
  %5069 = vmatprep.subr.bf16.mxu0 %v2838
  %5070 = vmatpush1.bf16.msra.mxu0 %v2837
  %5071 = vmatprep.subr.bf16.mxu0 %v2844
  %5072 = vmatpush1.bf16.msra.mxu0 %v2843
  %5073 = vmatprep.subr.bf16.mxu0 %v2850
  %5074 = vmatpush1.bf16.msra.mxu0 %v2849
  %5075 = vmatprep.subr.bf16.mxu0 %v2856
  %5076 = vmatpush1.bf16.msra.mxu0 %v2855
  %5077 = vmatprep.subr.bf16.mxu0 %v2862
  %5078 = vmatpush1.bf16.msra.mxu0 %v2861
  %5079 = vmatprep.subr.bf16.mxu0 %v2868
  %5080 = vmatpush1.bf16.msra.mxu0 %v2867
  %5081 = vmatprep.subr.bf16.mxu0 %v2874
  %5082 = vmatpush1.bf16.msra.mxu0 %v2873
  %5083 = vmatprep.subr.bf16.mxu0 %v2880
  %5084 = vmatpush1.bf16.msra.mxu0 %v2879
  %5085 = vmatprep.mubr.bf16.mxu0 %v198
  %5086 = vmatmul.mubr.bf16.gmra.mrb[0].mxu0 %v197
  %v5087 = vpop.f32.mrb[0].mxu0
  %v5088 = vadd.f32 %v1046, %v5087
  %v5089 = vpop.f32.mrb[0].mxu0
  %v5090 = vadd.f32 %v1050, %v5089
  %v5091 = vpop.f32.mrb[0].mxu0
  %v5092 = vadd.f32 %v1046, %v5091
  %v5093 = vpop.f32.mrb[0].mxu0
  %v5094 = vadd.f32 %v1050, %v5093
  %5095 = vmatprep.mubr.bf16.mxu0 %v210
  %5096 = vmatmul.mubr.bf16.gmra.mrb[0].mxu0 %v209
  %v5097 = vpop.f32.mrb[0].mxu0
  %v5098 = vadd.f32 %v1046, %v5097
  %v5099 = vpop.f32.mrb[0].mxu0
  %v5100 = vadd.f32 %v1050, %v5099
  %v5101 = vpop.f32.mrb[0].mxu0
  %v5102 = vadd.f32 %v1046, %v5101
  %v5103 = vpop.f32.mrb[0].mxu0
  %v5104 = vadd.f32 %v1050, %v5103
  %5105 = vmatprep.mubr.bf16.mxu0 %v222
  %5106 = vmatmul.mubr.bf16.gmra.mrb[0].mxu0 %v221
  %v5107 = vpop.f32.mrb[0].mxu0
  %v5108 = vadd.f32 %v1046, %v5107
  %v5109 = vpop.f32.mrb[0].mxu0
  %v5110 = vadd.f32 %v1050, %v5109
  %v5111 = vpop.f32.mrb[0].mxu0
  %v5112 = vadd.f32 %v1046, %v5111
  %v5113 = vpop.f32.mrb[0].mxu0
  %v5114 = vadd.f32 %v1050, %v5113
  %5115 = vmatprep.mubr.bf16.mxu0 %v378
  %5116 = vmatmul.mubr.bf16.gmra.mrb[0].mxu0 %v377
  %v5117 = vpop.f32.mrb[0].mxu0
  %v5118 = vadd.f32 %v1046, %v5117
  %v5119 = vpop.f32.mrb[0].mxu0
  %v5120 = vadd.f32 %v1050, %v5119
  %v5121 = vpop.f32.mrb[0].mxu0
  %v5122 = vadd.f32 %v1046, %v5121
  %v5123 = vpop.f32.mrb[0].mxu0
  %v5124 = vadd.f32 %v1050, %v5123
  %5125 = vmatprep.mubr.bf16.mxu0 %v390
  %5126 = vmatmul.mubr.bf16.gmra.mrb[0].mxu0 %v389
  %v5127 = vpop.f32.mrb[0].mxu0
  %v5128 = vadd.f32 %v1046, %v5127
  %v5129 = vpop.f32.mrb[0].mxu0
  %v5130 = vadd.f32 %v1050, %v5129
  %v5131 = vpop.f32.mrb[0].mxu0
  %v5132 = vadd.f32 %v1046, %v5131
  %v5133 = vpop.f32.mrb[0].mxu0
  %v5134 = vadd.f32 %v1050, %v5133
  %5135 = vmatprep.mubr.bf16.mxu0 %v402
  %5136 = vmatmul.mubr.bf16.gmra.mrb[0].mxu0 %v401
  %v5137 = vpop.f32.mrb[0].mxu0
  %v5138 = vadd.f32 %v1046, %v5137
  %v5139 = vpop.f32.mrb[0].mxu0
  %v5140 = vadd.f32 %v1050, %v5139
  %v5141 = vpop.f32.mrb[0].mxu0
  %v5142 = vadd.f32 %v1046, %v5141
  %v5143 = vpop.f32.mrb[0].mxu0
  %v5144 = vadd.f32 %v1050, %v5143
  %5145 = vdwg.mxu0
  %5146 = vmatprep.subr.bf16.mxu0 %v2886
  %5147 = vmatpush1.bf16.msra.mxu0 %v2885
  %5148 = vmatprep.subr.bf16.mxu0 %v2892
  %5149 = vmatpush1.bf16.msra.mxu0 %v2891
  %5150 = vmatprep.subr.bf16.mxu0 %v2898
  %5151 = vmatpush1.bf16.msra.mxu0 %v2897
  %5152 = vmatprep.subr.bf16.mxu0 %v2904
  %5153 = vmatpush1.bf16.msra.mxu0 %v2903
  %5154 = vmatprep.subr.bf16.mxu0 %v2910
  %5155 = vmatpush1.bf16.msra.mxu0 %v2909
  %5156 = vmatprep.subr.bf16.mxu0 %v2916
  %5157 = vmatpush1.bf16.msra.mxu0 %v2915
  %5158 = vmatprep.subr.bf16.mxu0 %v2922
  %5159 = vmatpush1.bf16.msra.mxu0 %v2921
  %5160 = vmatprep.subr.bf16.mxu0 %v2928
  %5161 = vmatpush1.bf16.msra.mxu0 %v2927
  %5162 = vmatprep.subr.bf16.mxu0 %v2934
  %5163 = vmatpush1.bf16.msra.mxu0 %v2933
  %5164 = vmatprep.subr.bf16.mxu0 %v2940
  %5165 = vmatpush1.bf16.msra.mxu0 %v2939
  %5166 = vmatprep.subr.bf16.mxu0 %v2946
  %5167 = vmatpush1.bf16.msra.mxu0 %v2945
  %5168 = vmatprep.subr.bf16.mxu0 %v2952
  %5169 = vmatpush1.bf16.msra.mxu0 %v2951
  %5170 = vmatprep.subr.bf16.mxu0 %v2958
  %5171 = vmatpush1.bf16.msra.mxu0 %v2957
  %5172 = vmatprep.subr.bf16.mxu0 %v2964
  %5173 = vmatpush1.bf16.msra.mxu0 %v2963
  %5174 = vmatprep.subr.bf16.mxu0 %v2970
  %5175 = vmatpush1.bf16.msra.mxu0 %v2969
  %5176 = vmatprep.subr.bf16.mxu0 %v2976
  %5177 = vmatpush1.bf16.msra.mxu0 %v2975
  %5178 = vmatprep.mubr.bf16.mxu0 %v200
  %5179 = vmatmul.mubr.bf16.gmra.mrb[0].mxu0 %v199
  %v5180 = vpop.f32.mrb[0].mxu0
  %v5181 = vadd.f32 %v5088, %v5180
  %v5182 = vpop.f32.mrb[0].mxu0
  %v5183 = vadd.f32 %v5090, %v5182
  %v5184 = vpop.f32.mrb[0].mxu0
  %v5185 = vadd.f32 %v5092, %v5184
  %v5186 = vpop.f32.mrb[0].mxu0
  %v5187 = vadd.f32 %v5094, %v5186
  %5188 = vmatprep.mubr.bf16.mxu0 %v212
  %5189 = vmatmul.mubr.bf16.gmra.mrb[0].mxu0 %v211
  %v5190 = vpop.f32.mrb[0].mxu0
  %v5191 = vadd.f32 %v5098, %v5190
  %v5192 = vpop.f32.mrb[0].mxu0
  %v5193 = vadd.f32 %v5100, %v5192
  %v5194 = vpop.f32.mrb[0].mxu0
  %v5195 = vadd.f32 %v5102, %v5194
  %v5196 = vpop.f32.mrb[0].mxu0
  %v5197 = vadd.f32 %v5104, %v5196
  %5198 = vmatprep.mubr.bf16.mxu0 %v224
  %5199 = vmatmul.mubr.bf16.gmra.mrb[0].mxu0 %v223
  %v5200 = vpop.f32.mrb[0].mxu0
  %v5201 = vadd.f32 %v5108, %v5200
  %v5202 = vpop.f32.mrb[0].mxu0
  %v5203 = vadd.f32 %v5110, %v5202
  %v5204 = vpop.f32.mrb[0].mxu0
  %v5205 = vadd.f32 %v5112, %v5204
  %v5206 = vpop.f32.mrb[0].mxu0
  %v5207 = vadd.f32 %v5114, %v5206
  %5208 = vmatprep.mubr.bf16.mxu0 %v380
  %5209 = vmatmul.mubr.bf16.gmra.mrb[0].mxu0 %v379
  %v5210 = vpop.f32.mrb[0].mxu0
  %v5211 = vadd.f32 %v5118, %v5210
  %v5212 = vpop.f32.mrb[0].mxu0
  %v5213 = vadd.f32 %v5120, %v5212
  %v5214 = vpop.f32.mrb[0].mxu0
  %v5215 = vadd.f32 %v5122, %v5214
  %v5216 = vpop.f32.mrb[0].mxu0
  %v5217 = vadd.f32 %v5124, %v5216
  %5218 = vmatprep.mubr.bf16.mxu0 %v392
  %5219 = vmatmul.mubr.bf16.gmra.mrb[0].mxu0 %v391
  %v5220 = vpop.f32.mrb[0].mxu0
  %v5221 = vadd.f32 %v5128, %v5220
  %v5222 = vpop.f32.mrb[0].mxu0
  %v5223 = vadd.f32 %v5130, %v5222
  %v5224 = vpop.f32.mrb[0].mxu0
  %v5225 = vadd.f32 %v5132, %v5224
  %v5226 = vpop.f32.mrb[0].mxu0
  %v5227 = vadd.f32 %v5134, %v5226
  %5228 = vmatprep.mubr.bf16.mxu0 %v404
  %5229 = vmatmul.mubr.bf16.gmra.mrb[0].mxu0 %v403
  %v5230 = vpop.f32.mrb[0].mxu0
  %v5231 = vadd.f32 %v5138, %v5230
  %v5232 = vpop.f32.mrb[0].mxu0
  %v5233 = vadd.f32 %v5140, %v5232
  %v5234 = vpop.f32.mrb[0].mxu0
  %v5235 = vadd.f32 %v5142, %v5234
  %v5236 = vpop.f32.mrb[0].mxu0
  %v5237 = vadd.f32 %v5144, %v5236
  %5238 = vdwg.mxu0
  %5239 = vmatprep.subr.bf16.mxu0 %v2982
  %5240 = vmatpush1.bf16.msra.mxu0 %v2981
  %5241 = vmatprep.subr.bf16.mxu0 %v2988
  %5242 = vmatpush1.bf16.msra.mxu0 %v2987
  %5243 = vmatprep.subr.bf16.mxu0 %v2994
  %5244 = vmatpush1.bf16.msra.mxu0 %v2993
  %5245 = vmatprep.subr.bf16.mxu0 %v3000
  %5246 = vmatpush1.bf16.msra.mxu0 %v2999
  %5247 = vmatprep.subr.bf16.mxu0 %v3006
  %5248 = vmatpush1.bf16.msra.mxu0 %v3005
  %5249 = vmatprep.subr.bf16.mxu0 %v3012
  %5250 = vmatpush1.bf16.msra.mxu0 %v3011
  %5251 = vmatprep.subr.bf16.mxu0 %v3018
  %5252 = vmatpush1.bf16.msra.mxu0 %v3017
  %5253 = vmatprep.subr.bf16.mxu0 %v3024
  %5254 = vmatpush1.bf16.msra.mxu0 %v3023
  %5255 = vmatprep.subr.bf16.mxu0 %v3030
  %5256 = vmatpush1.bf16.msra.mxu0 %v3029
  %5257 = vmatprep.subr.bf16.mxu0 %v3036
  %5258 = vmatpush1.bf16.msra.mxu0 %v3035
  %5259 = vmatprep.subr.bf16.mxu0 %v3042
  %5260 = vmatpush1.bf16.msra.mxu0 %v3041
  %5261 = vmatprep.subr.bf16.mxu0 %v3048
  %5262 = vmatpush1.bf16.msra.mxu0 %v3047
  %5263 = vmatprep.subr.bf16.mxu0 %v3054
  %5264 = vmatpush1.bf16.msra.mxu0 %v3053
  %5265 = vmatprep.subr.bf16.mxu0 %v3060
  %5266 = vmatpush1.bf16.msra.mxu0 %v3059
  %5267 = vmatprep.subr.bf16.mxu0 %v3066
  %5268 = vmatpush1.bf16.msra.mxu0 %v3065
  %5269 = vmatprep.subr.bf16.mxu0 %v3072
  %5270 = vmatpush1.bf16.msra.mxu0 %v3071
  %5271 = vmatprep.mubr.bf16.mxu0 %v202
  %5272 = vmatmul.mubr.bf16.gmra.mrb[0].mxu0 %v201
  %v5273 = vpop.f32.mrb[0].mxu0
  %v5274 = vadd.f32 %v5181, %v5273
  %v5275 = vpop.f32.mrb[0].mxu0
  %v5276 = vadd.f32 %v5183, %v5275
  %v5277 = vpop.f32.mrb[0].mxu0
  %v5278 = vadd.f32 %v5185, %v5277
  %v5279 = vpop.f32.mrb[0].mxu0
  %v5280 = vadd.f32 %v5187, %v5279
  %5281 = vmatprep.mubr.bf16.mxu0 %v214
  %5282 = vmatmul.mubr.bf16.gmra.mrb[0].mxu0 %v213
  %v5283 = vpop.f32.mrb[0].mxu0
  %v5284 = vadd.f32 %v5191, %v5283
  %v5285 = vpop.f32.mrb[0].mxu0
  %v5286 = vadd.f32 %v5193, %v5285
  %v5287 = vpop.f32.mrb[0].mxu0
  %v5288 = vadd.f32 %v5195, %v5287
  %v5289 = vpop.f32.mrb[0].mxu0
  %v5290 = vadd.f32 %v5197, %v5289
  %5291 = vmatprep.mubr.bf16.mxu0 %v226
  %5292 = vmatmul.mubr.bf16.gmra.mrb[0].mxu0 %v225
  %v5293 = vpop.f32.mrb[0].mxu0
  %v5294 = vadd.f32 %v5201, %v5293
  %v5295 = vpop.f32.mrb[0].mxu0
  %v5296 = vadd.f32 %v5203, %v5295
  %v5297 = vpop.f32.mrb[0].mxu0
  %v5298 = vadd.f32 %v5205, %v5297
  %v5299 = vpop.f32.mrb[0].mxu0
  %v5300 = vadd.f32 %v5207, %v5299
  %5301 = vmatprep.mubr.bf16.mxu0 %v382
  %5302 = vmatmul.mubr.bf16.gmra.mrb[0].mxu0 %v381
  %v5303 = vpop.f32.mrb[0].mxu0
  %v5304 = vadd.f32 %v5211, %v5303
  %v5305 = vpop.f32.mrb[0].mxu0
  %v5306 = vadd.f32 %v5213, %v5305
  %v5307 = vpop.f32.mrb[0].mxu0
  %v5308 = vadd.f32 %v5215, %v5307
  %v5309 = vpop.f32.mrb[0].mxu0
  %v5310 = vadd.f32 %v5217, %v5309
  %5311 = vmatprep.mubr.bf16.mxu0 %v394
  %5312 = vmatmul.mubr.bf16.gmra.mrb[0].mxu0 %v393
  %v5313 = vpop.f32.mrb[0].mxu0
  %v5314 = vadd.f32 %v5221, %v5313
  %v5315 = vpop.f32.mrb[0].mxu0
  %v5316 = vadd.f32 %v5223, %v5315
  %v5317 = vpop.f32.mrb[0].mxu0
  %v5318 = vadd.f32 %v5225, %v5317
  %v5319 = vpop.f32.mrb[0].mxu0
  %v5320 = vadd.f32 %v5227, %v5319
  %5321 = vmatprep.mubr.bf16.mxu0 %v406
  %5322 = vmatmul.mubr.bf16.gmra.mrb[0].mxu0 %v405
  %v5323 = vpop.f32.mrb[0].mxu0
  %v5324 = vadd.f32 %v5231, %v5323
  %v5325 = vpop.f32.mrb[0].mxu0
  %v5326 = vadd.f32 %v5233, %v5325
  %v5327 = vpop.f32.mrb[0].mxu0
  %v5328 = vadd.f32 %v5235, %v5327
  %v5329 = vpop.f32.mrb[0].mxu0
  %v5330 = vadd.f32 %v5237, %v5329
  %5331 = vdwg.mxu0
  %5332 = vmatprep.subr.bf16.mxu0 %v3078
  %5333 = vmatpush1.bf16.msra.mxu0 %v3077
  %5334 = vmatprep.subr.bf16.mxu0 %v3084
  %5335 = vmatpush1.bf16.msra.mxu0 %v3083
  %5336 = vmatprep.subr.bf16.mxu0 %v3090
  %5337 = vmatpush1.bf16.msra.mxu0 %v3089
  %5338 = vmatprep.subr.bf16.mxu0 %v3096
  %5339 = vmatpush1.bf16.msra.mxu0 %v3095
  %5340 = vmatprep.subr.bf16.mxu0 %v3102
  %5341 = vmatpush1.bf16.msra.mxu0 %v3101
  %5342 = vmatprep.subr.bf16.mxu0 %v3108
  %5343 = vmatpush1.bf16.msra.mxu0 %v3107
  %5344 = vmatprep.subr.bf16.mxu0 %v3114
  %5345 = vmatpush1.bf16.msra.mxu0 %v3113
  %5346 = vmatprep.subr.bf16.mxu0 %v3120
  %5347 = vmatpush1.bf16.msra.mxu0 %v3119
  %5348 = vmatprep.subr.bf16.mxu0 %v3126
  %5349 = vmatpush1.bf16.msra.mxu0 %v3125
  %5350 = vmatprep.subr.bf16.mxu0 %v3132
  %5351 = vmatpush1.bf16.msra.mxu0 %v3131
  %5352 = vmatprep.subr.bf16.mxu0 %v3138
  %5353 = vmatpush1.bf16.msra.mxu0 %v3137
  %5354 = vmatprep.subr.bf16.mxu0 %v3144
  %5355 = vmatpush1.bf16.msra.mxu0 %v3143
  %5356 = vmatprep.subr.bf16.mxu0 %v3150
  %5357 = vmatpush1.bf16.msra.mxu0 %v3149
  %5358 = vmatprep.subr.bf16.mxu0 %v3156
  %5359 = vmatpush1.bf16.msra.mxu0 %v3155
  %5360 = vmatprep.subr.bf16.mxu0 %v3162
  %5361 = vmatpush1.bf16.msra.mxu0 %v3161
  %5362 = vmatprep.subr.bf16.mxu0 %v3168
  %5363 = vmatpush1.bf16.msra.mxu0 %v3167
  %5364 = vmatprep.mubr.bf16.mxu0 %v204
  %5365 = vmatmul.mubr.bf16.gmra.mrb[0].mxu0 %v203
  %v5366 = vpop.f32.mrb[0].mxu0
  %v5367 = vadd.f32 %v5274, %v5366
  %v5368 = vpop.f32.mrb[0].mxu0
  %v5369 = vadd.f32 %v5276, %v5368
  %v5370 = vpop.f32.mrb[0].mxu0
  %v5371 = vadd.f32 %v5278, %v5370
  %v5372 = vpop.f32.mrb[0].mxu0
  %v5373 = vadd.f32 %v5280, %v5372
  %5374 = vmatprep.mubr.bf16.mxu0 %v216
  %5375 = vmatmul.mubr.bf16.gmra.mrb[0].mxu0 %v215
  %v5376 = vpop.f32.mrb[0].mxu0
  %v5377 = vadd.f32 %v5284, %v5376
  %v5378 = vpop.f32.mrb[0].mxu0
  %v5379 = vadd.f32 %v5286, %v5378
  %v5380 = vpop.f32.mrb[0].mxu0
  %v5381 = vadd.f32 %v5288, %v5380
  %v5382 = vpop.f32.mrb[0].mxu0
  %v5383 = vadd.f32 %v5290, %v5382
  %5384 = vmatprep.mubr.bf16.mxu0 %v228
  %5385 = vmatmul.mubr.bf16.gmra.mrb[0].mxu0 %v227
  %v5386 = vpop.f32.mrb[0].mxu0
  %v5387 = vadd.f32 %v5294, %v5386
  %v5388 = vpop.f32.mrb[0].mxu0
  %v5389 = vadd.f32 %v5296, %v5388
  %v5390 = vpop.f32.mrb[0].mxu0
  %v5391 = vadd.f32 %v5298, %v5390
  %v5392 = vpop.f32.mrb[0].mxu0
  %v5393 = vadd.f32 %v5300, %v5392
  %5394 = vmatprep.mubr.bf16.mxu0 %v384
  %5395 = vmatmul.mubr.bf16.gmra.mrb[0].mxu0 %v383
  %v5396 = vpop.f32.mrb[0].mxu0
  %v5397 = vadd.f32 %v5304, %v5396
  %v5398 = vpop.f32.mrb[0].mxu0
  %v5399 = vadd.f32 %v5306, %v5398
  %v5400 = vpop.f32.mrb[0].mxu0
  %v5401 = vadd.f32 %v5308, %v5400
  %v5402 = vpop.f32.mrb[0].mxu0
  %v5403 = vadd.f32 %v5310, %v5402
  %5404 = vmatprep.mubr.bf16.mxu0 %v396
  %5405 = vmatmul.mubr.bf16.gmra.mrb[0].mxu0 %v395
  %v5406 = vpop.f32.mrb[0].mxu0
  %v5407 = vadd.f32 %v5314, %v5406
  %v5408 = vpop.f32.mrb[0].mxu0
  %v5409 = vadd.f32 %v5316, %v5408
  %v5410 = vpop.f32.mrb[0].mxu0
  %v5411 = vadd.f32 %v5318, %v5410
  %v5412 = vpop.f32.mrb[0].mxu0
  %v5413 = vadd.f32 %v5320, %v5412
  %5414 = vmatprep.mubr.bf16.mxu0 %v408
  %5415 = vmatmul.mubr.bf16.gmra.mrb[0].mxu0 %v407
  %v5416 = vpop.f32.mrb[0].mxu0
  %v5417 = vadd.f32 %v5324, %v5416
  %v5418 = vpop.f32.mrb[0].mxu0
  %v5419 = vadd.f32 %v5326, %v5418
  %v5420 = vpop.f32.mrb[0].mxu0
  %v5421 = vadd.f32 %v5328, %v5420
  %v5422 = vpop.f32.mrb[0].mxu0
  %v5423 = vadd.f32 %v5330, %v5422
  %5424 = vdwg.mxu0
  %5425 = vmatprep.subr.bf16.mxu0 %v3174
  %5426 = vmatpush1.bf16.msra.mxu0 %v3173
  %5427 = vmatprep.subr.bf16.mxu0 %v3180
  %5428 = vmatpush1.bf16.msra.mxu0 %v3179
  %5429 = vmatprep.subr.bf16.mxu0 %v3186
  %5430 = vmatpush1.bf16.msra.mxu0 %v3185
  %5431 = vmatprep.subr.bf16.mxu0 %v3192
  %5432 = vmatpush1.bf16.msra.mxu0 %v3191
  %5433 = vmatprep.subr.bf16.mxu0 %v3198
  %5434 = vmatpush1.bf16.msra.mxu0 %v3197
  %5435 = vmatprep.subr.bf16.mxu0 %v3204
  %5436 = vmatpush1.bf16.msra.mxu0 %v3203
  %5437 = vmatprep.subr.bf16.mxu0 %v3210
  %5438 = vmatpush1.bf16.msra.mxu0 %v3209
  %5439 = vmatprep.subr.bf16.mxu0 %v3216
  %5440 = vmatpush1.bf16.msra.mxu0 %v3215
  %5441 = vmatprep.subr.bf16.mxu0 %v3222
  %5442 = vmatpush1.bf16.msra.mxu0 %v3221
  %5443 = vmatprep.subr.bf16.mxu0 %v3228
  %5444 = vmatpush1.bf16.msra.mxu0 %v3227
  %5445 = vmatprep.subr.bf16.mxu0 %v3234
  %5446 = vmatpush1.bf16.msra.mxu0 %v3233
  %5447 = vmatprep.subr.bf16.mxu0 %v3240
  %5448 = vmatpush1.bf16.msra.mxu0 %v3239
  %5449 = vmatprep.subr.bf16.mxu0 %v3246
  %5450 = vmatpush1.bf16.msra.mxu0 %v3245
  %5451 = vmatprep.subr.bf16.mxu0 %v3252
  %5452 = vmatpush1.bf16.msra.mxu0 %v3251
  %5453 = vmatprep.subr.bf16.mxu0 %v3258
  %5454 = vmatpush1.bf16.msra.mxu0 %v3257
  %5455 = vmatprep.subr.bf16.mxu0 %v3264
  %5456 = vmatpush1.bf16.msra.mxu0 %v3263
  %5457 = vmatprep.mubr.bf16.mxu0 %v206
  %5458 = vmatmul.mubr.bf16.gmra.mrb[0].mxu0 %v205
  %v5459 = vpop.f32.mrb[0].mxu0
  %v5460 = vadd.f32 %v5367, %v5459
  %v5461 = vpop.f32.mrb[0].mxu0
  %v5462 = vadd.f32 %v5369, %v5461
  %v5463 = vpop.f32.mrb[0].mxu0
  %v5464 = vadd.f32 %v5371, %v5463
  %v5465 = vpop.f32.mrb[0].mxu0
  %v5466 = vadd.f32 %v5373, %v5465
  %5467 = vmatprep.mubr.bf16.mxu0 %v218
  %5468 = vmatmul.mubr.bf16.gmra.mrb[0].mxu0 %v217
  %v5469 = vpop.f32.mrb[0].mxu0
  %v5470 = vadd.f32 %v5377, %v5469
  %v5471 = vpop.f32.mrb[0].mxu0
  %v5472 = vadd.f32 %v5379, %v5471
  %v5473 = vpop.f32.mrb[0].mxu0
  %v5474 = vadd.f32 %v5381, %v5473
  %v5475 = vpop.f32.mrb[0].mxu0
  %v5476 = vadd.f32 %v5383, %v5475
  %5477 = vmatprep.mubr.bf16.mxu0 %v230
  %5478 = vmatmul.mubr.bf16.gmra.mrb[0].mxu0 %v229
  %v5479 = vpop.f32.mrb[0].mxu0
  %v5480 = vadd.f32 %v5387, %v5479
  %v5481 = vpop.f32.mrb[0].mxu0
  %v5482 = vadd.f32 %v5389, %v5481
  %v5483 = vpop.f32.mrb[0].mxu0
  %v5484 = vadd.f32 %v5391, %v5483
  %v5485 = vpop.f32.mrb[0].mxu0
  %v5486 = vadd.f32 %v5393, %v5485
  %5487 = vmatprep.mubr.bf16.mxu0 %v386
  %5488 = vmatmul.mubr.bf16.gmra.mrb[0].mxu0 %v385
  %v5489 = vpop.f32.mrb[0].mxu0
  %v5490 = vadd.f32 %v5397, %v5489
  %v5491 = vpop.f32.mrb[0].mxu0
  %v5492 = vadd.f32 %v5399, %v5491
  %v5493 = vpop.f32.mrb[0].mxu0
  %v5494 = vadd.f32 %v5401, %v5493
  %v5495 = vpop.f32.mrb[0].mxu0
  %v5496 = vadd.f32 %v5403, %v5495
  %5497 = vmatprep.mubr.bf16.mxu0 %v398
  %5498 = vmatmul.mubr.bf16.gmra.mrb[0].mxu0 %v397
  %v5499 = vpop.f32.mrb[0].mxu0
  %v5500 = vadd.f32 %v5407, %v5499
  %v5501 = vpop.f32.mrb[0].mxu0
  %v5502 = vadd.f32 %v5409, %v5501
  %v5503 = vpop.f32.mrb[0].mxu0
  %v5504 = vadd.f32 %v5411, %v5503
  %v5505 = vpop.f32.mrb[0].mxu0
  %v5506 = vadd.f32 %v5413, %v5505
  %5507 = vmatprep.mubr.bf16.mxu0 %v410
  %5508 = vmatmul.mubr.bf16.gmra.mrb[0].mxu0 %v409
  %v5509 = vpop.f32.mrb[0].mxu0
  %v5510 = vadd.f32 %v5417, %v5509
  %v5511 = vpop.f32.mrb[0].mxu0
  %v5512 = vadd.f32 %v5419, %v5511
  %v5513 = vpop.f32.mrb[0].mxu0
  %v5514 = vadd.f32 %v5421, %v5513
  %v5515 = vpop.f32.mrb[0].mxu0
  %v5516 = vadd.f32 %v5423, %v5515
  %5517 = vdwg.mxu0
  %5518 = vmatprep.subr.bf16.mxu0 %v3270
  %5519 = vmatpush1.bf16.msra.mxu0 %v3269
  %5520 = vmatprep.subr.bf16.mxu0 %v3276
  %5521 = vmatpush1.bf16.msra.mxu0 %v3275
  %5522 = vmatprep.subr.bf16.mxu0 %v3282
  %5523 = vmatpush1.bf16.msra.mxu0 %v3281
  %5524 = vmatprep.subr.bf16.mxu0 %v3288
  %5525 = vmatpush1.bf16.msra.mxu0 %v3287
  %5526 = vmatprep.subr.bf16.mxu0 %v3294
  %5527 = vmatpush1.bf16.msra.mxu0 %v3293
  %5528 = vmatprep.subr.bf16.mxu0 %v3300
  %5529 = vmatpush1.bf16.msra.mxu0 %v3299
  %5530 = vmatprep.subr.bf16.mxu0 %v3306
  %5531 = vmatpush1.bf16.msra.mxu0 %v3305
  %5532 = vmatprep.subr.bf16.mxu0 %v3312
  %5533 = vmatpush1.bf16.msra.mxu0 %v3311
  %5534 = vmatprep.subr.bf16.mxu0 %v3318
  %5535 = vmatpush1.bf16.msra.mxu0 %v3317
  %5536 = vmatprep.subr.bf16.mxu0 %v3324
  %5537 = vmatpush1.bf16.msra.mxu0 %v3323
  %5538 = vmatprep.subr.bf16.mxu0 %v3330
  %5539 = vmatpush1.bf16.msra.mxu0 %v3329
  %5540 = vmatprep.subr.bf16.mxu0 %v3336
  %5541 = vmatpush1.bf16.msra.mxu0 %v3335
  %5542 = vmatprep.subr.bf16.mxu0 %v3342
  %5543 = vmatpush1.bf16.msra.mxu0 %v3341
  %5544 = vmatprep.subr.bf16.mxu0 %v3348
  %5545 = vmatpush1.bf16.msra.mxu0 %v3347
  %5546 = vmatprep.subr.bf16.mxu0 %v3354
  %5547 = vmatpush1.bf16.msra.mxu0 %v3353
  %5548 = vmatprep.subr.bf16.mxu0 %v3360
  %5549 = vmatpush1.bf16.msra.mxu0 %v3359
  %5550 = vmatprep.mubr.bf16.mxu0 %v208
  %5551 = vmatmul.mubr.bf16.gmra.mrb[0].mxu0 %v207
  %v5552 = vpop.f32.mrb[0].mxu0
  %v5553 = vadd.f32 %v5460, %v5552
  %v5554 = vpop.f32.mrb[0].mxu0
  %v5555 = vadd.f32 %v5462, %v5554
  %v5556 = vpop.f32.mrb[0].mxu0
  %v5557 = vadd.f32 %v5464, %v5556
  %v5558 = vpop.f32.mrb[0].mxu0
  %v5559 = vadd.f32 %v5466, %v5558
  %5560 = vmatprep.mubr.bf16.mxu0 %v220
  %5561 = vmatmul.mubr.bf16.gmra.mrb[0].mxu0 %v219
  %v5562 = vpop.f32.mrb[0].mxu0
  %v5563 = vadd.f32 %v5470, %v5562
  %v5564 = vpop.f32.mrb[0].mxu0
  %v5565 = vadd.f32 %v5472, %v5564
  %v5566 = vpop.f32.mrb[0].mxu0
  %v5567 = vadd.f32 %v5474, %v5566
  %v5568 = vpop.f32.mrb[0].mxu0
  %v5569 = vadd.f32 %v5476, %v5568
  %5570 = vmatprep.mubr.bf16.mxu0 %v232
  %5571 = vmatmul.mubr.bf16.gmra.mrb[0].mxu0 %v231
  %v5572 = vpop.f32.mrb[0].mxu0
  %v5573 = vadd.f32 %v5480, %v5572
  %v5574 = vpop.f32.mrb[0].mxu0
  %v5575 = vadd.f32 %v5482, %v5574
  %v5576 = vpop.f32.mrb[0].mxu0
  %v5577 = vadd.f32 %v5484, %v5576
  %v5578 = vpop.f32.mrb[0].mxu0
  %v5579 = vadd.f32 %v5486, %v5578
  %5580 = vmatprep.mubr.bf16.mxu0 %v388
  %5581 = vmatmul.mubr.bf16.gmra.mrb[0].mxu0 %v387
  %v5582 = vpop.f32.mrb[0].mxu0
  %v5583 = vadd.f32 %v5490, %v5582
  %v5584 = vpop.f32.mrb[0].mxu0
  %v5585 = vadd.f32 %v5492, %v5584
  %v5586 = vpop.f32.mrb[0].mxu0
  %v5587 = vadd.f32 %v5494, %v5586
  %v5588 = vpop.f32.mrb[0].mxu0
  %v5589 = vadd.f32 %v5496, %v5588
  %5590 = vmatprep.mubr.bf16.mxu0 %v400
  %5591 = vmatmul.mubr.bf16.gmra.mrb[0].mxu0 %v399
  %v5592 = vpop.f32.mrb[0].mxu0
  %v5593 = vadd.f32 %v5500, %v5592
  %v5594 = vpop.f32.mrb[0].mxu0
  %v5595 = vadd.f32 %v5502, %v5594
  %v5596 = vpop.f32.mrb[0].mxu0
  %v5597 = vadd.f32 %v5504, %v5596
  %v5598 = vpop.f32.mrb[0].mxu0
  %v5599 = vadd.f32 %v5506, %v5598
  %5600 = vmatprep.mubr.bf16.mxu0 %v412
  %5601 = vmatmul.mubr.bf16.gmra.mrb[0].mxu0 %v411
  %v5602 = vpop.f32.mrb[0].mxu0
  %v5603 = vadd.f32 %v5510, %v5602
  %v5604 = vpop.f32.mrb[0].mxu0
  %v5605 = vadd.f32 %v5512, %v5604
  %v5606 = vpop.f32.mrb[0].mxu0
  %v5607 = vadd.f32 %v5514, %v5606
  %v5608 = vpop.f32.mrb[0].mxu0
  %v5609 = vadd.f32 %v5516, %v5608
  %5610 = vdwg.mxu0
  %v5611 = vmax.f32 %v4437, 0.0
  %v5612 = vmax.f32 %v4439, 0.0
  %v5613 = vmax.f32 %v4995, 0.0
  %v5614 = vmax.f32 %v4997, 0.0
  %v5615 = vmax.f32 %v5553, 0.0
  %v5616 = vmax.f32 %v5555, 0.0
  %v5617 = vmax.f32 %v4441, 0.0
  %v5618 = vmax.f32 %v4443, 0.0
  %v5619 = vmax.f32 %v4999, 0.0
  %v5620 = vmax.f32 %v5001, 0.0
  %v5621 = vmax.f32 %v5557, 0.0
  %v5622 = vmax.f32 %v5559, 0.0
  %v5623 = vmax.f32 %v4447, 0.0
  %v5624 = vmax.f32 %v4449, 0.0
  %v5625 = vmax.f32 %v5005, 0.0
  %v5626 = vmax.f32 %v5007, 0.0
  %v5627 = vmax.f32 %v5563, 0.0
  %v5628 = vmax.f32 %v5565, 0.0
  %v5629 = vmax.f32 %v4451, 0.0
  %v5630 = vmax.f32 %v4453, 0.0
  %v5631 = vmax.f32 %v5009, 0.0
  %v5632 = vmax.f32 %v5011, 0.0
  %v5633 = vmax.f32 %v5567, 0.0
  %v5634 = vmax.f32 %v5569, 0.0
  %v5635 = vmax.f32 %v4457, 0.0
  %v5636 = vmax.f32 %v4459, 0.0
  %v5637 = vmax.f32 %v5015, 0.0
  %v5638 = vmax.f32 %v5017, 0.0
  %v5639 = vmax.f32 %v5573, 0.0
  %v5640 = vmax.f32 %v5575, 0.0
  %v5641 = vmax.f32 %v4461, 0.0
  %v5642 = vmax.f32 %v4463, 0.0
  %v5643 = vmax.f32 %v5019, 0.0
  %v5644 = vmax.f32 %v5021, 0.0
  %v5645 = vmax.f32 %v5577, 0.0
  %v5646 = vmax.f32 %v5579, 0.0
  %v5647 = vmax.f32 %v4467, 0.0
  %v5648 = vmax.f32 %v4469, 0.0
  %v5649 = vmax.f32 %v5025, 0.0
  %v5650 = vmax.f32 %v5027, 0.0
  %v5651 = vmax.f32 %v5583, 0.0
  %v5652 = vmax.f32 %v5585, 0.0
  %v5653 = vmax.f32 %v4471, 0.0
  %v5654 = vmax.f32 %v4473, 0.0
  %v5655 = vmax.f32 %v5029, 0.0
  %v5656 = vmax.f32 %v5031, 0.0
  %v5657 = vmax.f32 %v5587, 0.0
  %v5658 = vmax.f32 %v5589, 0.0
  %v5659 = vmax.f32 %v4477, 0.0
  %v5660 = vmax.f32 %v4479, 0.0
  %v5661 = vmax.f32 %v5035, 0.0
  %v5662 = vmax.f32 %v5037, 0.0
  %v5663 = vmax.f32 %v5593, 0.0
  %v5664 = vmax.f32 %v5595, 0.0
  %v5665 = vmax.f32 %v4481, 0.0
  %v5666 = vmax.f32 %v4483, 0.0
  %v5667 = vmax.f32 %v5039, 0.0
  %v5668 = vmax.f32 %v5041, 0.0
  %v5669 = vmax.f32 %v5597, 0.0
  %v5670 = vmax.f32 %v5599, 0.0
  %v5671 = vmax.f32 %v4487, 0.0
  %v5672 = vmax.f32 %v4489, 0.0
  %v5673 = vmax.f32 %v5045, 0.0
  %v5674 = vmax.f32 %v5047, 0.0
  %v5675 = vmax.f32 %v5603, 0.0
  %v5676 = vmax.f32 %v5605, 0.0
  %v5677 = vmax.f32 %v4491, 0.0
  %v5678 = vmax.f32 %v4493, 0.0
  %v5679 = vmax.f32 %v5049, 0.0
  %v5680 = vmax.f32 %v5051, 0.0
  %v5681 = vmax.f32 %v5607, 0.0
  %v5682 = vmax.f32 %v5609, 0.0
  %v5683 = vmax.f32 %v5611, %v5614
  %v5684 = vmax.f32 %v5612, %v5615
  %v5685 = vmax.f32 %v5613, %v5616
  %v5686 = vmax.f32 %v5617, %v5620
  %v5687 = vmax.f32 %v5618, %v5621
  %v5688 = vmax.f32 %v5619, %v5622
  %v5689 = vmax.f32 %v5623, %v5626
  %v5690 = vmax.f32 %v5624, %v5627
  %v5691 = vmax.f32 %v5625, %v5628
  %v5692 = vmax.f32 %v5629, %v5632
  %v5693 = vmax.f32 %v5630, %v5633
  %v5694 = vmax.f32 %v5631, %v5634
  %v5695 = vmax.f32 %v5635, %v5638
  %v5696 = vmax.f32 %v5636, %v5639
  %v5697 = vmax.f32 %v5637, %v5640
  %v5698 = vmax.f32 %v5641, %v5644
  %v5699 = vmax.f32 %v5642, %v5645
  %v5700 = vmax.f32 %v5643, %v5646
  %v5701 = vmax.f32 %v5647, %v5650
  %v5702 = vmax.f32 %v5648, %v5651
  %v5703 = vmax.f32 %v5649, %v5652
  %v5704 = vmax.f32 %v5653, %v5656
  %v5705 = vmax.f32 %v5654, %v5657
  %v5706 = vmax.f32 %v5655, %v5658
  %v5707 = vmax.f32 %v5659, %v5662
  %v5708 = vmax.f32 %v5660, %v5663
  %v5709 = vmax.f32 %v5661, %v5664
  %v5710 = vmax.f32 %v5665, %v5668
  %v5711 = vmax.f32 %v5666, %v5669
  %v5712 = vmax.f32 %v5667, %v5670
  %v5713 = vmax.f32 %v5671, %v5674
  %v5714 = vmax.f32 %v5672, %v5675
  %v5715 = vmax.f32 %v5673, %v5676
  %v5716 = vmax.f32 %v5677, %v5680
  %v5717 = vmax.f32 %v5678, %v5681
  %v5718 = vmax.f32 %v5679, %v5682
  %v5719 = vmax.f32 %v5683, %v5701
  %v5720 = vmax.f32 %v5684, %v5702
  %v5721 = vmax.f32 %v5685, %v5703
  %v5722 = vmax.f32 %v5686, %v5704
  %v5723 = vmax.f32 %v5687, %v5705
  %v5724 = vmax.f32 %v5688, %v5706
  %v5725 = vmax.f32 %v5689, %v5707
  %v5726 = vmax.f32 %v5690, %v5708
  %v5727 = vmax.f32 %v5691, %v5709
  %v5728 = vmax.f32 %v5692, %v5710
  %v5729 = vmax.f32 %v5693, %v5711
  %v5730 = vmax.f32 %v5694, %v5712
  %v5731 = vmax.f32 %v5695, %v5713
  %v5732 = vmax.f32 %v5696, %v5714
  %v5733 = vmax.f32 %v5697, %v5715
  %v5734 = vmax.f32 %v5698, %v5716
  %v5735 = vmax.f32 %v5699, %v5717
  %v5736 = vmax.f32 %v5700, %v5718
  %v5737 = vpack.c.bf16 %v5722, %v5719
  %v5738 = vpack.c.bf16 %v5723, %v5720
  %v5739 = vpack.c.bf16 %v5724, %v5721
  %v5740 = vpack.c.bf16 %v5728, %v5725
  %v5741 = vpack.c.bf16 %v5729, %v5726
  %v5742 = vpack.c.bf16 %v5730, %v5727
  %v5743 = vpack.c.bf16 %v5734, %v5731
  %v5744 = vpack.c.bf16 %v5735, %v5732
  %v5745 = vpack.c.bf16 %v5736, %v5733
  %v5755 = vunpack.c.l.b16 %v5737
  %v5756 = vunpack.c.l.b16 %v5738
  %v5757 = vunpack.c.l.b16 %v5739
  %v5758 = vunpack.c.h.b16 %v5737
  %v5759 = vunpack.c.h.b16 %v5738
  %v5760 = vunpack.c.h.b16 %v5739
  %v5761 = vunpack.c.l.b16 %v5740
  %v5762 = vunpack.c.l.b16 %v5741
  %v5763 = vunpack.c.l.b16 %v5742
  %v5764 = vunpack.c.h.b16 %v5740
  %v5765 = vunpack.c.h.b16 %v5741
  %v5766 = vunpack.c.h.b16 %v5742
  %v5767 = vunpack.c.l.b16 %v5743
  %v5768 = vunpack.c.l.b16 %v5744
  %v5769 = vunpack.c.l.b16 %v5745
  %v5770 = vunpack.c.h.b16 %v5743
  %v5771 = vunpack.c.h.b16 %v5744
  %v5772 = vunpack.c.h.b16 %v5745
  %v5773 = vpack.c.b16 %v5756, %v5755
  %v5774 = vpack.c.b16 %v5757, %v5757
  %v5775 = vpack.c.b16 %v5759, %v5758
  %v5776 = vpack.c.b16 %v5760, %v5760
  %v5777 = vpack.c.b16 %v5762, %v5761
  %v5778 = vpack.c.b16 %v5763, %v5763
  %v5779 = vpack.c.b16 %v5765, %v5764
  %v5780 = vpack.c.b16 %v5766, %v5766
  %v5781 = vpack.c.b16 %v5768, %v5767
  %v5782 = vpack.c.b16 %v5769, %v5769
  %v5783 = vpack.c.b16 %v5771, %v5770
  %v5784 = vpack.c.b16 %v5772, %v5772
  %5797 = vst [vmem:[%s4] sm:$0xff] %v5773
  %5798 = vst [vmem:[%s4 + $0x8] sm:$0xf] %v5774
  %5799 = vst [vmem:[%s4 + $0xc] sm:$0xff] %v5775
  %5800 = vst [vmem:[%s4 + $0x14] sm:$0xf] %v5776
  %5801 = vst [vmem:[%s4 + $0x18] sm:$0xff] %v5777
  %5802 = vst [vmem:[%s4 + $0x20] sm:$0xf] %v5778
  %5803 = vst [vmem:[%s4 + $0x24] sm:$0xff] %v5779
  %5804 = vst [vmem:[%s4 + $0x2c] sm:$0xf] %v5780
  %5805 = vst [vmem:[%s4 + $0x30] sm:$0xff] %v5781
  %5806 = vst [vmem:[%s4 + $0x38] sm:$0xf] %v5782
  %5807 = vst [vmem:[%s4 + $0x3c] sm:$0xff] %v5783
  %5808 = vst [vmem:[%s4 + $0x44] sm:$0xf] %v5784
  // Predicated region
  $region18: #{cnn_forward.4} parent=0 // pred_check
    _
  $region19: #{cnn_forward.4} parent=0 // pred_check_branch
    %5810 = sbr.rel (0) target = $region21
  $region20: #{cnn_forward.4} parent=0 // pred_region
    _
  $region21: #{cnn_forward.4} parent=0 // pred_fallthru
    _
  // Predicated region
  $region22: #{cnn_forward.4} parent=0 // pred_check
    _
  $region23: #{cnn_forward.4} parent=0 // pred_check_branch
    %5812 = sbr.rel (0) target = $region25
  $region24: #{cnn_forward.4} parent=0 // pred_region
    _
  $region25: #{cnn_forward.4} parent=0 // pred_fallthru
    _

</llo_original>
